<compile_context>
chip_gen: v7x
topology: tpu7x:2x2x1
jax: 0.10.0
libtpu: 0.0.40
codegen_flags: <defaults>
</compile_context>

<pallas_src>
import functools

import jax
import jax.numpy as jnp
from jax.experimental import pallas as pl
from jax.experimental.pallas import tpu as pltpu

BN_EPS = 1e-5
LEAKY_SLOPE = 0.1


# ------------------------- shared forward math (f32/bf16) --------------------
# These helpers take plain arrays, so the Pallas kernel and the pure-JAX
# reference run byte-for-byte the same expression graph.

def _leaky_relu(h):
    return jnp.where(h > 0, h, LEAKY_SLOPE * h)


def _batchnorm_train(h, gamma, beta):
    # Training-mode BatchNorm1d over the batch axis (biased variance), f32.
    mean = jnp.mean(h, axis=0, keepdims=True)
    var = jnp.mean((h - mean) * (h - mean), axis=0, keepdims=True)
    return (h - mean) * jax.lax.rsqrt(var + BN_EPS) * gamma + beta


def _linear_bf16(h, w_bf16, b_f32):
    # bf16 matmul inputs, f32 accumulation, f32 bias add.
    return jnp.dot(h.astype(jnp.bfloat16), w_bf16,
                   preferred_element_type=jnp.float32) + b_f32


def _trunk(h, c_bf16, w1a, w1b, b1, g1, be1, w2, b2, g2, be2, w3, b3, g3, be3):
    # First layer: split matmul over the (virtual) concat axis — no xc/zc
    # materialization, c stays resident once for both trunks.
    h1 = (jnp.dot(h.astype(jnp.bfloat16), w1a, preferred_element_type=jnp.float32)
          + jnp.dot(c_bf16, w1b, preferred_element_type=jnp.float32)
          + b1)
    h1 = _batchnorm_train(_leaky_relu(h1), g1, be1)
    h2 = _batchnorm_train(_leaky_relu(_linear_bf16(h1, w2, b2)), g2, be2)
    h3 = _batchnorm_train(_leaky_relu(_linear_bf16(h2, w3, b3)), g3, be3)
    return h3


def _cvae_math(x, c, eps, enc, dec, latent_size):
    (ew1x, ew1c, eb1, eg1, ebe1,
     ew2, eb2, eg2, ebe2,
     ew3, eb3, eg3, ebe3,
     wh, bh) = enc
    (dw1z, dw1c, db1, dg1, dbe1,
     dw2, db2, dg2, dbe2,
     dw3, db3, dg3, dbe3,
     wout, bout) = dec

    c_bf = c.astype(jnp.bfloat16)

    # ---- encoder ----
    h = _trunk(x, c_bf, ew1x, ew1c, eb1, eg1, ebe1,
               ew2, eb2, eg2, ebe2, ew3, eb3, eg3, ebe3)
    heads = _linear_bf16(h, wh, bh)            # merged mu||logvar head, 1 MXU pass
    mu = heads[:, :latent_size]
    logvar = heads[:, latent_size:]

    # ---- reparameterization (f32 VPU/EUP math) ----
    z = mu + eps * jnp.exp(0.5 * logvar)

    # ---- decoder ----
    h = _trunk(z, c_bf, dw1z, dw1c, db1, dg1, dbe1,
               dw2, db2, dg2, dbe2, dw3, db3, dg3, dbe3)
    x_hat = _linear_bf16(h, wout, bout)
    return heads, x_hat


# --------------------------------- kernel ------------------------------------

_N_ENC = 15
_N_DEC = 15


def cvae_kernel(latent_size, x_ref, c_ref, eps_ref, *refs):
    enc = tuple(r[...] for r in refs[:_N_ENC])
    dec = tuple(r[...] for r in refs[_N_ENC:_N_ENC + _N_DEC])
    heads_ref = refs[_N_ENC + _N_DEC]
    xhat_ref = refs[_N_ENC + _N_DEC + 1]

    heads, x_hat = _cvae_math(x_ref[...], c_ref[...], eps_ref[...],
                              enc, dec, latent_size)
    heads_ref[...] = heads
    xhat_ref[...] = x_hat


def _vmem_spec():
    return pl.BlockSpec(memory_space=pltpu.MemorySpace.VMEM)


@functools.partial(jax.jit, static_argnames=("input_size", "latent_size"))
def cvae_forward(x, c, eps, enc_params, dec_params, *, input_size, latent_size):
    b = x.shape[0]
    n_in = 3 + len(enc_params) + len(dec_params)
    heads, x_hat = pl.pallas_call(
        functools.partial(cvae_kernel, latent_size),
        out_shape=(
            jax.ShapeDtypeStruct((b, 2 * latent_size), jnp.float32),  # mu||logvar
            jax.ShapeDtypeStruct((b, input_size), jnp.float32),       # x_hat
        ),
        in_specs=[_vmem_spec() for _ in range(n_in)],
        out_specs=(_vmem_spec(), _vmem_spec()),
        compiler_params=pltpu.CompilerParams(
            vmem_limit_bytes=32 * 1024 * 1024),
    )(x, c, eps, *enc_params, *dec_params)
    mu = heads[:, :latent_size]
    logvar = heads[:, latent_size:]
    return x_hat, mu, logvar


# ----------------------------- parameter init --------------------------------

def _init_linear(key, fan_in, fan_out):
    # PyTorch nn.Linear default: U(-1/sqrt(fan_in), 1/sqrt(fan_in)).
    kw, kb = jax.random.split(key)
    bound = 1.0 / jnp.sqrt(jnp.float32(fan_in))
    w = jax.random.uniform(kw, (fan_in, fan_out), jnp.float32, -bound, bound)
    b = jax.random.uniform(kb, (1, fan_out), jnp.float32, -bound, bound)
    return w, b


def _init_bn(dim):
    # PyTorch BatchNorm1d default: weight=1, bias=0.
    return jnp.ones((1, dim), jnp.float32), jnp.zeros((1, dim), jnp.float32)


def init_cvae_params(key, input_size, latent_size, condition_size):
    bf16 = jnp.bfloat16
    keys = jax.random.split(key, 9)

    # ---- encoder ----
    ew1, eb1 = _init_linear(keys[0], input_size + condition_size, 1028)
    ew1x, ew1c = ew1[:input_size].astype(bf16), ew1[input_size:].astype(bf16)
    eg1, ebe1 = _init_bn(1028)
    ew2, eb2 = _init_linear(keys[1], 1028, 512)
    eg2, ebe2 = _init_bn(512)
    ew3, eb3 = _init_linear(keys[2], 512, 128)
    eg3, ebe3 = _init_bn(128)
    wmu, bmu = _init_linear(keys[3], 128, latent_size)
    wvar, bvar = _init_linear(keys[4], 128, latent_size)
    # merged mu||logvar head: one [128, 2L] weight, one bias.
    wh = jnp.concatenate([wmu, wvar], axis=1).astype(bf16)
    bh = jnp.concatenate([bmu, bvar], axis=1)
    enc = (ew1x, ew1c, eb1, eg1, ebe1,
           ew2.astype(bf16), eb2, eg2, ebe2,
           ew3.astype(bf16), eb3, eg3, ebe3,
           wh, bh)

    # ---- decoder ----
    dw1, db1 = _init_linear(keys[5], latent_size + condition_size, 1028)
    dw1z, dw1c = dw1[:latent_size].astype(bf16), dw1[latent_size:].astype(bf16)
    dg1, dbe1 = _init_bn(1028)
    dw2, db2 = _init_linear(keys[6], 1028, 512)
    dg2, dbe2 = _init_bn(512)
    dw3, db3 = _init_linear(keys[7], 512, 128)
    dg3, dbe3 = _init_bn(128)
    wout, bout = _init_linear(keys[8], 128, input_size)
    dec = (dw1z, dw1c, db1, dg1, dbe1,
           dw2.astype(bf16), db2, dg2, dbe2,
           dw3.astype(bf16), db3, dg3, dbe3,
           wout.astype(bf16), bout)
    return enc, dec


# ----------------------------- pure-JAX reference ----------------------------

def cvae_forward_ref(x, c, eps, enc_params, dec_params, latent_size):
    heads, x_hat = _cvae_math(x, c, eps, enc_params, dec_params, latent_size)
    return x_hat, heads[:, :latent_size], heads[:, latent_size:]


# ----------------------------------- main ------------------------------------

if __name__ == "__main__":
    input_size = 16
    latent_size = 8
    condition_size = 4
    batch = 8

    key = jax.random.PRNGKey(0)
    k_x, k_c, k_eps, k_params = jax.random.split(key, 4)

    x = jax.random.normal(k_x, (batch, input_size), jnp.float32)
    c = jax.random.normal(k_c, (batch, condition_size), jnp.float32)
    # TODO(synk): eps could be generated in-kernel with pltpu.prng_seed +
    # pltpu.stateful_normal; kept as an input here for deterministic checking.
    eps = jax.random.normal(k_eps, (batch, latent_size), jnp.float32)

    enc_params, dec_params = init_cvae_params(
        k_params, input_size, latent_size, condition_size)

    x_hat, mu, logvar = cvae_forward(
        x, c, eps, enc_params, dec_params,
        input_size=input_size, latent_size=latent_size)
    jax.block_until_ready((x_hat, mu, logvar))

    # correctness check against a pure-JAX reference of the same math
    x_hat_r, mu_r, logvar_r = cvae_forward_ref(
        x, c, eps, enc_params, dec_params, latent_size)
    assert x_hat.shape == (batch, input_size)
    assert mu.shape == (batch, latent_size) and logvar.shape == (batch, latent_size)
    assert jnp.allclose(x_hat, x_hat_r, atol=5e-3, rtol=5e-3)
    assert jnp.allclose(mu, mu_r, atol=5e-3, rtol=5e-3)
    assert jnp.allclose(logvar, logvar_r, atol=5e-3, rtol=5e-3)

    print("KERNEL_OK")
</pallas_src>

<mosaic_0001>
module attributes {stable_mosaic.version = 11 : i64} {
  func.func @cvae_kernel(%arg0: memref<8x16xf32, #tpu.memory_space<vmem>>, %arg1: memref<8x4xf32, #tpu.memory_space<vmem>>, %arg2: memref<8x8xf32, #tpu.memory_space<vmem>>, %arg3: memref<16x1028xbf16, #tpu.memory_space<vmem>>, %arg4: memref<4x1028xbf16, #tpu.memory_space<vmem>>, %arg5: memref<1x1028xf32, #tpu.memory_space<vmem>>, %arg6: memref<1x1028xf32, #tpu.memory_space<vmem>>, %arg7: memref<1x1028xf32, #tpu.memory_space<vmem>>, %arg8: memref<1028x512xbf16, #tpu.memory_space<vmem>>, %arg9: memref<1x512xf32, #tpu.memory_space<vmem>>, %arg10: memref<1x512xf32, #tpu.memory_space<vmem>>, %arg11: memref<1x512xf32, #tpu.memory_space<vmem>>, %arg12: memref<512x128xbf16, #tpu.memory_space<vmem>>, %arg13: memref<1x128xf32, #tpu.memory_space<vmem>>, %arg14: memref<1x128xf32, #tpu.memory_space<vmem>>, %arg15: memref<1x128xf32, #tpu.memory_space<vmem>>, %arg16: memref<128x16xbf16, #tpu.memory_space<vmem>>, %arg17: memref<1x16xf32, #tpu.memory_space<vmem>>, %arg18: memref<8x1028xbf16, #tpu.memory_space<vmem>>, %arg19: memref<4x1028xbf16, #tpu.memory_space<vmem>>, %arg20: memref<1x1028xf32, #tpu.memory_space<vmem>>, %arg21: memref<1x1028xf32, #tpu.memory_space<vmem>>, %arg22: memref<1x1028xf32, #tpu.memory_space<vmem>>, %arg23: memref<1028x512xbf16, #tpu.memory_space<vmem>>, %arg24: memref<1x512xf32, #tpu.memory_space<vmem>>, %arg25: memref<1x512xf32, #tpu.memory_space<vmem>>, %arg26: memref<1x512xf32, #tpu.memory_space<vmem>>, %arg27: memref<512x128xbf16, #tpu.memory_space<vmem>>, %arg28: memref<1x128xf32, #tpu.memory_space<vmem>>, %arg29: memref<1x128xf32, #tpu.memory_space<vmem>>, %arg30: memref<1x128xf32, #tpu.memory_space<vmem>>, %arg31: memref<128x16xbf16, #tpu.memory_space<vmem>>, %arg32: memref<1x16xf32, #tpu.memory_space<vmem>>, %arg33: memref<8x16xf32, #tpu.memory_space<vmem>>, %arg34: memref<8x16xf32, #tpu.memory_space<vmem>>) attributes {dimension_semantics = [], scalar_prefetch = 0 : i64, scratch_operands = 0 : i64, tpu.core_type = #tpu.core_type<tc>} {
    %c0 = arith.constant 0 : index
    %c0_0 = arith.constant 0 : index
    %0 = vector.load %arg3[%c0, %c0_0] : memref<16x1028xbf16, #tpu.memory_space<vmem>>, vector<16x1028xbf16>
    %c0_1 = arith.constant 0 : index
    %c0_2 = arith.constant 0 : index
    %1 = vector.load %arg4[%c0_1, %c0_2] : memref<4x1028xbf16, #tpu.memory_space<vmem>>, vector<4x1028xbf16>
    %c0_3 = arith.constant 0 : index
    %c0_4 = arith.constant 0 : index
    %2 = vector.load %arg5[%c0_3, %c0_4] : memref<1x1028xf32, #tpu.memory_space<vmem>>, vector<1x1028xf32>
    %c0_5 = arith.constant 0 : index
    %c0_6 = arith.constant 0 : index
    %3 = vector.load %arg6[%c0_5, %c0_6] : memref<1x1028xf32, #tpu.memory_space<vmem>>, vector<1x1028xf32>
    %c0_7 = arith.constant 0 : index
    %c0_8 = arith.constant 0 : index
    %4 = vector.load %arg7[%c0_7, %c0_8] : memref<1x1028xf32, #tpu.memory_space<vmem>>, vector<1x1028xf32>
    %c0_9 = arith.constant 0 : index
    %c0_10 = arith.constant 0 : index
    %5 = vector.load %arg8[%c0_9, %c0_10] : memref<1028x512xbf16, #tpu.memory_space<vmem>>, vector<1028x512xbf16>
    %c0_11 = arith.constant 0 : index
    %c0_12 = arith.constant 0 : index
    %6 = vector.load %arg9[%c0_11, %c0_12] : memref<1x512xf32, #tpu.memory_space<vmem>>, vector<1x512xf32>
    %c0_13 = arith.constant 0 : index
    %c0_14 = arith.constant 0 : index
    %7 = vector.load %arg10[%c0_13, %c0_14] : memref<1x512xf32, #tpu.memory_space<vmem>>, vector<1x512xf32>
    %c0_15 = arith.constant 0 : index
    %c0_16 = arith.constant 0 : index
    %8 = vector.load %arg11[%c0_15, %c0_16] : memref<1x512xf32, #tpu.memory_space<vmem>>, vector<1x512xf32>
    %c0_17 = arith.constant 0 : index
    %c0_18 = arith.constant 0 : index
    %9 = vector.load %arg12[%c0_17, %c0_18] : memref<512x128xbf16, #tpu.memory_space<vmem>>, vector<512x128xbf16>
    %c0_19 = arith.constant 0 : index
    %c0_20 = arith.constant 0 : index
    %10 = vector.load %arg13[%c0_19, %c0_20] : memref<1x128xf32, #tpu.memory_space<vmem>>, vector<1x128xf32>
    %c0_21 = arith.constant 0 : index
    %c0_22 = arith.constant 0 : index
    %11 = vector.load %arg14[%c0_21, %c0_22] : memref<1x128xf32, #tpu.memory_space<vmem>>, vector<1x128xf32>
    %c0_23 = arith.constant 0 : index
    %c0_24 = arith.constant 0 : index
    %12 = vector.load %arg15[%c0_23, %c0_24] : memref<1x128xf32, #tpu.memory_space<vmem>>, vector<1x128xf32>
    %c0_25 = arith.constant 0 : index
    %c0_26 = arith.constant 0 : index
    %13 = vector.load %arg16[%c0_25, %c0_26] : memref<128x16xbf16, #tpu.memory_space<vmem>>, vector<128x16xbf16>
    %c0_27 = arith.constant 0 : index
    %c0_28 = arith.constant 0 : index
    %14 = vector.load %arg17[%c0_27, %c0_28] : memref<1x16xf32, #tpu.memory_space<vmem>>, vector<1x16xf32>
    %c0_29 = arith.constant 0 : index
    %c0_30 = arith.constant 0 : index
    %15 = vector.load %arg18[%c0_29, %c0_30] : memref<8x1028xbf16, #tpu.memory_space<vmem>>, vector<8x1028xbf16>
    %c0_31 = arith.constant 0 : index
    %c0_32 = arith.constant 0 : index
    %16 = vector.load %arg19[%c0_31, %c0_32] : memref<4x1028xbf16, #tpu.memory_space<vmem>>, vector<4x1028xbf16>
    %c0_33 = arith.constant 0 : index
    %c0_34 = arith.constant 0 : index
    %17 = vector.load %arg20[%c0_33, %c0_34] : memref<1x1028xf32, #tpu.memory_space<vmem>>, vector<1x1028xf32>
    %c0_35 = arith.constant 0 : index
    %c0_36 = arith.constant 0 : index
    %18 = vector.load %arg21[%c0_35, %c0_36] : memref<1x1028xf32, #tpu.memory_space<vmem>>, vector<1x1028xf32>
    %c0_37 = arith.constant 0 : index
    %c0_38 = arith.constant 0 : index
    %19 = vector.load %arg22[%c0_37, %c0_38] : memref<1x1028xf32, #tpu.memory_space<vmem>>, vector<1x1028xf32>
    %c0_39 = arith.constant 0 : index
    %c0_40 = arith.constant 0 : index
    %20 = vector.load %arg23[%c0_39, %c0_40] : memref<1028x512xbf16, #tpu.memory_space<vmem>>, vector<1028x512xbf16>
    %c0_41 = arith.constant 0 : index
    %c0_42 = arith.constant 0 : index
    %21 = vector.load %arg24[%c0_41, %c0_42] : memref<1x512xf32, #tpu.memory_space<vmem>>, vector<1x512xf32>
    %c0_43 = arith.constant 0 : index
    %c0_44 = arith.constant 0 : index
    %22 = vector.load %arg25[%c0_43, %c0_44] : memref<1x512xf32, #tpu.memory_space<vmem>>, vector<1x512xf32>
    %c0_45 = arith.constant 0 : index
    %c0_46 = arith.constant 0 : index
    %23 = vector.load %arg26[%c0_45, %c0_46] : memref<1x512xf32, #tpu.memory_space<vmem>>, vector<1x512xf32>
    %c0_47 = arith.constant 0 : index
    %c0_48 = arith.constant 0 : index
    %24 = vector.load %arg27[%c0_47, %c0_48] : memref<512x128xbf16, #tpu.memory_space<vmem>>, vector<512x128xbf16>
    %c0_49 = arith.constant 0 : index
    %c0_50 = arith.constant 0 : index
    %25 = vector.load %arg28[%c0_49, %c0_50] : memref<1x128xf32, #tpu.memory_space<vmem>>, vector<1x128xf32>
    %c0_51 = arith.constant 0 : index
    %c0_52 = arith.constant 0 : index
    %26 = vector.load %arg29[%c0_51, %c0_52] : memref<1x128xf32, #tpu.memory_space<vmem>>, vector<1x128xf32>
    %c0_53 = arith.constant 0 : index
    %c0_54 = arith.constant 0 : index
    %27 = vector.load %arg30[%c0_53, %c0_54] : memref<1x128xf32, #tpu.memory_space<vmem>>, vector<1x128xf32>
    %c0_55 = arith.constant 0 : index
    %c0_56 = arith.constant 0 : index
    %28 = vector.load %arg31[%c0_55, %c0_56] : memref<128x16xbf16, #tpu.memory_space<vmem>>, vector<128x16xbf16>
    %c0_57 = arith.constant 0 : index
    %c0_58 = arith.constant 0 : index
    %29 = vector.load %arg32[%c0_57, %c0_58] : memref<1x16xf32, #tpu.memory_space<vmem>>, vector<1x16xf32>
    %c0_59 = arith.constant 0 : index
    %c0_60 = arith.constant 0 : index
    %30 = vector.load %arg0[%c0_59, %c0_60] : memref<8x16xf32, #tpu.memory_space<vmem>>, vector<8x16xf32>
    %c0_61 = arith.constant 0 : index
    %c0_62 = arith.constant 0 : index
    %31 = vector.load %arg1[%c0_61, %c0_62] : memref<8x4xf32, #tpu.memory_space<vmem>>, vector<8x4xf32>
    %c0_63 = arith.constant 0 : index
    %c0_64 = arith.constant 0 : index
    %32 = vector.load %arg2[%c0_63, %c0_64] : memref<8x8xf32, #tpu.memory_space<vmem>>, vector<8x8xf32>
    %33 = arith.truncf %31 : vector<8x4xf32> to vector<8x4xbf16>
    %34 = arith.truncf %30 : vector<8x16xf32> to vector<8x16xbf16>
    %cst = arith.constant dense<0.000000e+00> : vector<8x1028xf32>
    %35 = tpu.matmul %34, %0, %cst {dimension_numbers = #tpu.dot_dimension_numbers<[1], [0], [0], [1], [0, 0, 1, 1], [], []>} : vector<8x16xbf16>, vector<16x1028xbf16>, vector<8x1028xf32> -> vector<8x1028xf32>
    %cst_65 = arith.constant dense<0.000000e+00> : vector<8x1028xf32>
    %36 = tpu.matmul %33, %1, %cst_65 {dimension_numbers = #tpu.dot_dimension_numbers<[1], [0], [0], [1], [0, 0, 1, 1], [], []>} : vector<8x4xbf16>, vector<4x1028xbf16>, vector<8x1028xf32> -> vector<8x1028xf32>
    %37 = arith.addf %35, %36 : vector<8x1028xf32>
    %38 = vector.broadcast %2 : vector<1x1028xf32> to vector<8x1028xf32>
    %39 = arith.addf %37, %38 : vector<8x1028xf32>
    %cst_66 = arith.constant 0.000000e+00 : f32
    %40 = vector.broadcast %cst_66 : f32 to vector<8x1028xf32>
    %41 = arith.cmpf ogt, %39, %40 : vector<8x1028xf32>
    %cst_67 = arith.constant 1.000000e-01 : f32
    %42 = vector.broadcast %cst_67 : f32 to vector<8x1028xf32>
    %43 = arith.mulf %42, %39 : vector<8x1028xf32>
    %44 = arith.select %41, %39, %43 : vector<8x1028xi1>, vector<8x1028xf32>
    %cst_68 = arith.constant dense<0.000000e+00> : vector<1028xf32>
    %45 = vector.multi_reduction <add>, %44, %cst_68 [0] : vector<8x1028xf32> to vector<1028xf32>
    %46 = vector.shape_cast %45 : vector<1028xf32> to vector<1x1028xf32>
    %cst_69 = arith.constant 8.000000e+00 : f32
    %47 = vector.broadcast %cst_69 : f32 to vector<1x1028xf32>
    %48 = arith.divf %46, %47 : vector<1x1028xf32>
    %49 = vector.broadcast %48 : vector<1x1028xf32> to vector<8x1028xf32>
    %50 = arith.subf %44, %49 : vector<8x1028xf32>
    %51 = vector.broadcast %48 : vector<1x1028xf32> to vector<8x1028xf32>
    %52 = arith.subf %44, %51 : vector<8x1028xf32>
    %53 = arith.mulf %50, %52 : vector<8x1028xf32>
    %cst_70 = arith.constant dense<0.000000e+00> : vector<1028xf32>
    %54 = vector.multi_reduction <add>, %53, %cst_70 [0] : vector<8x1028xf32> to vector<1028xf32>
    %55 = vector.shape_cast %54 : vector<1028xf32> to vector<1x1028xf32>
    %cst_71 = arith.constant 8.000000e+00 : f32
    %56 = vector.broadcast %cst_71 : f32 to vector<1x1028xf32>
    %57 = arith.divf %55, %56 : vector<1x1028xf32>
    %58 = vector.broadcast %48 : vector<1x1028xf32> to vector<8x1028xf32>
    %59 = arith.subf %44, %58 : vector<8x1028xf32>
    %cst_72 = arith.constant 9.99999974E-6 : f32
    %60 = vector.broadcast %cst_72 : f32 to vector<1x1028xf32>
    %61 = arith.addf %57, %60 : vector<1x1028xf32>
    %62 = math.rsqrt %61 : vector<1x1028xf32>
    %63 = vector.broadcast %62 : vector<1x1028xf32> to vector<8x1028xf32>
    %64 = arith.mulf %59, %63 : vector<8x1028xf32>
    %65 = vector.broadcast %3 : vector<1x1028xf32> to vector<8x1028xf32>
    %66 = arith.mulf %64, %65 : vector<8x1028xf32>
    %67 = vector.broadcast %4 : vector<1x1028xf32> to vector<8x1028xf32>
    %68 = arith.addf %66, %67 : vector<8x1028xf32>
    %69 = arith.truncf %68 : vector<8x1028xf32> to vector<8x1028xbf16>
    %cst_73 = arith.constant dense<0.000000e+00> : vector<8x512xf32>
    %70 = tpu.matmul %69, %5, %cst_73 {dimension_numbers = #tpu.dot_dimension_numbers<[1], [0], [0], [1], [0, 0, 1, 1], [], []>} : vector<8x1028xbf16>, vector<1028x512xbf16>, vector<8x512xf32> -> vector<8x512xf32>
    %71 = vector.broadcast %6 : vector<1x512xf32> to vector<8x512xf32>
    %72 = arith.addf %70, %71 : vector<8x512xf32>
    %cst_74 = arith.constant 0.000000e+00 : f32
    %73 = vector.broadcast %cst_74 : f32 to vector<8x512xf32>
    %74 = arith.cmpf ogt, %72, %73 : vector<8x512xf32>
    %cst_75 = arith.constant 1.000000e-01 : f32
    %75 = vector.broadcast %cst_75 : f32 to vector<8x512xf32>
    %76 = arith.mulf %75, %72 : vector<8x512xf32>
    %77 = arith.select %74, %72, %76 : vector<8x512xi1>, vector<8x512xf32>
    %cst_76 = arith.constant dense<0.000000e+00> : vector<512xf32>
    %78 = vector.multi_reduction <add>, %77, %cst_76 [0] : vector<8x512xf32> to vector<512xf32>
    %79 = vector.shape_cast %78 : vector<512xf32> to vector<1x512xf32>
    %cst_77 = arith.constant 8.000000e+00 : f32
    %80 = vector.broadcast %cst_77 : f32 to vector<1x512xf32>
    %81 = arith.divf %79, %80 : vector<1x512xf32>
    %82 = vector.broadcast %81 : vector<1x512xf32> to vector<8x512xf32>
    %83 = arith.subf %77, %82 : vector<8x512xf32>
    %84 = vector.broadcast %81 : vector<1x512xf32> to vector<8x512xf32>
    %85 = arith.subf %77, %84 : vector<8x512xf32>
    %86 = arith.mulf %83, %85 : vector<8x512xf32>
    %cst_78 = arith.constant dense<0.000000e+00> : vector<512xf32>
    %87 = vector.multi_reduction <add>, %86, %cst_78 [0] : vector<8x512xf32> to vector<512xf32>
    %88 = vector.shape_cast %87 : vector<512xf32> to vector<1x512xf32>
    %cst_79 = arith.constant 8.000000e+00 : f32
    %89 = vector.broadcast %cst_79 : f32 to vector<1x512xf32>
    %90 = arith.divf %88, %89 : vector<1x512xf32>
    %91 = vector.broadcast %81 : vector<1x512xf32> to vector<8x512xf32>
    %92 = arith.subf %77, %91 : vector<8x512xf32>
    %cst_80 = arith.constant 9.99999974E-6 : f32
    %93 = vector.broadcast %cst_80 : f32 to vector<1x512xf32>
    %94 = arith.addf %90, %93 : vector<1x512xf32>
    %95 = math.rsqrt %94 : vector<1x512xf32>
    %96 = vector.broadcast %95 : vector<1x512xf32> to vector<8x512xf32>
    %97 = arith.mulf %92, %96 : vector<8x512xf32>
    %98 = vector.broadcast %7 : vector<1x512xf32> to vector<8x512xf32>
    %99 = arith.mulf %97, %98 : vector<8x512xf32>
    %100 = vector.broadcast %8 : vector<1x512xf32> to vector<8x512xf32>
    %101 = arith.addf %99, %100 : vector<8x512xf32>
    %102 = arith.truncf %101 : vector<8x512xf32> to vector<8x512xbf16>
    %cst_81 = arith.constant dense<0.000000e+00> : vector<8x128xf32>
    %103 = tpu.matmul %102, %9, %cst_81 {dimension_numbers = #tpu.dot_dimension_numbers<[1], [0], [0], [1], [0, 0, 1, 1], [], []>} : vector<8x512xbf16>, vector<512x128xbf16>, vector<8x128xf32> -> vector<8x128xf32>
    %104 = vector.broadcast %10 : vector<1x128xf32> to vector<8x128xf32>
    %105 = arith.addf %103, %104 : vector<8x128xf32>
    %cst_82 = arith.constant 0.000000e+00 : f32
    %106 = vector.broadcast %cst_82 : f32 to vector<8x128xf32>
    %107 = arith.cmpf ogt, %105, %106 : vector<8x128xf32>
    %cst_83 = arith.constant 1.000000e-01 : f32
    %108 = vector.broadcast %cst_83 : f32 to vector<8x128xf32>
    %109 = arith.mulf %108, %105 : vector<8x128xf32>
    %110 = arith.select %107, %105, %109 : vector<8x128xi1>, vector<8x128xf32>
    %cst_84 = arith.constant dense<0.000000e+00> : vector<128xf32>
    %111 = vector.multi_reduction <add>, %110, %cst_84 [0] : vector<8x128xf32> to vector<128xf32>
    %112 = vector.shape_cast %111 : vector<128xf32> to vector<1x128xf32>
    %cst_85 = arith.constant 8.000000e+00 : f32
    %113 = vector.broadcast %cst_85 : f32 to vector<1x128xf32>
    %114 = arith.divf %112, %113 : vector<1x128xf32>
    %115 = vector.broadcast %114 : vector<1x128xf32> to vector<8x128xf32>
    %116 = arith.subf %110, %115 : vector<8x128xf32>
    %117 = vector.broadcast %114 : vector<1x128xf32> to vector<8x128xf32>
    %118 = arith.subf %110, %117 : vector<8x128xf32>
    %119 = arith.mulf %116, %118 : vector<8x128xf32>
    %cst_86 = arith.constant dense<0.000000e+00> : vector<128xf32>
    %120 = vector.multi_reduction <add>, %119, %cst_86 [0] : vector<8x128xf32> to vector<128xf32>
    %121 = vector.shape_cast %120 : vector<128xf32> to vector<1x128xf32>
    %cst_87 = arith.constant 8.000000e+00 : f32
    %122 = vector.broadcast %cst_87 : f32 to vector<1x128xf32>
    %123 = arith.divf %121, %122 : vector<1x128xf32>
    %124 = vector.broadcast %114 : vector<1x128xf32> to vector<8x128xf32>
    %125 = arith.subf %110, %124 : vector<8x128xf32>
    %cst_88 = arith.constant 9.99999974E-6 : f32
    %126 = vector.broadcast %cst_88 : f32 to vector<1x128xf32>
    %127 = arith.addf %123, %126 : vector<1x128xf32>
    %128 = math.rsqrt %127 : vector<1x128xf32>
    %129 = vector.broadcast %128 : vector<1x128xf32> to vector<8x128xf32>
    %130 = arith.mulf %125, %129 : vector<8x128xf32>
    %131 = vector.broadcast %11 : vector<1x128xf32> to vector<8x128xf32>
    %132 = arith.mulf %130, %131 : vector<8x128xf32>
    %133 = vector.broadcast %12 : vector<1x128xf32> to vector<8x128xf32>
    %134 = arith.addf %132, %133 : vector<8x128xf32>
    %135 = arith.truncf %134 : vector<8x128xf32> to vector<8x128xbf16>
    %cst_89 = arith.constant dense<0.000000e+00> : vector<8x16xf32>
    %136 = tpu.matmul %135, %13, %cst_89 {dimension_numbers = #tpu.dot_dimension_numbers<[1], [0], [0], [1], [0, 0, 1, 1], [], []>} : vector<8x128xbf16>, vector<128x16xbf16>, vector<8x16xf32> -> vector<8x16xf32>
    %137 = vector.broadcast %14 : vector<1x16xf32> to vector<8x16xf32>
    %138 = arith.addf %136, %137 : vector<8x16xf32>
    %139 = vector.extract_strided_slice %138 {offsets = [0, 0], sizes = [8, 8], strides = [1, 1]} : vector<8x16xf32> to vector<8x8xf32>
    %140 = vector.extract_strided_slice %138 {offsets = [0, 8], sizes = [8, 8], strides = [1, 1]} : vector<8x16xf32> to vector<8x8xf32>
    %cst_90 = arith.constant 5.000000e-01 : f32
    %141 = vector.broadcast %cst_90 : f32 to vector<8x8xf32>
    %142 = arith.mulf %141, %140 : vector<8x8xf32>
    %143 = math.exp %142 : vector<8x8xf32>
    %144 = arith.mulf %32, %143 : vector<8x8xf32>
    %145 = arith.addf %139, %144 : vector<8x8xf32>
    %146 = arith.truncf %145 : vector<8x8xf32> to vector<8x8xbf16>
    %cst_91 = arith.constant dense<0.000000e+00> : vector<8x1028xf32>
    %147 = tpu.matmul %146, %15, %cst_91 {dimension_numbers = #tpu.dot_dimension_numbers<[1], [0], [0], [1], [0, 0, 1, 1], [], []>} : vector<8x8xbf16>, vector<8x1028xbf16>, vector<8x1028xf32> -> vector<8x1028xf32>
    %cst_92 = arith.constant dense<0.000000e+00> : vector<8x1028xf32>
    %148 = tpu.matmul %33, %16, %cst_92 {dimension_numbers = #tpu.dot_dimension_numbers<[1], [0], [0], [1], [0, 0, 1, 1], [], []>} : vector<8x4xbf16>, vector<4x1028xbf16>, vector<8x1028xf32> -> vector<8x1028xf32>
    %149 = arith.addf %147, %148 : vector<8x1028xf32>
    %150 = vector.broadcast %17 : vector<1x1028xf32> to vector<8x1028xf32>
    %151 = arith.addf %149, %150 : vector<8x1028xf32>
    %cst_93 = arith.constant 0.000000e+00 : f32
    %152 = vector.broadcast %cst_93 : f32 to vector<8x1028xf32>
    %153 = arith.cmpf ogt, %151, %152 : vector<8x1028xf32>
    %cst_94 = arith.constant 1.000000e-01 : f32
    %154 = vector.broadcast %cst_94 : f32 to vector<8x1028xf32>
    %155 = arith.mulf %154, %151 : vector<8x1028xf32>
    %156 = arith.select %153, %151, %155 : vector<8x1028xi1>, vector<8x1028xf32>
    %cst_95 = arith.constant dense<0.000000e+00> : vector<1028xf32>
    %157 = vector.multi_reduction <add>, %156, %cst_95 [0] : vector<8x1028xf32> to vector<1028xf32>
    %158 = vector.shape_cast %157 : vector<1028xf32> to vector<1x1028xf32>
    %cst_96 = arith.constant 8.000000e+00 : f32
    %159 = vector.broadcast %cst_96 : f32 to vector<1x1028xf32>
    %160 = arith.divf %158, %159 : vector<1x1028xf32>
    %161 = vector.broadcast %160 : vector<1x1028xf32> to vector<8x1028xf32>
    %162 = arith.subf %156, %161 : vector<8x1028xf32>
    %163 = vector.broadcast %160 : vector<1x1028xf32> to vector<8x1028xf32>
    %164 = arith.subf %156, %163 : vector<8x1028xf32>
    %165 = arith.mulf %162, %164 : vector<8x1028xf32>
    %cst_97 = arith.constant dense<0.000000e+00> : vector<1028xf32>
    %166 = vector.multi_reduction <add>, %165, %cst_97 [0] : vector<8x1028xf32> to vector<1028xf32>
    %167 = vector.shape_cast %166 : vector<1028xf32> to vector<1x1028xf32>
    %cst_98 = arith.constant 8.000000e+00 : f32
    %168 = vector.broadcast %cst_98 : f32 to vector<1x1028xf32>
    %169 = arith.divf %167, %168 : vector<1x1028xf32>
    %170 = vector.broadcast %160 : vector<1x1028xf32> to vector<8x1028xf32>
    %171 = arith.subf %156, %170 : vector<8x1028xf32>
    %cst_99 = arith.constant 9.99999974E-6 : f32
    %172 = vector.broadcast %cst_99 : f32 to vector<1x1028xf32>
    %173 = arith.addf %169, %172 : vector<1x1028xf32>
    %174 = math.rsqrt %173 : vector<1x1028xf32>
    %175 = vector.broadcast %174 : vector<1x1028xf32> to vector<8x1028xf32>
    %176 = arith.mulf %171, %175 : vector<8x1028xf32>
    %177 = vector.broadcast %18 : vector<1x1028xf32> to vector<8x1028xf32>
    %178 = arith.mulf %176, %177 : vector<8x1028xf32>
    %179 = vector.broadcast %19 : vector<1x1028xf32> to vector<8x1028xf32>
    %180 = arith.addf %178, %179 : vector<8x1028xf32>
    %181 = arith.truncf %180 : vector<8x1028xf32> to vector<8x1028xbf16>
    %cst_100 = arith.constant dense<0.000000e+00> : vector<8x512xf32>
    %182 = tpu.matmul %181, %20, %cst_100 {dimension_numbers = #tpu.dot_dimension_numbers<[1], [0], [0], [1], [0, 0, 1, 1], [], []>} : vector<8x1028xbf16>, vector<1028x512xbf16>, vector<8x512xf32> -> vector<8x512xf32>
    %183 = vector.broadcast %21 : vector<1x512xf32> to vector<8x512xf32>
    %184 = arith.addf %182, %183 : vector<8x512xf32>
    %cst_101 = arith.constant 0.000000e+00 : f32
    %185 = vector.broadcast %cst_101 : f32 to vector<8x512xf32>
    %186 = arith.cmpf ogt, %184, %185 : vector<8x512xf32>
    %cst_102 = arith.constant 1.000000e-01 : f32
    %187 = vector.broadcast %cst_102 : f32 to vector<8x512xf32>
    %188 = arith.mulf %187, %184 : vector<8x512xf32>
    %189 = arith.select %186, %184, %188 : vector<8x512xi1>, vector<8x512xf32>
    %cst_103 = arith.constant dense<0.000000e+00> : vector<512xf32>
    %190 = vector.multi_reduction <add>, %189, %cst_103 [0] : vector<8x512xf32> to vector<512xf32>
    %191 = vector.shape_cast %190 : vector<512xf32> to vector<1x512xf32>
    %cst_104 = arith.constant 8.000000e+00 : f32
    %192 = vector.broadcast %cst_104 : f32 to vector<1x512xf32>
    %193 = arith.divf %191, %192 : vector<1x512xf32>
    %194 = vector.broadcast %193 : vector<1x512xf32> to vector<8x512xf32>
    %195 = arith.subf %189, %194 : vector<8x512xf32>
    %196 = vector.broadcast %193 : vector<1x512xf32> to vector<8x512xf32>
    %197 = arith.subf %189, %196 : vector<8x512xf32>
    %198 = arith.mulf %195, %197 : vector<8x512xf32>
    %cst_105 = arith.constant dense<0.000000e+00> : vector<512xf32>
    %199 = vector.multi_reduction <add>, %198, %cst_105 [0] : vector<8x512xf32> to vector<512xf32>
    %200 = vector.shape_cast %199 : vector<512xf32> to vector<1x512xf32>
    %cst_106 = arith.constant 8.000000e+00 : f32
    %201 = vector.broadcast %cst_106 : f32 to vector<1x512xf32>
    %202 = arith.divf %200, %201 : vector<1x512xf32>
    %203 = vector.broadcast %193 : vector<1x512xf32> to vector<8x512xf32>
    %204 = arith.subf %189, %203 : vector<8x512xf32>
    %cst_107 = arith.constant 9.99999974E-6 : f32
    %205 = vector.broadcast %cst_107 : f32 to vector<1x512xf32>
    %206 = arith.addf %202, %205 : vector<1x512xf32>
    %207 = math.rsqrt %206 : vector<1x512xf32>
    %208 = vector.broadcast %207 : vector<1x512xf32> to vector<8x512xf32>
    %209 = arith.mulf %204, %208 : vector<8x512xf32>
    %210 = vector.broadcast %22 : vector<1x512xf32> to vector<8x512xf32>
    %211 = arith.mulf %209, %210 : vector<8x512xf32>
    %212 = vector.broadcast %23 : vector<1x512xf32> to vector<8x512xf32>
    %213 = arith.addf %211, %212 : vector<8x512xf32>
    %214 = arith.truncf %213 : vector<8x512xf32> to vector<8x512xbf16>
    %cst_108 = arith.constant dense<0.000000e+00> : vector<8x128xf32>
    %215 = tpu.matmul %214, %24, %cst_108 {dimension_numbers = #tpu.dot_dimension_numbers<[1], [0], [0], [1], [0, 0, 1, 1], [], []>} : vector<8x512xbf16>, vector<512x128xbf16>, vector<8x128xf32> -> vector<8x128xf32>
    %216 = vector.broadcast %25 : vector<1x128xf32> to vector<8x128xf32>
    %217 = arith.addf %215, %216 : vector<8x128xf32>
    %cst_109 = arith.constant 0.000000e+00 : f32
    %218 = vector.broadcast %cst_109 : f32 to vector<8x128xf32>
    %219 = arith.cmpf ogt, %217, %218 : vector<8x128xf32>
    %cst_110 = arith.constant 1.000000e-01 : f32
    %220 = vector.broadcast %cst_110 : f32 to vector<8x128xf32>
    %221 = arith.mulf %220, %217 : vector<8x128xf32>
    %222 = arith.select %219, %217, %221 : vector<8x128xi1>, vector<8x128xf32>
    %cst_111 = arith.constant dense<0.000000e+00> : vector<128xf32>
    %223 = vector.multi_reduction <add>, %222, %cst_111 [0] : vector<8x128xf32> to vector<128xf32>
    %224 = vector.shape_cast %223 : vector<128xf32> to vector<1x128xf32>
    %cst_112 = arith.constant 8.000000e+00 : f32
    %225 = vector.broadcast %cst_112 : f32 to vector<1x128xf32>
    %226 = arith.divf %224, %225 : vector<1x128xf32>
    %227 = vector.broadcast %226 : vector<1x128xf32> to vector<8x128xf32>
    %228 = arith.subf %222, %227 : vector<8x128xf32>
    %229 = vector.broadcast %226 : vector<1x128xf32> to vector<8x128xf32>
    %230 = arith.subf %222, %229 : vector<8x128xf32>
    %231 = arith.mulf %228, %230 : vector<8x128xf32>
    %cst_113 = arith.constant dense<0.000000e+00> : vector<128xf32>
    %232 = vector.multi_reduction <add>, %231, %cst_113 [0] : vector<8x128xf32> to vector<128xf32>
    %233 = vector.shape_cast %232 : vector<128xf32> to vector<1x128xf32>
    %cst_114 = arith.constant 8.000000e+00 : f32
    %234 = vector.broadcast %cst_114 : f32 to vector<1x128xf32>
    %235 = arith.divf %233, %234 : vector<1x128xf32>
    %236 = vector.broadcast %226 : vector<1x128xf32> to vector<8x128xf32>
    %237 = arith.subf %222, %236 : vector<8x128xf32>
    %cst_115 = arith.constant 9.99999974E-6 : f32
    %238 = vector.broadcast %cst_115 : f32 to vector<1x128xf32>
    %239 = arith.addf %235, %238 : vector<1x128xf32>
    %240 = math.rsqrt %239 : vector<1x128xf32>
    %241 = vector.broadcast %240 : vector<1x128xf32> to vector<8x128xf32>
    %242 = arith.mulf %237, %241 : vector<8x128xf32>
    %243 = vector.broadcast %26 : vector<1x128xf32> to vector<8x128xf32>
    %244 = arith.mulf %242, %243 : vector<8x128xf32>
    %245 = vector.broadcast %27 : vector<1x128xf32> to vector<8x128xf32>
    %246 = arith.addf %244, %245 : vector<8x128xf32>
    %247 = arith.truncf %246 : vector<8x128xf32> to vector<8x128xbf16>
    %cst_116 = arith.constant dense<0.000000e+00> : vector<8x16xf32>
    %248 = tpu.matmul %247, %28, %cst_116 {dimension_numbers = #tpu.dot_dimension_numbers<[1], [0], [0], [1], [0, 0, 1, 1], [], []>} : vector<8x128xbf16>, vector<128x16xbf16>, vector<8x16xf32> -> vector<8x16xf32>
    %249 = vector.broadcast %29 : vector<1x16xf32> to vector<8x16xf32>
    %250 = arith.addf %248, %249 : vector<8x16xf32>
    %c0_117 = arith.constant 0 : index
    %c0_118 = arith.constant 0 : index
    %251 = vector.load %arg33[%c0_117, %c0_118] : memref<8x16xf32, #tpu.memory_space<vmem>>, vector<8x16xf32>
    tpu.vector_store %arg33[%c0_117, %c0_118], %138 {strides = array<i32>} : memref<8x16xf32, #tpu.memory_space<vmem>>, vector<8x16xf32>,
    %c0_119 = arith.constant 0 : index
    %c0_120 = arith.constant 0 : index
    %252 = vector.load %arg34[%c0_119, %c0_120] : memref<8x16xf32, #tpu.memory_space<vmem>>, vector<8x16xf32>
    tpu.vector_store %arg34[%c0_119, %c0_120], %250 {strides = array<i32>} : memref<8x16xf32, #tpu.memory_space<vmem>>, vector<8x16xf32>,
    return
  }
}

</mosaic_0001>

<llo_original>
// kernel: cvae_forward.1
$region0: #{cvae_forward.1}
  #allocation0 [shape = 'u32[]', space=smem, size = 0x4, offset = 0x4, fixed_abs, tag = 'smem constant byte address 0x4 - core index']
  #allocation1 [shape = 'u32[144,128]{1,0:T(1,128)}', space=vmem, size = 0x12000, scoped, tag = 'internal scratch']
  %s0 = inlined_call_operand.smem [shape: u32[35], index: -1, kind: input, shape index: {}]
  %s1 = sld [smem:[%s0]]
  %s2 = scalar_lea.smem %s0, 1
  %s3 = sld [smem:[%s2]]
  %s4 = scalar_lea.smem %s0, 2
  %s5 = sld [smem:[%s4]]
  %s6 = scalar_lea.smem %s0, 3
  %s7 = sld [smem:[%s6]]
  %s8 = scalar_lea.smem %s0, 4
  %s9 = sld [smem:[%s8]]
  %s10 = scalar_lea.smem %s0, 5
  %s11 = sld [smem:[%s10]]
  %s12 = scalar_lea.smem %s0, 6
  %s13 = sld [smem:[%s12]]
  %s14 = scalar_lea.smem %s0, 7
  %s15 = sld [smem:[%s14]]
  %s16 = scalar_lea.smem %s0, 8
  %s17 = sld [smem:[%s16]]
  %s18 = scalar_lea.smem %s0, 9
  %s19 = sld [smem:[%s18]]
  %s20 = scalar_lea.smem %s0, 10
  %s21 = sld [smem:[%s20]]
  %s22 = scalar_lea.smem %s0, 11
  %s23 = sld [smem:[%s22]]
  %s24 = scalar_lea.smem %s0, 12
  %s25 = sld [smem:[%s24]]
  %s26 = scalar_lea.smem %s0, 13
  %s27 = sld [smem:[%s26]]
  %s28 = scalar_lea.smem %s0, 14
  %s29 = sld [smem:[%s28]]
  %s30 = scalar_lea.smem %s0, 15
  %s31 = sld [smem:[%s30]]
  %s32 = scalar_lea.smem %s0, 16
  %s33 = sld [smem:[%s32]]
  %s34 = scalar_lea.smem %s0, 17
  %s35 = sld [smem:[%s34]]
  %s36 = scalar_lea.smem %s0, 18
  %s37 = sld [smem:[%s36]]
  %s38 = scalar_lea.smem %s0, 19
  %s39 = sld [smem:[%s38]]
  %s40 = scalar_lea.smem %s0, 20
  %s41 = sld [smem:[%s40]]
  %s42 = scalar_lea.smem %s0, 21
  %s43 = sld [smem:[%s42]]
  %s44 = scalar_lea.smem %s0, 22
  %s45 = sld [smem:[%s44]]
  %s46 = scalar_lea.smem %s0, 23
  %s47 = sld [smem:[%s46]]
  %s48 = scalar_lea.smem %s0, 24
  %s49 = sld [smem:[%s48]]
  %s50 = scalar_lea.smem %s0, 25
  %s51 = sld [smem:[%s50]]
  %s52 = scalar_lea.smem %s0, 26
  %s53 = sld [smem:[%s52]]
  %s54 = scalar_lea.smem %s0, 27
  %s55 = sld [smem:[%s54]]
  %s56 = scalar_lea.smem %s0, 28
  %s57 = sld [smem:[%s56]]
  %s58 = scalar_lea.smem %s0, 29
  %s59 = sld [smem:[%s58]]
  %s60 = scalar_lea.smem %s0, 30
  %s61 = sld [smem:[%s60]]
  %s62 = scalar_lea.smem %s0, 31
  %s63 = sld [smem:[%s62]]
  %s64 = scalar_lea.smem %s0, 32
  %s65 = sld [smem:[%s64]]
  %s66 = scalar_lea.smem %s0, 33
  %s67 = sld [smem:[%s66]]
  %s68 = scalar_lea.smem %s0, 34
  %s69 = sld [smem:[%s68]]
  %70 = xla_tuple %s67, %s69
  %s71 = sld [smem:[#allocation0]]
  $region270: #{cvae_forward.1} parent=0
    _
  %s73 = ssub.s32 1, %s71
  %s74 = scalar_select 0, %s73, %s71
  $region1: #{cvae_forward.1} parent=0
    #allocation2 [shape = 'u8[4096]{0}', space=vmem, size = 0x1000, scoped, tag = 'input window, operand 0, single buffered']
    #allocation3 [shape = 's32[1]{0}', space=sflag, size = 0x4, scoped, tag = 'scoped memory for cvae_forward.1']
    #allocation4 [shape = 's32[1]{0}', space=sflag, size = 0x4, scoped, tag = 'scoped memory for cvae_forward.1']
    #allocation5 [shape = 'u8[4096]{0}', space=vmem, size = 0x1000, scoped, tag = 'input window, operand 2, single buffered']
    #allocation6 [shape = 's32[1]{0}', space=sflag, size = 0x4, scoped, tag = 'scoped memory for cvae_forward.1']
    #allocation7 [shape = 'u8[36864]{0}', space=vmem, size = 0x9000, scoped, tag = 'input window, operand 3, single buffered']
    #allocation8 [shape = 'u8[9216]{0}', space=vmem, size = 0x2400, scoped, tag = 'input window, operand 4, single buffered']
    #allocation9 [shape = 's32[1]{0}', space=sflag, size = 0x4, scoped, tag = 'scoped memory for cvae_forward.1']
    #allocation10 [shape = 'u8[4608]{0}', space=vmem, size = 0x1400, scoped, tag = 'input window, operand 5, single buffered']
    #allocation11 [shape = 'u8[4608]{0}', space=vmem, size = 0x1400, scoped, tag = 'input window, operand 6, single buffered']
    #allocation12 [shape = 's32[1]{0}', space=sflag, size = 0x4, scoped, tag = 'scoped memory for cvae_forward.1']
    #allocation13 [shape = 'u8[4608]{0}', space=vmem, size = 0x1400, scoped, tag = 'input window, operand 7, single buffered']
    #allocation14 [shape = 'u8[1056768]{0}', space=vmem, size = 0x102000, scoped, tag = 'input window, operand 8, single buffered']
    #allocation15 [shape = 's32[1]{0}', space=sflag, size = 0x4, scoped, tag = 'scoped memory for cvae_forward.1']
    #allocation16 [shape = 'u8[2048]{0}', space=vmem, size = 0x800, scoped, tag = 'input window, operand 9, single buffered']
    #allocation17 [shape = 'u8[2048]{0}', space=vmem, size = 0x800, scoped, tag = 'input window, operand 10, single buffered']
    #allocation18 [shape = 's32[1]{0}', space=sflag, size = 0x4, scoped, tag = 'scoped memory for cvae_forward.1']
    #allocation19 [shape = 'u8[2048]{0}', space=vmem, size = 0x800, scoped, tag = 'input window, operand 11, single buffered']
    #allocation20 [shape = 'u8[131072]{0}', space=vmem, size = 0x20000, scoped, tag = 'input window, operand 12, single buffered']
    #allocation21 [shape = 's32[1]{0}', space=sflag, size = 0x4, scoped, tag = 'scoped memory for cvae_forward.1']
    #allocation22 [shape = 'u8[512]{0}', space=vmem, size = 0x400, scoped, tag = 'input window, operand 13, single buffered']
    #allocation23 [shape = 'u8[512]{0}', space=vmem, size = 0x400, scoped, tag = 'input window, operand 14, single buffered']
    #allocation24 [shape = 's32[1]{0}', space=sflag, size = 0x4, scoped, tag = 'scoped memory for cvae_forward.1']
    #allocation25 [shape = 'u8[512]{0}', space=vmem, size = 0x400, scoped, tag = 'input window, operand 15, single buffered']
    #allocation26 [shape = 'u8[512]{0}', space=vmem, size = 0x400, scoped, tag = 'input window, operand 17, single buffered']
    #allocation27 [shape = 's32[1]{0}', space=sflag, size = 0x4, scoped, tag = 'scoped memory for cvae_forward.1']
    #allocation28 [shape = 'u8[18432]{0}', space=vmem, size = 0x4800, scoped, tag = 'input window, operand 18, single buffered']
    #allocation29 [shape = 'u8[9216]{0}', space=vmem, size = 0x2400, scoped, tag = 'input window, operand 19, single buffered']
    #allocation30 [shape = 's32[1]{0}', space=sflag, size = 0x4, scoped, tag = 'scoped memory for cvae_forward.1']
    #allocation31 [shape = 'u8[4608]{0}', space=vmem, size = 0x1400, scoped, tag = 'input window, operand 20, single buffered']
    #allocation32 [shape = 'u8[4608]{0}', space=vmem, size = 0x1400, scoped, tag = 'input window, operand 21, single buffered']
    #allocation33 [shape = 's32[1]{0}', space=sflag, size = 0x4, scoped, tag = 'scoped memory for cvae_forward.1']
    #allocation34 [shape = 'u8[4608]{0}', space=vmem, size = 0x1400, scoped, tag = 'input window, operand 22, single buffered']
    #allocation35 [shape = 'u8[1056768]{0}', space=vmem, size = 0x102000, scoped, tag = 'input window, operand 23, single buffered']
    #allocation36 [shape = 's32[1]{0}', space=sflag, size = 0x4, scoped, tag = 'scoped memory for cvae_forward.1']
    #allocation37 [shape = 'u8[2048]{0}', space=vmem, size = 0x800, scoped, tag = 'input window, operand 24, single buffered']
    #allocation38 [shape = 'u8[2048]{0}', space=vmem, size = 0x800, scoped, tag = 'input window, operand 25, single buffered']
    #allocation39 [shape = 's32[1]{0}', space=sflag, size = 0x4, scoped, tag = 'scoped memory for cvae_forward.1']
    #allocation40 [shape = 'u8[2048]{0}', space=vmem, size = 0x800, scoped, tag = 'input window, operand 26, single buffered']
    #allocation41 [shape = 'u8[131072]{0}', space=vmem, size = 0x20000, scoped, tag = 'input window, operand 27, single buffered']
    #allocation42 [shape = 's32[1]{0}', space=sflag, size = 0x4, scoped, tag = 'scoped memory for cvae_forward.1']
    #allocation43 [shape = 'u8[512]{0}', space=vmem, size = 0x400, scoped, tag = 'input window, operand 28, single buffered']
    #allocation44 [shape = 'u8[512]{0}', space=vmem, size = 0x400, scoped, tag = 'input window, operand 29, single buffered']
    #allocation45 [shape = 's32[1]{0}', space=sflag, size = 0x4, scoped, tag = 'scoped memory for cvae_forward.1']
    #allocation46 [shape = 'u8[512]{0}', space=vmem, size = 0x400, scoped, tag = 'input window, operand 30, single buffered']
    #allocation47 [shape = 'u8[512]{0}', space=vmem, size = 0x400, scoped, tag = 'input window, operand 32, single buffered']
    #allocation48 [shape = 's32[1]{0}', space=sflag, size = 0x4, scoped, tag = 'scoped memory for cvae_forward.1']
    #allocation49 [shape = 'u8[4096]{0}', space=vmem, size = 0x1000, scoped, tag = 'output window, operand 1, single buffered']
    %75 = vsyncpa [#allocation3], 0
    %76 = vsyncpa [#allocation6], 0
    %77 = vsyncpa [#allocation9], 0
    %78 = vsyncpa [#allocation12], 0
    %79 = vsyncpa [#allocation15], 0
    %80 = vsyncpa [#allocation18], 0
    %81 = vsyncpa [#allocation21], 0
    %82 = vsyncpa [#allocation24], 0
    %83 = vsyncpa [#allocation27], 0
    %84 = vsyncpa [#allocation30], 0
    %85 = vsyncpa [#allocation33], 0
    %86 = vsyncpa [#allocation36], 0
    %87 = vsyncpa [#allocation39], 0
    %88 = vsyncpa [#allocation42], 0
    %89 = vsyncpa [#allocation45], 0
    %90 = vsyncpa [#allocation48], 0
    %91 = vsyncpa [#allocation4], 0
    // Predicated region
    $region2: #{cvae_forward.1} parent=1 // pred_check
      _
    $region3: #{cvae_forward.1} parent=1 // pred_check_branch
      %93 = sbr.rel (0) target = $region5
    $region4: #{cvae_forward.1} parent=1 // pred_region
      %s95 = ssub.s32 128, 128
      %96 = vsyncadd [#allocation3], %s95
      %s98 = sshll.u32 [#allocation2], 4
      %s99 = int_to_ptr.vmem [resolvable:$true] %s98
      %101 = dma.hbm_to_vmem [thread:$0]  %s1, 128, %s99, [#allocation3]
    $region5: #{cvae_forward.1} parent=1 // pred_fallthru
      _
    // Predicated region
    $region6: #{cvae_forward.1} parent=1 // pred_check
      _
    $region7: #{cvae_forward.1} parent=1 // pred_check_branch
      %103 = sbr.rel (0) target = $region9
    $region8: #{cvae_forward.1} parent=1 // pred_region
      _
    $region9: #{cvae_forward.1} parent=1 // pred_fallthru
      _
    // Predicated region
    $region10: #{cvae_forward.1} parent=1 // pred_check
      _
    $region11: #{cvae_forward.1} parent=1 // pred_check_branch
      %105 = sbr.rel (0) target = $region13
    $region12: #{cvae_forward.1} parent=1 // pred_region
      %s107 = ssub.s32 128, 128
      %108 = vsyncadd [#allocation6], %s107
      %s110 = sshll.u32 [#allocation5], 4
      %s111 = int_to_ptr.vmem [resolvable:$true] %s110
      %113 = dma.hbm_to_vmem [thread:$0]  %s5, 128, %s111, [#allocation6]
    $region13: #{cvae_forward.1} parent=1 // pred_fallthru
      _
    // Predicated region
    $region14: #{cvae_forward.1} parent=1 // pred_check
      _
    $region15: #{cvae_forward.1} parent=1 // pred_check_branch
      %115 = sbr.rel (0) target = $region17
    $region16: #{cvae_forward.1} parent=1 // pred_region
      %s117 = ssub.s32 1152, 1152
      %118 = vsyncadd [#allocation6], %s117
      %s119 = sshll.u32 [#allocation7], 4
      %s120 = int_to_ptr.vmem [resolvable:$true] %s119
      %125 = dma.hbm_to_vmem [thread:$0]  %s7, 1152, %s120, [#allocation6], 576, 576, 36
    $region17: #{cvae_forward.1} parent=1 // pred_fallthru
      _
    // Predicated region
    $region18: #{cvae_forward.1} parent=1 // pred_check
      _
    $region19: #{cvae_forward.1} parent=1 // pred_check_branch
      %127 = sbr.rel (0) target = $region21
    $region20: #{cvae_forward.1} parent=1 // pred_region
      %s129 = ssub.s32 288, 288
      %130 = vsyncadd [#allocation9], %s129
      %s132 = sshll.u32 [#allocation8], 4
      %s133 = int_to_ptr.vmem [resolvable:$true] %s132
      %135 = dma.hbm_to_vmem [thread:$0]  %s9, 288, %s133, [#allocation9]
    $region21: #{cvae_forward.1} parent=1 // pred_fallthru
      _
    // Predicated region
    $region22: #{cvae_forward.1} parent=1 // pred_check
      _
    $region23: #{cvae_forward.1} parent=1 // pred_check_branch
      %137 = sbr.rel (0) target = $region25
    $region24: #{cvae_forward.1} parent=1 // pred_region
      %s139 = ssub.s32 144, 144
      %140 = vsyncadd [#allocation9], %s139
      %s142 = sshll.u32 [#allocation10], 4
      %s143 = int_to_ptr.vmem [resolvable:$true] %s142
      %145 = dma.hbm_to_vmem [thread:$0]  %s11, 144, %s143, [#allocation9]
    $region25: #{cvae_forward.1} parent=1 // pred_fallthru
      _
    // Predicated region
    $region26: #{cvae_forward.1} parent=1 // pred_check
      _
    $region27: #{cvae_forward.1} parent=1 // pred_check_branch
      %147 = sbr.rel (0) target = $region29
    $region28: #{cvae_forward.1} parent=1 // pred_region
      %s149 = ssub.s32 144, 144
      %150 = vsyncadd [#allocation12], %s149
      %s152 = sshll.u32 [#allocation11], 4
      %s153 = int_to_ptr.vmem [resolvable:$true] %s152
      %155 = dma.hbm_to_vmem [thread:$0]  %s13, 144, %s153, [#allocation12]
    $region29: #{cvae_forward.1} parent=1 // pred_fallthru
      _
    // Predicated region
    $region30: #{cvae_forward.1} parent=1 // pred_check
      _
    $region31: #{cvae_forward.1} parent=1 // pred_check_branch
      %157 = sbr.rel (0) target = $region33
    $region32: #{cvae_forward.1} parent=1 // pred_region
      %s159 = ssub.s32 144, 144
      %160 = vsyncadd [#allocation12], %s159
      %s162 = sshll.u32 [#allocation13], 4
      %s163 = int_to_ptr.vmem [resolvable:$true] %s162
      %165 = dma.hbm_to_vmem [thread:$0]  %s15, 144, %s163, [#allocation12]
    $region33: #{cvae_forward.1} parent=1 // pred_fallthru
      _
    // Predicated region
    $region34: #{cvae_forward.1} parent=1 // pred_check
      _
    $region35: #{cvae_forward.1} parent=1 // pred_check_branch
      %167 = sbr.rel (0) target = $region37
    $region36: #{cvae_forward.1} parent=1 // pred_region
      %s169 = ssub.s32 33024, 33024
      %170 = vsyncadd [#allocation15], %s169
      %s171 = sshll.u32 [#allocation14], 4
      %s172 = int_to_ptr.vmem [resolvable:$true] %s171
      %177 = dma.hbm_to_vmem [thread:$0]  %s17, 33024, %s172, [#allocation15], 256, 256, 16
    $region37: #{cvae_forward.1} parent=1 // pred_fallthru
      _
    // Predicated region
    $region38: #{cvae_forward.1} parent=1 // pred_check
      _
    $region39: #{cvae_forward.1} parent=1 // pred_check_branch
      %179 = sbr.rel (0) target = $region41
    $region40: #{cvae_forward.1} parent=1 // pred_region
      %s181 = ssub.s32 64, 64
      %182 = vsyncadd [#allocation15], %s181
      %s184 = sshll.u32 [#allocation16], 4
      %s185 = int_to_ptr.vmem [resolvable:$true] %s184
      %187 = dma.hbm_to_vmem [thread:$0]  %s19, 64, %s185, [#allocation15]
    $region41: #{cvae_forward.1} parent=1 // pred_fallthru
      _
    // Predicated region
    $region42: #{cvae_forward.1} parent=1 // pred_check
      _
    $region43: #{cvae_forward.1} parent=1 // pred_check_branch
      %189 = sbr.rel (0) target = $region45
    $region44: #{cvae_forward.1} parent=1 // pred_region
      %s191 = ssub.s32 64, 64
      %192 = vsyncadd [#allocation18], %s191
      %s194 = sshll.u32 [#allocation17], 4
      %s195 = int_to_ptr.vmem [resolvable:$true] %s194
      %197 = dma.hbm_to_vmem [thread:$0]  %s21, 64, %s195, [#allocation18]
    $region45: #{cvae_forward.1} parent=1 // pred_fallthru
      _
    // Predicated region
    $region46: #{cvae_forward.1} parent=1 // pred_check
      _
    $region47: #{cvae_forward.1} parent=1 // pred_check_branch
      %199 = sbr.rel (0) target = $region49
    $region48: #{cvae_forward.1} parent=1 // pred_region
      %s201 = ssub.s32 64, 64
      %202 = vsyncadd [#allocation18], %s201
      %s204 = sshll.u32 [#allocation19], 4
      %s205 = int_to_ptr.vmem [resolvable:$true] %s204
      %207 = dma.hbm_to_vmem [thread:$0]  %s23, 64, %s205, [#allocation18]
    $region49: #{cvae_forward.1} parent=1 // pred_fallthru
      _
    // Predicated region
    $region50: #{cvae_forward.1} parent=1 // pred_check
      _
    $region51: #{cvae_forward.1} parent=1 // pred_check_branch
      %209 = sbr.rel (0) target = $region53
    $region52: #{cvae_forward.1} parent=1 // pred_region
      %s211 = ssub.s32 4096, 4096
      %212 = vsyncadd [#allocation21], %s211
      %s213 = sshll.u32 [#allocation20], 4
      %s214 = int_to_ptr.vmem [resolvable:$true] %s213
      %219 = dma.hbm_to_vmem [thread:$0]  %s25, 4096, %s214, [#allocation21], 64, 64, 4
    $region53: #{cvae_forward.1} parent=1 // pred_fallthru
      _
    // Predicated region
    $region54: #{cvae_forward.1} parent=1 // pred_check
      _
    $region55: #{cvae_forward.1} parent=1 // pred_check_branch
      %221 = sbr.rel (0) target = $region57
    $region56: #{cvae_forward.1} parent=1 // pred_region
      %s223 = ssub.s32 16, 16
      %224 = vsyncadd [#allocation21], %s223
      %s226 = sshll.u32 [#allocation22], 4
      %s227 = int_to_ptr.vmem [resolvable:$true] %s226
      %229 = dma.hbm_to_vmem [thread:$0]  %s27, 16, %s227, [#allocation21]
    $region57: #{cvae_forward.1} parent=1 // pred_fallthru
      _
    // Predicated region
    $region58: #{cvae_forward.1} parent=1 // pred_check
      _
    $region59: #{cvae_forward.1} parent=1 // pred_check_branch
      %231 = sbr.rel (0) target = $region61
    $region60: #{cvae_forward.1} parent=1 // pred_region
      %s233 = ssub.s32 16, 16
      %234 = vsyncadd [#allocation24], %s233
      %s236 = sshll.u32 [#allocation23], 4
      %s237 = int_to_ptr.vmem [resolvable:$true] %s236
      %239 = dma.hbm_to_vmem [thread:$0]  %s29, 16, %s237, [#allocation24]
    $region61: #{cvae_forward.1} parent=1 // pred_fallthru
      _
    // Predicated region
    $region62: #{cvae_forward.1} parent=1 // pred_check
      _
    $region63: #{cvae_forward.1} parent=1 // pred_check_branch
      %241 = sbr.rel (0) target = $region65
    $region64: #{cvae_forward.1} parent=1 // pred_region
      %s243 = ssub.s32 16, 16
      %244 = vsyncadd [#allocation24], %s243
      %s246 = sshll.u32 [#allocation25], 4
      %s247 = int_to_ptr.vmem [resolvable:$true] %s246
      %249 = dma.hbm_to_vmem [thread:$0]  %s31, 16, %s247, [#allocation24]
    $region65: #{cvae_forward.1} parent=1 // pred_fallthru
      _
    // Predicated region
    $region66: #{cvae_forward.1} parent=1 // pred_check
      _
    $region67: #{cvae_forward.1} parent=1 // pred_check_branch
      %251 = sbr.rel (0) target = $region69
    $region68: #{cvae_forward.1} parent=1 // pred_region
      _
    $region69: #{cvae_forward.1} parent=1 // pred_fallthru
      _
    // Predicated region
    $region70: #{cvae_forward.1} parent=1 // pred_check
      _
    $region71: #{cvae_forward.1} parent=1 // pred_check_branch
      %253 = sbr.rel (0) target = $region73
    $region72: #{cvae_forward.1} parent=1 // pred_region
      %s255 = ssub.s32 16, 16
      %256 = vsyncadd [#allocation27], %s255
      %s258 = sshll.u32 [#allocation26], 4
      %s259 = int_to_ptr.vmem [resolvable:$true] %s258
      %261 = dma.hbm_to_vmem [thread:$0]  %s35, 16, %s259, [#allocation27]
    $region73: #{cvae_forward.1} parent=1 // pred_fallthru
      _
    // Predicated region
    $region74: #{cvae_forward.1} parent=1 // pred_check
      _
    $region75: #{cvae_forward.1} parent=1 // pred_check_branch
      %263 = sbr.rel (0) target = $region77
    $region76: #{cvae_forward.1} parent=1 // pred_region
      %s265 = ssub.s32 576, 576
      %266 = vsyncadd [#allocation27], %s265
      %s268 = sshll.u32 [#allocation28], 4
      %s269 = int_to_ptr.vmem [resolvable:$true] %s268
      %271 = dma.hbm_to_vmem [thread:$0]  %s37, 576, %s269, [#allocation27]
    $region77: #{cvae_forward.1} parent=1 // pred_fallthru
      _
    // Predicated region
    $region78: #{cvae_forward.1} parent=1 // pred_check
      _
    $region79: #{cvae_forward.1} parent=1 // pred_check_branch
      %273 = sbr.rel (0) target = $region81
    $region80: #{cvae_forward.1} parent=1 // pred_region
      %s275 = ssub.s32 288, 288
      %276 = vsyncadd [#allocation30], %s275
      %s278 = sshll.u32 [#allocation29], 4
      %s279 = int_to_ptr.vmem [resolvable:$true] %s278
      %281 = dma.hbm_to_vmem [thread:$0]  %s39, 288, %s279, [#allocation30]
    $region81: #{cvae_forward.1} parent=1 // pred_fallthru
      _
    // Predicated region
    $region82: #{cvae_forward.1} parent=1 // pred_check
      _
    $region83: #{cvae_forward.1} parent=1 // pred_check_branch
      %283 = sbr.rel (0) target = $region85
    $region84: #{cvae_forward.1} parent=1 // pred_region
      %s285 = ssub.s32 144, 144
      %286 = vsyncadd [#allocation30], %s285
      %s288 = sshll.u32 [#allocation31], 4
      %s289 = int_to_ptr.vmem [resolvable:$true] %s288
      %291 = dma.hbm_to_vmem [thread:$0]  %s41, 144, %s289, [#allocation30]
    $region85: #{cvae_forward.1} parent=1 // pred_fallthru
      _
    // Predicated region
    $region86: #{cvae_forward.1} parent=1 // pred_check
      _
    $region87: #{cvae_forward.1} parent=1 // pred_check_branch
      %293 = sbr.rel (0) target = $region89
    $region88: #{cvae_forward.1} parent=1 // pred_region
      %s295 = ssub.s32 144, 144
      %296 = vsyncadd [#allocation33], %s295
      %s298 = sshll.u32 [#allocation32], 4
      %s299 = int_to_ptr.vmem [resolvable:$true] %s298
      %301 = dma.hbm_to_vmem [thread:$0]  %s43, 144, %s299, [#allocation33]
    $region89: #{cvae_forward.1} parent=1 // pred_fallthru
      _
    // Predicated region
    $region90: #{cvae_forward.1} parent=1 // pred_check
      _
    $region91: #{cvae_forward.1} parent=1 // pred_check_branch
      %303 = sbr.rel (0) target = $region93
    $region92: #{cvae_forward.1} parent=1 // pred_region
      %s305 = ssub.s32 144, 144
      %306 = vsyncadd [#allocation33], %s305
      %s308 = sshll.u32 [#allocation34], 4
      %s309 = int_to_ptr.vmem [resolvable:$true] %s308
      %311 = dma.hbm_to_vmem [thread:$0]  %s45, 144, %s309, [#allocation33]
    $region93: #{cvae_forward.1} parent=1 // pred_fallthru
      _
    // Predicated region
    $region94: #{cvae_forward.1} parent=1 // pred_check
      _
    $region95: #{cvae_forward.1} parent=1 // pred_check_branch
      %313 = sbr.rel (0) target = $region97
    $region96: #{cvae_forward.1} parent=1 // pred_region
      %s315 = ssub.s32 33024, 33024
      %316 = vsyncadd [#allocation36], %s315
      %s317 = sshll.u32 [#allocation35], 4
      %s318 = int_to_ptr.vmem [resolvable:$true] %s317
      %323 = dma.hbm_to_vmem [thread:$0]  %s47, 33024, %s318, [#allocation36], 256, 256, 16
    $region97: #{cvae_forward.1} parent=1 // pred_fallthru
      _
    // Predicated region
    $region98: #{cvae_forward.1} parent=1 // pred_check
      _
    $region99: #{cvae_forward.1} parent=1 // pred_check_branch
      %325 = sbr.rel (0) target = $region101
    $region100: #{cvae_forward.1} parent=1 // pred_region
      %s327 = ssub.s32 64, 64
      %328 = vsyncadd [#allocation36], %s327
      %s330 = sshll.u32 [#allocation37], 4
      %s331 = int_to_ptr.vmem [resolvable:$true] %s330
      %333 = dma.hbm_to_vmem [thread:$0]  %s49, 64, %s331, [#allocation36]
    $region101: #{cvae_forward.1} parent=1 // pred_fallthru
      _
    // Predicated region
    $region102: #{cvae_forward.1} parent=1 // pred_check
      _
    $region103: #{cvae_forward.1} parent=1 // pred_check_branch
      %335 = sbr.rel (0) target = $region105
    $region104: #{cvae_forward.1} parent=1 // pred_region
      %s337 = ssub.s32 64, 64
      %338 = vsyncadd [#allocation39], %s337
      %s340 = sshll.u32 [#allocation38], 4
      %s341 = int_to_ptr.vmem [resolvable:$true] %s340
      %343 = dma.hbm_to_vmem [thread:$0]  %s51, 64, %s341, [#allocation39]
    $region105: #{cvae_forward.1} parent=1 // pred_fallthru
      _
    // Predicated region
    $region106: #{cvae_forward.1} parent=1 // pred_check
      _
    $region107: #{cvae_forward.1} parent=1 // pred_check_branch
      %345 = sbr.rel (0) target = $region109
    $region108: #{cvae_forward.1} parent=1 // pred_region
      %s347 = ssub.s32 64, 64
      %348 = vsyncadd [#allocation39], %s347
      %s350 = sshll.u32 [#allocation40], 4
      %s351 = int_to_ptr.vmem [resolvable:$true] %s350
      %353 = dma.hbm_to_vmem [thread:$0]  %s53, 64, %s351, [#allocation39]
    $region109: #{cvae_forward.1} parent=1 // pred_fallthru
      _
    // Predicated region
    $region110: #{cvae_forward.1} parent=1 // pred_check
      _
    $region111: #{cvae_forward.1} parent=1 // pred_check_branch
      %355 = sbr.rel (0) target = $region113
    $region112: #{cvae_forward.1} parent=1 // pred_region
      %s357 = ssub.s32 4096, 4096
      %358 = vsyncadd [#allocation42], %s357
      %s359 = sshll.u32 [#allocation41], 4
      %s360 = int_to_ptr.vmem [resolvable:$true] %s359
      %365 = dma.hbm_to_vmem [thread:$0]  %s55, 4096, %s360, [#allocation42], 64, 64, 4
    $region113: #{cvae_forward.1} parent=1 // pred_fallthru
      _
    // Predicated region
    $region114: #{cvae_forward.1} parent=1 // pred_check
      _
    $region115: #{cvae_forward.1} parent=1 // pred_check_branch
      %367 = sbr.rel (0) target = $region117
    $region116: #{cvae_forward.1} parent=1 // pred_region
      %s369 = ssub.s32 16, 16
      %370 = vsyncadd [#allocation42], %s369
      %s372 = sshll.u32 [#allocation43], 4
      %s373 = int_to_ptr.vmem [resolvable:$true] %s372
      %375 = dma.hbm_to_vmem [thread:$0]  %s57, 16, %s373, [#allocation42]
    $region117: #{cvae_forward.1} parent=1 // pred_fallthru
      _
    // Predicated region
    $region118: #{cvae_forward.1} parent=1 // pred_check
      _
    $region119: #{cvae_forward.1} parent=1 // pred_check_branch
      %377 = sbr.rel (0) target = $region121
    $region120: #{cvae_forward.1} parent=1 // pred_region
      %s379 = ssub.s32 16, 16
      %380 = vsyncadd [#allocation45], %s379
      %s382 = sshll.u32 [#allocation44], 4
      %s383 = int_to_ptr.vmem [resolvable:$true] %s382
      %385 = dma.hbm_to_vmem [thread:$0]  %s59, 16, %s383, [#allocation45]
    $region121: #{cvae_forward.1} parent=1 // pred_fallthru
      _
    // Predicated region
    $region122: #{cvae_forward.1} parent=1 // pred_check
      _
    $region123: #{cvae_forward.1} parent=1 // pred_check_branch
      %387 = sbr.rel (0) target = $region125
    $region124: #{cvae_forward.1} parent=1 // pred_region
      %s389 = ssub.s32 16, 16
      %390 = vsyncadd [#allocation45], %s389
      %s392 = sshll.u32 [#allocation46], 4
      %s393 = int_to_ptr.vmem [resolvable:$true] %s392
      %395 = dma.hbm_to_vmem [thread:$0]  %s61, 16, %s393, [#allocation45]
    $region125: #{cvae_forward.1} parent=1 // pred_fallthru
      _
    // Predicated region
    $region126: #{cvae_forward.1} parent=1 // pred_check
      _
    $region127: #{cvae_forward.1} parent=1 // pred_check_branch
      %397 = sbr.rel (0) target = $region129
    $region128: #{cvae_forward.1} parent=1 // pred_region
      _
    $region129: #{cvae_forward.1} parent=1 // pred_fallthru
      _
    // Predicated region
    $region130: #{cvae_forward.1} parent=1 // pred_check
      _
    $region131: #{cvae_forward.1} parent=1 // pred_check_branch
      %399 = sbr.rel (0) target = $region133
    $region132: #{cvae_forward.1} parent=1 // pred_region
      %s401 = ssub.s32 16, 16
      %402 = vsyncadd [#allocation48], %s401
      %s404 = sshll.u32 [#allocation47], 4
      %s405 = int_to_ptr.vmem [resolvable:$true] %s404
      %407 = dma.hbm_to_vmem [thread:$0]  %s65, 16, %s405, [#allocation48]
    $region133: #{cvae_forward.1} parent=1 // pred_fallthru
      _
    // Predicated region
    $region134: #{cvae_forward.1} parent=1 // pred_check
      _
    $region135: #{cvae_forward.1} parent=1 // pred_check_branch
      %409 = sbr.rel (0) target = $region137
    $region136: #{cvae_forward.1} parent=1 // pred_region
      %410 = dma.done [#allocation3], 128
    $region137: #{cvae_forward.1} parent=1 // pred_fallthru
      _
    // Predicated region
    $region138: #{cvae_forward.1} parent=1 // pred_check
      _
    $region139: #{cvae_forward.1} parent=1 // pred_check_branch
      %412 = sbr.rel (0) target = $region141
    $region140: #{cvae_forward.1} parent=1 // pred_region
      %413 = dma.done [#allocation6], 128
    $region141: #{cvae_forward.1} parent=1 // pred_fallthru
      _
    // Predicated region
    $region142: #{cvae_forward.1} parent=1 // pred_check
      _
    $region143: #{cvae_forward.1} parent=1 // pred_check_branch
      %415 = sbr.rel (0) target = $region145
    $region144: #{cvae_forward.1} parent=1 // pred_region
      %416 = dma.done [#allocation6], 1152
    $region145: #{cvae_forward.1} parent=1 // pred_fallthru
      _
    // Predicated region
    $region146: #{cvae_forward.1} parent=1 // pred_check
      _
    $region147: #{cvae_forward.1} parent=1 // pred_check_branch
      %418 = sbr.rel (0) target = $region149
    $region148: #{cvae_forward.1} parent=1 // pred_region
      %419 = dma.done [#allocation9], 288
    $region149: #{cvae_forward.1} parent=1 // pred_fallthru
      _
    // Predicated region
    $region150: #{cvae_forward.1} parent=1 // pred_check
      _
    $region151: #{cvae_forward.1} parent=1 // pred_check_branch
      %421 = sbr.rel (0) target = $region153
    $region152: #{cvae_forward.1} parent=1 // pred_region
      %422 = dma.done [#allocation9], 144
    $region153: #{cvae_forward.1} parent=1 // pred_fallthru
      _
    // Predicated region
    $region154: #{cvae_forward.1} parent=1 // pred_check
      _
    $region155: #{cvae_forward.1} parent=1 // pred_check_branch
      %424 = sbr.rel (0) target = $region157
    $region156: #{cvae_forward.1} parent=1 // pred_region
      %425 = dma.done [#allocation12], 144
    $region157: #{cvae_forward.1} parent=1 // pred_fallthru
      _
    // Predicated region
    $region158: #{cvae_forward.1} parent=1 // pred_check
      _
    $region159: #{cvae_forward.1} parent=1 // pred_check_branch
      %427 = sbr.rel (0) target = $region161
    $region160: #{cvae_forward.1} parent=1 // pred_region
      %428 = dma.done [#allocation12], 144
    $region161: #{cvae_forward.1} parent=1 // pred_fallthru
      _
    // Predicated region
    $region162: #{cvae_forward.1} parent=1 // pred_check
      _
    $region163: #{cvae_forward.1} parent=1 // pred_check_branch
      %430 = sbr.rel (0) target = $region165
    $region164: #{cvae_forward.1} parent=1 // pred_region
      %431 = dma.done [#allocation15], 33024
    $region165: #{cvae_forward.1} parent=1 // pred_fallthru
      _
    // Predicated region
    $region166: #{cvae_forward.1} parent=1 // pred_check
      _
    $region167: #{cvae_forward.1} parent=1 // pred_check_branch
      %433 = sbr.rel (0) target = $region169
    $region168: #{cvae_forward.1} parent=1 // pred_region
      %434 = dma.done [#allocation15], 64
    $region169: #{cvae_forward.1} parent=1 // pred_fallthru
      _
    // Predicated region
    $region170: #{cvae_forward.1} parent=1 // pred_check
      _
    $region171: #{cvae_forward.1} parent=1 // pred_check_branch
      %436 = sbr.rel (0) target = $region173
    $region172: #{cvae_forward.1} parent=1 // pred_region
      %437 = dma.done [#allocation18], 64
    $region173: #{cvae_forward.1} parent=1 // pred_fallthru
      _
    // Predicated region
    $region174: #{cvae_forward.1} parent=1 // pred_check
      _
    $region175: #{cvae_forward.1} parent=1 // pred_check_branch
      %439 = sbr.rel (0) target = $region177
    $region176: #{cvae_forward.1} parent=1 // pred_region
      %440 = dma.done [#allocation18], 64
    $region177: #{cvae_forward.1} parent=1 // pred_fallthru
      _
    // Predicated region
    $region178: #{cvae_forward.1} parent=1 // pred_check
      _
    $region179: #{cvae_forward.1} parent=1 // pred_check_branch
      %442 = sbr.rel (0) target = $region181
    $region180: #{cvae_forward.1} parent=1 // pred_region
      %443 = dma.done [#allocation21], 4096
    $region181: #{cvae_forward.1} parent=1 // pred_fallthru
      _
    // Predicated region
    $region182: #{cvae_forward.1} parent=1 // pred_check
      _
    $region183: #{cvae_forward.1} parent=1 // pred_check_branch
      %445 = sbr.rel (0) target = $region185
    $region184: #{cvae_forward.1} parent=1 // pred_region
      %446 = dma.done [#allocation21], 16
    $region185: #{cvae_forward.1} parent=1 // pred_fallthru
      _
    // Predicated region
    $region186: #{cvae_forward.1} parent=1 // pred_check
      _
    $region187: #{cvae_forward.1} parent=1 // pred_check_branch
      %448 = sbr.rel (0) target = $region189
    $region188: #{cvae_forward.1} parent=1 // pred_region
      %449 = dma.done [#allocation24], 16
    $region189: #{cvae_forward.1} parent=1 // pred_fallthru
      _
    // Predicated region
    $region190: #{cvae_forward.1} parent=1 // pred_check
      _
    $region191: #{cvae_forward.1} parent=1 // pred_check_branch
      %451 = sbr.rel (0) target = $region193
    $region192: #{cvae_forward.1} parent=1 // pred_region
      %452 = dma.done [#allocation24], 16
    $region193: #{cvae_forward.1} parent=1 // pred_fallthru
      _
    // Predicated region
    $region194: #{cvae_forward.1} parent=1 // pred_check
      _
    $region195: #{cvae_forward.1} parent=1 // pred_check_branch
      %454 = sbr.rel (0) target = $region197
    $region196: #{cvae_forward.1} parent=1 // pred_region
      %455 = dma.done [#allocation27], 16
    $region197: #{cvae_forward.1} parent=1 // pred_fallthru
      _
    // Predicated region
    $region198: #{cvae_forward.1} parent=1 // pred_check
      _
    $region199: #{cvae_forward.1} parent=1 // pred_check_branch
      %457 = sbr.rel (0) target = $region201
    $region200: #{cvae_forward.1} parent=1 // pred_region
      %458 = dma.done [#allocation27], 576
    $region201: #{cvae_forward.1} parent=1 // pred_fallthru
      _
    // Predicated region
    $region202: #{cvae_forward.1} parent=1 // pred_check
      _
    $region203: #{cvae_forward.1} parent=1 // pred_check_branch
      %460 = sbr.rel (0) target = $region205
    $region204: #{cvae_forward.1} parent=1 // pred_region
      %461 = dma.done [#allocation30], 288
    $region205: #{cvae_forward.1} parent=1 // pred_fallthru
      _
    // Predicated region
    $region206: #{cvae_forward.1} parent=1 // pred_check
      _
    $region207: #{cvae_forward.1} parent=1 // pred_check_branch
      %463 = sbr.rel (0) target = $region209
    $region208: #{cvae_forward.1} parent=1 // pred_region
      %464 = dma.done [#allocation30], 144
    $region209: #{cvae_forward.1} parent=1 // pred_fallthru
      _
    // Predicated region
    $region210: #{cvae_forward.1} parent=1 // pred_check
      _
    $region211: #{cvae_forward.1} parent=1 // pred_check_branch
      %466 = sbr.rel (0) target = $region213
    $region212: #{cvae_forward.1} parent=1 // pred_region
      %467 = dma.done [#allocation33], 144
    $region213: #{cvae_forward.1} parent=1 // pred_fallthru
      _
    // Predicated region
    $region214: #{cvae_forward.1} parent=1 // pred_check
      _
    $region215: #{cvae_forward.1} parent=1 // pred_check_branch
      %469 = sbr.rel (0) target = $region217
    $region216: #{cvae_forward.1} parent=1 // pred_region
      %470 = dma.done [#allocation33], 144
    $region217: #{cvae_forward.1} parent=1 // pred_fallthru
      _
    // Predicated region
    $region218: #{cvae_forward.1} parent=1 // pred_check
      _
    $region219: #{cvae_forward.1} parent=1 // pred_check_branch
      %472 = sbr.rel (0) target = $region221
    $region220: #{cvae_forward.1} parent=1 // pred_region
      %473 = dma.done [#allocation36], 33024
    $region221: #{cvae_forward.1} parent=1 // pred_fallthru
      _
    // Predicated region
    $region222: #{cvae_forward.1} parent=1 // pred_check
      _
    $region223: #{cvae_forward.1} parent=1 // pred_check_branch
      %475 = sbr.rel (0) target = $region225
    $region224: #{cvae_forward.1} parent=1 // pred_region
      %476 = dma.done [#allocation36], 64
    $region225: #{cvae_forward.1} parent=1 // pred_fallthru
      _
    // Predicated region
    $region226: #{cvae_forward.1} parent=1 // pred_check
      _
    $region227: #{cvae_forward.1} parent=1 // pred_check_branch
      %478 = sbr.rel (0) target = $region229
    $region228: #{cvae_forward.1} parent=1 // pred_region
      %479 = dma.done [#allocation39], 64
    $region229: #{cvae_forward.1} parent=1 // pred_fallthru
      _
    // Predicated region
    $region230: #{cvae_forward.1} parent=1 // pred_check
      _
    $region231: #{cvae_forward.1} parent=1 // pred_check_branch
      %481 = sbr.rel (0) target = $region233
    $region232: #{cvae_forward.1} parent=1 // pred_region
      %482 = dma.done [#allocation39], 64
    $region233: #{cvae_forward.1} parent=1 // pred_fallthru
      _
    // Predicated region
    $region234: #{cvae_forward.1} parent=1 // pred_check
      _
    $region235: #{cvae_forward.1} parent=1 // pred_check_branch
      %484 = sbr.rel (0) target = $region237
    $region236: #{cvae_forward.1} parent=1 // pred_region
      %485 = dma.done [#allocation42], 4096
    $region237: #{cvae_forward.1} parent=1 // pred_fallthru
      _
    // Predicated region
    $region238: #{cvae_forward.1} parent=1 // pred_check
      _
    $region239: #{cvae_forward.1} parent=1 // pred_check_branch
      %487 = sbr.rel (0) target = $region241
    $region240: #{cvae_forward.1} parent=1 // pred_region
      %488 = dma.done [#allocation42], 16
    $region241: #{cvae_forward.1} parent=1 // pred_fallthru
      _
    // Predicated region
    $region242: #{cvae_forward.1} parent=1 // pred_check
      _
    $region243: #{cvae_forward.1} parent=1 // pred_check_branch
      %490 = sbr.rel (0) target = $region245
    $region244: #{cvae_forward.1} parent=1 // pred_region
      %491 = dma.done [#allocation45], 16
    $region245: #{cvae_forward.1} parent=1 // pred_fallthru
      _
    // Predicated region
    $region246: #{cvae_forward.1} parent=1 // pred_check
      _
    $region247: #{cvae_forward.1} parent=1 // pred_check_branch
      %493 = sbr.rel (0) target = $region249
    $region248: #{cvae_forward.1} parent=1 // pred_region
      %494 = dma.done [#allocation45], 16
    $region249: #{cvae_forward.1} parent=1 // pred_fallthru
      _
    // Predicated region
    $region250: #{cvae_forward.1} parent=1 // pred_check
      _
    $region251: #{cvae_forward.1} parent=1 // pred_check_branch
      %496 = sbr.rel (0) target = $region253
    $region252: #{cvae_forward.1} parent=1 // pred_region
      %497 = dma.done [#allocation48], 16
    $region253: #{cvae_forward.1} parent=1 // pred_fallthru
      _
    %v499 = vld [vmem:[#allocation7] sm:$0xff]
    %v500 = vld [vmem:[#allocation7 + $0x8] sm:$0xff]
    %v501 = vld [vmem:[#allocation7 + $0x10] sm:$0xff]
    %v502 = vld [vmem:[#allocation7 + $0x18] sm:$0xff]
    %v503 = vld [vmem:[#allocation7 + $0x20] sm:$0xf]
    %v504 = vld [vmem:[#allocation7 + $0x24] sm:$0xff]
    %v505 = vld [vmem:[#allocation7 + $0x2c] sm:$0xff]
    %v506 = vld [vmem:[#allocation7 + $0x34] sm:$0xff]
    %v507 = vld [vmem:[#allocation7 + $0x3c] sm:$0xff]
    %v508 = vld [vmem:[#allocation7 + $0x44] sm:$0xf]
    %v509 = vld [vmem:[#allocation8] sm:$0xff]
    %v510 = vld [vmem:[#allocation8 + $0x8] sm:$0xff]
    %v511 = vld [vmem:[#allocation8 + $0x10] sm:$0x3]
    %v512 = vld [vmem:[#allocation10] sm:$0xff]
    %v513 = vld [vmem:[#allocation10 + $0x8] sm:$0x1]
    %v514 = vld [vmem:[#allocation11] sm:$0xff]
    %v515 = vld [vmem:[#allocation11 + $0x8] sm:$0x1]
    %v516 = vld [vmem:[#allocation13] sm:$0xff]
    %v517 = vld [vmem:[#allocation13 + $0x8] sm:$0x1]
    %v518 = vld [vmem:[#allocation14] sm:$0xff]
    %v519 = vld [vmem:[#allocation14 + $0x8] sm:$0xff]
    %v520 = vld [vmem:[#allocation14 + $0x10] sm:$0xff]
    %v521 = vld [vmem:[#allocation14 + $0x18] sm:$0xff]
    %v522 = vld [vmem:[#allocation14 + $0x20] sm:$0xff]
    %v523 = vld [vmem:[#allocation14 + $0x28] sm:$0xff]
    %v524 = vld [vmem:[#allocation14 + $0x30] sm:$0xff]
    %v525 = vld [vmem:[#allocation14 + $0x38] sm:$0xff]
    %v526 = vld [vmem:[#allocation14 + $0x40] sm:$0xff]
    %v527 = vld [vmem:[#allocation14 + $0x48] sm:$0xff]
    %v528 = vld [vmem:[#allocation14 + $0x50] sm:$0xff]
    %v529 = vld [vmem:[#allocation14 + $0x58] sm:$0xff]
    %v530 = vld [vmem:[#allocation14 + $0x60] sm:$0xff]
    %v531 = vld [vmem:[#allocation14 + $0x68] sm:$0xff]
    %v532 = vld [vmem:[#allocation14 + $0x70] sm:$0xff]
    %v533 = vld [vmem:[#allocation14 + $0x78] sm:$0xff]
    %v534 = vld [vmem:[#allocation14 + $0x80] sm:$0xff]
    %v535 = vld [vmem:[#allocation14 + $0x88] sm:$0xff]
    %v536 = vld [vmem:[#allocation14 + $0x90] sm:$0xff]
    %v537 = vld [vmem:[#allocation14 + $0x98] sm:$0xff]
    %v538 = vld [vmem:[#allocation14 + $0xa0] sm:$0xff]
    %v539 = vld [vmem:[#allocation14 + $0xa8] sm:$0xff]
    %v540 = vld [vmem:[#allocation14 + $0xb0] sm:$0xff]
    %v541 = vld [vmem:[#allocation14 + $0xb8] sm:$0xff]
    %v542 = vld [vmem:[#allocation14 + $0xc0] sm:$0xff]
    %v543 = vld [vmem:[#allocation14 + $0xc8] sm:$0xff]
    %v544 = vld [vmem:[#allocation14 + $0xd0] sm:$0xff]
    %v545 = vld [vmem:[#allocation14 + $0xd8] sm:$0xff]
    %v546 = vld [vmem:[#allocation14 + $0xe0] sm:$0xff]
    %v547 = vld [vmem:[#allocation14 + $0xe8] sm:$0xff]
    %v548 = vld [vmem:[#allocation14 + $0xf0] sm:$0xff]
    %v549 = vld [vmem:[#allocation14 + $0xf8] sm:$0xff]
    %v550 = vld [vmem:[#allocation14 + $0x100] sm:$0xff]
    %v551 = vld [vmem:[#allocation14 + $0x108] sm:$0xff]
    %v552 = vld [vmem:[#allocation14 + $0x110] sm:$0xff]
    %v553 = vld [vmem:[#allocation14 + $0x118] sm:$0xff]
    %v554 = vld [vmem:[#allocation14 + $0x120] sm:$0xff]
    %v555 = vld [vmem:[#allocation14 + $0x128] sm:$0xff]
    %v556 = vld [vmem:[#allocation14 + $0x130] sm:$0xff]
    %v557 = vld [vmem:[#allocation14 + $0x138] sm:$0xff]
    %v558 = vld [vmem:[#allocation14 + $0x140] sm:$0xff]
    %v559 = vld [vmem:[#allocation14 + $0x148] sm:$0xff]
    %v560 = vld [vmem:[#allocation14 + $0x150] sm:$0xff]
    %v561 = vld [vmem:[#allocation14 + $0x158] sm:$0xff]
    %v562 = vld [vmem:[#allocation14 + $0x160] sm:$0xff]
    %v563 = vld [vmem:[#allocation14 + $0x168] sm:$0xff]
    %v564 = vld [vmem:[#allocation14 + $0x170] sm:$0xff]
    %v565 = vld [vmem:[#allocation14 + $0x178] sm:$0xff]
    %v566 = vld [vmem:[#allocation14 + $0x180] sm:$0xff]
    %v567 = vld [vmem:[#allocation14 + $0x188] sm:$0xff]
    %v568 = vld [vmem:[#allocation14 + $0x190] sm:$0xff]
    %v569 = vld [vmem:[#allocation14 + $0x198] sm:$0xff]
    %v570 = vld [vmem:[#allocation14 + $0x1a0] sm:$0xff]
    %v571 = vld [vmem:[#allocation14 + $0x1a8] sm:$0xff]
    %v572 = vld [vmem:[#allocation14 + $0x1b0] sm:$0xff]
    %v573 = vld [vmem:[#allocation14 + $0x1b8] sm:$0xff]
    %v574 = vld [vmem:[#allocation14 + $0x1c0] sm:$0xff]
    %v575 = vld [vmem:[#allocation14 + $0x1c8] sm:$0xff]
    %v576 = vld [vmem:[#allocation14 + $0x1d0] sm:$0xff]
    %v577 = vld [vmem:[#allocation14 + $0x1d8] sm:$0xff]
    %v578 = vld [vmem:[#allocation14 + $0x1e0] sm:$0xff]
    %v579 = vld [vmem:[#allocation14 + $0x1e8] sm:$0xff]
    %v580 = vld [vmem:[#allocation14 + $0x1f0] sm:$0xff]
    %v581 = vld [vmem:[#allocation14 + $0x1f8] sm:$0xff]
    %v582 = vld [vmem:[#allocation14 + $0x200] sm:$0xff]
    %v583 = vld [vmem:[#allocation14 + $0x208] sm:$0xff]
    %v584 = vld [vmem:[#allocation14 + $0x210] sm:$0xff]
    %v585 = vld [vmem:[#allocation14 + $0x218] sm:$0xff]
    %v586 = vld [vmem:[#allocation14 + $0x220] sm:$0xff]
    %v587 = vld [vmem:[#allocation14 + $0x228] sm:$0xff]
    %v588 = vld [vmem:[#allocation14 + $0x230] sm:$0xff]
    %v589 = vld [vmem:[#allocation14 + $0x238] sm:$0xff]
    %v590 = vld [vmem:[#allocation14 + $0x240] sm:$0xff]
    %v591 = vld [vmem:[#allocation14 + $0x248] sm:$0xff]
    %v592 = vld [vmem:[#allocation14 + $0x250] sm:$0xff]
    %v593 = vld [vmem:[#allocation14 + $0x258] sm:$0xff]
    %v594 = vld [vmem:[#allocation14 + $0x260] sm:$0xff]
    %v595 = vld [vmem:[#allocation14 + $0x268] sm:$0xff]
    %v596 = vld [vmem:[#allocation14 + $0x270] sm:$0xff]
    %v597 = vld [vmem:[#allocation14 + $0x278] sm:$0xff]
    %v598 = vld [vmem:[#allocation14 + $0x280] sm:$0xff]
    %v599 = vld [vmem:[#allocation14 + $0x288] sm:$0xff]
    %v600 = vld [vmem:[#allocation14 + $0x290] sm:$0xff]
    %v601 = vld [vmem:[#allocation14 + $0x298] sm:$0xff]
    %v602 = vld [vmem:[#allocation14 + $0x2a0] sm:$0xff]
    %v603 = vld [vmem:[#allocation14 + $0x2a8] sm:$0xff]
    %v604 = vld [vmem:[#allocation14 + $0x2b0] sm:$0xff]
    %v605 = vld [vmem:[#allocation14 + $0x2b8] sm:$0xff]
    %v606 = vld [vmem:[#allocation14 + $0x2c0] sm:$0xff]
    %v607 = vld [vmem:[#allocation14 + $0x2c8] sm:$0xff]
    %v608 = vld [vmem:[#allocation14 + $0x2d0] sm:$0xff]
    %v609 = vld [vmem:[#allocation14 + $0x2d8] sm:$0xff]
    %v610 = vld [vmem:[#allocation14 + $0x2e0] sm:$0xff]
    %v611 = vld [vmem:[#allocation14 + $0x2e8] sm:$0xff]
    %v612 = vld [vmem:[#allocation14 + $0x2f0] sm:$0xff]
    %v613 = vld [vmem:[#allocation14 + $0x2f8] sm:$0xff]
    %v614 = vld [vmem:[#allocation14 + $0x300] sm:$0xff]
    %v615 = vld [vmem:[#allocation14 + $0x308] sm:$0xff]
    %v616 = vld [vmem:[#allocation14 + $0x310] sm:$0xff]
    %v617 = vld [vmem:[#allocation14 + $0x318] sm:$0xff]
    %v618 = vld [vmem:[#allocation14 + $0x320] sm:$0xff]
    %v619 = vld [vmem:[#allocation14 + $0x328] sm:$0xff]
    %v620 = vld [vmem:[#allocation14 + $0x330] sm:$0xff]
    %v621 = vld [vmem:[#allocation14 + $0x338] sm:$0xff]
    %v622 = vld [vmem:[#allocation14 + $0x340] sm:$0xff]
    %v623 = vld [vmem:[#allocation14 + $0x348] sm:$0xff]
    %v624 = vld [vmem:[#allocation14 + $0x350] sm:$0xff]
    %v625 = vld [vmem:[#allocation14 + $0x358] sm:$0xff]
    %v626 = vld [vmem:[#allocation14 + $0x360] sm:$0xff]
    %v627 = vld [vmem:[#allocation14 + $0x368] sm:$0xff]
    %v628 = vld [vmem:[#allocation14 + $0x370] sm:$0xff]
    %v629 = vld [vmem:[#allocation14 + $0x378] sm:$0xff]
    %v630 = vld [vmem:[#allocation14 + $0x380] sm:$0xff]
    %v631 = vld [vmem:[#allocation14 + $0x388] sm:$0xff]
    %v632 = vld [vmem:[#allocation14 + $0x390] sm:$0xff]
    %v633 = vld [vmem:[#allocation14 + $0x398] sm:$0xff]
    %v634 = vld [vmem:[#allocation14 + $0x3a0] sm:$0xff]
    %v635 = vld [vmem:[#allocation14 + $0x3a8] sm:$0xff]
    %v636 = vld [vmem:[#allocation14 + $0x3b0] sm:$0xff]
    %v637 = vld [vmem:[#allocation14 + $0x3b8] sm:$0xff]
    %v638 = vld [vmem:[#allocation14 + $0x3c0] sm:$0xff]
    %v639 = vld [vmem:[#allocation14 + $0x3c8] sm:$0xff]
    %v640 = vld [vmem:[#allocation14 + $0x3d0] sm:$0xff]
    %v641 = vld [vmem:[#allocation14 + $0x3d8] sm:$0xff]
    %v642 = vld [vmem:[#allocation14 + $0x3e0] sm:$0xff]
    %v643 = vld [vmem:[#allocation14 + $0x3e8] sm:$0xff]
    %v644 = vld [vmem:[#allocation14 + $0x3f0] sm:$0xff]
    %v645 = vld [vmem:[#allocation14 + $0x3f8] sm:$0xff]
    %v646 = vld [vmem:[#allocation14 + $0x400] sm:$0xff]
    %v647 = vld [vmem:[#allocation14 + $0x408] sm:$0xff]
    %v648 = vld [vmem:[#allocation14 + $0x410] sm:$0xff]
    %v649 = vld [vmem:[#allocation14 + $0x418] sm:$0xff]
    %v650 = vld [vmem:[#allocation14 + $0x420] sm:$0xff]
    %v651 = vld [vmem:[#allocation14 + $0x428] sm:$0xff]
    %v652 = vld [vmem:[#allocation14 + $0x430] sm:$0xff]
    %v653 = vld [vmem:[#allocation14 + $0x438] sm:$0xff]
    %v654 = vld [vmem:[#allocation14 + $0x440] sm:$0xff]
    %v655 = vld [vmem:[#allocation14 + $0x448] sm:$0xff]
    %v656 = vld [vmem:[#allocation14 + $0x450] sm:$0xff]
    %v657 = vld [vmem:[#allocation14 + $0x458] sm:$0xff]
    %v658 = vld [vmem:[#allocation14 + $0x460] sm:$0xff]
    %v659 = vld [vmem:[#allocation14 + $0x468] sm:$0xff]
    %v660 = vld [vmem:[#allocation14 + $0x470] sm:$0xff]
    %v661 = vld [vmem:[#allocation14 + $0x478] sm:$0xff]
    %v662 = vld [vmem:[#allocation14 + $0x480] sm:$0xff]
    %v663 = vld [vmem:[#allocation14 + $0x488] sm:$0xff]
    %v664 = vld [vmem:[#allocation14 + $0x490] sm:$0xff]
    %v665 = vld [vmem:[#allocation14 + $0x498] sm:$0xff]
    %v666 = vld [vmem:[#allocation14 + $0x4a0] sm:$0xff]
    %v667 = vld [vmem:[#allocation14 + $0x4a8] sm:$0xff]
    %v668 = vld [vmem:[#allocation14 + $0x4b0] sm:$0xff]
    %v669 = vld [vmem:[#allocation14 + $0x4b8] sm:$0xff]
    %v670 = vld [vmem:[#allocation14 + $0x4c0] sm:$0xff]
    %v671 = vld [vmem:[#allocation14 + $0x4c8] sm:$0xff]
    %v672 = vld [vmem:[#allocation14 + $0x4d0] sm:$0xff]
    %v673 = vld [vmem:[#allocation14 + $0x4d8] sm:$0xff]
    %v674 = vld [vmem:[#allocation14 + $0x4e0] sm:$0xff]
    %v675 = vld [vmem:[#allocation14 + $0x4e8] sm:$0xff]
    %v676 = vld [vmem:[#allocation14 + $0x4f0] sm:$0xff]
    %v677 = vld [vmem:[#allocation14 + $0x4f8] sm:$0xff]
    %v678 = vld [vmem:[#allocation14 + $0x500] sm:$0xff]
    %v679 = vld [vmem:[#allocation14 + $0x508] sm:$0xff]
    %v680 = vld [vmem:[#allocation14 + $0x510] sm:$0xff]
    %v681 = vld [vmem:[#allocation14 + $0x518] sm:$0xff]
    %v682 = vld [vmem:[#allocation14 + $0x520] sm:$0xff]
    %v683 = vld [vmem:[#allocation14 + $0x528] sm:$0xff]
    %v684 = vld [vmem:[#allocation14 + $0x530] sm:$0xff]
    %v685 = vld [vmem:[#allocation14 + $0x538] sm:$0xff]
    %v686 = vld [vmem:[#allocation14 + $0x540] sm:$0xff]
    %v687 = vld [vmem:[#allocation14 + $0x548] sm:$0xff]
    %v688 = vld [vmem:[#allocation14 + $0x550] sm:$0xff]
    %v689 = vld [vmem:[#allocation14 + $0x558] sm:$0xff]
    %v690 = vld [vmem:[#allocation14 + $0x560] sm:$0xff]
    %v691 = vld [vmem:[#allocation14 + $0x568] sm:$0xff]
    %v692 = vld [vmem:[#allocation14 + $0x570] sm:$0xff]
    %v693 = vld [vmem:[#allocation14 + $0x578] sm:$0xff]
    %v694 = vld [vmem:[#allocation14 + $0x580] sm:$0xff]
    %v695 = vld [vmem:[#allocation14 + $0x588] sm:$0xff]
    %v696 = vld [vmem:[#allocation14 + $0x590] sm:$0xff]
    %v697 = vld [vmem:[#allocation14 + $0x598] sm:$0xff]
    %v698 = vld [vmem:[#allocation14 + $0x5a0] sm:$0xff]
    %v699 = vld [vmem:[#allocation14 + $0x5a8] sm:$0xff]
    %v700 = vld [vmem:[#allocation14 + $0x5b0] sm:$0xff]
    %v701 = vld [vmem:[#allocation14 + $0x5b8] sm:$0xff]
    %v702 = vld [vmem:[#allocation14 + $0x5c0] sm:$0xff]
    %v703 = vld [vmem:[#allocation14 + $0x5c8] sm:$0xff]
    %v704 = vld [vmem:[#allocation14 + $0x5d0] sm:$0xff]
    %v705 = vld [vmem:[#allocation14 + $0x5d8] sm:$0xff]
    %v706 = vld [vmem:[#allocation14 + $0x5e0] sm:$0xff]
    %v707 = vld [vmem:[#allocation14 + $0x5e8] sm:$0xff]
    %v708 = vld [vmem:[#allocation14 + $0x5f0] sm:$0xff]
    %v709 = vld [vmem:[#allocation14 + $0x5f8] sm:$0xff]
    %v710 = vld [vmem:[#allocation14 + $0x600] sm:$0xff]
    %v711 = vld [vmem:[#allocation14 + $0x608] sm:$0xff]
    %v712 = vld [vmem:[#allocation14 + $0x610] sm:$0xff]
    %v713 = vld [vmem:[#allocation14 + $0x618] sm:$0xff]
    %v714 = vld [vmem:[#allocation14 + $0x620] sm:$0xff]
    %v715 = vld [vmem:[#allocation14 + $0x628] sm:$0xff]
    %v716 = vld [vmem:[#allocation14 + $0x630] sm:$0xff]
    %v717 = vld [vmem:[#allocation14 + $0x638] sm:$0xff]
    %v718 = vld [vmem:[#allocation14 + $0x640] sm:$0xff]
    %v719 = vld [vmem:[#allocation14 + $0x648] sm:$0xff]
    %v720 = vld [vmem:[#allocation14 + $0x650] sm:$0xff]
    %v721 = vld [vmem:[#allocation14 + $0x658] sm:$0xff]
    %v722 = vld [vmem:[#allocation14 + $0x660] sm:$0xff]
    %v723 = vld [vmem:[#allocation14 + $0x668] sm:$0xff]
    %v724 = vld [vmem:[#allocation14 + $0x670] sm:$0xff]
    %v725 = vld [vmem:[#allocation14 + $0x678] sm:$0xff]
    %v726 = vld [vmem:[#allocation14 + $0x680] sm:$0xff]
    %v727 = vld [vmem:[#allocation14 + $0x688] sm:$0xff]
    %v728 = vld [vmem:[#allocation14 + $0x690] sm:$0xff]
    %v729 = vld [vmem:[#allocation14 + $0x698] sm:$0xff]
    %v730 = vld [vmem:[#allocation14 + $0x6a0] sm:$0xff]
    %v731 = vld [vmem:[#allocation14 + $0x6a8] sm:$0xff]
    %v732 = vld [vmem:[#allocation14 + $0x6b0] sm:$0xff]
    %v733 = vld [vmem:[#allocation14 + $0x6b8] sm:$0xff]
    %v734 = vld [vmem:[#allocation14 + $0x6c0] sm:$0xff]
    %v735 = vld [vmem:[#allocation14 + $0x6c8] sm:$0xff]
    %v736 = vld [vmem:[#allocation14 + $0x6d0] sm:$0xff]
    %v737 = vld [vmem:[#allocation14 + $0x6d8] sm:$0xff]
    %v738 = vld [vmem:[#allocation14 + $0x6e0] sm:$0xff]
    %v739 = vld [vmem:[#allocation14 + $0x6e8] sm:$0xff]
    %v740 = vld [vmem:[#allocation14 + $0x6f0] sm:$0xff]
    %v741 = vld [vmem:[#allocation14 + $0x6f8] sm:$0xff]
    %v742 = vld [vmem:[#allocation14 + $0x700] sm:$0xff]
    %v743 = vld [vmem:[#allocation14 + $0x708] sm:$0xff]
    %v744 = vld [vmem:[#allocation14 + $0x710] sm:$0xff]
    %v745 = vld [vmem:[#allocation14 + $0x718] sm:$0xff]
    %v746 = vld [vmem:[#allocation14 + $0x720] sm:$0xff]
    %v747 = vld [vmem:[#allocation14 + $0x728] sm:$0xff]
    %v748 = vld [vmem:[#allocation14 + $0x730] sm:$0xff]
    %v749 = vld [vmem:[#allocation14 + $0x738] sm:$0xff]
    %v750 = vld [vmem:[#allocation14 + $0x740] sm:$0xff]
    %v751 = vld [vmem:[#allocation14 + $0x748] sm:$0xff]
    %v752 = vld [vmem:[#allocation14 + $0x750] sm:$0xff]
    %v753 = vld [vmem:[#allocation14 + $0x758] sm:$0xff]
    %v754 = vld [vmem:[#allocation14 + $0x760] sm:$0xff]
    %v755 = vld [vmem:[#allocation14 + $0x768] sm:$0xff]
    %v756 = vld [vmem:[#allocation14 + $0x770] sm:$0xff]
    %v757 = vld [vmem:[#allocation14 + $0x778] sm:$0xff]
    %v758 = vld [vmem:[#allocation14 + $0x780] sm:$0xff]
    %v759 = vld [vmem:[#allocation14 + $0x788] sm:$0xff]
    %v760 = vld [vmem:[#allocation14 + $0x790] sm:$0xff]
    %v761 = vld [vmem:[#allocation14 + $0x798] sm:$0xff]
    %v762 = vld [vmem:[#allocation14 + $0x7a0] sm:$0xff]
    %v763 = vld [vmem:[#allocation14 + $0x7a8] sm:$0xff]
    %v764 = vld [vmem:[#allocation14 + $0x7b0] sm:$0xff]
    %v765 = vld [vmem:[#allocation14 + $0x7b8] sm:$0xff]
    %v766 = vld [vmem:[#allocation14 + $0x7c0] sm:$0xff]
    %v767 = vld [vmem:[#allocation14 + $0x7c8] sm:$0xff]
    %v768 = vld [vmem:[#allocation14 + $0x7d0] sm:$0xff]
    %v769 = vld [vmem:[#allocation14 + $0x7d8] sm:$0xff]
    %v770 = vld [vmem:[#allocation14 + $0x7e0] sm:$0xff]
    %v771 = vld [vmem:[#allocation14 + $0x7e8] sm:$0xff]
    %v772 = vld [vmem:[#allocation14 + $0x7f0] sm:$0xff]
    %v773 = vld [vmem:[#allocation14 + $0x7f8] sm:$0xff]
    %v774 = vld [vmem:[#allocation14 + $0x800] sm:$0x33]
    %v775 = vld [vmem:[#allocation14 + $0x808] sm:$0x33]
    %v776 = vld [vmem:[#allocation16] sm:$0xf]
    %v777 = vld [vmem:[#allocation17] sm:$0xf]
    %v778 = vld [vmem:[#allocation19] sm:$0xf]
    %v779 = vld [vmem:[#allocation20] sm:$0xf]
    %v780 = vld [vmem:[#allocation20 + $0x4] sm:$0xf]
    %v781 = vld [vmem:[#allocation20 + $0x8] sm:$0xf]
    %v782 = vld [vmem:[#allocation20 + $0xc] sm:$0xf]
    %v783 = vld [vmem:[#allocation20 + $0x10] sm:$0xf]
    %v784 = vld [vmem:[#allocation20 + $0x14] sm:$0xf]
    %v785 = vld [vmem:[#allocation20 + $0x18] sm:$0xf]
    %v786 = vld [vmem:[#allocation20 + $0x1c] sm:$0xf]
    %v787 = vld [vmem:[#allocation20 + $0x20] sm:$0xf]
    %v788 = vld [vmem:[#allocation20 + $0x24] sm:$0xf]
    %v789 = vld [vmem:[#allocation20 + $0x28] sm:$0xf]
    %v790 = vld [vmem:[#allocation20 + $0x2c] sm:$0xf]
    %v791 = vld [vmem:[#allocation20 + $0x30] sm:$0xf]
    %v792 = vld [vmem:[#allocation20 + $0x34] sm:$0xf]
    %v793 = vld [vmem:[#allocation20 + $0x38] sm:$0xf]
    %v794 = vld [vmem:[#allocation20 + $0x3c] sm:$0xf]
    %v795 = vld [vmem:[#allocation20 + $0x40] sm:$0xf]
    %v796 = vld [vmem:[#allocation20 + $0x44] sm:$0xf]
    %v797 = vld [vmem:[#allocation20 + $0x48] sm:$0xf]
    %v798 = vld [vmem:[#allocation20 + $0x4c] sm:$0xf]
    %v799 = vld [vmem:[#allocation20 + $0x50] sm:$0xf]
    %v800 = vld [vmem:[#allocation20 + $0x54] sm:$0xf]
    %v801 = vld [vmem:[#allocation20 + $0x58] sm:$0xf]
    %v802 = vld [vmem:[#allocation20 + $0x5c] sm:$0xf]
    %v803 = vld [vmem:[#allocation20 + $0x60] sm:$0xf]
    %v804 = vld [vmem:[#allocation20 + $0x64] sm:$0xf]
    %v805 = vld [vmem:[#allocation20 + $0x68] sm:$0xf]
    %v806 = vld [vmem:[#allocation20 + $0x6c] sm:$0xf]
    %v807 = vld [vmem:[#allocation20 + $0x70] sm:$0xf]
    %v808 = vld [vmem:[#allocation20 + $0x74] sm:$0xf]
    %v809 = vld [vmem:[#allocation20 + $0x78] sm:$0xf]
    %v810 = vld [vmem:[#allocation20 + $0x7c] sm:$0xf]
    %v811 = vld [vmem:[#allocation20 + $0x80] sm:$0xf]
    %v812 = vld [vmem:[#allocation20 + $0x84] sm:$0xf]
    %v813 = vld [vmem:[#allocation20 + $0x88] sm:$0xf]
    %v814 = vld [vmem:[#allocation20 + $0x8c] sm:$0xf]
    %v815 = vld [vmem:[#allocation20 + $0x90] sm:$0xf]
    %v816 = vld [vmem:[#allocation20 + $0x94] sm:$0xf]
    %v817 = vld [vmem:[#allocation20 + $0x98] sm:$0xf]
    %v818 = vld [vmem:[#allocation20 + $0x9c] sm:$0xf]
    %v819 = vld [vmem:[#allocation20 + $0xa0] sm:$0xf]
    %v820 = vld [vmem:[#allocation20 + $0xa4] sm:$0xf]
    %v821 = vld [vmem:[#allocation20 + $0xa8] sm:$0xf]
    %v822 = vld [vmem:[#allocation20 + $0xac] sm:$0xf]
    %v823 = vld [vmem:[#allocation20 + $0xb0] sm:$0xf]
    %v824 = vld [vmem:[#allocation20 + $0xb4] sm:$0xf]
    %v825 = vld [vmem:[#allocation20 + $0xb8] sm:$0xf]
    %v826 = vld [vmem:[#allocation20 + $0xbc] sm:$0xf]
    %v827 = vld [vmem:[#allocation20 + $0xc0] sm:$0xf]
    %v828 = vld [vmem:[#allocation20 + $0xc4] sm:$0xf]
    %v829 = vld [vmem:[#allocation20 + $0xc8] sm:$0xf]
    %v830 = vld [vmem:[#allocation20 + $0xcc] sm:$0xf]
    %v831 = vld [vmem:[#allocation20 + $0xd0] sm:$0xf]
    %v832 = vld [vmem:[#allocation20 + $0xd4] sm:$0xf]
    %v833 = vld [vmem:[#allocation20 + $0xd8] sm:$0xf]
    %v834 = vld [vmem:[#allocation20 + $0xdc] sm:$0xf]
    %v835 = vld [vmem:[#allocation20 + $0xe0] sm:$0xf]
    %v836 = vld [vmem:[#allocation20 + $0xe4] sm:$0xf]
    %v837 = vld [vmem:[#allocation20 + $0xe8] sm:$0xf]
    %v838 = vld [vmem:[#allocation20 + $0xec] sm:$0xf]
    %v839 = vld [vmem:[#allocation20 + $0xf0] sm:$0xf]
    %v840 = vld [vmem:[#allocation20 + $0xf4] sm:$0xf]
    %v841 = vld [vmem:[#allocation20 + $0xf8] sm:$0xf]
    %v842 = vld [vmem:[#allocation20 + $0xfc] sm:$0xf]
    %v843 = vld [vmem:[#allocation22] sm:$0x1]
    %v844 = vld [vmem:[#allocation23] sm:$0x1]
    %v845 = vld [vmem:[#allocation25] sm:$0x1]
    %v846 = vld [vmem:[%s33] sm:$0xf]
    %v847 = vld [vmem:[%s33 + $0x4] sm:$0xf]
    %v848 = vld [vmem:[%s33 + $0x8] sm:$0xf]
    %v849 = vld [vmem:[%s33 + $0xc] sm:$0xf]
    %v850 = vld [vmem:[%s33 + $0x10] sm:$0xf]
    %v851 = vld [vmem:[%s33 + $0x14] sm:$0xf]
    %v852 = vld [vmem:[%s33 + $0x18] sm:$0xf]
    %v853 = vld [vmem:[%s33 + $0x1c] sm:$0xf]
    %v854 = vld [vmem:[%s33 + $0x20] sm:$0xf]
    %v855 = vld [vmem:[%s33 + $0x24] sm:$0xf]
    %v856 = vld [vmem:[%s33 + $0x28] sm:$0xf]
    %v857 = vld [vmem:[%s33 + $0x2c] sm:$0xf]
    %v858 = vld [vmem:[%s33 + $0x30] sm:$0xf]
    %v859 = vld [vmem:[%s33 + $0x34] sm:$0xf]
    %v860 = vld [vmem:[%s33 + $0x38] sm:$0xf]
    %v861 = vld [vmem:[%s33 + $0x3c] sm:$0xf]
    %v862 = vld [vmem:[#allocation26] sm:$0x1]
    %v863 = vld [vmem:[#allocation28] sm:$0xff]
    %v864 = vld [vmem:[#allocation28 + $0x8] sm:$0xff]
    %v865 = vld [vmem:[#allocation28 + $0x10] sm:$0xff]
    %v866 = vld [vmem:[#allocation28 + $0x18] sm:$0xff]
    %v867 = vld [vmem:[#allocation28 + $0x20] sm:$0xf]
    %v868 = vld [vmem:[#allocation29] sm:$0xff]
    %v869 = vld [vmem:[#allocation29 + $0x8] sm:$0xff]
    %v870 = vld [vmem:[#allocation29 + $0x10] sm:$0x3]
    %v871 = vld [vmem:[#allocation31] sm:$0xff]
    %v872 = vld [vmem:[#allocation31 + $0x8] sm:$0x1]
    %v873 = vld [vmem:[#allocation32] sm:$0xff]
    %v874 = vld [vmem:[#allocation32 + $0x8] sm:$0x1]
    %v875 = vld [vmem:[#allocation34] sm:$0xff]
    %v876 = vld [vmem:[#allocation34 + $0x8] sm:$0x1]
    %v877 = vld [vmem:[#allocation35] sm:$0xff]
    %v878 = vld [vmem:[#allocation35 + $0x8] sm:$0xff]
    %v879 = vld [vmem:[#allocation35 + $0x10] sm:$0xff]
    %v880 = vld [vmem:[#allocation35 + $0x18] sm:$0xff]
    %v881 = vld [vmem:[#allocation35 + $0x20] sm:$0xff]
    %v882 = vld [vmem:[#allocation35 + $0x28] sm:$0xff]
    %v883 = vld [vmem:[#allocation35 + $0x30] sm:$0xff]
    %v884 = vld [vmem:[#allocation35 + $0x38] sm:$0xff]
    %v885 = vld [vmem:[#allocation35 + $0x40] sm:$0xff]
    %v886 = vld [vmem:[#allocation35 + $0x48] sm:$0xff]
    %v887 = vld [vmem:[#allocation35 + $0x50] sm:$0xff]
    %v888 = vld [vmem:[#allocation35 + $0x58] sm:$0xff]
    %v889 = vld [vmem:[#allocation35 + $0x60] sm:$0xff]
    %v890 = vld [vmem:[#allocation35 + $0x68] sm:$0xff]
    %v891 = vld [vmem:[#allocation35 + $0x70] sm:$0xff]
    %v892 = vld [vmem:[#allocation35 + $0x78] sm:$0xff]
    %v893 = vld [vmem:[#allocation35 + $0x80] sm:$0xff]
    %v894 = vld [vmem:[#allocation35 + $0x88] sm:$0xff]
    %v895 = vld [vmem:[#allocation35 + $0x90] sm:$0xff]
    %v896 = vld [vmem:[#allocation35 + $0x98] sm:$0xff]
    %v897 = vld [vmem:[#allocation35 + $0xa0] sm:$0xff]
    %v898 = vld [vmem:[#allocation35 + $0xa8] sm:$0xff]
    %v899 = vld [vmem:[#allocation35 + $0xb0] sm:$0xff]
    %v900 = vld [vmem:[#allocation35 + $0xb8] sm:$0xff]
    %v901 = vld [vmem:[#allocation35 + $0xc0] sm:$0xff]
    %v902 = vld [vmem:[#allocation35 + $0xc8] sm:$0xff]
    %v903 = vld [vmem:[#allocation35 + $0xd0] sm:$0xff]
    %v904 = vld [vmem:[#allocation35 + $0xd8] sm:$0xff]
    %v905 = vld [vmem:[#allocation35 + $0xe0] sm:$0xff]
    %v906 = vld [vmem:[#allocation35 + $0xe8] sm:$0xff]
    %v907 = vld [vmem:[#allocation35 + $0xf0] sm:$0xff]
    %v908 = vld [vmem:[#allocation35 + $0xf8] sm:$0xff]
    %v909 = vld [vmem:[#allocation35 + $0x100] sm:$0xff]
    %v910 = vld [vmem:[#allocation35 + $0x108] sm:$0xff]
    %v911 = vld [vmem:[#allocation35 + $0x110] sm:$0xff]
    %v912 = vld [vmem:[#allocation35 + $0x118] sm:$0xff]
    %v913 = vld [vmem:[#allocation35 + $0x120] sm:$0xff]
    %v914 = vld [vmem:[#allocation35 + $0x128] sm:$0xff]
    %v915 = vld [vmem:[#allocation35 + $0x130] sm:$0xff]
    %v916 = vld [vmem:[#allocation35 + $0x138] sm:$0xff]
    %v917 = vld [vmem:[#allocation35 + $0x140] sm:$0xff]
    %v918 = vld [vmem:[#allocation35 + $0x148] sm:$0xff]
    %v919 = vld [vmem:[#allocation35 + $0x150] sm:$0xff]
    %v920 = vld [vmem:[#allocation35 + $0x158] sm:$0xff]
    %v921 = vld [vmem:[#allocation35 + $0x160] sm:$0xff]
    %v922 = vld [vmem:[#allocation35 + $0x168] sm:$0xff]
    %v923 = vld [vmem:[#allocation35 + $0x170] sm:$0xff]
    %v924 = vld [vmem:[#allocation35 + $0x178] sm:$0xff]
    %v925 = vld [vmem:[#allocation35 + $0x180] sm:$0xff]
    %v926 = vld [vmem:[#allocation35 + $0x188] sm:$0xff]
    %v927 = vld [vmem:[#allocation35 + $0x190] sm:$0xff]
    %v928 = vld [vmem:[#allocation35 + $0x198] sm:$0xff]
    %v929 = vld [vmem:[#allocation35 + $0x1a0] sm:$0xff]
    %v930 = vld [vmem:[#allocation35 + $0x1a8] sm:$0xff]
    %v931 = vld [vmem:[#allocation35 + $0x1b0] sm:$0xff]
    %v932 = vld [vmem:[#allocation35 + $0x1b8] sm:$0xff]
    %v933 = vld [vmem:[#allocation35 + $0x1c0] sm:$0xff]
    %v934 = vld [vmem:[#allocation35 + $0x1c8] sm:$0xff]
    %v935 = vld [vmem:[#allocation35 + $0x1d0] sm:$0xff]
    %v936 = vld [vmem:[#allocation35 + $0x1d8] sm:$0xff]
    %v937 = vld [vmem:[#allocation35 + $0x1e0] sm:$0xff]
    %v938 = vld [vmem:[#allocation35 + $0x1e8] sm:$0xff]
    %v939 = vld [vmem:[#allocation35 + $0x1f0] sm:$0xff]
    %v940 = vld [vmem:[#allocation35 + $0x1f8] sm:$0xff]
    %v941 = vld [vmem:[#allocation35 + $0x200] sm:$0xff]
    %v942 = vld [vmem:[#allocation35 + $0x208] sm:$0xff]
    %v943 = vld [vmem:[#allocation35 + $0x210] sm:$0xff]
    %v944 = vld [vmem:[#allocation35 + $0x218] sm:$0xff]
    %v945 = vld [vmem:[#allocation35 + $0x220] sm:$0xff]
    %v946 = vld [vmem:[#allocation35 + $0x228] sm:$0xff]
    %v947 = vld [vmem:[#allocation35 + $0x230] sm:$0xff]
    %v948 = vld [vmem:[#allocation35 + $0x238] sm:$0xff]
    %v949 = vld [vmem:[#allocation35 + $0x240] sm:$0xff]
    %v950 = vld [vmem:[#allocation35 + $0x248] sm:$0xff]
    %v951 = vld [vmem:[#allocation35 + $0x250] sm:$0xff]
    %v952 = vld [vmem:[#allocation35 + $0x258] sm:$0xff]
    %v953 = vld [vmem:[#allocation35 + $0x260] sm:$0xff]
    %v954 = vld [vmem:[#allocation35 + $0x268] sm:$0xff]
    %v955 = vld [vmem:[#allocation35 + $0x270] sm:$0xff]
    %v956 = vld [vmem:[#allocation35 + $0x278] sm:$0xff]
    %v957 = vld [vmem:[#allocation35 + $0x280] sm:$0xff]
    %v958 = vld [vmem:[#allocation35 + $0x288] sm:$0xff]
    %v959 = vld [vmem:[#allocation35 + $0x290] sm:$0xff]
    %v960 = vld [vmem:[#allocation35 + $0x298] sm:$0xff]
    %v961 = vld [vmem:[#allocation35 + $0x2a0] sm:$0xff]
    %v962 = vld [vmem:[#allocation35 + $0x2a8] sm:$0xff]
    %v963 = vld [vmem:[#allocation35 + $0x2b0] sm:$0xff]
    %v964 = vld [vmem:[#allocation35 + $0x2b8] sm:$0xff]
    %v965 = vld [vmem:[#allocation35 + $0x2c0] sm:$0xff]
    %v966 = vld [vmem:[#allocation35 + $0x2c8] sm:$0xff]
    %v967 = vld [vmem:[#allocation35 + $0x2d0] sm:$0xff]
    %v968 = vld [vmem:[#allocation35 + $0x2d8] sm:$0xff]
    %v969 = vld [vmem:[#allocation35 + $0x2e0] sm:$0xff]
    %v970 = vld [vmem:[#allocation35 + $0x2e8] sm:$0xff]
    %v971 = vld [vmem:[#allocation35 + $0x2f0] sm:$0xff]
    %v972 = vld [vmem:[#allocation35 + $0x2f8] sm:$0xff]
    %v973 = vld [vmem:[#allocation35 + $0x300] sm:$0xff]
    %v974 = vld [vmem:[#allocation35 + $0x308] sm:$0xff]
    %v975 = vld [vmem:[#allocation35 + $0x310] sm:$0xff]
    %v976 = vld [vmem:[#allocation35 + $0x318] sm:$0xff]
    %v977 = vld [vmem:[#allocation35 + $0x320] sm:$0xff]
    %v978 = vld [vmem:[#allocation35 + $0x328] sm:$0xff]
    %v979 = vld [vmem:[#allocation35 + $0x330] sm:$0xff]
    %v980 = vld [vmem:[#allocation35 + $0x338] sm:$0xff]
    %v981 = vld [vmem:[#allocation35 + $0x340] sm:$0xff]
    %v982 = vld [vmem:[#allocation35 + $0x348] sm:$0xff]
    %v983 = vld [vmem:[#allocation35 + $0x350] sm:$0xff]
    %v984 = vld [vmem:[#allocation35 + $0x358] sm:$0xff]
    %v985 = vld [vmem:[#allocation35 + $0x360] sm:$0xff]
    %v986 = vld [vmem:[#allocation35 + $0x368] sm:$0xff]
    %v987 = vld [vmem:[#allocation35 + $0x370] sm:$0xff]
    %v988 = vld [vmem:[#allocation35 + $0x378] sm:$0xff]
    %v989 = vld [vmem:[#allocation35 + $0x380] sm:$0xff]
    %v990 = vld [vmem:[#allocation35 + $0x388] sm:$0xff]
    %v991 = vld [vmem:[#allocation35 + $0x390] sm:$0xff]
    %v992 = vld [vmem:[#allocation35 + $0x398] sm:$0xff]
    %v993 = vld [vmem:[#allocation35 + $0x3a0] sm:$0xff]
    %v994 = vld [vmem:[#allocation35 + $0x3a8] sm:$0xff]
    %v995 = vld [vmem:[#allocation35 + $0x3b0] sm:$0xff]
    %v996 = vld [vmem:[#allocation35 + $0x3b8] sm:$0xff]
    %v997 = vld [vmem:[#allocation35 + $0x3c0] sm:$0xff]
    %v998 = vld [vmem:[#allocation35 + $0x3c8] sm:$0xff]
    %v999 = vld [vmem:[#allocation35 + $0x3d0] sm:$0xff]
    %v1000 = vld [vmem:[#allocation35 + $0x3d8] sm:$0xff]
    %v1001 = vld [vmem:[#allocation35 + $0x3e0] sm:$0xff]
    %v1002 = vld [vmem:[#allocation35 + $0x3e8] sm:$0xff]
    %v1003 = vld [vmem:[#allocation35 + $0x3f0] sm:$0xff]
    %v1004 = vld [vmem:[#allocation35 + $0x3f8] sm:$0xff]
    %v1005 = vld [vmem:[#allocation35 + $0x400] sm:$0xff]
    %v1006 = vld [vmem:[#allocation35 + $0x408] sm:$0xff]
    %v1007 = vld [vmem:[#allocation35 + $0x410] sm:$0xff]
    %v1008 = vld [vmem:[#allocation35 + $0x418] sm:$0xff]
    %v1009 = vld [vmem:[#allocation35 + $0x420] sm:$0xff]
    %v1010 = vld [vmem:[#allocation35 + $0x428] sm:$0xff]
    %v1011 = vld [vmem:[#allocation35 + $0x430] sm:$0xff]
    %v1012 = vld [vmem:[#allocation35 + $0x438] sm:$0xff]
    %v1013 = vld [vmem:[#allocation35 + $0x440] sm:$0xff]
    %v1014 = vld [vmem:[#allocation35 + $0x448] sm:$0xff]
    %v1015 = vld [vmem:[#allocation35 + $0x450] sm:$0xff]
    %v1016 = vld [vmem:[#allocation35 + $0x458] sm:$0xff]
    %v1017 = vld [vmem:[#allocation35 + $0x460] sm:$0xff]
    %v1018 = vld [vmem:[#allocation35 + $0x468] sm:$0xff]
    %v1019 = vld [vmem:[#allocation35 + $0x470] sm:$0xff]
    %v1020 = vld [vmem:[#allocation35 + $0x478] sm:$0xff]
    %v1021 = vld [vmem:[#allocation35 + $0x480] sm:$0xff]
    %v1022 = vld [vmem:[#allocation35 + $0x488] sm:$0xff]
    %v1023 = vld [vmem:[#allocation35 + $0x490] sm:$0xff]
    %v1024 = vld [vmem:[#allocation35 + $0x498] sm:$0xff]
    %v1025 = vld [vmem:[#allocation35 + $0x4a0] sm:$0xff]
    %v1026 = vld [vmem:[#allocation35 + $0x4a8] sm:$0xff]
    %v1027 = vld [vmem:[#allocation35 + $0x4b0] sm:$0xff]
    %v1028 = vld [vmem:[#allocation35 + $0x4b8] sm:$0xff]
    %v1029 = vld [vmem:[#allocation35 + $0x4c0] sm:$0xff]
    %v1030 = vld [vmem:[#allocation35 + $0x4c8] sm:$0xff]
    %v1031 = vld [vmem:[#allocation35 + $0x4d0] sm:$0xff]
    %v1032 = vld [vmem:[#allocation35 + $0x4d8] sm:$0xff]
    %v1033 = vld [vmem:[#allocation35 + $0x4e0] sm:$0xff]
    %v1034 = vld [vmem:[#allocation35 + $0x4e8] sm:$0xff]
    %v1035 = vld [vmem:[#allocation35 + $0x4f0] sm:$0xff]
    %v1036 = vld [vmem:[#allocation35 + $0x4f8] sm:$0xff]
    %v1037 = vld [vmem:[#allocation35 + $0x500] sm:$0xff]
    %v1038 = vld [vmem:[#allocation35 + $0x508] sm:$0xff]
    %v1039 = vld [vmem:[#allocation35 + $0x510] sm:$0xff]
    %v1040 = vld [vmem:[#allocation35 + $0x518] sm:$0xff]
    %v1041 = vld [vmem:[#allocation35 + $0x520] sm:$0xff]
    %v1042 = vld [vmem:[#allocation35 + $0x528] sm:$0xff]
    %v1043 = vld [vmem:[#allocation35 + $0x530] sm:$0xff]
    %v1044 = vld [vmem:[#allocation35 + $0x538] sm:$0xff]
    %v1045 = vld [vmem:[#allocation35 + $0x540] sm:$0xff]
    %v1046 = vld [vmem:[#allocation35 + $0x548] sm:$0xff]
    %v1047 = vld [vmem:[#allocation35 + $0x550] sm:$0xff]
    %v1048 = vld [vmem:[#allocation35 + $0x558] sm:$0xff]
    %v1049 = vld [vmem:[#allocation35 + $0x560] sm:$0xff]
    %v1050 = vld [vmem:[#allocation35 + $0x568] sm:$0xff]
    %v1051 = vld [vmem:[#allocation35 + $0x570] sm:$0xff]
    %v1052 = vld [vmem:[#allocation35 + $0x578] sm:$0xff]
    %v1053 = vld [vmem:[#allocation35 + $0x580] sm:$0xff]
    %v1054 = vld [vmem:[#allocation35 + $0x588] sm:$0xff]
    %v1055 = vld [vmem:[#allocation35 + $0x590] sm:$0xff]
    %v1056 = vld [vmem:[#allocation35 + $0x598] sm:$0xff]
    %v1057 = vld [vmem:[#allocation35 + $0x5a0] sm:$0xff]
    %v1058 = vld [vmem:[#allocation35 + $0x5a8] sm:$0xff]
    %v1059 = vld [vmem:[#allocation35 + $0x5b0] sm:$0xff]
    %v1060 = vld [vmem:[#allocation35 + $0x5b8] sm:$0xff]
    %v1061 = vld [vmem:[#allocation35 + $0x5c0] sm:$0xff]
    %v1062 = vld [vmem:[#allocation35 + $0x5c8] sm:$0xff]
    %v1063 = vld [vmem:[#allocation35 + $0x5d0] sm:$0xff]
    %v1064 = vld [vmem:[#allocation35 + $0x5d8] sm:$0xff]
    %v1065 = vld [vmem:[#allocation35 + $0x5e0] sm:$0xff]
    %v1066 = vld [vmem:[#allocation35 + $0x5e8] sm:$0xff]
    %v1067 = vld [vmem:[#allocation35 + $0x5f0] sm:$0xff]
    %v1068 = vld [vmem:[#allocation35 + $0x5f8] sm:$0xff]
    %v1069 = vld [vmem:[#allocation35 + $0x600] sm:$0xff]
    %v1070 = vld [vmem:[#allocation35 + $0x608] sm:$0xff]
    %v1071 = vld [vmem:[#allocation35 + $0x610] sm:$0xff]
    %v1072 = vld [vmem:[#allocation35 + $0x618] sm:$0xff]
    %v1073 = vld [vmem:[#allocation35 + $0x620] sm:$0xff]
    %v1074 = vld [vmem:[#allocation35 + $0x628] sm:$0xff]
    %v1075 = vld [vmem:[#allocation35 + $0x630] sm:$0xff]
    %v1076 = vld [vmem:[#allocation35 + $0x638] sm:$0xff]
    %v1077 = vld [vmem:[#allocation35 + $0x640] sm:$0xff]
    %v1078 = vld [vmem:[#allocation35 + $0x648] sm:$0xff]
    %v1079 = vld [vmem:[#allocation35 + $0x650] sm:$0xff]
    %v1080 = vld [vmem:[#allocation35 + $0x658] sm:$0xff]
    %v1081 = vld [vmem:[#allocation35 + $0x660] sm:$0xff]
    %v1082 = vld [vmem:[#allocation35 + $0x668] sm:$0xff]
    %v1083 = vld [vmem:[#allocation35 + $0x670] sm:$0xff]
    %v1084 = vld [vmem:[#allocation35 + $0x678] sm:$0xff]
    %v1085 = vld [vmem:[#allocation35 + $0x680] sm:$0xff]
    %v1086 = vld [vmem:[#allocation35 + $0x688] sm:$0xff]
    %v1087 = vld [vmem:[#allocation35 + $0x690] sm:$0xff]
    %v1088 = vld [vmem:[#allocation35 + $0x698] sm:$0xff]
    %v1089 = vld [vmem:[#allocation35 + $0x6a0] sm:$0xff]
    %v1090 = vld [vmem:[#allocation35 + $0x6a8] sm:$0xff]
    %v1091 = vld [vmem:[#allocation35 + $0x6b0] sm:$0xff]
    %v1092 = vld [vmem:[#allocation35 + $0x6b8] sm:$0xff]
    %v1093 = vld [vmem:[#allocation35 + $0x6c0] sm:$0xff]
    %v1094 = vld [vmem:[#allocation35 + $0x6c8] sm:$0xff]
    %v1095 = vld [vmem:[#allocation35 + $0x6d0] sm:$0xff]
    %v1096 = vld [vmem:[#allocation35 + $0x6d8] sm:$0xff]
    %v1097 = vld [vmem:[#allocation35 + $0x6e0] sm:$0xff]
    %v1098 = vld [vmem:[#allocation35 + $0x6e8] sm:$0xff]
    %v1099 = vld [vmem:[#allocation35 + $0x6f0] sm:$0xff]
    %v1100 = vld [vmem:[#allocation35 + $0x6f8] sm:$0xff]
    %v1101 = vld [vmem:[#allocation35 + $0x700] sm:$0xff]
    %v1102 = vld [vmem:[#allocation35 + $0x708] sm:$0xff]
    %v1103 = vld [vmem:[#allocation35 + $0x710] sm:$0xff]
    %v1104 = vld [vmem:[#allocation35 + $0x718] sm:$0xff]
    %v1105 = vld [vmem:[#allocation35 + $0x720] sm:$0xff]
    %v1106 = vld [vmem:[#allocation35 + $0x728] sm:$0xff]
    %v1107 = vld [vmem:[#allocation35 + $0x730] sm:$0xff]
    %v1108 = vld [vmem:[#allocation35 + $0x738] sm:$0xff]
    %v1109 = vld [vmem:[#allocation35 + $0x740] sm:$0xff]
    %v1110 = vld [vmem:[#allocation35 + $0x748] sm:$0xff]
    %v1111 = vld [vmem:[#allocation35 + $0x750] sm:$0xff]
    %v1112 = vld [vmem:[#allocation35 + $0x758] sm:$0xff]
    %v1113 = vld [vmem:[#allocation35 + $0x760] sm:$0xff]
    %v1114 = vld [vmem:[#allocation35 + $0x768] sm:$0xff]
    %v1115 = vld [vmem:[#allocation35 + $0x770] sm:$0xff]
    %v1116 = vld [vmem:[#allocation35 + $0x778] sm:$0xff]
    %v1117 = vld [vmem:[#allocation35 + $0x780] sm:$0xff]
    %v1118 = vld [vmem:[#allocation35 + $0x788] sm:$0xff]
    %v1119 = vld [vmem:[#allocation35 + $0x790] sm:$0xff]
    %v1120 = vld [vmem:[#allocation35 + $0x798] sm:$0xff]
    %v1121 = vld [vmem:[#allocation35 + $0x7a0] sm:$0xff]
    %v1122 = vld [vmem:[#allocation35 + $0x7a8] sm:$0xff]
    %v1123 = vld [vmem:[#allocation35 + $0x7b0] sm:$0xff]
    %v1124 = vld [vmem:[#allocation35 + $0x7b8] sm:$0xff]
    %v1125 = vld [vmem:[#allocation35 + $0x7c0] sm:$0xff]
    %v1126 = vld [vmem:[#allocation35 + $0x7c8] sm:$0xff]
    %v1127 = vld [vmem:[#allocation35 + $0x7d0] sm:$0xff]
    %v1128 = vld [vmem:[#allocation35 + $0x7d8] sm:$0xff]
    %v1129 = vld [vmem:[#allocation35 + $0x7e0] sm:$0xff]
    %v1130 = vld [vmem:[#allocation35 + $0x7e8] sm:$0xff]
    %v1131 = vld [vmem:[#allocation35 + $0x7f0] sm:$0xff]
    %v1132 = vld [vmem:[#allocation35 + $0x7f8] sm:$0xff]
    %v1133 = vld [vmem:[#allocation35 + $0x800] sm:$0x33]
    %v1134 = vld [vmem:[#allocation35 + $0x808] sm:$0x33]
    %v1135 = vld [vmem:[#allocation37] sm:$0xf]
    %v1136 = vld [vmem:[#allocation38] sm:$0xf]
    %v1137 = vld [vmem:[#allocation40] sm:$0xf]
    %v1138 = vld [vmem:[#allocation41] sm:$0xf]
    %v1139 = vld [vmem:[#allocation41 + $0x4] sm:$0xf]
    %v1140 = vld [vmem:[#allocation41 + $0x8] sm:$0xf]
    %v1141 = vld [vmem:[#allocation41 + $0xc] sm:$0xf]
    %v1142 = vld [vmem:[#allocation41 + $0x10] sm:$0xf]
    %v1143 = vld [vmem:[#allocation41 + $0x14] sm:$0xf]
    %v1144 = vld [vmem:[#allocation41 + $0x18] sm:$0xf]
    %v1145 = vld [vmem:[#allocation41 + $0x1c] sm:$0xf]
    %v1146 = vld [vmem:[#allocation41 + $0x20] sm:$0xf]
    %v1147 = vld [vmem:[#allocation41 + $0x24] sm:$0xf]
    %v1148 = vld [vmem:[#allocation41 + $0x28] sm:$0xf]
    %v1149 = vld [vmem:[#allocation41 + $0x2c] sm:$0xf]
    %v1150 = vld [vmem:[#allocation41 + $0x30] sm:$0xf]
    %v1151 = vld [vmem:[#allocation41 + $0x34] sm:$0xf]
    %v1152 = vld [vmem:[#allocation41 + $0x38] sm:$0xf]
    %v1153 = vld [vmem:[#allocation41 + $0x3c] sm:$0xf]
    %v1154 = vld [vmem:[#allocation41 + $0x40] sm:$0xf]
    %v1155 = vld [vmem:[#allocation41 + $0x44] sm:$0xf]
    %v1156 = vld [vmem:[#allocation41 + $0x48] sm:$0xf]
    %v1157 = vld [vmem:[#allocation41 + $0x4c] sm:$0xf]
    %v1158 = vld [vmem:[#allocation41 + $0x50] sm:$0xf]
    %v1159 = vld [vmem:[#allocation41 + $0x54] sm:$0xf]
    %v1160 = vld [vmem:[#allocation41 + $0x58] sm:$0xf]
    %v1161 = vld [vmem:[#allocation41 + $0x5c] sm:$0xf]
    %v1162 = vld [vmem:[#allocation41 + $0x60] sm:$0xf]
    %v1163 = vld [vmem:[#allocation41 + $0x64] sm:$0xf]
    %v1164 = vld [vmem:[#allocation41 + $0x68] sm:$0xf]
    %v1165 = vld [vmem:[#allocation41 + $0x6c] sm:$0xf]
    %v1166 = vld [vmem:[#allocation41 + $0x70] sm:$0xf]
    %v1167 = vld [vmem:[#allocation41 + $0x74] sm:$0xf]
    %v1168 = vld [vmem:[#allocation41 + $0x78] sm:$0xf]
    %v1169 = vld [vmem:[#allocation41 + $0x7c] sm:$0xf]
    %v1170 = vld [vmem:[#allocation41 + $0x80] sm:$0xf]
    %v1171 = vld [vmem:[#allocation41 + $0x84] sm:$0xf]
    %v1172 = vld [vmem:[#allocation41 + $0x88] sm:$0xf]
    %v1173 = vld [vmem:[#allocation41 + $0x8c] sm:$0xf]
    %v1174 = vld [vmem:[#allocation41 + $0x90] sm:$0xf]
    %v1175 = vld [vmem:[#allocation41 + $0x94] sm:$0xf]
    %v1176 = vld [vmem:[#allocation41 + $0x98] sm:$0xf]
    %v1177 = vld [vmem:[#allocation41 + $0x9c] sm:$0xf]
    %v1178 = vld [vmem:[#allocation41 + $0xa0] sm:$0xf]
    %v1179 = vld [vmem:[#allocation41 + $0xa4] sm:$0xf]
    %v1180 = vld [vmem:[#allocation41 + $0xa8] sm:$0xf]
    %v1181 = vld [vmem:[#allocation41 + $0xac] sm:$0xf]
    %v1182 = vld [vmem:[#allocation41 + $0xb0] sm:$0xf]
    %v1183 = vld [vmem:[#allocation41 + $0xb4] sm:$0xf]
    %v1184 = vld [vmem:[#allocation41 + $0xb8] sm:$0xf]
    %v1185 = vld [vmem:[#allocation41 + $0xbc] sm:$0xf]
    %v1186 = vld [vmem:[#allocation41 + $0xc0] sm:$0xf]
    %v1187 = vld [vmem:[#allocation41 + $0xc4] sm:$0xf]
    %v1188 = vld [vmem:[#allocation41 + $0xc8] sm:$0xf]
    %v1189 = vld [vmem:[#allocation41 + $0xcc] sm:$0xf]
    %v1190 = vld [vmem:[#allocation41 + $0xd0] sm:$0xf]
    %v1191 = vld [vmem:[#allocation41 + $0xd4] sm:$0xf]
    %v1192 = vld [vmem:[#allocation41 + $0xd8] sm:$0xf]
    %v1193 = vld [vmem:[#allocation41 + $0xdc] sm:$0xf]
    %v1194 = vld [vmem:[#allocation41 + $0xe0] sm:$0xf]
    %v1195 = vld [vmem:[#allocation41 + $0xe4] sm:$0xf]
    %v1196 = vld [vmem:[#allocation41 + $0xe8] sm:$0xf]
    %v1197 = vld [vmem:[#allocation41 + $0xec] sm:$0xf]
    %v1198 = vld [vmem:[#allocation41 + $0xf0] sm:$0xf]
    %v1199 = vld [vmem:[#allocation41 + $0xf4] sm:$0xf]
    %v1200 = vld [vmem:[#allocation41 + $0xf8] sm:$0xf]
    %v1201 = vld [vmem:[#allocation41 + $0xfc] sm:$0xf]
    %v1202 = vld [vmem:[#allocation43] sm:$0x1]
    %v1203 = vld [vmem:[#allocation44] sm:$0x1]
    %v1204 = vld [vmem:[#allocation46] sm:$0x1]
    %v1205 = vld [vmem:[%s63] sm:$0xf]
    %v1206 = vld [vmem:[%s63 + $0x4] sm:$0xf]
    %v1207 = vld [vmem:[%s63 + $0x8] sm:$0xf]
    %v1208 = vld [vmem:[%s63 + $0xc] sm:$0xf]
    %v1209 = vld [vmem:[%s63 + $0x10] sm:$0xf]
    %v1210 = vld [vmem:[%s63 + $0x14] sm:$0xf]
    %v1211 = vld [vmem:[%s63 + $0x18] sm:$0xf]
    %v1212 = vld [vmem:[%s63 + $0x1c] sm:$0xf]
    %v1213 = vld [vmem:[%s63 + $0x20] sm:$0xf]
    %v1214 = vld [vmem:[%s63 + $0x24] sm:$0xf]
    %v1215 = vld [vmem:[%s63 + $0x28] sm:$0xf]
    %v1216 = vld [vmem:[%s63 + $0x2c] sm:$0xf]
    %v1217 = vld [vmem:[%s63 + $0x30] sm:$0xf]
    %v1218 = vld [vmem:[%s63 + $0x34] sm:$0xf]
    %v1219 = vld [vmem:[%s63 + $0x38] sm:$0xf]
    %v1220 = vld [vmem:[%s63 + $0x3c] sm:$0xf]
    %v1221 = vld [vmem:[#allocation47] sm:$0x1]
    %v1222 = vld [vmem:[#allocation2] sm:$0xff]
    %v1223 = vld [vmem:[%s3] sm:$0xff]
    %v1224 = vld [vmem:[#allocation5] sm:$0xff]
    %v1225 = vpack.c.bf16 %v1223, %v1223
    %v1226 = vpack.c.bf16 %v1222, %v1222
    %v1230 = vcombine.high %v509, %v509
    %v1232 = vunpack.c.l.s4 1983009808
    %v1233 = vunpack.c.0.s8 %v1232
    %v1234 = vlaneseq
    %v1235 = vshrl.u32 %v1234, 7
    %v1236 = vsub.s32 %v1233, %v1235
    %v1237 = vrot.slane %v509, %v1236
    %v1239 = vunpack.c.l.s4 1983009808
    %v1240 = vunpack.c.0.s8 %v1239
    %v1241 = vlaneseq
    %v1242 = vshrl.u32 %v1241, 7
    %v1243 = vsub.s32 %v1240, %v1242
    %v1244 = vrot.slane %v1230, %v1243
    %v1245 = vcombine.high %v1237, %v1237
    %v1246 = vcombine.high %v1244, %v1244
    %v1247 = vcombine.high %v510, %v510
    %v1249 = vunpack.c.l.s4 1983009808
    %v1250 = vunpack.c.0.s8 %v1249
    %v1251 = vlaneseq
    %v1252 = vshrl.u32 %v1251, 7
    %v1253 = vsub.s32 %v1250, %v1252
    %v1254 = vrot.slane %v510, %v1253
    %v1256 = vunpack.c.l.s4 1983009808
    %v1257 = vunpack.c.0.s8 %v1256
    %v1258 = vlaneseq
    %v1259 = vshrl.u32 %v1258, 7
    %v1260 = vsub.s32 %v1257, %v1259
    %v1261 = vrot.slane %v1247, %v1260
    %v1262 = vcombine.high %v1254, %v1254
    %v1263 = vcombine.high %v1261, %v1261
    %v1265 = vunpack.c.l.s4 1983009808
    %v1266 = vunpack.c.0.s8 %v1265
    %v1267 = vlaneseq
    %v1268 = vshrl.u32 %v1267, 7
    %v1269 = vsub.s32 %v1266, %v1268
    %v1270 = vrot.slane %v511, %v1269
    %vm1271 = vcmask 31744
    %v1273 = vsel %vm1271, %v1225, 0
    %vm1275 = vcmask 1041408
    %v1277 = vsel %vm1275, %v1237, 0
    %v1280 = vsel %vm1275, %v1245, 0
    %v1283 = vsel %vm1275, %v1244, 0
    %v1286 = vsel %vm1275, %v1246, 0
    %v1289 = vsel %vm1275, %v1254, 0
    %v1292 = vsel %vm1275, %v1262, 0
    %v1295 = vsel %vm1275, %v1261, 0
    %v1298 = vsel %vm1275, %v1263, 0
    %v1301 = vsel %vm1275, %v1270, 0
    %1303 = vmatprep.subr.bf16.mxu0 %v1280
    %1304 = vmatpush1.bf16.msra.mxu0 %v1277
    %1305 = vmatprep.subr.bf16.mxu0 0
    %1306 = vmatpush1.bf16.msra.mxu0 0
    %1307 = vmatprep.subr.bf16.mxu0 0
    %1308 = vmatpush1.bf16.msra.mxu0 0
    %1309 = vmatprep.subr.bf16.mxu0 0
    %1310 = vmatpush1.bf16.msra.mxu0 0
    %1311 = vmatprep.subr.bf16.mxu0 0
    %1312 = vmatpush1.bf16.msra.mxu0 0
    %1313 = vmatprep.subr.bf16.mxu0 0
    %1314 = vmatpush1.bf16.msra.mxu0 0
    %1315 = vmatprep.subr.bf16.mxu0 0
    %1316 = vmatpush1.bf16.msra.mxu0 0
    %1317 = vmatprep.subr.bf16.mxu0 0
    %1318 = vmatpush1.bf16.msra.mxu0 0
    %1319 = vmatprep.subr.bf16.mxu0 0
    %1320 = vmatpush1.bf16.msra.mxu0 0
    %1321 = vmatprep.subr.bf16.mxu0 0
    %1322 = vmatpush1.bf16.msra.mxu0 0
    %1323 = vmatprep.subr.bf16.mxu0 0
    %1324 = vmatpush1.bf16.msra.mxu0 0
    %1325 = vmatprep.subr.bf16.mxu0 0
    %1326 = vmatpush1.bf16.msra.mxu0 0
    %1327 = vmatprep.subr.bf16.mxu0 0
    %1328 = vmatpush1.bf16.msra.mxu0 0
    %1329 = vmatprep.subr.bf16.mxu0 0
    %1330 = vmatpush1.bf16.msra.mxu0 0
    %1331 = vmatprep.subr.bf16.mxu0 0
    %1332 = vmatpush1.bf16.msra.mxu0 0
    %1333 = vmatprep.subr.bf16.mxu0 0
    %1334 = vmatpush1.bf16.msra.mxu0 0
    %1335 = vmatprep.mubr.bf16.mxu0 0
    %1336 = vmatmul.mubr.bf16.gmra.mrb[0].mxu0 %v1273
    %v1337 = vpop.f32.mrb[0].mxu0
    %v1338 = vadd.f32 0.0, %v1337
    %v1339 = vpop.f32.mrb[0].mxu0
    %v1340 = vadd.f32 0.0, %v1339
    %v1341 = vpop.f32.mrb[0].mxu0
    %v1342 = vpop.f32.mrb[0].mxu0
    %1343 = vdwg.mxu0
    %1344 = vmatprep.subr.bf16.mxu0 %v1286
    %1345 = vmatpush1.bf16.msra.mxu0 %v1283
    %1346 = vmatprep.subr.bf16.mxu0 0
    %1347 = vmatpush1.bf16.msra.mxu0 0
    %1348 = vmatprep.subr.bf16.mxu0 0
    %1349 = vmatpush1.bf16.msra.mxu0 0
    %1350 = vmatprep.subr.bf16.mxu0 0
    %1351 = vmatpush1.bf16.msra.mxu0 0
    %1352 = vmatprep.subr.bf16.mxu0 0
    %1353 = vmatpush1.bf16.msra.mxu0 0
    %1354 = vmatprep.subr.bf16.mxu0 0
    %1355 = vmatpush1.bf16.msra.mxu0 0
    %1356 = vmatprep.subr.bf16.mxu0 0
    %1357 = vmatpush1.bf16.msra.mxu0 0
    %1358 = vmatprep.subr.bf16.mxu0 0
    %1359 = vmatpush1.bf16.msra.mxu0 0
    %1360 = vmatprep.subr.bf16.mxu0 0
    %1361 = vmatpush1.bf16.msra.mxu0 0
    %1362 = vmatprep.subr.bf16.mxu0 0
    %1363 = vmatpush1.bf16.msra.mxu0 0
    %1364 = vmatprep.subr.bf16.mxu0 0
    %1365 = vmatpush1.bf16.msra.mxu0 0
    %1366 = vmatprep.subr.bf16.mxu0 0
    %1367 = vmatpush1.bf16.msra.mxu0 0
    %1368 = vmatprep.subr.bf16.mxu0 0
    %1369 = vmatpush1.bf16.msra.mxu0 0
    %1370 = vmatprep.subr.bf16.mxu0 0
    %1371 = vmatpush1.bf16.msra.mxu0 0
    %1372 = vmatprep.subr.bf16.mxu0 0
    %1373 = vmatpush1.bf16.msra.mxu0 0
    %1374 = vmatprep.subr.bf16.mxu0 0
    %1375 = vmatpush1.bf16.msra.mxu0 0
    %1376 = vmatprep.mubr.bf16.mxu0 0
    %1377 = vmatmul.mubr.bf16.gmra.mrb[0].mxu0 %v1273
    %v1378 = vpop.f32.mrb[0].mxu0
    %v1379 = vadd.f32 0.0, %v1378
    %v1380 = vpop.f32.mrb[0].mxu0
    %v1381 = vadd.f32 0.0, %v1380
    %v1382 = vpop.f32.mrb[0].mxu0
    %v1383 = vpop.f32.mrb[0].mxu0
    %1384 = vdwg.mxu0
    %1385 = vmatprep.subr.bf16.mxu0 %v1292
    %1386 = vmatpush1.bf16.msra.mxu0 %v1289
    %1387 = vmatprep.subr.bf16.mxu0 0
    %1388 = vmatpush1.bf16.msra.mxu0 0
    %1389 = vmatprep.subr.bf16.mxu0 0
    %1390 = vmatpush1.bf16.msra.mxu0 0
    %1391 = vmatprep.subr.bf16.mxu0 0
    %1392 = vmatpush1.bf16.msra.mxu0 0
    %1393 = vmatprep.subr.bf16.mxu0 0
    %1394 = vmatpush1.bf16.msra.mxu0 0
    %1395 = vmatprep.subr.bf16.mxu0 0
    %1396 = vmatpush1.bf16.msra.mxu0 0
    %1397 = vmatprep.subr.bf16.mxu0 0
    %1398 = vmatpush1.bf16.msra.mxu0 0
    %1399 = vmatprep.subr.bf16.mxu0 0
    %1400 = vmatpush1.bf16.msra.mxu0 0
    %1401 = vmatprep.subr.bf16.mxu0 0
    %1402 = vmatpush1.bf16.msra.mxu0 0
    %1403 = vmatprep.subr.bf16.mxu0 0
    %1404 = vmatpush1.bf16.msra.mxu0 0
    %1405 = vmatprep.subr.bf16.mxu0 0
    %1406 = vmatpush1.bf16.msra.mxu0 0
    %1407 = vmatprep.subr.bf16.mxu0 0
    %1408 = vmatpush1.bf16.msra.mxu0 0
    %1409 = vmatprep.subr.bf16.mxu0 0
    %1410 = vmatpush1.bf16.msra.mxu0 0
    %1411 = vmatprep.subr.bf16.mxu0 0
    %1412 = vmatpush1.bf16.msra.mxu0 0
    %1413 = vmatprep.subr.bf16.mxu0 0
    %1414 = vmatpush1.bf16.msra.mxu0 0
    %1415 = vmatprep.subr.bf16.mxu0 0
    %1416 = vmatpush1.bf16.msra.mxu0 0
    %1417 = vmatprep.mubr.bf16.mxu0 0
    %1418 = vmatmul.mubr.bf16.gmra.mrb[0].mxu0 %v1273
    %v1419 = vpop.f32.mrb[0].mxu0
    %v1420 = vadd.f32 0.0, %v1419
    %v1421 = vpop.f32.mrb[0].mxu0
    %v1422 = vadd.f32 0.0, %v1421
    %v1423 = vpop.f32.mrb[0].mxu0
    %v1424 = vpop.f32.mrb[0].mxu0
    %1425 = vdwg.mxu0
    %1426 = vmatprep.subr.bf16.mxu0 %v1298
    %1427 = vmatpush1.bf16.msra.mxu0 %v1295
    %1428 = vmatprep.subr.bf16.mxu0 0
    %1429 = vmatpush1.bf16.msra.mxu0 0
    %1430 = vmatprep.subr.bf16.mxu0 0
    %1431 = vmatpush1.bf16.msra.mxu0 0
    %1432 = vmatprep.subr.bf16.mxu0 0
    %1433 = vmatpush1.bf16.msra.mxu0 0
    %1434 = vmatprep.subr.bf16.mxu0 0
    %1435 = vmatpush1.bf16.msra.mxu0 0
    %1436 = vmatprep.subr.bf16.mxu0 0
    %1437 = vmatpush1.bf16.msra.mxu0 0
    %1438 = vmatprep.subr.bf16.mxu0 0
    %1439 = vmatpush1.bf16.msra.mxu0 0
    %1440 = vmatprep.subr.bf16.mxu0 0
    %1441 = vmatpush1.bf16.msra.mxu0 0
    %1442 = vmatprep.subr.bf16.mxu0 0
    %1443 = vmatpush1.bf16.msra.mxu0 0
    %1444 = vmatprep.subr.bf16.mxu0 0
    %1445 = vmatpush1.bf16.msra.mxu0 0
    %1446 = vmatprep.subr.bf16.mxu0 0
    %1447 = vmatpush1.bf16.msra.mxu0 0
    %1448 = vmatprep.subr.bf16.mxu0 0
    %1449 = vmatpush1.bf16.msra.mxu0 0
    %1450 = vmatprep.subr.bf16.mxu0 0
    %1451 = vmatpush1.bf16.msra.mxu0 0
    %1452 = vmatprep.subr.bf16.mxu0 0
    %1453 = vmatpush1.bf16.msra.mxu0 0
    %1454 = vmatprep.subr.bf16.mxu0 0
    %1455 = vmatpush1.bf16.msra.mxu0 0
    %1456 = vmatprep.subr.bf16.mxu0 0
    %1457 = vmatpush1.bf16.msra.mxu0 0
    %1458 = vmatprep.mubr.bf16.mxu0 0
    %1459 = vmatmul.mubr.bf16.gmra.mrb[0].mxu0 %v1273
    %v1460 = vpop.f32.mrb[0].mxu0
    %v1461 = vadd.f32 0.0, %v1460
    %v1462 = vpop.f32.mrb[0].mxu0
    %v1463 = vadd.f32 0.0, %v1462
    %v1464 = vpop.f32.mrb[0].mxu0
    %v1465 = vpop.f32.mrb[0].mxu0
    %1466 = vdwg.mxu0
    %1467 = vmatprep.subr.bf16.mxu0 0
    %1468 = vmatpush1.bf16.msra.mxu0 %v1301
    %1469 = vmatprep.subr.bf16.mxu0 0
    %1470 = vmatpush1.bf16.msra.mxu0 0
    %1471 = vmatprep.subr.bf16.mxu0 0
    %1472 = vmatpush1.bf16.msra.mxu0 0
    %1473 = vmatprep.subr.bf16.mxu0 0
    %1474 = vmatpush1.bf16.msra.mxu0 0
    %1475 = vmatprep.subr.bf16.mxu0 0
    %1476 = vmatpush1.bf16.msra.mxu0 0
    %1477 = vmatprep.subr.bf16.mxu0 0
    %1478 = vmatpush1.bf16.msra.mxu0 0
    %1479 = vmatprep.subr.bf16.mxu0 0
    %1480 = vmatpush1.bf16.msra.mxu0 0
    %1481 = vmatprep.subr.bf16.mxu0 0
    %1482 = vmatpush1.bf16.msra.mxu0 0
    %1483 = vmatprep.subr.bf16.mxu0 0
    %1484 = vmatpush1.bf16.msra.mxu0 0
    %1485 = vmatprep.subr.bf16.mxu0 0
    %1486 = vmatpush1.bf16.msra.mxu0 0
    %1487 = vmatprep.subr.bf16.mxu0 0
    %1488 = vmatpush1.bf16.msra.mxu0 0
    %1489 = vmatprep.subr.bf16.mxu0 0
    %1490 = vmatpush1.bf16.msra.mxu0 0
    %1491 = vmatprep.subr.bf16.mxu0 0
    %1492 = vmatpush1.bf16.msra.mxu0 0
    %1493 = vmatprep.subr.bf16.mxu0 0
    %1494 = vmatpush1.bf16.msra.mxu0 0
    %1495 = vmatprep.subr.bf16.mxu0 0
    %1496 = vmatpush1.bf16.msra.mxu0 0
    %1497 = vmatprep.subr.bf16.mxu0 0
    %1498 = vmatpush1.bf16.msra.mxu0 0
    %1499 = vmatprep.mubr.bf16.mxu0 0
    %1500 = vmatmul.mubr.bf16.gmra.mrb[0].mxu0 %v1273
    %v1501 = vpop.f32.mrb[0].mxu0
    %v1502 = vadd.f32 0.0, %v1501
    %v1503 = vpop.f32.mrb[0].mxu0
    %v1504 = vpop.f32.mrb[0].mxu0
    %v1505 = vpop.f32.mrb[0].mxu0
    %1506 = vdwg.mxu0
    %v1517 = vunpack.c.l.b16 %v499
    %v1518 = vunpack.c.h.b16 %v499
    %v1519 = vunpack.c.l.b16 %v500
    %v1520 = vunpack.c.h.b16 %v500
    %v1521 = vunpack.c.l.b16 %v501
    %v1522 = vunpack.c.h.b16 %v501
    %v1523 = vunpack.c.l.b16 %v502
    %v1524 = vunpack.c.h.b16 %v502
    %v1525 = vunpack.c.l.b16 %v503
    %v1526 = vunpack.c.l.b16 %v504
    %v1527 = vunpack.c.h.b16 %v504
    %v1528 = vunpack.c.l.b16 %v505
    %v1529 = vunpack.c.h.b16 %v505
    %v1530 = vunpack.c.l.b16 %v506
    %v1531 = vunpack.c.h.b16 %v506
    %v1532 = vunpack.c.l.b16 %v507
    %v1533 = vunpack.c.h.b16 %v507
    %v1534 = vunpack.c.l.b16 %v508
    %v1535 = vpack.c.b16 %v1526, %v1517
    %v1536 = vpack.c.b16 %v1527, %v1518
    %v1537 = vpack.c.b16 %v1528, %v1519
    %v1538 = vpack.c.b16 %v1529, %v1520
    %v1539 = vpack.c.b16 %v1530, %v1521
    %v1540 = vpack.c.b16 %v1531, %v1522
    %v1541 = vpack.c.b16 %v1532, %v1523
    %v1542 = vpack.c.b16 %v1533, %v1524
    %v1543 = vpack.c.b16 %v1534, %v1525
    %vm1553 = vcmask 130048
    %v1555 = vsel %vm1553, %v1226, 0
    %1557 = vmatprep.subr.bf16.mxu0 %v1536
    %1558 = vmatpush1.bf16.msra.mxu0 %v1535
    %1559 = vmatprep.subr.bf16.mxu0 0
    %1560 = vmatpush1.bf16.msra.mxu0 0
    %1561 = vmatprep.subr.bf16.mxu0 0
    %1562 = vmatpush1.bf16.msra.mxu0 0
    %1563 = vmatprep.subr.bf16.mxu0 0
    %1564 = vmatpush1.bf16.msra.mxu0 0
    %1565 = vmatprep.subr.bf16.mxu0 0
    %1566 = vmatpush1.bf16.msra.mxu0 0
    %1567 = vmatprep.subr.bf16.mxu0 0
    %1568 = vmatpush1.bf16.msra.mxu0 0
    %1569 = vmatprep.subr.bf16.mxu0 0
    %1570 = vmatpush1.bf16.msra.mxu0 0
    %1571 = vmatprep.subr.bf16.mxu0 0
    %1572 = vmatpush1.bf16.msra.mxu0 0
    %1573 = vmatprep.subr.bf16.mxu0 0
    %1574 = vmatpush1.bf16.msra.mxu0 0
    %1575 = vmatprep.subr.bf16.mxu0 0
    %1576 = vmatpush1.bf16.msra.mxu0 0
    %1577 = vmatprep.subr.bf16.mxu0 0
    %1578 = vmatpush1.bf16.msra.mxu0 0
    %1579 = vmatprep.subr.bf16.mxu0 0
    %1580 = vmatpush1.bf16.msra.mxu0 0
    %1581 = vmatprep.subr.bf16.mxu0 0
    %1582 = vmatpush1.bf16.msra.mxu0 0
    %1583 = vmatprep.subr.bf16.mxu0 0
    %1584 = vmatpush1.bf16.msra.mxu0 0
    %1585 = vmatprep.subr.bf16.mxu0 0
    %1586 = vmatpush1.bf16.msra.mxu0 0
    %1587 = vmatprep.subr.bf16.mxu0 0
    %1588 = vmatpush1.bf16.msra.mxu0 0
    %1589 = vmatprep.mubr.bf16.mxu0 0
    %1590 = vmatmul.mubr.bf16.gmra.mrb[0].mxu0 %v1555
    %v1591 = vpop.f32.mrb[0].mxu0
    %v1592 = vadd.f32 %v1338, %v1591
    %v1593 = vpop.f32.mrb[0].mxu0
    %v1594 = vadd.f32 %v1340, %v1593
    %v1595 = vpop.f32.mrb[0].mxu0
    %v1596 = vpop.f32.mrb[0].mxu0
    %1597 = vdwg.mxu0
    %1598 = vmatprep.subr.bf16.mxu0 %v1538
    %1599 = vmatpush1.bf16.msra.mxu0 %v1537
    %1600 = vmatprep.subr.bf16.mxu0 0
    %1601 = vmatpush1.bf16.msra.mxu0 0
    %1602 = vmatprep.subr.bf16.mxu0 0
    %1603 = vmatpush1.bf16.msra.mxu0 0
    %1604 = vmatprep.subr.bf16.mxu0 0
    %1605 = vmatpush1.bf16.msra.mxu0 0
    %1606 = vmatprep.subr.bf16.mxu0 0
    %1607 = vmatpush1.bf16.msra.mxu0 0
    %1608 = vmatprep.subr.bf16.mxu0 0
    %1609 = vmatpush1.bf16.msra.mxu0 0
    %1610 = vmatprep.subr.bf16.mxu0 0
    %1611 = vmatpush1.bf16.msra.mxu0 0
    %1612 = vmatprep.subr.bf16.mxu0 0
    %1613 = vmatpush1.bf16.msra.mxu0 0
    %1614 = vmatprep.subr.bf16.mxu0 0
    %1615 = vmatpush1.bf16.msra.mxu0 0
    %1616 = vmatprep.subr.bf16.mxu0 0
    %1617 = vmatpush1.bf16.msra.mxu0 0
    %1618 = vmatprep.subr.bf16.mxu0 0
    %1619 = vmatpush1.bf16.msra.mxu0 0
    %1620 = vmatprep.subr.bf16.mxu0 0
    %1621 = vmatpush1.bf16.msra.mxu0 0
    %1622 = vmatprep.subr.bf16.mxu0 0
    %1623 = vmatpush1.bf16.msra.mxu0 0
    %1624 = vmatprep.subr.bf16.mxu0 0
    %1625 = vmatpush1.bf16.msra.mxu0 0
    %1626 = vmatprep.subr.bf16.mxu0 0
    %1627 = vmatpush1.bf16.msra.mxu0 0
    %1628 = vmatprep.subr.bf16.mxu0 0
    %1629 = vmatpush1.bf16.msra.mxu0 0
    %1630 = vmatprep.mubr.bf16.mxu0 0
    %1631 = vmatmul.mubr.bf16.gmra.mrb[0].mxu0 %v1555
    %v1632 = vpop.f32.mrb[0].mxu0
    %v1633 = vadd.f32 %v1379, %v1632
    %v1634 = vpop.f32.mrb[0].mxu0
    %v1635 = vadd.f32 %v1381, %v1634
    %v1636 = vpop.f32.mrb[0].mxu0
    %v1637 = vpop.f32.mrb[0].mxu0
    %1638 = vdwg.mxu0
    %1639 = vmatprep.subr.bf16.mxu0 %v1540
    %1640 = vmatpush1.bf16.msra.mxu0 %v1539
    %1641 = vmatprep.subr.bf16.mxu0 0
    %1642 = vmatpush1.bf16.msra.mxu0 0
    %1643 = vmatprep.subr.bf16.mxu0 0
    %1644 = vmatpush1.bf16.msra.mxu0 0
    %1645 = vmatprep.subr.bf16.mxu0 0
    %1646 = vmatpush1.bf16.msra.mxu0 0
    %1647 = vmatprep.subr.bf16.mxu0 0
    %1648 = vmatpush1.bf16.msra.mxu0 0
    %1649 = vmatprep.subr.bf16.mxu0 0
    %1650 = vmatpush1.bf16.msra.mxu0 0
    %1651 = vmatprep.subr.bf16.mxu0 0
    %1652 = vmatpush1.bf16.msra.mxu0 0
    %1653 = vmatprep.subr.bf16.mxu0 0
    %1654 = vmatpush1.bf16.msra.mxu0 0
    %1655 = vmatprep.subr.bf16.mxu0 0
    %1656 = vmatpush1.bf16.msra.mxu0 0
    %1657 = vmatprep.subr.bf16.mxu0 0
    %1658 = vmatpush1.bf16.msra.mxu0 0
    %1659 = vmatprep.subr.bf16.mxu0 0
    %1660 = vmatpush1.bf16.msra.mxu0 0
    %1661 = vmatprep.subr.bf16.mxu0 0
    %1662 = vmatpush1.bf16.msra.mxu0 0
    %1663 = vmatprep.subr.bf16.mxu0 0
    %1664 = vmatpush1.bf16.msra.mxu0 0
    %1665 = vmatprep.subr.bf16.mxu0 0
    %1666 = vmatpush1.bf16.msra.mxu0 0
    %1667 = vmatprep.subr.bf16.mxu0 0
    %1668 = vmatpush1.bf16.msra.mxu0 0
    %1669 = vmatprep.subr.bf16.mxu0 0
    %1670 = vmatpush1.bf16.msra.mxu0 0
    %1671 = vmatprep.mubr.bf16.mxu0 0
    %1672 = vmatmul.mubr.bf16.gmra.mrb[0].mxu0 %v1555
    %v1673 = vpop.f32.mrb[0].mxu0
    %v1674 = vadd.f32 %v1420, %v1673
    %v1675 = vpop.f32.mrb[0].mxu0
    %v1676 = vadd.f32 %v1422, %v1675
    %v1677 = vpop.f32.mrb[0].mxu0
    %v1678 = vpop.f32.mrb[0].mxu0
    %1679 = vdwg.mxu0
    %1680 = vmatprep.subr.bf16.mxu0 %v1542
    %1681 = vmatpush1.bf16.msra.mxu0 %v1541
    %1682 = vmatprep.subr.bf16.mxu0 0
    %1683 = vmatpush1.bf16.msra.mxu0 0
    %1684 = vmatprep.subr.bf16.mxu0 0
    %1685 = vmatpush1.bf16.msra.mxu0 0
    %1686 = vmatprep.subr.bf16.mxu0 0
    %1687 = vmatpush1.bf16.msra.mxu0 0
    %1688 = vmatprep.subr.bf16.mxu0 0
    %1689 = vmatpush1.bf16.msra.mxu0 0
    %1690 = vmatprep.subr.bf16.mxu0 0
    %1691 = vmatpush1.bf16.msra.mxu0 0
    %1692 = vmatprep.subr.bf16.mxu0 0
    %1693 = vmatpush1.bf16.msra.mxu0 0
    %1694 = vmatprep.subr.bf16.mxu0 0
    %1695 = vmatpush1.bf16.msra.mxu0 0
    %1696 = vmatprep.subr.bf16.mxu0 0
    %1697 = vmatpush1.bf16.msra.mxu0 0
    %1698 = vmatprep.subr.bf16.mxu0 0
    %1699 = vmatpush1.bf16.msra.mxu0 0
    %1700 = vmatprep.subr.bf16.mxu0 0
    %1701 = vmatpush1.bf16.msra.mxu0 0
    %1702 = vmatprep.subr.bf16.mxu0 0
    %1703 = vmatpush1.bf16.msra.mxu0 0
    %1704 = vmatprep.subr.bf16.mxu0 0
    %1705 = vmatpush1.bf16.msra.mxu0 0
    %1706 = vmatprep.subr.bf16.mxu0 0
    %1707 = vmatpush1.bf16.msra.mxu0 0
    %1708 = vmatprep.subr.bf16.mxu0 0
    %1709 = vmatpush1.bf16.msra.mxu0 0
    %1710 = vmatprep.subr.bf16.mxu0 0
    %1711 = vmatpush1.bf16.msra.mxu0 0
    %1712 = vmatprep.mubr.bf16.mxu0 0
    %1713 = vmatmul.mubr.bf16.gmra.mrb[0].mxu0 %v1555
    %v1714 = vpop.f32.mrb[0].mxu0
    %v1715 = vadd.f32 %v1461, %v1714
    %v1716 = vpop.f32.mrb[0].mxu0
    %v1717 = vadd.f32 %v1463, %v1716
    %v1718 = vpop.f32.mrb[0].mxu0
    %v1719 = vpop.f32.mrb[0].mxu0
    %1720 = vdwg.mxu0
    %1721 = vmatprep.subr.bf16.mxu0 0
    %1722 = vmatpush1.bf16.msra.mxu0 %v1543
    %1723 = vmatprep.subr.bf16.mxu0 0
    %1724 = vmatpush1.bf16.msra.mxu0 0
    %1725 = vmatprep.subr.bf16.mxu0 0
    %1726 = vmatpush1.bf16.msra.mxu0 0
    %1727 = vmatprep.subr.bf16.mxu0 0
    %1728 = vmatpush1.bf16.msra.mxu0 0
    %1729 = vmatprep.subr.bf16.mxu0 0
    %1730 = vmatpush1.bf16.msra.mxu0 0
    %1731 = vmatprep.subr.bf16.mxu0 0
    %1732 = vmatpush1.bf16.msra.mxu0 0
    %1733 = vmatprep.subr.bf16.mxu0 0
    %1734 = vmatpush1.bf16.msra.mxu0 0
    %1735 = vmatprep.subr.bf16.mxu0 0
    %1736 = vmatpush1.bf16.msra.mxu0 0
    %1737 = vmatprep.subr.bf16.mxu0 0
    %1738 = vmatpush1.bf16.msra.mxu0 0
    %1739 = vmatprep.subr.bf16.mxu0 0
    %1740 = vmatpush1.bf16.msra.mxu0 0
    %1741 = vmatprep.subr.bf16.mxu0 0
    %1742 = vmatpush1.bf16.msra.mxu0 0
    %1743 = vmatprep.subr.bf16.mxu0 0
    %1744 = vmatpush1.bf16.msra.mxu0 0
    %1745 = vmatprep.subr.bf16.mxu0 0
    %1746 = vmatpush1.bf16.msra.mxu0 0
    %1747 = vmatprep.subr.bf16.mxu0 0
    %1748 = vmatpush1.bf16.msra.mxu0 0
    %1749 = vmatprep.subr.bf16.mxu0 0
    %1750 = vmatpush1.bf16.msra.mxu0 0
    %1751 = vmatprep.subr.bf16.mxu0 0
    %1752 = vmatpush1.bf16.msra.mxu0 0
    %1753 = vmatprep.mubr.bf16.mxu0 0
    %1754 = vmatmul.mubr.bf16.gmra.mrb[0].mxu0 %v1555
    %v1755 = vpop.f32.mrb[0].mxu0
    %v1756 = vadd.f32 %v1502, %v1755
    %v1757 = vpop.f32.mrb[0].mxu0
    %v1758 = vpop.f32.mrb[0].mxu0
    %v1759 = vpop.f32.mrb[0].mxu0
    %1760 = vdwg.mxu0
    %v1763 = vlaneseq
    %v1764 = vshrl.u32 %v1763, 7
    %v1765 = vsub.s32 0, %v1764
    %v1766 = vrot.slane %v512, %v1765
    %v1767 = vlaneseq
    %v1768 = vshrl.u32 %v1767, 7
    %v1769 = vsub.s32 1, %v1768
    %v1770 = vrot.slane %v512, %v1769
    %v1771 = vlaneseq
    %v1772 = vshrl.u32 %v1771, 7
    %v1773 = vsub.s32 2, %v1772
    %v1774 = vrot.slane %v512, %v1773
    %v1775 = vlaneseq
    %v1776 = vshrl.u32 %v1775, 7
    %v1777 = vsub.s32 3, %v1776
    %v1778 = vrot.slane %v512, %v1777
    %v1779 = vlaneseq
    %v1780 = vshrl.u32 %v1779, 7
    %v1781 = vsub.s32 4, %v1780
    %v1782 = vrot.slane %v512, %v1781
    %v1783 = vlaneseq
    %v1784 = vshrl.u32 %v1783, 7
    %v1785 = vsub.s32 5, %v1784
    %v1786 = vrot.slane %v512, %v1785
    %v1787 = vlaneseq
    %v1788 = vshrl.u32 %v1787, 7
    %v1789 = vsub.s32 6, %v1788
    %v1790 = vrot.slane %v512, %v1789
    %v1791 = vlaneseq
    %v1792 = vshrl.u32 %v1791, 7
    %v1793 = vsub.s32 7, %v1792
    %v1794 = vrot.slane %v512, %v1793
    %v1795 = vlaneseq
    %v1796 = vshrl.u32 %v1795, 7
    %v1797 = vsub.s32 0, %v1796
    %v1798 = vrot.slane %v513, %v1797
    %v1808 = vadd.f32 %v1592, %v1766
    %v1809 = vadd.f32 %v1594, %v1770
    %v1810 = vadd.f32 %v1633, %v1774
    %v1811 = vadd.f32 %v1635, %v1778
    %v1812 = vadd.f32 %v1674, %v1782
    %v1813 = vadd.f32 %v1676, %v1786
    %v1814 = vadd.f32 %v1715, %v1790
    %v1815 = vadd.f32 %v1717, %v1794
    %v1816 = vadd.f32 %v1756, %v1798
    %vm1817 = vcmp.gt.f32.partialorder %v1808, 0.0
    %vm1818 = vcmp.gt.f32.partialorder %v1809, 0.0
    %vm1819 = vcmp.gt.f32.partialorder %v1810, 0.0
    %vm1820 = vcmp.gt.f32.partialorder %v1811, 0.0
    %vm1821 = vcmp.gt.f32.partialorder %v1812, 0.0
    %vm1822 = vcmp.gt.f32.partialorder %v1813, 0.0
    %vm1823 = vcmp.gt.f32.partialorder %v1814, 0.0
    %vm1824 = vcmp.gt.f32.partialorder %v1815, 0.0
    %vm1825 = vcmp.gt.f32.partialorder %v1816, 0.0
    %v1826 = vmul.f32 %v1808, 0.1
    %v1827 = vmul.f32 %v1809, 0.1
    %v1828 = vmul.f32 %v1810, 0.1
    %v1829 = vmul.f32 %v1811, 0.1
    %v1830 = vmul.f32 %v1812, 0.1
    %v1831 = vmul.f32 %v1813, 0.1
    %v1832 = vmul.f32 %v1814, 0.1
    %v1833 = vmul.f32 %v1815, 0.1
    %v1834 = vmul.f32 %v1816, 0.1
    %v1835 = vsel %vm1817, %v1808, %v1826
    %v1836 = vsel %vm1818, %v1809, %v1827
    %v1837 = vsel %vm1819, %v1810, %v1828
    %v1838 = vsel %vm1820, %v1811, %v1829
    %v1839 = vsel %vm1821, %v1812, %v1830
    %v1840 = vsel %vm1822, %v1813, %v1831
    %v1841 = vsel %vm1823, %v1814, %v1832
    %v1842 = vsel %vm1824, %v1815, %v1833
    %v1843 = vsel %vm1825, %v1816, %v1834
    %v1844 = vrot.slane %v1835, 4
    %v1845 = vadd.f32 %v1835, %v1844
    %v1846 = vrot.slane %v1845, 2
    %v1847 = vadd.f32 %v1845, %v1846
    %v1848 = vrot.slane %v1847, 1
    %v1849 = vadd.f32 %v1847, %v1848
    %v1850 = vrot.slane %v1836, 4
    %v1851 = vadd.f32 %v1836, %v1850
    %v1852 = vrot.slane %v1851, 2
    %v1853 = vadd.f32 %v1851, %v1852
    %v1854 = vrot.slane %v1853, 1
    %v1855 = vadd.f32 %v1853, %v1854
    %v1856 = vrot.slane %v1837, 4
    %v1857 = vadd.f32 %v1837, %v1856
    %v1858 = vrot.slane %v1857, 2
    %v1859 = vadd.f32 %v1857, %v1858
    %v1860 = vrot.slane %v1859, 1
    %v1861 = vadd.f32 %v1859, %v1860
    %v1862 = vrot.slane %v1838, 4
    %v1863 = vadd.f32 %v1838, %v1862
    %v1864 = vrot.slane %v1863, 2
    %v1865 = vadd.f32 %v1863, %v1864
    %v1866 = vrot.slane %v1865, 1
    %v1867 = vadd.f32 %v1865, %v1866
    %v1868 = vrot.slane %v1839, 4
    %v1869 = vadd.f32 %v1839, %v1868
    %v1870 = vrot.slane %v1869, 2
    %v1871 = vadd.f32 %v1869, %v1870
    %v1872 = vrot.slane %v1871, 1
    %v1873 = vadd.f32 %v1871, %v1872
    %v1874 = vrot.slane %v1840, 4
    %v1875 = vadd.f32 %v1840, %v1874
    %v1876 = vrot.slane %v1875, 2
    %v1877 = vadd.f32 %v1875, %v1876
    %v1878 = vrot.slane %v1877, 1
    %v1879 = vadd.f32 %v1877, %v1878
    %v1880 = vrot.slane %v1841, 4
    %v1881 = vadd.f32 %v1841, %v1880
    %v1882 = vrot.slane %v1881, 2
    %v1883 = vadd.f32 %v1881, %v1882
    %v1884 = vrot.slane %v1883, 1
    %v1885 = vadd.f32 %v1883, %v1884
    %v1886 = vrot.slane %v1842, 4
    %v1887 = vadd.f32 %v1842, %v1886
    %v1888 = vrot.slane %v1887, 2
    %v1889 = vadd.f32 %v1887, %v1888
    %v1890 = vrot.slane %v1889, 1
    %v1891 = vadd.f32 %v1889, %v1890
    %v1892 = vsel %vm1271, %v1843, 0.0
    %v1893 = vrot.slane %v1892, 4
    %v1894 = vadd.f32 %v1892, %v1893
    %v1895 = vrot.slane %v1894, 2
    %v1896 = vadd.f32 %v1894, %v1895
    %v1897 = vrot.slane %v1896, 1
    %v1898 = vadd.f32 %v1896, %v1897
    %v1899 = vrcp.pop 8.0
    %v1900 = vmul.f32 %v1849, %v1899
    %v1901 = vmul.f32 %v1855, %v1899
    %v1902 = vmul.f32 %v1861, %v1899
    %v1903 = vmul.f32 %v1867, %v1899
    %v1904 = vmul.f32 %v1873, %v1899
    %v1905 = vmul.f32 %v1879, %v1899
    %v1906 = vmul.f32 %v1885, %v1899
    %v1907 = vmul.f32 %v1891, %v1899
    %v1908 = vmul.f32 %v1898, %v1899
    %v1909 = vsub.f32 %v1835, %v1900
    %v1910 = vsub.f32 %v1836, %v1901
    %v1911 = vsub.f32 %v1837, %v1902
    %v1912 = vsub.f32 %v1838, %v1903
    %v1913 = vsub.f32 %v1839, %v1904
    %v1914 = vsub.f32 %v1840, %v1905
    %v1915 = vsub.f32 %v1841, %v1906
    %v1916 = vsub.f32 %v1842, %v1907
    %v1917 = vsub.f32 %v1843, %v1908
    %v1918 = vmul.f32 %v1909, %v1909
    %v1919 = vmul.f32 %v1910, %v1910
    %v1920 = vmul.f32 %v1911, %v1911
    %v1921 = vmul.f32 %v1912, %v1912
    %v1922 = vmul.f32 %v1913, %v1913
    %v1923 = vmul.f32 %v1914, %v1914
    %v1924 = vmul.f32 %v1915, %v1915
    %v1925 = vmul.f32 %v1916, %v1916
    %v1926 = vmul.f32 %v1917, %v1917
    %v1927 = vrot.slane %v1918, 4
    %v1928 = vadd.f32 %v1918, %v1927
    %v1929 = vrot.slane %v1928, 2
    %v1930 = vadd.f32 %v1928, %v1929
    %v1931 = vrot.slane %v1930, 1
    %v1932 = vadd.f32 %v1930, %v1931
    %v1933 = vrot.slane %v1919, 4
    %v1934 = vadd.f32 %v1919, %v1933
    %v1935 = vrot.slane %v1934, 2
    %v1936 = vadd.f32 %v1934, %v1935
    %v1937 = vrot.slane %v1936, 1
    %v1938 = vadd.f32 %v1936, %v1937
    %v1939 = vrot.slane %v1920, 4
    %v1940 = vadd.f32 %v1920, %v1939
    %v1941 = vrot.slane %v1940, 2
    %v1942 = vadd.f32 %v1940, %v1941
    %v1943 = vrot.slane %v1942, 1
    %v1944 = vadd.f32 %v1942, %v1943
    %v1945 = vrot.slane %v1921, 4
    %v1946 = vadd.f32 %v1921, %v1945
    %v1947 = vrot.slane %v1946, 2
    %v1948 = vadd.f32 %v1946, %v1947
    %v1949 = vrot.slane %v1948, 1
    %v1950 = vadd.f32 %v1948, %v1949
    %v1951 = vrot.slane %v1922, 4
    %v1952 = vadd.f32 %v1922, %v1951
    %v1953 = vrot.slane %v1952, 2
    %v1954 = vadd.f32 %v1952, %v1953
    %v1955 = vrot.slane %v1954, 1
    %v1956 = vadd.f32 %v1954, %v1955
    %v1957 = vrot.slane %v1923, 4
    %v1958 = vadd.f32 %v1923, %v1957
    %v1959 = vrot.slane %v1958, 2
    %v1960 = vadd.f32 %v1958, %v1959
    %v1961 = vrot.slane %v1960, 1
    %v1962 = vadd.f32 %v1960, %v1961
    %v1963 = vrot.slane %v1924, 4
    %v1964 = vadd.f32 %v1924, %v1963
    %v1965 = vrot.slane %v1964, 2
    %v1966 = vadd.f32 %v1964, %v1965
    %v1967 = vrot.slane %v1966, 1
    %v1968 = vadd.f32 %v1966, %v1967
    %v1969 = vrot.slane %v1925, 4
    %v1970 = vadd.f32 %v1925, %v1969
    %v1971 = vrot.slane %v1970, 2
    %v1972 = vadd.f32 %v1970, %v1971
    %v1973 = vrot.slane %v1972, 1
    %v1974 = vadd.f32 %v1972, %v1973
    %v1975 = vsel %vm1271, %v1926, 0.0
    %v1976 = vrot.slane %v1975, 4
    %v1977 = vadd.f32 %v1975, %v1976
    %v1978 = vrot.slane %v1977, 2
    %v1979 = vadd.f32 %v1977, %v1978
    %v1980 = vrot.slane %v1979, 1
    %v1981 = vadd.f32 %v1979, %v1980
    %v1982 = vmul.f32 %v1932, %v1899
    %v1983 = vmul.f32 %v1938, %v1899
    %v1984 = vmul.f32 %v1944, %v1899
    %v1985 = vmul.f32 %v1950, %v1899
    %v1986 = vmul.f32 %v1956, %v1899
    %v1987 = vmul.f32 %v1962, %v1899
    %v1988 = vmul.f32 %v1968, %v1899
    %v1989 = vmul.f32 %v1974, %v1899
    %v1990 = vmul.f32 %v1981, %v1899
    %v1991 = vadd.f32 %v1982, 1e-05
    %v1992 = vadd.f32 %v1983, 1e-05
    %v1993 = vadd.f32 %v1984, 1e-05
    %v1994 = vadd.f32 %v1985, 1e-05
    %v1995 = vadd.f32 %v1986, 1e-05
    %v1996 = vadd.f32 %v1987, 1e-05
    %v1997 = vadd.f32 %v1988, 1e-05
    %v1998 = vadd.f32 %v1989, 1e-05
    %v1999 = vadd.f32 %v1990, 1e-05
    %v2000 = vrsqrt.pop %v1991
    %v2001 = vrsqrt.pop %v1992
    %v2002 = vrsqrt.pop %v1993
    %v2003 = vrsqrt.pop %v1994
    %v2004 = vrsqrt.pop %v1995
    %v2005 = vrsqrt.pop %v1996
    %v2006 = vrsqrt.pop %v1997
    %v2007 = vrsqrt.pop %v1998
    %v2008 = vrsqrt.pop %v1999
    %v2009 = vmul.f32 %v1909, %v2000
    %v2010 = vmul.f32 %v1910, %v2001
    %v2011 = vmul.f32 %v1911, %v2002
    %v2012 = vmul.f32 %v1912, %v2003
    %v2013 = vmul.f32 %v1913, %v2004
    %v2014 = vmul.f32 %v1914, %v2005
    %v2015 = vmul.f32 %v1915, %v2006
    %v2016 = vmul.f32 %v1916, %v2007
    %v2017 = vmul.f32 %v1917, %v2008
    %v2020 = vlaneseq
    %v2021 = vshrl.u32 %v2020, 7
    %v2022 = vsub.s32 0, %v2021
    %v2023 = vrot.slane %v514, %v2022
    %v2024 = vlaneseq
    %v2025 = vshrl.u32 %v2024, 7
    %v2026 = vsub.s32 1, %v2025
    %v2027 = vrot.slane %v514, %v2026
    %v2028 = vlaneseq
    %v2029 = vshrl.u32 %v2028, 7
    %v2030 = vsub.s32 2, %v2029
    %v2031 = vrot.slane %v514, %v2030
    %v2032 = vlaneseq
    %v2033 = vshrl.u32 %v2032, 7
    %v2034 = vsub.s32 3, %v2033
    %v2035 = vrot.slane %v514, %v2034
    %v2036 = vlaneseq
    %v2037 = vshrl.u32 %v2036, 7
    %v2038 = vsub.s32 4, %v2037
    %v2039 = vrot.slane %v514, %v2038
    %v2040 = vlaneseq
    %v2041 = vshrl.u32 %v2040, 7
    %v2042 = vsub.s32 5, %v2041
    %v2043 = vrot.slane %v514, %v2042
    %v2044 = vlaneseq
    %v2045 = vshrl.u32 %v2044, 7
    %v2046 = vsub.s32 6, %v2045
    %v2047 = vrot.slane %v514, %v2046
    %v2048 = vlaneseq
    %v2049 = vshrl.u32 %v2048, 7
    %v2050 = vsub.s32 7, %v2049
    %v2051 = vrot.slane %v514, %v2050
    %v2052 = vlaneseq
    %v2053 = vshrl.u32 %v2052, 7
    %v2054 = vsub.s32 0, %v2053
    %v2055 = vrot.slane %v515, %v2054
    %v2065 = vmul.f32 %v2009, %v2023
    %v2066 = vmul.f32 %v2010, %v2027
    %v2067 = vmul.f32 %v2011, %v2031
    %v2068 = vmul.f32 %v2012, %v2035
    %v2069 = vmul.f32 %v2013, %v2039
    %v2070 = vmul.f32 %v2014, %v2043
    %v2071 = vmul.f32 %v2015, %v2047
    %v2072 = vmul.f32 %v2016, %v2051
    %v2073 = vmul.f32 %v2017, %v2055
    %v2076 = vlaneseq
    %v2077 = vshrl.u32 %v2076, 7
    %v2078 = vsub.s32 0, %v2077
    %v2079 = vrot.slane %v516, %v2078
    %v2080 = vlaneseq
    %v2081 = vshrl.u32 %v2080, 7
    %v2082 = vsub.s32 1, %v2081
    %v2083 = vrot.slane %v516, %v2082
    %v2084 = vlaneseq
    %v2085 = vshrl.u32 %v2084, 7
    %v2086 = vsub.s32 2, %v2085
    %v2087 = vrot.slane %v516, %v2086
    %v2088 = vlaneseq
    %v2089 = vshrl.u32 %v2088, 7
    %v2090 = vsub.s32 3, %v2089
    %v2091 = vrot.slane %v516, %v2090
    %v2092 = vlaneseq
    %v2093 = vshrl.u32 %v2092, 7
    %v2094 = vsub.s32 4, %v2093
    %v2095 = vrot.slane %v516, %v2094
    %v2096 = vlaneseq
    %v2097 = vshrl.u32 %v2096, 7
    %v2098 = vsub.s32 5, %v2097
    %v2099 = vrot.slane %v516, %v2098
    %v2100 = vlaneseq
    %v2101 = vshrl.u32 %v2100, 7
    %v2102 = vsub.s32 6, %v2101
    %v2103 = vrot.slane %v516, %v2102
    %v2104 = vlaneseq
    %v2105 = vshrl.u32 %v2104, 7
    %v2106 = vsub.s32 7, %v2105
    %v2107 = vrot.slane %v516, %v2106
    %v2108 = vlaneseq
    %v2109 = vshrl.u32 %v2108, 7
    %v2110 = vsub.s32 0, %v2109
    %v2111 = vrot.slane %v517, %v2110
    %v2121 = vadd.f32 %v2065, %v2079
    %v2122 = vadd.f32 %v2066, %v2083
    %v2123 = vadd.f32 %v2067, %v2087
    %v2124 = vadd.f32 %v2068, %v2091
    %v2125 = vadd.f32 %v2069, %v2095
    %v2126 = vadd.f32 %v2070, %v2099
    %v2127 = vadd.f32 %v2071, %v2103
    %v2128 = vadd.f32 %v2072, %v2107
    %v2129 = vadd.f32 %v2073, %v2111
    %v2130 = vpack.c.bf16 %v2121, %v2121
    %v2131 = vpack.c.bf16 %v2122, %v2122
    %v2132 = vpack.c.bf16 %v2123, %v2123
    %v2133 = vpack.c.bf16 %v2124, %v2124
    %v2134 = vpack.c.bf16 %v2125, %v2125
    %v2135 = vpack.c.bf16 %v2126, %v2126
    %v2136 = vpack.c.bf16 %v2127, %v2127
    %v2137 = vpack.c.bf16 %v2128, %v2128
    %v2138 = vpack.c.bf16 %v2129, %v2129
    %v2140 = vlaneseq
    %v2141 = vshrl.u32 %v2140, 7
    %v2142 = vsub.s32 0, %v2141
    %v2143 = vrot.slane %v776, %v2142
    %v2144 = vlaneseq
    %v2145 = vshrl.u32 %v2144, 7
    %v2146 = vsub.s32 1, %v2145
    %v2147 = vrot.slane %v776, %v2146
    %v2148 = vlaneseq
    %v2149 = vshrl.u32 %v2148, 7
    %v2150 = vsub.s32 2, %v2149
    %v2151 = vrot.slane %v776, %v2150
    %v2152 = vlaneseq
    %v2153 = vshrl.u32 %v2152, 7
    %v2154 = vsub.s32 3, %v2153
    %v2155 = vrot.slane %v776, %v2154
    %v2418 = vunpack.c.l.b16 %v518
    %v2419 = vunpack.c.h.b16 %v518
    %v2420 = vunpack.c.l.b16 %v519
    %v2421 = vunpack.c.h.b16 %v519
    %v2422 = vunpack.c.l.b16 %v520
    %v2423 = vunpack.c.h.b16 %v520
    %v2424 = vunpack.c.l.b16 %v521
    %v2425 = vunpack.c.h.b16 %v521
    %v2426 = vunpack.c.l.b16 %v522
    %v2427 = vunpack.c.h.b16 %v522
    %v2428 = vunpack.c.l.b16 %v523
    %v2429 = vunpack.c.h.b16 %v523
    %v2430 = vunpack.c.l.b16 %v524
    %v2431 = vunpack.c.h.b16 %v524
    %v2432 = vunpack.c.l.b16 %v525
    %v2433 = vunpack.c.h.b16 %v525
    %v2434 = vunpack.c.l.b16 %v526
    %v2435 = vunpack.c.h.b16 %v526
    %v2436 = vunpack.c.l.b16 %v527
    %v2437 = vunpack.c.h.b16 %v527
    %v2438 = vunpack.c.l.b16 %v528
    %v2439 = vunpack.c.h.b16 %v528
    %v2440 = vunpack.c.l.b16 %v529
    %v2441 = vunpack.c.h.b16 %v529
    %v2442 = vunpack.c.l.b16 %v530
    %v2443 = vunpack.c.h.b16 %v530
    %v2444 = vunpack.c.l.b16 %v531
    %v2445 = vunpack.c.h.b16 %v531
    %v2446 = vunpack.c.l.b16 %v532
    %v2447 = vunpack.c.h.b16 %v532
    %v2448 = vunpack.c.l.b16 %v533
    %v2449 = vunpack.c.h.b16 %v533
    %v2450 = vunpack.c.l.b16 %v534
    %v2451 = vunpack.c.h.b16 %v534
    %v2452 = vunpack.c.l.b16 %v535
    %v2453 = vunpack.c.h.b16 %v535
    %v2454 = vunpack.c.l.b16 %v536
    %v2455 = vunpack.c.h.b16 %v536
    %v2456 = vunpack.c.l.b16 %v537
    %v2457 = vunpack.c.h.b16 %v537
    %v2458 = vunpack.c.l.b16 %v538
    %v2459 = vunpack.c.h.b16 %v538
    %v2460 = vunpack.c.l.b16 %v539
    %v2461 = vunpack.c.h.b16 %v539
    %v2462 = vunpack.c.l.b16 %v540
    %v2463 = vunpack.c.h.b16 %v540
    %v2464 = vunpack.c.l.b16 %v541
    %v2465 = vunpack.c.h.b16 %v541
    %v2466 = vunpack.c.l.b16 %v542
    %v2467 = vunpack.c.h.b16 %v542
    %v2468 = vunpack.c.l.b16 %v543
    %v2469 = vunpack.c.h.b16 %v543
    %v2470 = vunpack.c.l.b16 %v544
    %v2471 = vunpack.c.h.b16 %v544
    %v2472 = vunpack.c.l.b16 %v545
    %v2473 = vunpack.c.h.b16 %v545
    %v2474 = vunpack.c.l.b16 %v546
    %v2475 = vunpack.c.h.b16 %v546
    %v2476 = vunpack.c.l.b16 %v547
    %v2477 = vunpack.c.h.b16 %v547
    %v2478 = vunpack.c.l.b16 %v548
    %v2479 = vunpack.c.h.b16 %v548
    %v2480 = vunpack.c.l.b16 %v549
    %v2481 = vunpack.c.h.b16 %v549
    %v2482 = vunpack.c.l.b16 %v550
    %v2483 = vunpack.c.h.b16 %v550
    %v2484 = vunpack.c.l.b16 %v551
    %v2485 = vunpack.c.h.b16 %v551
    %v2486 = vunpack.c.l.b16 %v552
    %v2487 = vunpack.c.h.b16 %v552
    %v2488 = vunpack.c.l.b16 %v553
    %v2489 = vunpack.c.h.b16 %v553
    %v2490 = vunpack.c.l.b16 %v554
    %v2491 = vunpack.c.h.b16 %v554
    %v2492 = vunpack.c.l.b16 %v555
    %v2493 = vunpack.c.h.b16 %v555
    %v2494 = vunpack.c.l.b16 %v556
    %v2495 = vunpack.c.h.b16 %v556
    %v2496 = vunpack.c.l.b16 %v557
    %v2497 = vunpack.c.h.b16 %v557
    %v2498 = vunpack.c.l.b16 %v558
    %v2499 = vunpack.c.h.b16 %v558
    %v2500 = vunpack.c.l.b16 %v559
    %v2501 = vunpack.c.h.b16 %v559
    %v2502 = vunpack.c.l.b16 %v560
    %v2503 = vunpack.c.h.b16 %v560
    %v2504 = vunpack.c.l.b16 %v561
    %v2505 = vunpack.c.h.b16 %v561
    %v2506 = vunpack.c.l.b16 %v562
    %v2507 = vunpack.c.h.b16 %v562
    %v2508 = vunpack.c.l.b16 %v563
    %v2509 = vunpack.c.h.b16 %v563
    %v2510 = vunpack.c.l.b16 %v564
    %v2511 = vunpack.c.h.b16 %v564
    %v2512 = vunpack.c.l.b16 %v565
    %v2513 = vunpack.c.h.b16 %v565
    %v2514 = vunpack.c.l.b16 %v566
    %v2515 = vunpack.c.h.b16 %v566
    %v2516 = vunpack.c.l.b16 %v567
    %v2517 = vunpack.c.h.b16 %v567
    %v2518 = vunpack.c.l.b16 %v568
    %v2519 = vunpack.c.h.b16 %v568
    %v2520 = vunpack.c.l.b16 %v569
    %v2521 = vunpack.c.h.b16 %v569
    %v2522 = vunpack.c.l.b16 %v570
    %v2523 = vunpack.c.h.b16 %v570
    %v2524 = vunpack.c.l.b16 %v571
    %v2525 = vunpack.c.h.b16 %v571
    %v2526 = vunpack.c.l.b16 %v572
    %v2527 = vunpack.c.h.b16 %v572
    %v2528 = vunpack.c.l.b16 %v573
    %v2529 = vunpack.c.h.b16 %v573
    %v2530 = vunpack.c.l.b16 %v574
    %v2531 = vunpack.c.h.b16 %v574
    %v2532 = vunpack.c.l.b16 %v575
    %v2533 = vunpack.c.h.b16 %v575
    %v2534 = vunpack.c.l.b16 %v576
    %v2535 = vunpack.c.h.b16 %v576
    %v2536 = vunpack.c.l.b16 %v577
    %v2537 = vunpack.c.h.b16 %v577
    %v2538 = vunpack.c.l.b16 %v578
    %v2539 = vunpack.c.h.b16 %v578
    %v2540 = vunpack.c.l.b16 %v579
    %v2541 = vunpack.c.h.b16 %v579
    %v2542 = vunpack.c.l.b16 %v580
    %v2543 = vunpack.c.h.b16 %v580
    %v2544 = vunpack.c.l.b16 %v581
    %v2545 = vunpack.c.h.b16 %v581
    %v2546 = vunpack.c.l.b16 %v582
    %v2547 = vunpack.c.h.b16 %v582
    %v2548 = vunpack.c.l.b16 %v583
    %v2549 = vunpack.c.h.b16 %v583
    %v2550 = vunpack.c.l.b16 %v584
    %v2551 = vunpack.c.h.b16 %v584
    %v2552 = vunpack.c.l.b16 %v585
    %v2553 = vunpack.c.h.b16 %v585
    %v2554 = vunpack.c.l.b16 %v586
    %v2555 = vunpack.c.h.b16 %v586
    %v2556 = vunpack.c.l.b16 %v587
    %v2557 = vunpack.c.h.b16 %v587
    %v2558 = vunpack.c.l.b16 %v588
    %v2559 = vunpack.c.h.b16 %v588
    %v2560 = vunpack.c.l.b16 %v589
    %v2561 = vunpack.c.h.b16 %v589
    %v2562 = vunpack.c.l.b16 %v590
    %v2563 = vunpack.c.h.b16 %v590
    %v2564 = vunpack.c.l.b16 %v591
    %v2565 = vunpack.c.h.b16 %v591
    %v2566 = vunpack.c.l.b16 %v592
    %v2567 = vunpack.c.h.b16 %v592
    %v2568 = vunpack.c.l.b16 %v593
    %v2569 = vunpack.c.h.b16 %v593
    %v2570 = vunpack.c.l.b16 %v594
    %v2571 = vunpack.c.h.b16 %v594
    %v2572 = vunpack.c.l.b16 %v595
    %v2573 = vunpack.c.h.b16 %v595
    %v2574 = vunpack.c.l.b16 %v596
    %v2575 = vunpack.c.h.b16 %v596
    %v2576 = vunpack.c.l.b16 %v597
    %v2577 = vunpack.c.h.b16 %v597
    %v2578 = vunpack.c.l.b16 %v598
    %v2579 = vunpack.c.h.b16 %v598
    %v2580 = vunpack.c.l.b16 %v599
    %v2581 = vunpack.c.h.b16 %v599
    %v2582 = vunpack.c.l.b16 %v600
    %v2583 = vunpack.c.h.b16 %v600
    %v2584 = vunpack.c.l.b16 %v601
    %v2585 = vunpack.c.h.b16 %v601
    %v2586 = vunpack.c.l.b16 %v602
    %v2587 = vunpack.c.h.b16 %v602
    %v2588 = vunpack.c.l.b16 %v603
    %v2589 = vunpack.c.h.b16 %v603
    %v2590 = vunpack.c.l.b16 %v604
    %v2591 = vunpack.c.h.b16 %v604
    %v2592 = vunpack.c.l.b16 %v605
    %v2593 = vunpack.c.h.b16 %v605
    %v2594 = vunpack.c.l.b16 %v606
    %v2595 = vunpack.c.h.b16 %v606
    %v2596 = vunpack.c.l.b16 %v607
    %v2597 = vunpack.c.h.b16 %v607
    %v2598 = vunpack.c.l.b16 %v608
    %v2599 = vunpack.c.h.b16 %v608
    %v2600 = vunpack.c.l.b16 %v609
    %v2601 = vunpack.c.h.b16 %v609
    %v2602 = vunpack.c.l.b16 %v610
    %v2603 = vunpack.c.h.b16 %v610
    %v2604 = vunpack.c.l.b16 %v611
    %v2605 = vunpack.c.h.b16 %v611
    %v2606 = vunpack.c.l.b16 %v612
    %v2607 = vunpack.c.h.b16 %v612
    %v2608 = vunpack.c.l.b16 %v613
    %v2609 = vunpack.c.h.b16 %v613
    %v2610 = vunpack.c.l.b16 %v614
    %v2611 = vunpack.c.h.b16 %v614
    %v2612 = vunpack.c.l.b16 %v615
    %v2613 = vunpack.c.h.b16 %v615
    %v2614 = vunpack.c.l.b16 %v616
    %v2615 = vunpack.c.h.b16 %v616
    %v2616 = vunpack.c.l.b16 %v617
    %v2617 = vunpack.c.h.b16 %v617
    %v2618 = vunpack.c.l.b16 %v618
    %v2619 = vunpack.c.h.b16 %v618
    %v2620 = vunpack.c.l.b16 %v619
    %v2621 = vunpack.c.h.b16 %v619
    %v2622 = vunpack.c.l.b16 %v620
    %v2623 = vunpack.c.h.b16 %v620
    %v2624 = vunpack.c.l.b16 %v621
    %v2625 = vunpack.c.h.b16 %v621
    %v2626 = vunpack.c.l.b16 %v622
    %v2627 = vunpack.c.h.b16 %v622
    %v2628 = vunpack.c.l.b16 %v623
    %v2629 = vunpack.c.h.b16 %v623
    %v2630 = vunpack.c.l.b16 %v624
    %v2631 = vunpack.c.h.b16 %v624
    %v2632 = vunpack.c.l.b16 %v625
    %v2633 = vunpack.c.h.b16 %v625
    %v2634 = vunpack.c.l.b16 %v626
    %v2635 = vunpack.c.h.b16 %v626
    %v2636 = vunpack.c.l.b16 %v627
    %v2637 = vunpack.c.h.b16 %v627
    %v2638 = vunpack.c.l.b16 %v628
    %v2639 = vunpack.c.h.b16 %v628
    %v2640 = vunpack.c.l.b16 %v629
    %v2641 = vunpack.c.h.b16 %v629
    %v2642 = vunpack.c.l.b16 %v630
    %v2643 = vunpack.c.h.b16 %v630
    %v2644 = vunpack.c.l.b16 %v631
    %v2645 = vunpack.c.h.b16 %v631
    %v2646 = vunpack.c.l.b16 %v632
    %v2647 = vunpack.c.h.b16 %v632
    %v2648 = vunpack.c.l.b16 %v633
    %v2649 = vunpack.c.h.b16 %v633
    %v2650 = vunpack.c.l.b16 %v634
    %v2651 = vunpack.c.h.b16 %v634
    %v2652 = vunpack.c.l.b16 %v635
    %v2653 = vunpack.c.h.b16 %v635
    %v2654 = vunpack.c.l.b16 %v636
    %v2655 = vunpack.c.h.b16 %v636
    %v2656 = vunpack.c.l.b16 %v637
    %v2657 = vunpack.c.h.b16 %v637
    %v2658 = vunpack.c.l.b16 %v638
    %v2659 = vunpack.c.h.b16 %v638
    %v2660 = vunpack.c.l.b16 %v639
    %v2661 = vunpack.c.h.b16 %v639
    %v2662 = vunpack.c.l.b16 %v640
    %v2663 = vunpack.c.h.b16 %v640
    %v2664 = vunpack.c.l.b16 %v641
    %v2665 = vunpack.c.h.b16 %v641
    %v2666 = vunpack.c.l.b16 %v642
    %v2667 = vunpack.c.h.b16 %v642
    %v2668 = vunpack.c.l.b16 %v643
    %v2669 = vunpack.c.h.b16 %v643
    %v2670 = vunpack.c.l.b16 %v644
    %v2671 = vunpack.c.h.b16 %v644
    %v2672 = vunpack.c.l.b16 %v645
    %v2673 = vunpack.c.h.b16 %v645
    %v2674 = vunpack.c.l.b16 %v646
    %v2675 = vunpack.c.h.b16 %v646
    %v2676 = vunpack.c.l.b16 %v647
    %v2677 = vunpack.c.h.b16 %v647
    %v2678 = vunpack.c.l.b16 %v648
    %v2679 = vunpack.c.h.b16 %v648
    %v2680 = vunpack.c.l.b16 %v649
    %v2681 = vunpack.c.h.b16 %v649
    %v2682 = vunpack.c.l.b16 %v650
    %v2683 = vunpack.c.h.b16 %v650
    %v2684 = vunpack.c.l.b16 %v651
    %v2685 = vunpack.c.h.b16 %v651
    %v2686 = vunpack.c.l.b16 %v652
    %v2687 = vunpack.c.h.b16 %v652
    %v2688 = vunpack.c.l.b16 %v653
    %v2689 = vunpack.c.h.b16 %v653
    %v2690 = vunpack.c.l.b16 %v654
    %v2691 = vunpack.c.h.b16 %v654
    %v2692 = vunpack.c.l.b16 %v655
    %v2693 = vunpack.c.h.b16 %v655
    %v2694 = vunpack.c.l.b16 %v656
    %v2695 = vunpack.c.h.b16 %v656
    %v2696 = vunpack.c.l.b16 %v657
    %v2697 = vunpack.c.h.b16 %v657
    %v2698 = vunpack.c.l.b16 %v658
    %v2699 = vunpack.c.h.b16 %v658
    %v2700 = vunpack.c.l.b16 %v659
    %v2701 = vunpack.c.h.b16 %v659
    %v2702 = vunpack.c.l.b16 %v660
    %v2703 = vunpack.c.h.b16 %v660
    %v2704 = vunpack.c.l.b16 %v661
    %v2705 = vunpack.c.h.b16 %v661
    %v2706 = vunpack.c.l.b16 %v662
    %v2707 = vunpack.c.h.b16 %v662
    %v2708 = vunpack.c.l.b16 %v663
    %v2709 = vunpack.c.h.b16 %v663
    %v2710 = vunpack.c.l.b16 %v664
    %v2711 = vunpack.c.h.b16 %v664
    %v2712 = vunpack.c.l.b16 %v665
    %v2713 = vunpack.c.h.b16 %v665
    %v2714 = vunpack.c.l.b16 %v666
    %v2715 = vunpack.c.h.b16 %v666
    %v2716 = vunpack.c.l.b16 %v667
    %v2717 = vunpack.c.h.b16 %v667
    %v2718 = vunpack.c.l.b16 %v668
    %v2719 = vunpack.c.h.b16 %v668
    %v2720 = vunpack.c.l.b16 %v669
    %v2721 = vunpack.c.h.b16 %v669
    %v2722 = vunpack.c.l.b16 %v670
    %v2723 = vunpack.c.h.b16 %v670
    %v2724 = vunpack.c.l.b16 %v671
    %v2725 = vunpack.c.h.b16 %v671
    %v2726 = vunpack.c.l.b16 %v672
    %v2727 = vunpack.c.h.b16 %v672
    %v2728 = vunpack.c.l.b16 %v673
    %v2729 = vunpack.c.h.b16 %v673
    %v2730 = vunpack.c.l.b16 %v674
    %v2731 = vunpack.c.h.b16 %v674
    %v2732 = vunpack.c.l.b16 %v675
    %v2733 = vunpack.c.h.b16 %v675
    %v2734 = vunpack.c.l.b16 %v676
    %v2735 = vunpack.c.h.b16 %v676
    %v2736 = vunpack.c.l.b16 %v677
    %v2737 = vunpack.c.h.b16 %v677
    %v2738 = vunpack.c.l.b16 %v678
    %v2739 = vunpack.c.h.b16 %v678
    %v2740 = vunpack.c.l.b16 %v679
    %v2741 = vunpack.c.h.b16 %v679
    %v2742 = vunpack.c.l.b16 %v680
    %v2743 = vunpack.c.h.b16 %v680
    %v2744 = vunpack.c.l.b16 %v681
    %v2745 = vunpack.c.h.b16 %v681
    %v2746 = vunpack.c.l.b16 %v682
    %v2747 = vunpack.c.h.b16 %v682
    %v2748 = vunpack.c.l.b16 %v683
    %v2749 = vunpack.c.h.b16 %v683
    %v2750 = vunpack.c.l.b16 %v684
    %v2751 = vunpack.c.h.b16 %v684
    %v2752 = vunpack.c.l.b16 %v685
    %v2753 = vunpack.c.h.b16 %v685
    %v2754 = vunpack.c.l.b16 %v686
    %v2755 = vunpack.c.h.b16 %v686
    %v2756 = vunpack.c.l.b16 %v687
    %v2757 = vunpack.c.h.b16 %v687
    %v2758 = vunpack.c.l.b16 %v688
    %v2759 = vunpack.c.h.b16 %v688
    %v2760 = vunpack.c.l.b16 %v689
    %v2761 = vunpack.c.h.b16 %v689
    %v2762 = vunpack.c.l.b16 %v690
    %v2763 = vunpack.c.h.b16 %v690
    %v2764 = vunpack.c.l.b16 %v691
    %v2765 = vunpack.c.h.b16 %v691
    %v2766 = vunpack.c.l.b16 %v692
    %v2767 = vunpack.c.h.b16 %v692
    %v2768 = vunpack.c.l.b16 %v693
    %v2769 = vunpack.c.h.b16 %v693
    %v2770 = vunpack.c.l.b16 %v694
    %v2771 = vunpack.c.h.b16 %v694
    %v2772 = vunpack.c.l.b16 %v695
    %v2773 = vunpack.c.h.b16 %v695
    %v2774 = vunpack.c.l.b16 %v696
    %v2775 = vunpack.c.h.b16 %v696
    %v2776 = vunpack.c.l.b16 %v697
    %v2777 = vunpack.c.h.b16 %v697
    %v2778 = vunpack.c.l.b16 %v698
    %v2779 = vunpack.c.h.b16 %v698
    %v2780 = vunpack.c.l.b16 %v699
    %v2781 = vunpack.c.h.b16 %v699
    %v2782 = vunpack.c.l.b16 %v700
    %v2783 = vunpack.c.h.b16 %v700
    %v2784 = vunpack.c.l.b16 %v701
    %v2785 = vunpack.c.h.b16 %v701
    %v2786 = vunpack.c.l.b16 %v702
    %v2787 = vunpack.c.h.b16 %v702
    %v2788 = vunpack.c.l.b16 %v703
    %v2789 = vunpack.c.h.b16 %v703
    %v2790 = vunpack.c.l.b16 %v704
    %v2791 = vunpack.c.h.b16 %v704
    %v2792 = vunpack.c.l.b16 %v705
    %v2793 = vunpack.c.h.b16 %v705
    %v2794 = vunpack.c.l.b16 %v706
    %v2795 = vunpack.c.h.b16 %v706
    %v2796 = vunpack.c.l.b16 %v707
    %v2797 = vunpack.c.h.b16 %v707
    %v2798 = vunpack.c.l.b16 %v708
    %v2799 = vunpack.c.h.b16 %v708
    %v2800 = vunpack.c.l.b16 %v709
    %v2801 = vunpack.c.h.b16 %v709
    %v2802 = vunpack.c.l.b16 %v710
    %v2803 = vunpack.c.h.b16 %v710
    %v2804 = vunpack.c.l.b16 %v711
    %v2805 = vunpack.c.h.b16 %v711
    %v2806 = vunpack.c.l.b16 %v712
    %v2807 = vunpack.c.h.b16 %v712
    %v2808 = vunpack.c.l.b16 %v713
    %v2809 = vunpack.c.h.b16 %v713
    %v2810 = vunpack.c.l.b16 %v714
    %v2811 = vunpack.c.h.b16 %v714
    %v2812 = vunpack.c.l.b16 %v715
    %v2813 = vunpack.c.h.b16 %v715
    %v2814 = vunpack.c.l.b16 %v716
    %v2815 = vunpack.c.h.b16 %v716
    %v2816 = vunpack.c.l.b16 %v717
    %v2817 = vunpack.c.h.b16 %v717
    %v2818 = vunpack.c.l.b16 %v718
    %v2819 = vunpack.c.h.b16 %v718
    %v2820 = vunpack.c.l.b16 %v719
    %v2821 = vunpack.c.h.b16 %v719
    %v2822 = vunpack.c.l.b16 %v720
    %v2823 = vunpack.c.h.b16 %v720
    %v2824 = vunpack.c.l.b16 %v721
    %v2825 = vunpack.c.h.b16 %v721
    %v2826 = vunpack.c.l.b16 %v722
    %v2827 = vunpack.c.h.b16 %v722
    %v2828 = vunpack.c.l.b16 %v723
    %v2829 = vunpack.c.h.b16 %v723
    %v2830 = vunpack.c.l.b16 %v724
    %v2831 = vunpack.c.h.b16 %v724
    %v2832 = vunpack.c.l.b16 %v725
    %v2833 = vunpack.c.h.b16 %v725
    %v2834 = vunpack.c.l.b16 %v726
    %v2835 = vunpack.c.h.b16 %v726
    %v2836 = vunpack.c.l.b16 %v727
    %v2837 = vunpack.c.h.b16 %v727
    %v2838 = vunpack.c.l.b16 %v728
    %v2839 = vunpack.c.h.b16 %v728
    %v2840 = vunpack.c.l.b16 %v729
    %v2841 = vunpack.c.h.b16 %v729
    %v2842 = vunpack.c.l.b16 %v730
    %v2843 = vunpack.c.h.b16 %v730
    %v2844 = vunpack.c.l.b16 %v731
    %v2845 = vunpack.c.h.b16 %v731
    %v2846 = vunpack.c.l.b16 %v732
    %v2847 = vunpack.c.h.b16 %v732
    %v2848 = vunpack.c.l.b16 %v733
    %v2849 = vunpack.c.h.b16 %v733
    %v2850 = vunpack.c.l.b16 %v734
    %v2851 = vunpack.c.h.b16 %v734
    %v2852 = vunpack.c.l.b16 %v735
    %v2853 = vunpack.c.h.b16 %v735
    %v2854 = vunpack.c.l.b16 %v736
    %v2855 = vunpack.c.h.b16 %v736
    %v2856 = vunpack.c.l.b16 %v737
    %v2857 = vunpack.c.h.b16 %v737
    %v2858 = vunpack.c.l.b16 %v738
    %v2859 = vunpack.c.h.b16 %v738
    %v2860 = vunpack.c.l.b16 %v739
    %v2861 = vunpack.c.h.b16 %v739
    %v2862 = vunpack.c.l.b16 %v740
    %v2863 = vunpack.c.h.b16 %v740
    %v2864 = vunpack.c.l.b16 %v741
    %v2865 = vunpack.c.h.b16 %v741
    %v2866 = vunpack.c.l.b16 %v742
    %v2867 = vunpack.c.h.b16 %v742
    %v2868 = vunpack.c.l.b16 %v743
    %v2869 = vunpack.c.h.b16 %v743
    %v2870 = vunpack.c.l.b16 %v744
    %v2871 = vunpack.c.h.b16 %v744
    %v2872 = vunpack.c.l.b16 %v745
    %v2873 = vunpack.c.h.b16 %v745
    %v2874 = vunpack.c.l.b16 %v746
    %v2875 = vunpack.c.h.b16 %v746
    %v2876 = vunpack.c.l.b16 %v747
    %v2877 = vunpack.c.h.b16 %v747
    %v2878 = vunpack.c.l.b16 %v748
    %v2879 = vunpack.c.h.b16 %v748
    %v2880 = vunpack.c.l.b16 %v749
    %v2881 = vunpack.c.h.b16 %v749
    %v2882 = vunpack.c.l.b16 %v750
    %v2883 = vunpack.c.h.b16 %v750
    %v2884 = vunpack.c.l.b16 %v751
    %v2885 = vunpack.c.h.b16 %v751
    %v2886 = vunpack.c.l.b16 %v752
    %v2887 = vunpack.c.h.b16 %v752
    %v2888 = vunpack.c.l.b16 %v753
    %v2889 = vunpack.c.h.b16 %v753
    %v2890 = vunpack.c.l.b16 %v754
    %v2891 = vunpack.c.h.b16 %v754
    %v2892 = vunpack.c.l.b16 %v755
    %v2893 = vunpack.c.h.b16 %v755
    %v2894 = vunpack.c.l.b16 %v756
    %v2895 = vunpack.c.h.b16 %v756
    %v2896 = vunpack.c.l.b16 %v757
    %v2897 = vunpack.c.h.b16 %v757
    %v2898 = vunpack.c.l.b16 %v758
    %v2899 = vunpack.c.h.b16 %v758
    %v2900 = vunpack.c.l.b16 %v759
    %v2901 = vunpack.c.h.b16 %v759
    %v2902 = vunpack.c.l.b16 %v760
    %v2903 = vunpack.c.h.b16 %v760
    %v2904 = vunpack.c.l.b16 %v761
    %v2905 = vunpack.c.h.b16 %v761
    %v2906 = vunpack.c.l.b16 %v762
    %v2907 = vunpack.c.h.b16 %v762
    %v2908 = vunpack.c.l.b16 %v763
    %v2909 = vunpack.c.h.b16 %v763
    %v2910 = vunpack.c.l.b16 %v764
    %v2911 = vunpack.c.h.b16 %v764
    %v2912 = vunpack.c.l.b16 %v765
    %v2913 = vunpack.c.h.b16 %v765
    %v2914 = vunpack.c.l.b16 %v766
    %v2915 = vunpack.c.h.b16 %v766
    %v2916 = vunpack.c.l.b16 %v767
    %v2917 = vunpack.c.h.b16 %v767
    %v2918 = vunpack.c.l.b16 %v768
    %v2919 = vunpack.c.h.b16 %v768
    %v2920 = vunpack.c.l.b16 %v769
    %v2921 = vunpack.c.h.b16 %v769
    %v2922 = vunpack.c.l.b16 %v770
    %v2923 = vunpack.c.h.b16 %v770
    %v2924 = vunpack.c.l.b16 %v771
    %v2925 = vunpack.c.h.b16 %v771
    %v2926 = vunpack.c.l.b16 %v772
    %v2927 = vunpack.c.h.b16 %v772
    %v2928 = vunpack.c.l.b16 %v773
    %v2929 = vunpack.c.h.b16 %v773
    %v2930 = vunpack.c.l.b16 %v774
    %v2931 = vunpack.c.h.b16 %v774
    %v2932 = vunpack.c.l.b16 %v775
    %v2933 = vunpack.c.h.b16 %v775
    %v2934 = vpack.c.b16 %v2422, %v2418
    %v2935 = vpack.c.b16 %v2423, %v2419
    %v2936 = vpack.c.b16 %v2424, %v2420
    %v2937 = vpack.c.b16 %v2425, %v2421
    %v2938 = vpack.c.b16 %v2430, %v2426
    %v2939 = vpack.c.b16 %v2431, %v2427
    %v2940 = vpack.c.b16 %v2432, %v2428
    %v2941 = vpack.c.b16 %v2433, %v2429
    %v2942 = vpack.c.b16 %v2438, %v2434
    %v2943 = vpack.c.b16 %v2439, %v2435
    %v2944 = vpack.c.b16 %v2440, %v2436
    %v2945 = vpack.c.b16 %v2441, %v2437
    %v2946 = vpack.c.b16 %v2446, %v2442
    %v2947 = vpack.c.b16 %v2447, %v2443
    %v2948 = vpack.c.b16 %v2448, %v2444
    %v2949 = vpack.c.b16 %v2449, %v2445
    %v2950 = vpack.c.b16 %v2454, %v2450
    %v2951 = vpack.c.b16 %v2455, %v2451
    %v2952 = vpack.c.b16 %v2456, %v2452
    %v2953 = vpack.c.b16 %v2457, %v2453
    %v2954 = vpack.c.b16 %v2462, %v2458
    %v2955 = vpack.c.b16 %v2463, %v2459
    %v2956 = vpack.c.b16 %v2464, %v2460
    %v2957 = vpack.c.b16 %v2465, %v2461
    %v2958 = vpack.c.b16 %v2470, %v2466
    %v2959 = vpack.c.b16 %v2471, %v2467
    %v2960 = vpack.c.b16 %v2472, %v2468
    %v2961 = vpack.c.b16 %v2473, %v2469
    %v2962 = vpack.c.b16 %v2478, %v2474
    %v2963 = vpack.c.b16 %v2479, %v2475
    %v2964 = vpack.c.b16 %v2480, %v2476
    %v2965 = vpack.c.b16 %v2481, %v2477
    %v2966 = vpack.c.b16 %v2486, %v2482
    %v2967 = vpack.c.b16 %v2487, %v2483
    %v2968 = vpack.c.b16 %v2488, %v2484
    %v2969 = vpack.c.b16 %v2489, %v2485
    %v2970 = vpack.c.b16 %v2494, %v2490
    %v2971 = vpack.c.b16 %v2495, %v2491
    %v2972 = vpack.c.b16 %v2496, %v2492
    %v2973 = vpack.c.b16 %v2497, %v2493
    %v2974 = vpack.c.b16 %v2502, %v2498
    %v2975 = vpack.c.b16 %v2503, %v2499
    %v2976 = vpack.c.b16 %v2504, %v2500
    %v2977 = vpack.c.b16 %v2505, %v2501
    %v2978 = vpack.c.b16 %v2510, %v2506
    %v2979 = vpack.c.b16 %v2511, %v2507
    %v2980 = vpack.c.b16 %v2512, %v2508
    %v2981 = vpack.c.b16 %v2513, %v2509
    %v2982 = vpack.c.b16 %v2518, %v2514
    %v2983 = vpack.c.b16 %v2519, %v2515
    %v2984 = vpack.c.b16 %v2520, %v2516
    %v2985 = vpack.c.b16 %v2521, %v2517
    %v2986 = vpack.c.b16 %v2526, %v2522
    %v2987 = vpack.c.b16 %v2527, %v2523
    %v2988 = vpack.c.b16 %v2528, %v2524
    %v2989 = vpack.c.b16 %v2529, %v2525
    %v2990 = vpack.c.b16 %v2534, %v2530
    %v2991 = vpack.c.b16 %v2535, %v2531
    %v2992 = vpack.c.b16 %v2536, %v2532
    %v2993 = vpack.c.b16 %v2537, %v2533
    %v2994 = vpack.c.b16 %v2542, %v2538
    %v2995 = vpack.c.b16 %v2543, %v2539
    %v2996 = vpack.c.b16 %v2544, %v2540
    %v2997 = vpack.c.b16 %v2545, %v2541
    %v2998 = vpack.c.b16 %v2550, %v2546
    %v2999 = vpack.c.b16 %v2551, %v2547
    %v3000 = vpack.c.b16 %v2552, %v2548
    %v3001 = vpack.c.b16 %v2553, %v2549
    %v3002 = vpack.c.b16 %v2558, %v2554
    %v3003 = vpack.c.b16 %v2559, %v2555
    %v3004 = vpack.c.b16 %v2560, %v2556
    %v3005 = vpack.c.b16 %v2561, %v2557
    %v3006 = vpack.c.b16 %v2566, %v2562
    %v3007 = vpack.c.b16 %v2567, %v2563
    %v3008 = vpack.c.b16 %v2568, %v2564
    %v3009 = vpack.c.b16 %v2569, %v2565
    %v3010 = vpack.c.b16 %v2574, %v2570
    %v3011 = vpack.c.b16 %v2575, %v2571
    %v3012 = vpack.c.b16 %v2576, %v2572
    %v3013 = vpack.c.b16 %v2577, %v2573
    %v3014 = vpack.c.b16 %v2582, %v2578
    %v3015 = vpack.c.b16 %v2583, %v2579
    %v3016 = vpack.c.b16 %v2584, %v2580
    %v3017 = vpack.c.b16 %v2585, %v2581
    %v3018 = vpack.c.b16 %v2590, %v2586
    %v3019 = vpack.c.b16 %v2591, %v2587
    %v3020 = vpack.c.b16 %v2592, %v2588
    %v3021 = vpack.c.b16 %v2593, %v2589
    %v3022 = vpack.c.b16 %v2598, %v2594
    %v3023 = vpack.c.b16 %v2599, %v2595
    %v3024 = vpack.c.b16 %v2600, %v2596
    %v3025 = vpack.c.b16 %v2601, %v2597
    %v3026 = vpack.c.b16 %v2606, %v2602
    %v3027 = vpack.c.b16 %v2607, %v2603
    %v3028 = vpack.c.b16 %v2608, %v2604
    %v3029 = vpack.c.b16 %v2609, %v2605
    %v3030 = vpack.c.b16 %v2614, %v2610
    %v3031 = vpack.c.b16 %v2615, %v2611
    %v3032 = vpack.c.b16 %v2616, %v2612
    %v3033 = vpack.c.b16 %v2617, %v2613
    %v3034 = vpack.c.b16 %v2622, %v2618
    %v3035 = vpack.c.b16 %v2623, %v2619
    %v3036 = vpack.c.b16 %v2624, %v2620
    %v3037 = vpack.c.b16 %v2625, %v2621
    %v3038 = vpack.c.b16 %v2630, %v2626
    %v3039 = vpack.c.b16 %v2631, %v2627
    %v3040 = vpack.c.b16 %v2632, %v2628
    %v3041 = vpack.c.b16 %v2633, %v2629
    %v3042 = vpack.c.b16 %v2638, %v2634
    %v3043 = vpack.c.b16 %v2639, %v2635
    %v3044 = vpack.c.b16 %v2640, %v2636
    %v3045 = vpack.c.b16 %v2641, %v2637
    %v3046 = vpack.c.b16 %v2646, %v2642
    %v3047 = vpack.c.b16 %v2647, %v2643
    %v3048 = vpack.c.b16 %v2648, %v2644
    %v3049 = vpack.c.b16 %v2649, %v2645
    %v3050 = vpack.c.b16 %v2654, %v2650
    %v3051 = vpack.c.b16 %v2655, %v2651
    %v3052 = vpack.c.b16 %v2656, %v2652
    %v3053 = vpack.c.b16 %v2657, %v2653
    %v3054 = vpack.c.b16 %v2662, %v2658
    %v3055 = vpack.c.b16 %v2663, %v2659
    %v3056 = vpack.c.b16 %v2664, %v2660
    %v3057 = vpack.c.b16 %v2665, %v2661
    %v3058 = vpack.c.b16 %v2670, %v2666
    %v3059 = vpack.c.b16 %v2671, %v2667
    %v3060 = vpack.c.b16 %v2672, %v2668
    %v3061 = vpack.c.b16 %v2673, %v2669
    %v3062 = vpack.c.b16 %v2678, %v2674
    %v3063 = vpack.c.b16 %v2679, %v2675
    %v3064 = vpack.c.b16 %v2680, %v2676
    %v3065 = vpack.c.b16 %v2681, %v2677
    %v3066 = vpack.c.b16 %v2686, %v2682
    %v3067 = vpack.c.b16 %v2687, %v2683
    %v3068 = vpack.c.b16 %v2688, %v2684
    %v3069 = vpack.c.b16 %v2689, %v2685
    %v3070 = vpack.c.b16 %v2694, %v2690
    %v3071 = vpack.c.b16 %v2695, %v2691
    %v3072 = vpack.c.b16 %v2696, %v2692
    %v3073 = vpack.c.b16 %v2697, %v2693
    %v3074 = vpack.c.b16 %v2702, %v2698
    %v3075 = vpack.c.b16 %v2703, %v2699
    %v3076 = vpack.c.b16 %v2704, %v2700
    %v3077 = vpack.c.b16 %v2705, %v2701
    %v3078 = vpack.c.b16 %v2710, %v2706
    %v3079 = vpack.c.b16 %v2711, %v2707
    %v3080 = vpack.c.b16 %v2712, %v2708
    %v3081 = vpack.c.b16 %v2713, %v2709
    %v3082 = vpack.c.b16 %v2718, %v2714
    %v3083 = vpack.c.b16 %v2719, %v2715
    %v3084 = vpack.c.b16 %v2720, %v2716
    %v3085 = vpack.c.b16 %v2721, %v2717
    %v3086 = vpack.c.b16 %v2726, %v2722
    %v3087 = vpack.c.b16 %v2727, %v2723
    %v3088 = vpack.c.b16 %v2728, %v2724
    %v3089 = vpack.c.b16 %v2729, %v2725
    %v3090 = vpack.c.b16 %v2734, %v2730
    %v3091 = vpack.c.b16 %v2735, %v2731
    %v3092 = vpack.c.b16 %v2736, %v2732
    %v3093 = vpack.c.b16 %v2737, %v2733
    %v3094 = vpack.c.b16 %v2742, %v2738
    %v3095 = vpack.c.b16 %v2743, %v2739
    %v3096 = vpack.c.b16 %v2744, %v2740
    %v3097 = vpack.c.b16 %v2745, %v2741
    %v3098 = vpack.c.b16 %v2750, %v2746
    %v3099 = vpack.c.b16 %v2751, %v2747
    %v3100 = vpack.c.b16 %v2752, %v2748
    %v3101 = vpack.c.b16 %v2753, %v2749
    %v3102 = vpack.c.b16 %v2758, %v2754
    %v3103 = vpack.c.b16 %v2759, %v2755
    %v3104 = vpack.c.b16 %v2760, %v2756
    %v3105 = vpack.c.b16 %v2761, %v2757
    %v3106 = vpack.c.b16 %v2766, %v2762
    %v3107 = vpack.c.b16 %v2767, %v2763
    %v3108 = vpack.c.b16 %v2768, %v2764
    %v3109 = vpack.c.b16 %v2769, %v2765
    %v3110 = vpack.c.b16 %v2774, %v2770
    %v3111 = vpack.c.b16 %v2775, %v2771
    %v3112 = vpack.c.b16 %v2776, %v2772
    %v3113 = vpack.c.b16 %v2777, %v2773
    %v3114 = vpack.c.b16 %v2782, %v2778
    %v3115 = vpack.c.b16 %v2783, %v2779
    %v3116 = vpack.c.b16 %v2784, %v2780
    %v3117 = vpack.c.b16 %v2785, %v2781
    %v3118 = vpack.c.b16 %v2790, %v2786
    %v3119 = vpack.c.b16 %v2791, %v2787
    %v3120 = vpack.c.b16 %v2792, %v2788
    %v3121 = vpack.c.b16 %v2793, %v2789
    %v3122 = vpack.c.b16 %v2798, %v2794
    %v3123 = vpack.c.b16 %v2799, %v2795
    %v3124 = vpack.c.b16 %v2800, %v2796
    %v3125 = vpack.c.b16 %v2801, %v2797
    %v3126 = vpack.c.b16 %v2806, %v2802
    %v3127 = vpack.c.b16 %v2807, %v2803
    %v3128 = vpack.c.b16 %v2808, %v2804
    %v3129 = vpack.c.b16 %v2809, %v2805
    %v3130 = vpack.c.b16 %v2814, %v2810
    %v3131 = vpack.c.b16 %v2815, %v2811
    %v3132 = vpack.c.b16 %v2816, %v2812
    %v3133 = vpack.c.b16 %v2817, %v2813
    %v3134 = vpack.c.b16 %v2822, %v2818
    %v3135 = vpack.c.b16 %v2823, %v2819
    %v3136 = vpack.c.b16 %v2824, %v2820
    %v3137 = vpack.c.b16 %v2825, %v2821
    %v3138 = vpack.c.b16 %v2830, %v2826
    %v3139 = vpack.c.b16 %v2831, %v2827
    %v3140 = vpack.c.b16 %v2832, %v2828
    %v3141 = vpack.c.b16 %v2833, %v2829
    %v3142 = vpack.c.b16 %v2838, %v2834
    %v3143 = vpack.c.b16 %v2839, %v2835
    %v3144 = vpack.c.b16 %v2840, %v2836
    %v3145 = vpack.c.b16 %v2841, %v2837
    %v3146 = vpack.c.b16 %v2846, %v2842
    %v3147 = vpack.c.b16 %v2847, %v2843
    %v3148 = vpack.c.b16 %v2848, %v2844
    %v3149 = vpack.c.b16 %v2849, %v2845
    %v3150 = vpack.c.b16 %v2854, %v2850
    %v3151 = vpack.c.b16 %v2855, %v2851
    %v3152 = vpack.c.b16 %v2856, %v2852
    %v3153 = vpack.c.b16 %v2857, %v2853
    %v3154 = vpack.c.b16 %v2862, %v2858
    %v3155 = vpack.c.b16 %v2863, %v2859
    %v3156 = vpack.c.b16 %v2864, %v2860
    %v3157 = vpack.c.b16 %v2865, %v2861
    %v3158 = vpack.c.b16 %v2870, %v2866
    %v3159 = vpack.c.b16 %v2871, %v2867
    %v3160 = vpack.c.b16 %v2872, %v2868
    %v3161 = vpack.c.b16 %v2873, %v2869
    %v3162 = vpack.c.b16 %v2878, %v2874
    %v3163 = vpack.c.b16 %v2879, %v2875
    %v3164 = vpack.c.b16 %v2880, %v2876
    %v3165 = vpack.c.b16 %v2881, %v2877
    %v3166 = vpack.c.b16 %v2886, %v2882
    %v3167 = vpack.c.b16 %v2887, %v2883
    %v3168 = vpack.c.b16 %v2888, %v2884
    %v3169 = vpack.c.b16 %v2889, %v2885
    %v3170 = vpack.c.b16 %v2894, %v2890
    %v3171 = vpack.c.b16 %v2895, %v2891
    %v3172 = vpack.c.b16 %v2896, %v2892
    %v3173 = vpack.c.b16 %v2897, %v2893
    %v3174 = vpack.c.b16 %v2902, %v2898
    %v3175 = vpack.c.b16 %v2903, %v2899
    %v3176 = vpack.c.b16 %v2904, %v2900
    %v3177 = vpack.c.b16 %v2905, %v2901
    %v3178 = vpack.c.b16 %v2910, %v2906
    %v3179 = vpack.c.b16 %v2911, %v2907
    %v3180 = vpack.c.b16 %v2912, %v2908
    %v3181 = vpack.c.b16 %v2913, %v2909
    %v3182 = vpack.c.b16 %v2918, %v2914
    %v3183 = vpack.c.b16 %v2919, %v2915
    %v3184 = vpack.c.b16 %v2920, %v2916
    %v3185 = vpack.c.b16 %v2921, %v2917
    %v3186 = vpack.c.b16 %v2926, %v2922
    %v3187 = vpack.c.b16 %v2927, %v2923
    %v3188 = vpack.c.b16 %v2928, %v2924
    %v3189 = vpack.c.b16 %v2929, %v2925
    %v3190 = vpack.c.b16 %v2930, %v2930
    %v3191 = vpack.c.b16 %v2931, %v2931
    %v3192 = vpack.c.b16 %v2932, %v2932
    %v3193 = vpack.c.b16 %v2933, %v2933
    %v3451 = vsel %vm1271, %v2138, 0
    %v3454 = vsel %vm1275, %v3190, 0
    %v3457 = vsel %vm1275, %v3191, 0
    %v3460 = vsel %vm1275, %v3192, 0
    %v3463 = vsel %vm1275, %v3193, 0
    %3465 = vmatprep.subr.bf16.mxu0 %v2935
    %3466 = vmatpush1.bf16.msra.mxu0 %v2934
    %3467 = vmatprep.subr.bf16.mxu0 %v2939
    %3468 = vmatpush1.bf16.msra.mxu0 %v2938
    %3469 = vmatprep.subr.bf16.mxu0 %v2943
    %3470 = vmatpush1.bf16.msra.mxu0 %v2942
    %3471 = vmatprep.subr.bf16.mxu0 %v2947
    %3472 = vmatpush1.bf16.msra.mxu0 %v2946
    %3473 = vmatprep.subr.bf16.mxu0 %v2951
    %3474 = vmatpush1.bf16.msra.mxu0 %v2950
    %3475 = vmatprep.subr.bf16.mxu0 %v2955
    %3476 = vmatpush1.bf16.msra.mxu0 %v2954
    %3477 = vmatprep.subr.bf16.mxu0 %v2959
    %3478 = vmatpush1.bf16.msra.mxu0 %v2958
    %3479 = vmatprep.subr.bf16.mxu0 %v2963
    %3480 = vmatpush1.bf16.msra.mxu0 %v2962
    %3481 = vmatprep.subr.bf16.mxu0 %v2967
    %3482 = vmatpush1.bf16.msra.mxu0 %v2966
    %3483 = vmatprep.subr.bf16.mxu0 %v2971
    %3484 = vmatpush1.bf16.msra.mxu0 %v2970
    %3485 = vmatprep.subr.bf16.mxu0 %v2975
    %3486 = vmatpush1.bf16.msra.mxu0 %v2974
    %3487 = vmatprep.subr.bf16.mxu0 %v2979
    %3488 = vmatpush1.bf16.msra.mxu0 %v2978
    %3489 = vmatprep.subr.bf16.mxu0 %v2983
    %3490 = vmatpush1.bf16.msra.mxu0 %v2982
    %3491 = vmatprep.subr.bf16.mxu0 %v2987
    %3492 = vmatpush1.bf16.msra.mxu0 %v2986
    %3493 = vmatprep.subr.bf16.mxu0 %v2991
    %3494 = vmatpush1.bf16.msra.mxu0 %v2990
    %3495 = vmatprep.subr.bf16.mxu0 %v2995
    %3496 = vmatpush1.bf16.msra.mxu0 %v2994
    %3497 = vmatprep.mubr.bf16.mxu0 %v2131
    %3498 = vmatmul.mubr.bf16.gmra.mrb[0].mxu0 %v2130
    %v3499 = vpop.f32.mrb[0].mxu0
    %v3500 = vadd.f32 %v2143, %v3499
    %v3501 = vpop.f32.mrb[0].mxu0
    %v3502 = vadd.f32 %v2147, %v3501
    %v3503 = vpop.f32.mrb[0].mxu0
    %v3504 = vpop.f32.mrb[0].mxu0
    %3505 = vdwg.mxu0
    %3506 = vmatprep.subr.bf16.mxu0 %v2999
    %3507 = vmatpush1.bf16.msra.mxu0 %v2998
    %3508 = vmatprep.subr.bf16.mxu0 %v3003
    %3509 = vmatpush1.bf16.msra.mxu0 %v3002
    %3510 = vmatprep.subr.bf16.mxu0 %v3007
    %3511 = vmatpush1.bf16.msra.mxu0 %v3006
    %3512 = vmatprep.subr.bf16.mxu0 %v3011
    %3513 = vmatpush1.bf16.msra.mxu0 %v3010
    %3514 = vmatprep.subr.bf16.mxu0 %v3015
    %3515 = vmatpush1.bf16.msra.mxu0 %v3014
    %3516 = vmatprep.subr.bf16.mxu0 %v3019
    %3517 = vmatpush1.bf16.msra.mxu0 %v3018
    %3518 = vmatprep.subr.bf16.mxu0 %v3023
    %3519 = vmatpush1.bf16.msra.mxu0 %v3022
    %3520 = vmatprep.subr.bf16.mxu0 %v3027
    %3521 = vmatpush1.bf16.msra.mxu0 %v3026
    %3522 = vmatprep.subr.bf16.mxu0 %v3031
    %3523 = vmatpush1.bf16.msra.mxu0 %v3030
    %3524 = vmatprep.subr.bf16.mxu0 %v3035
    %3525 = vmatpush1.bf16.msra.mxu0 %v3034
    %3526 = vmatprep.subr.bf16.mxu0 %v3039
    %3527 = vmatpush1.bf16.msra.mxu0 %v3038
    %3528 = vmatprep.subr.bf16.mxu0 %v3043
    %3529 = vmatpush1.bf16.msra.mxu0 %v3042
    %3530 = vmatprep.subr.bf16.mxu0 %v3047
    %3531 = vmatpush1.bf16.msra.mxu0 %v3046
    %3532 = vmatprep.subr.bf16.mxu0 %v3051
    %3533 = vmatpush1.bf16.msra.mxu0 %v3050
    %3534 = vmatprep.subr.bf16.mxu0 %v3055
    %3535 = vmatpush1.bf16.msra.mxu0 %v3054
    %3536 = vmatprep.subr.bf16.mxu0 %v3059
    %3537 = vmatpush1.bf16.msra.mxu0 %v3058
    %3538 = vmatprep.mubr.bf16.mxu0 %v2133
    %3539 = vmatmul.mubr.bf16.gmra.mrb[0].mxu0 %v2132
    %v3540 = vpop.f32.mrb[0].mxu0
    %v3541 = vadd.f32 %v3500, %v3540
    %v3542 = vpop.f32.mrb[0].mxu0
    %v3543 = vadd.f32 %v3502, %v3542
    %v3544 = vpop.f32.mrb[0].mxu0
    %v3545 = vpop.f32.mrb[0].mxu0
    %3546 = vdwg.mxu0
    %3547 = vmatprep.subr.bf16.mxu0 %v3063
    %3548 = vmatpush1.bf16.msra.mxu0 %v3062
    %3549 = vmatprep.subr.bf16.mxu0 %v3067
    %3550 = vmatpush1.bf16.msra.mxu0 %v3066
    %3551 = vmatprep.subr.bf16.mxu0 %v3071
    %3552 = vmatpush1.bf16.msra.mxu0 %v3070
    %3553 = vmatprep.subr.bf16.mxu0 %v3075
    %3554 = vmatpush1.bf16.msra.mxu0 %v3074
    %3555 = vmatprep.subr.bf16.mxu0 %v3079
    %3556 = vmatpush1.bf16.msra.mxu0 %v3078
    %3557 = vmatprep.subr.bf16.mxu0 %v3083
    %3558 = vmatpush1.bf16.msra.mxu0 %v3082
    %3559 = vmatprep.subr.bf16.mxu0 %v3087
    %3560 = vmatpush1.bf16.msra.mxu0 %v3086
    %3561 = vmatprep.subr.bf16.mxu0 %v3091
    %3562 = vmatpush1.bf16.msra.mxu0 %v3090
    %3563 = vmatprep.subr.bf16.mxu0 %v3095
    %3564 = vmatpush1.bf16.msra.mxu0 %v3094
    %3565 = vmatprep.subr.bf16.mxu0 %v3099
    %3566 = vmatpush1.bf16.msra.mxu0 %v3098
    %3567 = vmatprep.subr.bf16.mxu0 %v3103
    %3568 = vmatpush1.bf16.msra.mxu0 %v3102
    %3569 = vmatprep.subr.bf16.mxu0 %v3107
    %3570 = vmatpush1.bf16.msra.mxu0 %v3106
    %3571 = vmatprep.subr.bf16.mxu0 %v3111
    %3572 = vmatpush1.bf16.msra.mxu0 %v3110
    %3573 = vmatprep.subr.bf16.mxu0 %v3115
    %3574 = vmatpush1.bf16.msra.mxu0 %v3114
    %3575 = vmatprep.subr.bf16.mxu0 %v3119
    %3576 = vmatpush1.bf16.msra.mxu0 %v3118
    %3577 = vmatprep.subr.bf16.mxu0 %v3123
    %3578 = vmatpush1.bf16.msra.mxu0 %v3122
    %3579 = vmatprep.mubr.bf16.mxu0 %v2135
    %3580 = vmatmul.mubr.bf16.gmra.mrb[0].mxu0 %v2134
    %v3581 = vpop.f32.mrb[0].mxu0
    %v3582 = vadd.f32 %v3541, %v3581
    %v3583 = vpop.f32.mrb[0].mxu0
    %v3584 = vadd.f32 %v3543, %v3583
    %v3585 = vpop.f32.mrb[0].mxu0
    %v3586 = vpop.f32.mrb[0].mxu0
    %3587 = vdwg.mxu0
    %3588 = vmatprep.subr.bf16.mxu0 %v3127
    %3589 = vmatpush1.bf16.msra.mxu0 %v3126
    %3590 = vmatprep.subr.bf16.mxu0 %v3131
    %3591 = vmatpush1.bf16.msra.mxu0 %v3130
    %3592 = vmatprep.subr.bf16.mxu0 %v3135
    %3593 = vmatpush1.bf16.msra.mxu0 %v3134
    %3594 = vmatprep.subr.bf16.mxu0 %v3139
    %3595 = vmatpush1.bf16.msra.mxu0 %v3138
    %3596 = vmatprep.subr.bf16.mxu0 %v3143
    %3597 = vmatpush1.bf16.msra.mxu0 %v3142
    %3598 = vmatprep.subr.bf16.mxu0 %v3147
    %3599 = vmatpush1.bf16.msra.mxu0 %v3146
    %3600 = vmatprep.subr.bf16.mxu0 %v3151
    %3601 = vmatpush1.bf16.msra.mxu0 %v3150
    %3602 = vmatprep.subr.bf16.mxu0 %v3155
    %3603 = vmatpush1.bf16.msra.mxu0 %v3154
    %3604 = vmatprep.subr.bf16.mxu0 %v3159
    %3605 = vmatpush1.bf16.msra.mxu0 %v3158
    %3606 = vmatprep.subr.bf16.mxu0 %v3163
    %3607 = vmatpush1.bf16.msra.mxu0 %v3162
    %3608 = vmatprep.subr.bf16.mxu0 %v3167
    %3609 = vmatpush1.bf16.msra.mxu0 %v3166
    %3610 = vmatprep.subr.bf16.mxu0 %v3171
    %3611 = vmatpush1.bf16.msra.mxu0 %v3170
    %3612 = vmatprep.subr.bf16.mxu0 %v3175
    %3613 = vmatpush1.bf16.msra.mxu0 %v3174
    %3614 = vmatprep.subr.bf16.mxu0 %v3179
    %3615 = vmatpush1.bf16.msra.mxu0 %v3178
    %3616 = vmatprep.subr.bf16.mxu0 %v3183
    %3617 = vmatpush1.bf16.msra.mxu0 %v3182
    %3618 = vmatprep.subr.bf16.mxu0 %v3187
    %3619 = vmatpush1.bf16.msra.mxu0 %v3186
    %3620 = vmatprep.mubr.bf16.mxu0 %v2137
    %3621 = vmatmul.mubr.bf16.gmra.mrb[0].mxu0 %v2136
    %v3622 = vpop.f32.mrb[0].mxu0
    %v3623 = vadd.f32 %v3582, %v3622
    %v3624 = vpop.f32.mrb[0].mxu0
    %v3625 = vadd.f32 %v3584, %v3624
    %v3626 = vpop.f32.mrb[0].mxu0
    %v3627 = vpop.f32.mrb[0].mxu0
    %3628 = vdwg.mxu0
    %3629 = vmatprep.subr.bf16.mxu0 %v3457
    %3630 = vmatpush1.bf16.msra.mxu0 %v3454
    %3631 = vmatprep.subr.bf16.mxu0 0
    %3632 = vmatpush1.bf16.msra.mxu0 0
    %3633 = vmatprep.subr.bf16.mxu0 0
    %3634 = vmatpush1.bf16.msra.mxu0 0
    %3635 = vmatprep.subr.bf16.mxu0 0
    %3636 = vmatpush1.bf16.msra.mxu0 0
    %3637 = vmatprep.subr.bf16.mxu0 0
    %3638 = vmatpush1.bf16.msra.mxu0 0
    %3639 = vmatprep.subr.bf16.mxu0 0
    %3640 = vmatpush1.bf16.msra.mxu0 0
    %3641 = vmatprep.subr.bf16.mxu0 0
    %3642 = vmatpush1.bf16.msra.mxu0 0
    %3643 = vmatprep.subr.bf16.mxu0 0
    %3644 = vmatpush1.bf16.msra.mxu0 0
    %3645 = vmatprep.subr.bf16.mxu0 0
    %3646 = vmatpush1.bf16.msra.mxu0 0
    %3647 = vmatprep.subr.bf16.mxu0 0
    %3648 = vmatpush1.bf16.msra.mxu0 0
    %3649 = vmatprep.subr.bf16.mxu0 0
    %3650 = vmatpush1.bf16.msra.mxu0 0
    %3651 = vmatprep.subr.bf16.mxu0 0
    %3652 = vmatpush1.bf16.msra.mxu0 0
    %3653 = vmatprep.subr.bf16.mxu0 0
    %3654 = vmatpush1.bf16.msra.mxu0 0
    %3655 = vmatprep.subr.bf16.mxu0 0
    %3656 = vmatpush1.bf16.msra.mxu0 0
    %3657 = vmatprep.subr.bf16.mxu0 0
    %3658 = vmatpush1.bf16.msra.mxu0 0
    %3659 = vmatprep.subr.bf16.mxu0 0
    %3660 = vmatpush1.bf16.msra.mxu0 0
    %3661 = vmatprep.mubr.bf16.mxu0 0
    %3662 = vmatmul.mubr.bf16.gmra.mrb[0].mxu0 %v3451
    %v3663 = vpop.f32.mrb[0].mxu0
    %v3664 = vadd.f32 %v3623, %v3663
    %v3665 = vpop.f32.mrb[0].mxu0
    %v3666 = vadd.f32 %v3625, %v3665
    %v3667 = vpop.f32.mrb[0].mxu0
    %v3668 = vpop.f32.mrb[0].mxu0
    %3669 = vdwg.mxu0
    %3670 = vmatprep.subr.bf16.mxu0 %v2937
    %3671 = vmatpush1.bf16.msra.mxu0 %v2936
    %3672 = vmatprep.subr.bf16.mxu0 %v2941
    %3673 = vmatpush1.bf16.msra.mxu0 %v2940
    %3674 = vmatprep.subr.bf16.mxu0 %v2945
    %3675 = vmatpush1.bf16.msra.mxu0 %v2944
    %3676 = vmatprep.subr.bf16.mxu0 %v2949
    %3677 = vmatpush1.bf16.msra.mxu0 %v2948
    %3678 = vmatprep.subr.bf16.mxu0 %v2953
    %3679 = vmatpush1.bf16.msra.mxu0 %v2952
    %3680 = vmatprep.subr.bf16.mxu0 %v2957
    %3681 = vmatpush1.bf16.msra.mxu0 %v2956
    %3682 = vmatprep.subr.bf16.mxu0 %v2961
    %3683 = vmatpush1.bf16.msra.mxu0 %v2960
    %3684 = vmatprep.subr.bf16.mxu0 %v2965
    %3685 = vmatpush1.bf16.msra.mxu0 %v2964
    %3686 = vmatprep.subr.bf16.mxu0 %v2969
    %3687 = vmatpush1.bf16.msra.mxu0 %v2968
    %3688 = vmatprep.subr.bf16.mxu0 %v2973
    %3689 = vmatpush1.bf16.msra.mxu0 %v2972
    %3690 = vmatprep.subr.bf16.mxu0 %v2977
    %3691 = vmatpush1.bf16.msra.mxu0 %v2976
    %3692 = vmatprep.subr.bf16.mxu0 %v2981
    %3693 = vmatpush1.bf16.msra.mxu0 %v2980
    %3694 = vmatprep.subr.bf16.mxu0 %v2985
    %3695 = vmatpush1.bf16.msra.mxu0 %v2984
    %3696 = vmatprep.subr.bf16.mxu0 %v2989
    %3697 = vmatpush1.bf16.msra.mxu0 %v2988
    %3698 = vmatprep.subr.bf16.mxu0 %v2993
    %3699 = vmatpush1.bf16.msra.mxu0 %v2992
    %3700 = vmatprep.subr.bf16.mxu0 %v2997
    %3701 = vmatpush1.bf16.msra.mxu0 %v2996
    %3702 = vmatprep.mubr.bf16.mxu0 %v2131
    %3703 = vmatmul.mubr.bf16.gmra.mrb[0].mxu0 %v2130
    %v3704 = vpop.f32.mrb[0].mxu0
    %v3705 = vadd.f32 %v2151, %v3704
    %v3706 = vpop.f32.mrb[0].mxu0
    %v3707 = vadd.f32 %v2155, %v3706
    %v3708 = vpop.f32.mrb[0].mxu0
    %v3709 = vpop.f32.mrb[0].mxu0
    %3710 = vdwg.mxu0
    %3711 = vmatprep.subr.bf16.mxu0 %v3001
    %3712 = vmatpush1.bf16.msra.mxu0 %v3000
    %3713 = vmatprep.subr.bf16.mxu0 %v3005
    %3714 = vmatpush1.bf16.msra.mxu0 %v3004
    %3715 = vmatprep.subr.bf16.mxu0 %v3009
    %3716 = vmatpush1.bf16.msra.mxu0 %v3008
    %3717 = vmatprep.subr.bf16.mxu0 %v3013
    %3718 = vmatpush1.bf16.msra.mxu0 %v3012
    %3719 = vmatprep.subr.bf16.mxu0 %v3017
    %3720 = vmatpush1.bf16.msra.mxu0 %v3016
    %3721 = vmatprep.subr.bf16.mxu0 %v3021
    %3722 = vmatpush1.bf16.msra.mxu0 %v3020
    %3723 = vmatprep.subr.bf16.mxu0 %v3025
    %3724 = vmatpush1.bf16.msra.mxu0 %v3024
    %3725 = vmatprep.subr.bf16.mxu0 %v3029
    %3726 = vmatpush1.bf16.msra.mxu0 %v3028
    %3727 = vmatprep.subr.bf16.mxu0 %v3033
    %3728 = vmatpush1.bf16.msra.mxu0 %v3032
    %3729 = vmatprep.subr.bf16.mxu0 %v3037
    %3730 = vmatpush1.bf16.msra.mxu0 %v3036
    %3731 = vmatprep.subr.bf16.mxu0 %v3041
    %3732 = vmatpush1.bf16.msra.mxu0 %v3040
    %3733 = vmatprep.subr.bf16.mxu0 %v3045
    %3734 = vmatpush1.bf16.msra.mxu0 %v3044
    %3735 = vmatprep.subr.bf16.mxu0 %v3049
    %3736 = vmatpush1.bf16.msra.mxu0 %v3048
    %3737 = vmatprep.subr.bf16.mxu0 %v3053
    %3738 = vmatpush1.bf16.msra.mxu0 %v3052
    %3739 = vmatprep.subr.bf16.mxu0 %v3057
    %3740 = vmatpush1.bf16.msra.mxu0 %v3056
    %3741 = vmatprep.subr.bf16.mxu0 %v3061
    %3742 = vmatpush1.bf16.msra.mxu0 %v3060
    %3743 = vmatprep.mubr.bf16.mxu0 %v2133
    %3744 = vmatmul.mubr.bf16.gmra.mrb[0].mxu0 %v2132
    %v3745 = vpop.f32.mrb[0].mxu0
    %v3746 = vadd.f32 %v3705, %v3745
    %v3747 = vpop.f32.mrb[0].mxu0
    %v3748 = vadd.f32 %v3707, %v3747
    %v3749 = vpop.f32.mrb[0].mxu0
    %v3750 = vpop.f32.mrb[0].mxu0
    %3751 = vdwg.mxu0
    %3752 = vmatprep.subr.bf16.mxu0 %v3065
    %3753 = vmatpush1.bf16.msra.mxu0 %v3064
    %3754 = vmatprep.subr.bf16.mxu0 %v3069
    %3755 = vmatpush1.bf16.msra.mxu0 %v3068
    %3756 = vmatprep.subr.bf16.mxu0 %v3073
    %3757 = vmatpush1.bf16.msra.mxu0 %v3072
    %3758 = vmatprep.subr.bf16.mxu0 %v3077
    %3759 = vmatpush1.bf16.msra.mxu0 %v3076
    %3760 = vmatprep.subr.bf16.mxu0 %v3081
    %3761 = vmatpush1.bf16.msra.mxu0 %v3080
    %3762 = vmatprep.subr.bf16.mxu0 %v3085
    %3763 = vmatpush1.bf16.msra.mxu0 %v3084
    %3764 = vmatprep.subr.bf16.mxu0 %v3089
    %3765 = vmatpush1.bf16.msra.mxu0 %v3088
    %3766 = vmatprep.subr.bf16.mxu0 %v3093
    %3767 = vmatpush1.bf16.msra.mxu0 %v3092
    %3768 = vmatprep.subr.bf16.mxu0 %v3097
    %3769 = vmatpush1.bf16.msra.mxu0 %v3096
    %3770 = vmatprep.subr.bf16.mxu0 %v3101
    %3771 = vmatpush1.bf16.msra.mxu0 %v3100
    %3772 = vmatprep.subr.bf16.mxu0 %v3105
    %3773 = vmatpush1.bf16.msra.mxu0 %v3104
    %3774 = vmatprep.subr.bf16.mxu0 %v3109
    %3775 = vmatpush1.bf16.msra.mxu0 %v3108
    %3776 = vmatprep.subr.bf16.mxu0 %v3113
    %3777 = vmatpush1.bf16.msra.mxu0 %v3112
    %3778 = vmatprep.subr.bf16.mxu0 %v3117
    %3779 = vmatpush1.bf16.msra.mxu0 %v3116
    %3780 = vmatprep.subr.bf16.mxu0 %v3121
    %3781 = vmatpush1.bf16.msra.mxu0 %v3120
    %3782 = vmatprep.subr.bf16.mxu0 %v3125
    %3783 = vmatpush1.bf16.msra.mxu0 %v3124
    %3784 = vmatprep.mubr.bf16.mxu0 %v2135
    %3785 = vmatmul.mubr.bf16.gmra.mrb[0].mxu0 %v2134
    %v3786 = vpop.f32.mrb[0].mxu0
    %v3787 = vadd.f32 %v3746, %v3786
    %v3788 = vpop.f32.mrb[0].mxu0
    %v3789 = vadd.f32 %v3748, %v3788
    %v3790 = vpop.f32.mrb[0].mxu0
    %v3791 = vpop.f32.mrb[0].mxu0
    %3792 = vdwg.mxu0
    %3793 = vmatprep.subr.bf16.mxu0 %v3129
    %3794 = vmatpush1.bf16.msra.mxu0 %v3128
    %3795 = vmatprep.subr.bf16.mxu0 %v3133
    %3796 = vmatpush1.bf16.msra.mxu0 %v3132
    %3797 = vmatprep.subr.bf16.mxu0 %v3137
    %3798 = vmatpush1.bf16.msra.mxu0 %v3136
    %3799 = vmatprep.subr.bf16.mxu0 %v3141
    %3800 = vmatpush1.bf16.msra.mxu0 %v3140
    %3801 = vmatprep.subr.bf16.mxu0 %v3145
    %3802 = vmatpush1.bf16.msra.mxu0 %v3144
    %3803 = vmatprep.subr.bf16.mxu0 %v3149
    %3804 = vmatpush1.bf16.msra.mxu0 %v3148
    %3805 = vmatprep.subr.bf16.mxu0 %v3153
    %3806 = vmatpush1.bf16.msra.mxu0 %v3152
    %3807 = vmatprep.subr.bf16.mxu0 %v3157
    %3808 = vmatpush1.bf16.msra.mxu0 %v3156
    %3809 = vmatprep.subr.bf16.mxu0 %v3161
    %3810 = vmatpush1.bf16.msra.mxu0 %v3160
    %3811 = vmatprep.subr.bf16.mxu0 %v3165
    %3812 = vmatpush1.bf16.msra.mxu0 %v3164
    %3813 = vmatprep.subr.bf16.mxu0 %v3169
    %3814 = vmatpush1.bf16.msra.mxu0 %v3168
    %3815 = vmatprep.subr.bf16.mxu0 %v3173
    %3816 = vmatpush1.bf16.msra.mxu0 %v3172
    %3817 = vmatprep.subr.bf16.mxu0 %v3177
    %3818 = vmatpush1.bf16.msra.mxu0 %v3176
    %3819 = vmatprep.subr.bf16.mxu0 %v3181
    %3820 = vmatpush1.bf16.msra.mxu0 %v3180
    %3821 = vmatprep.subr.bf16.mxu0 %v3185
    %3822 = vmatpush1.bf16.msra.mxu0 %v3184
    %3823 = vmatprep.subr.bf16.mxu0 %v3189
    %3824 = vmatpush1.bf16.msra.mxu0 %v3188
    %3825 = vmatprep.mubr.bf16.mxu0 %v2137
    %3826 = vmatmul.mubr.bf16.gmra.mrb[0].mxu0 %v2136
    %v3827 = vpop.f32.mrb[0].mxu0
    %v3828 = vadd.f32 %v3787, %v3827
    %v3829 = vpop.f32.mrb[0].mxu0
    %v3830 = vadd.f32 %v3789, %v3829
    %v3831 = vpop.f32.mrb[0].mxu0
    %v3832 = vpop.f32.mrb[0].mxu0
    %3833 = vdwg.mxu0
    %3834 = vmatprep.subr.bf16.mxu0 %v3463
    %3835 = vmatpush1.bf16.msra.mxu0 %v3460
    %3836 = vmatprep.subr.bf16.mxu0 0
    %3837 = vmatpush1.bf16.msra.mxu0 0
    %3838 = vmatprep.subr.bf16.mxu0 0
    %3839 = vmatpush1.bf16.msra.mxu0 0
    %3840 = vmatprep.subr.bf16.mxu0 0
    %3841 = vmatpush1.bf16.msra.mxu0 0
    %3842 = vmatprep.subr.bf16.mxu0 0
    %3843 = vmatpush1.bf16.msra.mxu0 0
    %3844 = vmatprep.subr.bf16.mxu0 0
    %3845 = vmatpush1.bf16.msra.mxu0 0
    %3846 = vmatprep.subr.bf16.mxu0 0
    %3847 = vmatpush1.bf16.msra.mxu0 0
    %3848 = vmatprep.subr.bf16.mxu0 0
    %3849 = vmatpush1.bf16.msra.mxu0 0
    %3850 = vmatprep.subr.bf16.mxu0 0
    %3851 = vmatpush1.bf16.msra.mxu0 0
    %3852 = vmatprep.subr.bf16.mxu0 0
    %3853 = vmatpush1.bf16.msra.mxu0 0
    %3854 = vmatprep.subr.bf16.mxu0 0
    %3855 = vmatpush1.bf16.msra.mxu0 0
    %3856 = vmatprep.subr.bf16.mxu0 0
    %3857 = vmatpush1.bf16.msra.mxu0 0
    %3858 = vmatprep.subr.bf16.mxu0 0
    %3859 = vmatpush1.bf16.msra.mxu0 0
    %3860 = vmatprep.subr.bf16.mxu0 0
    %3861 = vmatpush1.bf16.msra.mxu0 0
    %3862 = vmatprep.subr.bf16.mxu0 0
    %3863 = vmatpush1.bf16.msra.mxu0 0
    %3864 = vmatprep.subr.bf16.mxu0 0
    %3865 = vmatpush1.bf16.msra.mxu0 0
    %3866 = vmatprep.mubr.bf16.mxu0 0
    %3867 = vmatmul.mubr.bf16.gmra.mrb[0].mxu0 %v3451
    %v3868 = vpop.f32.mrb[0].mxu0
    %v3869 = vadd.f32 %v3828, %v3868
    %v3870 = vpop.f32.mrb[0].mxu0
    %v3871 = vadd.f32 %v3830, %v3870
    %v3872 = vpop.f32.mrb[0].mxu0
    %v3873 = vpop.f32.mrb[0].mxu0
    %3874 = vdwg.mxu0
    %vm3875 = vcmp.gt.f32.partialorder %v3664, 0.0
    %vm3876 = vcmp.gt.f32.partialorder %v3666, 0.0
    %vm3877 = vcmp.gt.f32.partialorder %v3869, 0.0
    %vm3878 = vcmp.gt.f32.partialorder %v3871, 0.0
    %v3879 = vmul.f32 %v3664, 0.1
    %v3880 = vmul.f32 %v3666, 0.1
    %v3881 = vmul.f32 %v3869, 0.1
    %v3882 = vmul.f32 %v3871, 0.1
    %v3883 = vsel %vm3875, %v3664, %v3879
    %v3884 = vsel %vm3876, %v3666, %v3880
    %v3885 = vsel %vm3877, %v3869, %v3881
    %v3886 = vsel %vm3878, %v3871, %v3882
    %v3887 = vrot.slane %v3883, 4
    %v3888 = vadd.f32 %v3883, %v3887
    %v3889 = vrot.slane %v3888, 2
    %v3890 = vadd.f32 %v3888, %v3889
    %v3891 = vrot.slane %v3890, 1
    %v3892 = vadd.f32 %v3890, %v3891
    %v3893 = vrot.slane %v3884, 4
    %v3894 = vadd.f32 %v3884, %v3893
    %v3895 = vrot.slane %v3894, 2
    %v3896 = vadd.f32 %v3894, %v3895
    %v3897 = vrot.slane %v3896, 1
    %v3898 = vadd.f32 %v3896, %v3897
    %v3899 = vrot.slane %v3885, 4
    %v3900 = vadd.f32 %v3885, %v3899
    %v3901 = vrot.slane %v3900, 2
    %v3902 = vadd.f32 %v3900, %v3901
    %v3903 = vrot.slane %v3902, 1
    %v3904 = vadd.f32 %v3902, %v3903
    %v3905 = vrot.slane %v3886, 4
    %v3906 = vadd.f32 %v3886, %v3905
    %v3907 = vrot.slane %v3906, 2
    %v3908 = vadd.f32 %v3906, %v3907
    %v3909 = vrot.slane %v3908, 1
    %v3910 = vadd.f32 %v3908, %v3909
    %v3911 = vmul.f32 %v3892, %v1899
    %v3912 = vmul.f32 %v3898, %v1899
    %v3913 = vmul.f32 %v3904, %v1899
    %v3914 = vmul.f32 %v3910, %v1899
    %v3915 = vsub.f32 %v3883, %v3911
    %v3916 = vsub.f32 %v3884, %v3912
    %v3917 = vsub.f32 %v3885, %v3913
    %v3918 = vsub.f32 %v3886, %v3914
    %v3919 = vmul.f32 %v3915, %v3915
    %v3920 = vmul.f32 %v3916, %v3916
    %v3921 = vmul.f32 %v3917, %v3917
    %v3922 = vmul.f32 %v3918, %v3918
    %v3923 = vrot.slane %v3919, 4
    %v3924 = vadd.f32 %v3919, %v3923
    %v3925 = vrot.slane %v3924, 2
    %v3926 = vadd.f32 %v3924, %v3925
    %v3927 = vrot.slane %v3926, 1
    %v3928 = vadd.f32 %v3926, %v3927
    %v3929 = vrot.slane %v3920, 4
    %v3930 = vadd.f32 %v3920, %v3929
    %v3931 = vrot.slane %v3930, 2
    %v3932 = vadd.f32 %v3930, %v3931
    %v3933 = vrot.slane %v3932, 1
    %v3934 = vadd.f32 %v3932, %v3933
    %v3935 = vrot.slane %v3921, 4
    %v3936 = vadd.f32 %v3921, %v3935
    %v3937 = vrot.slane %v3936, 2
    %v3938 = vadd.f32 %v3936, %v3937
    %v3939 = vrot.slane %v3938, 1
    %v3940 = vadd.f32 %v3938, %v3939
    %v3941 = vrot.slane %v3922, 4
    %v3942 = vadd.f32 %v3922, %v3941
    %v3943 = vrot.slane %v3942, 2
    %v3944 = vadd.f32 %v3942, %v3943
    %v3945 = vrot.slane %v3944, 1
    %v3946 = vadd.f32 %v3944, %v3945
    %v3947 = vmul.f32 %v3928, %v1899
    %v3948 = vmul.f32 %v3934, %v1899
    %v3949 = vmul.f32 %v3940, %v1899
    %v3950 = vmul.f32 %v3946, %v1899
    %v3951 = vadd.f32 %v3947, 1e-05
    %v3952 = vadd.f32 %v3948, 1e-05
    %v3953 = vadd.f32 %v3949, 1e-05
    %v3954 = vadd.f32 %v3950, 1e-05
    %v3955 = vrsqrt.pop %v3951
    %v3956 = vrsqrt.pop %v3952
    %v3957 = vrsqrt.pop %v3953
    %v3958 = vrsqrt.pop %v3954
    %v3959 = vmul.f32 %v3915, %v3955
    %v3960 = vmul.f32 %v3916, %v3956
    %v3961 = vmul.f32 %v3917, %v3957
    %v3962 = vmul.f32 %v3918, %v3958
    %v3964 = vlaneseq
    %v3965 = vshrl.u32 %v3964, 7
    %v3966 = vsub.s32 0, %v3965
    %v3967 = vrot.slane %v777, %v3966
    %v3968 = vlaneseq
    %v3969 = vshrl.u32 %v3968, 7
    %v3970 = vsub.s32 1, %v3969
    %v3971 = vrot.slane %v777, %v3970
    %v3972 = vlaneseq
    %v3973 = vshrl.u32 %v3972, 7
    %v3974 = vsub.s32 2, %v3973
    %v3975 = vrot.slane %v777, %v3974
    %v3976 = vlaneseq
    %v3977 = vshrl.u32 %v3976, 7
    %v3978 = vsub.s32 3, %v3977
    %v3979 = vrot.slane %v777, %v3978
    %v3984 = vmul.f32 %v3959, %v3967
    %v3985 = vmul.f32 %v3960, %v3971
    %v3986 = vmul.f32 %v3961, %v3975
    %v3987 = vmul.f32 %v3962, %v3979
    %v3989 = vlaneseq
    %v3990 = vshrl.u32 %v3989, 7
    %v3991 = vsub.s32 0, %v3990
    %v3992 = vrot.slane %v778, %v3991
    %v3993 = vlaneseq
    %v3994 = vshrl.u32 %v3993, 7
    %v3995 = vsub.s32 1, %v3994
    %v3996 = vrot.slane %v778, %v3995
    %v3997 = vlaneseq
    %v3998 = vshrl.u32 %v3997, 7
    %v3999 = vsub.s32 2, %v3998
    %v4000 = vrot.slane %v778, %v3999
    %v4001 = vlaneseq
    %v4002 = vshrl.u32 %v4001, 7
    %v4003 = vsub.s32 3, %v4002
    %v4004 = vrot.slane %v778, %v4003
    %v4009 = vadd.f32 %v3984, %v3992
    %v4010 = vadd.f32 %v3985, %v3996
    %v4011 = vadd.f32 %v3986, %v4000
    %v4012 = vadd.f32 %v3987, %v4004
    %v4013 = vpack.c.bf16 %v4009, %v4009
    %v4014 = vpack.c.bf16 %v4010, %v4010
    %v4015 = vpack.c.bf16 %v4011, %v4011
    %v4016 = vpack.c.bf16 %v4012, %v4012
    %v4018 = vlaneseq
    %v4019 = vshrl.u32 %v4018, 7
    %v4020 = vsub.s32 0, %v4019
    %v4021 = vrot.slane %v843, %v4020
    %v4087 = vunpack.c.l.b16 %v779
    %v4088 = vunpack.c.l.b16 %v780
    %v4089 = vunpack.c.l.b16 %v781
    %v4090 = vunpack.c.l.b16 %v782
    %v4091 = vunpack.c.l.b16 %v783
    %v4092 = vunpack.c.l.b16 %v784
    %v4093 = vunpack.c.l.b16 %v785
    %v4094 = vunpack.c.l.b16 %v786
    %v4095 = vunpack.c.l.b16 %v787
    %v4096 = vunpack.c.l.b16 %v788
    %v4097 = vunpack.c.l.b16 %v789
    %v4098 = vunpack.c.l.b16 %v790
    %v4099 = vunpack.c.l.b16 %v791
    %v4100 = vunpack.c.l.b16 %v792
    %v4101 = vunpack.c.l.b16 %v793
    %v4102 = vunpack.c.l.b16 %v794
    %v4103 = vunpack.c.l.b16 %v795
    %v4104 = vunpack.c.l.b16 %v796
    %v4105 = vunpack.c.l.b16 %v797
    %v4106 = vunpack.c.l.b16 %v798
    %v4107 = vunpack.c.l.b16 %v799
    %v4108 = vunpack.c.l.b16 %v800
    %v4109 = vunpack.c.l.b16 %v801
    %v4110 = vunpack.c.l.b16 %v802
    %v4111 = vunpack.c.l.b16 %v803
    %v4112 = vunpack.c.l.b16 %v804
    %v4113 = vunpack.c.l.b16 %v805
    %v4114 = vunpack.c.l.b16 %v806
    %v4115 = vunpack.c.l.b16 %v807
    %v4116 = vunpack.c.l.b16 %v808
    %v4117 = vunpack.c.l.b16 %v809
    %v4118 = vunpack.c.l.b16 %v810
    %v4119 = vunpack.c.l.b16 %v811
    %v4120 = vunpack.c.l.b16 %v812
    %v4121 = vunpack.c.l.b16 %v813
    %v4122 = vunpack.c.l.b16 %v814
    %v4123 = vunpack.c.l.b16 %v815
    %v4124 = vunpack.c.l.b16 %v816
    %v4125 = vunpack.c.l.b16 %v817
    %v4126 = vunpack.c.l.b16 %v818
    %v4127 = vunpack.c.l.b16 %v819
    %v4128 = vunpack.c.l.b16 %v820
    %v4129 = vunpack.c.l.b16 %v821
    %v4130 = vunpack.c.l.b16 %v822
    %v4131 = vunpack.c.l.b16 %v823
    %v4132 = vunpack.c.l.b16 %v824
    %v4133 = vunpack.c.l.b16 %v825
    %v4134 = vunpack.c.l.b16 %v826
    %v4135 = vunpack.c.l.b16 %v827
    %v4136 = vunpack.c.l.b16 %v828
    %v4137 = vunpack.c.l.b16 %v829
    %v4138 = vunpack.c.l.b16 %v830
    %v4139 = vunpack.c.l.b16 %v831
    %v4140 = vunpack.c.l.b16 %v832
    %v4141 = vunpack.c.l.b16 %v833
    %v4142 = vunpack.c.l.b16 %v834
    %v4143 = vunpack.c.l.b16 %v835
    %v4144 = vunpack.c.l.b16 %v836
    %v4145 = vunpack.c.l.b16 %v837
    %v4146 = vunpack.c.l.b16 %v838
    %v4147 = vunpack.c.l.b16 %v839
    %v4148 = vunpack.c.l.b16 %v840
    %v4149 = vunpack.c.l.b16 %v841
    %v4150 = vunpack.c.l.b16 %v842
    %v4151 = vpack.c.b16 %v4088, %v4087
    %v4152 = vpack.c.b16 %v4090, %v4089
    %v4153 = vpack.c.b16 %v4092, %v4091
    %v4154 = vpack.c.b16 %v4094, %v4093
    %v4155 = vpack.c.b16 %v4096, %v4095
    %v4156 = vpack.c.b16 %v4098, %v4097
    %v4157 = vpack.c.b16 %v4100, %v4099
    %v4158 = vpack.c.b16 %v4102, %v4101
    %v4159 = vpack.c.b16 %v4104, %v4103
    %v4160 = vpack.c.b16 %v4106, %v4105
    %v4161 = vpack.c.b16 %v4108, %v4107
    %v4162 = vpack.c.b16 %v4110, %v4109
    %v4163 = vpack.c.b16 %v4112, %v4111
    %v4164 = vpack.c.b16 %v4114, %v4113
    %v4165 = vpack.c.b16 %v4116, %v4115
    %v4166 = vpack.c.b16 %v4118, %v4117
    %v4167 = vpack.c.b16 %v4120, %v4119
    %v4168 = vpack.c.b16 %v4122, %v4121
    %v4169 = vpack.c.b16 %v4124, %v4123
    %v4170 = vpack.c.b16 %v4126, %v4125
    %v4171 = vpack.c.b16 %v4128, %v4127
    %v4172 = vpack.c.b16 %v4130, %v4129
    %v4173 = vpack.c.b16 %v4132, %v4131
    %v4174 = vpack.c.b16 %v4134, %v4133
    %v4175 = vpack.c.b16 %v4136, %v4135
    %v4176 = vpack.c.b16 %v4138, %v4137
    %v4177 = vpack.c.b16 %v4140, %v4139
    %v4178 = vpack.c.b16 %v4142, %v4141
    %v4179 = vpack.c.b16 %v4144, %v4143
    %v4180 = vpack.c.b16 %v4146, %v4145
    %v4181 = vpack.c.b16 %v4148, %v4147
    %v4182 = vpack.c.b16 %v4150, %v4149
    %4215 = vmatprep.subr.bf16.mxu0 0
    %4216 = vmatpush1.bf16.msra.mxu0 %v4151
    %4217 = vmatprep.subr.bf16.mxu0 0
    %4218 = vmatpush1.bf16.msra.mxu0 %v4152
    %4219 = vmatprep.subr.bf16.mxu0 0
    %4220 = vmatpush1.bf16.msra.mxu0 %v4153
    %4221 = vmatprep.subr.bf16.mxu0 0
    %4222 = vmatpush1.bf16.msra.mxu0 %v4154
    %4223 = vmatprep.subr.bf16.mxu0 0
    %4224 = vmatpush1.bf16.msra.mxu0 %v4155
    %4225 = vmatprep.subr.bf16.mxu0 0
    %4226 = vmatpush1.bf16.msra.mxu0 %v4156
    %4227 = vmatprep.subr.bf16.mxu0 0
    %4228 = vmatpush1.bf16.msra.mxu0 %v4157
    %4229 = vmatprep.subr.bf16.mxu0 0
    %4230 = vmatpush1.bf16.msra.mxu0 %v4158
    %4231 = vmatprep.subr.bf16.mxu0 0
    %4232 = vmatpush1.bf16.msra.mxu0 %v4159
    %4233 = vmatprep.subr.bf16.mxu0 0
    %4234 = vmatpush1.bf16.msra.mxu0 %v4160
    %4235 = vmatprep.subr.bf16.mxu0 0
    %4236 = vmatpush1.bf16.msra.mxu0 %v4161
    %4237 = vmatprep.subr.bf16.mxu0 0
    %4238 = vmatpush1.bf16.msra.mxu0 %v4162
    %4239 = vmatprep.subr.bf16.mxu0 0
    %4240 = vmatpush1.bf16.msra.mxu0 %v4163
    %4241 = vmatprep.subr.bf16.mxu0 0
    %4242 = vmatpush1.bf16.msra.mxu0 %v4164
    %4243 = vmatprep.subr.bf16.mxu0 0
    %4244 = vmatpush1.bf16.msra.mxu0 %v4165
    %4245 = vmatprep.subr.bf16.mxu0 0
    %4246 = vmatpush1.bf16.msra.mxu0 %v4166
    %4247 = vmatprep.mubr.bf16.mxu0 %v4014
    %4248 = vmatmul.mubr.bf16.gmra.mrb[0].mxu0 %v4013
    %v4249 = vpop.f32.mrb[0].mxu0
    %v4250 = vadd.f32 %v4021, %v4249
    %v4251 = vpop.f32.mrb[0].mxu0
    %v4252 = vpop.f32.mrb[0].mxu0
    %v4253 = vpop.f32.mrb[0].mxu0
    %4254 = vdwg.mxu0
    %4255 = vmatprep.subr.bf16.mxu0 0
    %4256 = vmatpush1.bf16.msra.mxu0 %v4167
    %4257 = vmatprep.subr.bf16.mxu0 0
    %4258 = vmatpush1.bf16.msra.mxu0 %v4168
    %4259 = vmatprep.subr.bf16.mxu0 0
    %4260 = vmatpush1.bf16.msra.mxu0 %v4169
    %4261 = vmatprep.subr.bf16.mxu0 0
    %4262 = vmatpush1.bf16.msra.mxu0 %v4170
    %4263 = vmatprep.subr.bf16.mxu0 0
    %4264 = vmatpush1.bf16.msra.mxu0 %v4171
    %4265 = vmatprep.subr.bf16.mxu0 0
    %4266 = vmatpush1.bf16.msra.mxu0 %v4172
    %4267 = vmatprep.subr.bf16.mxu0 0
    %4268 = vmatpush1.bf16.msra.mxu0 %v4173
    %4269 = vmatprep.subr.bf16.mxu0 0
    %4270 = vmatpush1.bf16.msra.mxu0 %v4174
    %4271 = vmatprep.subr.bf16.mxu0 0
    %4272 = vmatpush1.bf16.msra.mxu0 %v4175
    %4273 = vmatprep.subr.bf16.mxu0 0
    %4274 = vmatpush1.bf16.msra.mxu0 %v4176
    %4275 = vmatprep.subr.bf16.mxu0 0
    %4276 = vmatpush1.bf16.msra.mxu0 %v4177
    %4277 = vmatprep.subr.bf16.mxu0 0
    %4278 = vmatpush1.bf16.msra.mxu0 %v4178
    %4279 = vmatprep.subr.bf16.mxu0 0
    %4280 = vmatpush1.bf16.msra.mxu0 %v4179
    %4281 = vmatprep.subr.bf16.mxu0 0
    %4282 = vmatpush1.bf16.msra.mxu0 %v4180
    %4283 = vmatprep.subr.bf16.mxu0 0
    %4284 = vmatpush1.bf16.msra.mxu0 %v4181
    %4285 = vmatprep.subr.bf16.mxu0 0
    %4286 = vmatpush1.bf16.msra.mxu0 %v4182
    %4287 = vmatprep.mubr.bf16.mxu0 %v4016
    %4288 = vmatmul.mubr.bf16.gmra.mrb[0].mxu0 %v4015
    %v4289 = vpop.f32.mrb[0].mxu0
    %v4290 = vadd.f32 %v4250, %v4289
    %v4291 = vpop.f32.mrb[0].mxu0
    %v4292 = vpop.f32.mrb[0].mxu0
    %v4293 = vpop.f32.mrb[0].mxu0
    %4294 = vdwg.mxu0
    %vm4295 = vcmp.gt.f32.partialorder %v4290, 0.0
    %v4296 = vmul.f32 %v4290, 0.1
    %v4297 = vsel %vm4295, %v4290, %v4296
    %v4298 = vrot.slane %v4297, 4
    %v4299 = vadd.f32 %v4297, %v4298
    %v4300 = vrot.slane %v4299, 2
    %v4301 = vadd.f32 %v4299, %v4300
    %v4302 = vrot.slane %v4301, 1
    %v4303 = vadd.f32 %v4301, %v4302
    %v4304 = vmul.f32 %v4303, %v1899
    %v4305 = vsub.f32 %v4297, %v4304
    %v4306 = vmul.f32 %v4305, %v4305
    %v4307 = vrot.slane %v4306, 4
    %v4308 = vadd.f32 %v4306, %v4307
    %v4309 = vrot.slane %v4308, 2
    %v4310 = vadd.f32 %v4308, %v4309
    %v4311 = vrot.slane %v4310, 1
    %v4312 = vadd.f32 %v4310, %v4311
    %v4313 = vmul.f32 %v4312, %v1899
    %v4314 = vadd.f32 %v4313, 1e-05
    %v4315 = vrsqrt.pop %v4314
    %v4316 = vmul.f32 %v4305, %v4315
    %v4318 = vlaneseq
    %v4319 = vshrl.u32 %v4318, 7
    %v4320 = vsub.s32 0, %v4319
    %v4321 = vrot.slane %v844, %v4320
    %v4323 = vmul.f32 %v4316, %v4321
    %v4325 = vlaneseq
    %v4326 = vshrl.u32 %v4325, 7
    %v4327 = vsub.s32 0, %v4326
    %v4328 = vrot.slane %v845, %v4327
    %v4330 = vadd.f32 %v4323, %v4328
    %v4331 = vpack.c.bf16 %v4330, %v4330
    %v4333 = vlaneseq
    %v4334 = vshrl.u32 %v4333, 7
    %v4335 = vsub.s32 0, %v4334
    %v4336 = vrot.slane %v862, %v4335
    %v4354 = vunpack.c.l.b16 %v846
    %v4355 = vunpack.c.l.b16 %v847
    %v4356 = vunpack.c.l.b16 %v848
    %v4357 = vunpack.c.l.b16 %v849
    %v4358 = vunpack.c.l.b16 %v850
    %v4359 = vunpack.c.l.b16 %v851
    %v4360 = vunpack.c.l.b16 %v852
    %v4361 = vunpack.c.l.b16 %v853
    %v4362 = vunpack.c.l.b16 %v854
    %v4363 = vunpack.c.l.b16 %v855
    %v4364 = vunpack.c.l.b16 %v856
    %v4365 = vunpack.c.l.b16 %v857
    %v4366 = vunpack.c.l.b16 %v858
    %v4367 = vunpack.c.l.b16 %v859
    %v4368 = vunpack.c.l.b16 %v860
    %v4369 = vunpack.c.l.b16 %v861
    %v4370 = vpack.c.b16 %v4355, %v4354
    %v4371 = vpack.c.b16 %v4357, %v4356
    %v4372 = vpack.c.b16 %v4359, %v4358
    %v4373 = vpack.c.b16 %v4361, %v4360
    %v4374 = vpack.c.b16 %v4363, %v4362
    %v4375 = vpack.c.b16 %v4365, %v4364
    %v4376 = vpack.c.b16 %v4367, %v4366
    %v4377 = vpack.c.b16 %v4369, %v4368
    %4386 = vmatprep.subr.bf16.mxu0 0
    %4387 = vmatpush1.bf16.msra.mxu0 %v4370
    %4388 = vmatprep.subr.bf16.mxu0 0
    %4389 = vmatpush1.bf16.msra.mxu0 %v4371
    %4390 = vmatprep.subr.bf16.mxu0 0
    %4391 = vmatpush1.bf16.msra.mxu0 %v4372
    %4392 = vmatprep.subr.bf16.mxu0 0
    %4393 = vmatpush1.bf16.msra.mxu0 %v4373
    %4394 = vmatprep.subr.bf16.mxu0 0
    %4395 = vmatpush1.bf16.msra.mxu0 %v4374
    %4396 = vmatprep.subr.bf16.mxu0 0
    %4397 = vmatpush1.bf16.msra.mxu0 %v4375
    %4398 = vmatprep.subr.bf16.mxu0 0
    %4399 = vmatpush1.bf16.msra.mxu0 %v4376
    %4400 = vmatprep.subr.bf16.mxu0 0
    %4401 = vmatpush1.bf16.msra.mxu0 %v4377
    %4402 = vmatprep.subr.bf16.mxu0 0
    %4403 = vmatpush1.bf16.msra.mxu0 0
    %4404 = vmatprep.subr.bf16.mxu0 0
    %4405 = vmatpush1.bf16.msra.mxu0 0
    %4406 = vmatprep.subr.bf16.mxu0 0
    %4407 = vmatpush1.bf16.msra.mxu0 0
    %4408 = vmatprep.subr.bf16.mxu0 0
    %4409 = vmatpush1.bf16.msra.mxu0 0
    %4410 = vmatprep.subr.bf16.mxu0 0
    %4411 = vmatpush1.bf16.msra.mxu0 0
    %4412 = vmatprep.subr.bf16.mxu0 0
    %4413 = vmatpush1.bf16.msra.mxu0 0
    %4414 = vmatprep.subr.bf16.mxu0 0
    %4415 = vmatpush1.bf16.msra.mxu0 0
    %4416 = vmatprep.subr.bf16.mxu0 0
    %4417 = vmatpush1.bf16.msra.mxu0 0
    %4418 = vmatprep.mubr.bf16.mxu0 0
    %4419 = vmatmul.mubr.bf16.gmra.mrb[0].mxu0 %v4331
    %v4420 = vpop.f32.mrb[0].mxu0
    %v4421 = vadd.f32 %v4336, %v4420
    %v4422 = vpop.f32.mrb[0].mxu0
    %v4423 = vpop.f32.mrb[0].mxu0
    %v4424 = vpop.f32.mrb[0].mxu0
    %4425 = vdwg.mxu0
    %v4426 = vmul.f32 %v4421, 0.5
    %v4427 = vmul.f32 %v4426, 1.442695
    %v4428 = vpow.pop %v4427
    %4430 = vrot.lane.b32.xlu0 %v4428, 120
    %v4431 = vpop.permute.xlu0 %4430
    %v4433 = vmul.f32 %v1224, %v4431
    %v4434 = vadd.f32 %v4421, %v4433
    %v4435 = vpack.c.bf16 %v4434, %v4434
    %v4439 = vcombine.high %v868, %v868
    %v4441 = vunpack.c.l.s4 1983009808
    %v4442 = vunpack.c.0.s8 %v4441
    %v4443 = vlaneseq
    %v4444 = vshrl.u32 %v4443, 7
    %v4445 = vsub.s32 %v4442, %v4444
    %v4446 = vrot.slane %v868, %v4445
    %v4448 = vunpack.c.l.s4 1983009808
    %v4449 = vunpack.c.0.s8 %v4448
    %v4450 = vlaneseq
    %v4451 = vshrl.u32 %v4450, 7
    %v4452 = vsub.s32 %v4449, %v4451
    %v4453 = vrot.slane %v4439, %v4452
    %v4454 = vcombine.high %v4446, %v4446
    %v4455 = vcombine.high %v4453, %v4453
    %v4456 = vcombine.high %v869, %v869
    %v4458 = vunpack.c.l.s4 1983009808
    %v4459 = vunpack.c.0.s8 %v4458
    %v4460 = vlaneseq
    %v4461 = vshrl.u32 %v4460, 7
    %v4462 = vsub.s32 %v4459, %v4461
    %v4463 = vrot.slane %v869, %v4462
    %v4465 = vunpack.c.l.s4 1983009808
    %v4466 = vunpack.c.0.s8 %v4465
    %v4467 = vlaneseq
    %v4468 = vshrl.u32 %v4467, 7
    %v4469 = vsub.s32 %v4466, %v4468
    %v4470 = vrot.slane %v4456, %v4469
    %v4471 = vcombine.high %v4463, %v4463
    %v4472 = vcombine.high %v4470, %v4470
    %v4474 = vunpack.c.l.s4 1983009808
    %v4475 = vunpack.c.0.s8 %v4474
    %v4476 = vlaneseq
    %v4477 = vshrl.u32 %v4476, 7
    %v4478 = vsub.s32 %v4475, %v4477
    %v4479 = vrot.slane %v870, %v4478
    %v4481 = vsel %vm1275, %v4446, 0
    %v4484 = vsel %vm1275, %v4454, 0
    %v4487 = vsel %vm1275, %v4453, 0
    %v4490 = vsel %vm1275, %v4455, 0
    %v4493 = vsel %vm1275, %v4463, 0
    %v4496 = vsel %vm1275, %v4471, 0
    %v4499 = vsel %vm1275, %v4470, 0
    %v4502 = vsel %vm1275, %v4472, 0
    %v4505 = vsel %vm1275, %v4479, 0
    %4507 = vmatprep.subr.bf16.mxu0 %v4484
    %4508 = vmatpush1.bf16.msra.mxu0 %v4481
    %4509 = vmatprep.subr.bf16.mxu0 0
    %4510 = vmatpush1.bf16.msra.mxu0 0
    %4511 = vmatprep.subr.bf16.mxu0 0
    %4512 = vmatpush1.bf16.msra.mxu0 0
    %4513 = vmatprep.subr.bf16.mxu0 0
    %4514 = vmatpush1.bf16.msra.mxu0 0
    %4515 = vmatprep.subr.bf16.mxu0 0
    %4516 = vmatpush1.bf16.msra.mxu0 0
    %4517 = vmatprep.subr.bf16.mxu0 0
    %4518 = vmatpush1.bf16.msra.mxu0 0
    %4519 = vmatprep.subr.bf16.mxu0 0
    %4520 = vmatpush1.bf16.msra.mxu0 0
    %4521 = vmatprep.subr.bf16.mxu0 0
    %4522 = vmatpush1.bf16.msra.mxu0 0
    %4523 = vmatprep.subr.bf16.mxu0 0
    %4524 = vmatpush1.bf16.msra.mxu0 0
    %4525 = vmatprep.subr.bf16.mxu0 0
    %4526 = vmatpush1.bf16.msra.mxu0 0
    %4527 = vmatprep.subr.bf16.mxu0 0
    %4528 = vmatpush1.bf16.msra.mxu0 0
    %4529 = vmatprep.subr.bf16.mxu0 0
    %4530 = vmatpush1.bf16.msra.mxu0 0
    %4531 = vmatprep.subr.bf16.mxu0 0
    %4532 = vmatpush1.bf16.msra.mxu0 0
    %4533 = vmatprep.subr.bf16.mxu0 0
    %4534 = vmatpush1.bf16.msra.mxu0 0
    %4535 = vmatprep.subr.bf16.mxu0 0
    %4536 = vmatpush1.bf16.msra.mxu0 0
    %4537 = vmatprep.subr.bf16.mxu0 0
    %4538 = vmatpush1.bf16.msra.mxu0 0
    %4539 = vmatprep.mubr.bf16.mxu0 0
    %4540 = vmatmul.mubr.bf16.gmra.mrb[0].mxu0 %v1273
    %v4541 = vpop.f32.mrb[0].mxu0
    %v4542 = vadd.f32 0.0, %v4541
    %v4543 = vpop.f32.mrb[0].mxu0
    %v4544 = vadd.f32 0.0, %v4543
    %v4545 = vpop.f32.mrb[0].mxu0
    %v4546 = vpop.f32.mrb[0].mxu0
    %4547 = vdwg.mxu0
    %4548 = vmatprep.subr.bf16.mxu0 %v4490
    %4549 = vmatpush1.bf16.msra.mxu0 %v4487
    %4550 = vmatprep.subr.bf16.mxu0 0
    %4551 = vmatpush1.bf16.msra.mxu0 0
    %4552 = vmatprep.subr.bf16.mxu0 0
    %4553 = vmatpush1.bf16.msra.mxu0 0
    %4554 = vmatprep.subr.bf16.mxu0 0
    %4555 = vmatpush1.bf16.msra.mxu0 0
    %4556 = vmatprep.subr.bf16.mxu0 0
    %4557 = vmatpush1.bf16.msra.mxu0 0
    %4558 = vmatprep.subr.bf16.mxu0 0
    %4559 = vmatpush1.bf16.msra.mxu0 0
    %4560 = vmatprep.subr.bf16.mxu0 0
    %4561 = vmatpush1.bf16.msra.mxu0 0
    %4562 = vmatprep.subr.bf16.mxu0 0
    %4563 = vmatpush1.bf16.msra.mxu0 0
    %4564 = vmatprep.subr.bf16.mxu0 0
    %4565 = vmatpush1.bf16.msra.mxu0 0
    %4566 = vmatprep.subr.bf16.mxu0 0
    %4567 = vmatpush1.bf16.msra.mxu0 0
    %4568 = vmatprep.subr.bf16.mxu0 0
    %4569 = vmatpush1.bf16.msra.mxu0 0
    %4570 = vmatprep.subr.bf16.mxu0 0
    %4571 = vmatpush1.bf16.msra.mxu0 0
    %4572 = vmatprep.subr.bf16.mxu0 0
    %4573 = vmatpush1.bf16.msra.mxu0 0
    %4574 = vmatprep.subr.bf16.mxu0 0
    %4575 = vmatpush1.bf16.msra.mxu0 0
    %4576 = vmatprep.subr.bf16.mxu0 0
    %4577 = vmatpush1.bf16.msra.mxu0 0
    %4578 = vmatprep.subr.bf16.mxu0 0
    %4579 = vmatpush1.bf16.msra.mxu0 0
    %4580 = vmatprep.mubr.bf16.mxu0 0
    %4581 = vmatmul.mubr.bf16.gmra.mrb[0].mxu0 %v1273
    %v4582 = vpop.f32.mrb[0].mxu0
    %v4583 = vadd.f32 0.0, %v4582
    %v4584 = vpop.f32.mrb[0].mxu0
    %v4585 = vadd.f32 0.0, %v4584
    %v4586 = vpop.f32.mrb[0].mxu0
    %v4587 = vpop.f32.mrb[0].mxu0
    %4588 = vdwg.mxu0
    %4589 = vmatprep.subr.bf16.mxu0 %v4496
    %4590 = vmatpush1.bf16.msra.mxu0 %v4493
    %4591 = vmatprep.subr.bf16.mxu0 0
    %4592 = vmatpush1.bf16.msra.mxu0 0
    %4593 = vmatprep.subr.bf16.mxu0 0
    %4594 = vmatpush1.bf16.msra.mxu0 0
    %4595 = vmatprep.subr.bf16.mxu0 0
    %4596 = vmatpush1.bf16.msra.mxu0 0
    %4597 = vmatprep.subr.bf16.mxu0 0
    %4598 = vmatpush1.bf16.msra.mxu0 0
    %4599 = vmatprep.subr.bf16.mxu0 0
    %4600 = vmatpush1.bf16.msra.mxu0 0
    %4601 = vmatprep.subr.bf16.mxu0 0
    %4602 = vmatpush1.bf16.msra.mxu0 0
    %4603 = vmatprep.subr.bf16.mxu0 0
    %4604 = vmatpush1.bf16.msra.mxu0 0
    %4605 = vmatprep.subr.bf16.mxu0 0
    %4606 = vmatpush1.bf16.msra.mxu0 0
    %4607 = vmatprep.subr.bf16.mxu0 0
    %4608 = vmatpush1.bf16.msra.mxu0 0
    %4609 = vmatprep.subr.bf16.mxu0 0
    %4610 = vmatpush1.bf16.msra.mxu0 0
    %4611 = vmatprep.subr.bf16.mxu0 0
    %4612 = vmatpush1.bf16.msra.mxu0 0
    %4613 = vmatprep.subr.bf16.mxu0 0
    %4614 = vmatpush1.bf16.msra.mxu0 0
    %4615 = vmatprep.subr.bf16.mxu0 0
    %4616 = vmatpush1.bf16.msra.mxu0 0
    %4617 = vmatprep.subr.bf16.mxu0 0
    %4618 = vmatpush1.bf16.msra.mxu0 0
    %4619 = vmatprep.subr.bf16.mxu0 0
    %4620 = vmatpush1.bf16.msra.mxu0 0
    %4621 = vmatprep.mubr.bf16.mxu0 0
    %4622 = vmatmul.mubr.bf16.gmra.mrb[0].mxu0 %v1273
    %v4623 = vpop.f32.mrb[0].mxu0
    %v4624 = vadd.f32 0.0, %v4623
    %v4625 = vpop.f32.mrb[0].mxu0
    %v4626 = vadd.f32 0.0, %v4625
    %v4627 = vpop.f32.mrb[0].mxu0
    %v4628 = vpop.f32.mrb[0].mxu0
    %4629 = vdwg.mxu0
    %4630 = vmatprep.subr.bf16.mxu0 %v4502
    %4631 = vmatpush1.bf16.msra.mxu0 %v4499
    %4632 = vmatprep.subr.bf16.mxu0 0
    %4633 = vmatpush1.bf16.msra.mxu0 0
    %4634 = vmatprep.subr.bf16.mxu0 0
    %4635 = vmatpush1.bf16.msra.mxu0 0
    %4636 = vmatprep.subr.bf16.mxu0 0
    %4637 = vmatpush1.bf16.msra.mxu0 0
    %4638 = vmatprep.subr.bf16.mxu0 0
    %4639 = vmatpush1.bf16.msra.mxu0 0
    %4640 = vmatprep.subr.bf16.mxu0 0
    %4641 = vmatpush1.bf16.msra.mxu0 0
    %4642 = vmatprep.subr.bf16.mxu0 0
    %4643 = vmatpush1.bf16.msra.mxu0 0
    %4644 = vmatprep.subr.bf16.mxu0 0
    %4645 = vmatpush1.bf16.msra.mxu0 0
    %4646 = vmatprep.subr.bf16.mxu0 0
    %4647 = vmatpush1.bf16.msra.mxu0 0
    %4648 = vmatprep.subr.bf16.mxu0 0
    %4649 = vmatpush1.bf16.msra.mxu0 0
    %4650 = vmatprep.subr.bf16.mxu0 0
    %4651 = vmatpush1.bf16.msra.mxu0 0
    %4652 = vmatprep.subr.bf16.mxu0 0
    %4653 = vmatpush1.bf16.msra.mxu0 0
    %4654 = vmatprep.subr.bf16.mxu0 0
    %4655 = vmatpush1.bf16.msra.mxu0 0
    %4656 = vmatprep.subr.bf16.mxu0 0
    %4657 = vmatpush1.bf16.msra.mxu0 0
    %4658 = vmatprep.subr.bf16.mxu0 0
    %4659 = vmatpush1.bf16.msra.mxu0 0
    %4660 = vmatprep.subr.bf16.mxu0 0
    %4661 = vmatpush1.bf16.msra.mxu0 0
    %4662 = vmatprep.mubr.bf16.mxu0 0
    %4663 = vmatmul.mubr.bf16.gmra.mrb[0].mxu0 %v1273
    %v4664 = vpop.f32.mrb[0].mxu0
    %v4665 = vadd.f32 0.0, %v4664
    %v4666 = vpop.f32.mrb[0].mxu0
    %v4667 = vadd.f32 0.0, %v4666
    %v4668 = vpop.f32.mrb[0].mxu0
    %v4669 = vpop.f32.mrb[0].mxu0
    %4670 = vdwg.mxu0
    %4671 = vmatprep.subr.bf16.mxu0 0
    %4672 = vmatpush1.bf16.msra.mxu0 %v4505
    %4673 = vmatprep.subr.bf16.mxu0 0
    %4674 = vmatpush1.bf16.msra.mxu0 0
    %4675 = vmatprep.subr.bf16.mxu0 0
    %4676 = vmatpush1.bf16.msra.mxu0 0
    %4677 = vmatprep.subr.bf16.mxu0 0
    %4678 = vmatpush1.bf16.msra.mxu0 0
    %4679 = vmatprep.subr.bf16.mxu0 0
    %4680 = vmatpush1.bf16.msra.mxu0 0
    %4681 = vmatprep.subr.bf16.mxu0 0
    %4682 = vmatpush1.bf16.msra.mxu0 0
    %4683 = vmatprep.subr.bf16.mxu0 0
    %4684 = vmatpush1.bf16.msra.mxu0 0
    %4685 = vmatprep.subr.bf16.mxu0 0
    %4686 = vmatpush1.bf16.msra.mxu0 0
    %4687 = vmatprep.subr.bf16.mxu0 0
    %4688 = vmatpush1.bf16.msra.mxu0 0
    %4689 = vmatprep.subr.bf16.mxu0 0
    %4690 = vmatpush1.bf16.msra.mxu0 0
    %4691 = vmatprep.subr.bf16.mxu0 0
    %4692 = vmatpush1.bf16.msra.mxu0 0
    %4693 = vmatprep.subr.bf16.mxu0 0
    %4694 = vmatpush1.bf16.msra.mxu0 0
    %4695 = vmatprep.subr.bf16.mxu0 0
    %4696 = vmatpush1.bf16.msra.mxu0 0
    %4697 = vmatprep.subr.bf16.mxu0 0
    %4698 = vmatpush1.bf16.msra.mxu0 0
    %4699 = vmatprep.subr.bf16.mxu0 0
    %4700 = vmatpush1.bf16.msra.mxu0 0
    %4701 = vmatprep.subr.bf16.mxu0 0
    %4702 = vmatpush1.bf16.msra.mxu0 0
    %4703 = vmatprep.mubr.bf16.mxu0 0
    %4704 = vmatmul.mubr.bf16.gmra.mrb[0].mxu0 %v1273
    %v4705 = vpop.f32.mrb[0].mxu0
    %v4706 = vadd.f32 0.0, %v4705
    %v4707 = vpop.f32.mrb[0].mxu0
    %v4708 = vpop.f32.mrb[0].mxu0
    %v4709 = vpop.f32.mrb[0].mxu0
    %4710 = vdwg.mxu0
    %v4716 = vunpack.c.l.b16 %v863
    %v4717 = vunpack.c.h.b16 %v863
    %v4718 = vunpack.c.l.b16 %v864
    %v4719 = vunpack.c.h.b16 %v864
    %v4720 = vunpack.c.l.b16 %v865
    %v4721 = vunpack.c.h.b16 %v865
    %v4722 = vunpack.c.l.b16 %v866
    %v4723 = vunpack.c.h.b16 %v866
    %v4724 = vunpack.c.l.b16 %v867
    %v4725 = vpack.c.b16 %v4716, %v4716
    %v4726 = vpack.c.b16 %v4717, %v4717
    %v4727 = vpack.c.b16 %v4718, %v4718
    %v4728 = vpack.c.b16 %v4719, %v4719
    %v4729 = vpack.c.b16 %v4720, %v4720
    %v4730 = vpack.c.b16 %v4721, %v4721
    %v4731 = vpack.c.b16 %v4722, %v4722
    %v4732 = vpack.c.b16 %v4723, %v4723
    %v4733 = vpack.c.b16 %v4724, %v4724
    %vm4734 = vcmask 64512
    %v4736 = vsel %vm4734, %v4435, 0
    %vm4738 = vcmask 1043456
    %v4740 = vsel %vm4738, %v4725, 0
    %v4743 = vsel %vm4738, %v4726, 0
    %v4746 = vsel %vm4738, %v4727, 0
    %v4749 = vsel %vm4738, %v4728, 0
    %v4752 = vsel %vm4738, %v4729, 0
    %v4755 = vsel %vm4738, %v4730, 0
    %v4758 = vsel %vm4738, %v4731, 0
    %v4761 = vsel %vm4738, %v4732, 0
    %v4764 = vsel %vm4738, %v4733, 0
    %4766 = vmatprep.subr.bf16.mxu0 %v4743
    %4767 = vmatpush1.bf16.msra.mxu0 %v4740
    %4768 = vmatprep.subr.bf16.mxu0 0
    %4769 = vmatpush1.bf16.msra.mxu0 0
    %4770 = vmatprep.subr.bf16.mxu0 0
    %4771 = vmatpush1.bf16.msra.mxu0 0
    %4772 = vmatprep.subr.bf16.mxu0 0
    %4773 = vmatpush1.bf16.msra.mxu0 0
    %4774 = vmatprep.subr.bf16.mxu0 0
    %4775 = vmatpush1.bf16.msra.mxu0 0
    %4776 = vmatprep.subr.bf16.mxu0 0
    %4777 = vmatpush1.bf16.msra.mxu0 0
    %4778 = vmatprep.subr.bf16.mxu0 0
    %4779 = vmatpush1.bf16.msra.mxu0 0
    %4780 = vmatprep.subr.bf16.mxu0 0
    %4781 = vmatpush1.bf16.msra.mxu0 0
    %4782 = vmatprep.subr.bf16.mxu0 0
    %4783 = vmatpush1.bf16.msra.mxu0 0
    %4784 = vmatprep.subr.bf16.mxu0 0
    %4785 = vmatpush1.bf16.msra.mxu0 0
    %4786 = vmatprep.subr.bf16.mxu0 0
    %4787 = vmatpush1.bf16.msra.mxu0 0
    %4788 = vmatprep.subr.bf16.mxu0 0
    %4789 = vmatpush1.bf16.msra.mxu0 0
    %4790 = vmatprep.subr.bf16.mxu0 0
    %4791 = vmatpush1.bf16.msra.mxu0 0
    %4792 = vmatprep.subr.bf16.mxu0 0
    %4793 = vmatpush1.bf16.msra.mxu0 0
    %4794 = vmatprep.subr.bf16.mxu0 0
    %4795 = vmatpush1.bf16.msra.mxu0 0
    %4796 = vmatprep.subr.bf16.mxu0 0
    %4797 = vmatpush1.bf16.msra.mxu0 0
    %4798 = vmatprep.mubr.bf16.mxu0 0
    %4799 = vmatmul.mubr.bf16.gmra.mrb[0].mxu0 %v4736
    %v4800 = vpop.f32.mrb[0].mxu0
    %v4801 = vadd.f32 %v4542, %v4800
    %v4802 = vpop.f32.mrb[0].mxu0
    %v4803 = vadd.f32 %v4544, %v4802
    %v4804 = vpop.f32.mrb[0].mxu0
    %v4805 = vpop.f32.mrb[0].mxu0
    %4806 = vdwg.mxu0
    %4807 = vmatprep.subr.bf16.mxu0 %v4749
    %4808 = vmatpush1.bf16.msra.mxu0 %v4746
    %4809 = vmatprep.subr.bf16.mxu0 0
    %4810 = vmatpush1.bf16.msra.mxu0 0
    %4811 = vmatprep.subr.bf16.mxu0 0
    %4812 = vmatpush1.bf16.msra.mxu0 0
    %4813 = vmatprep.subr.bf16.mxu0 0
    %4814 = vmatpush1.bf16.msra.mxu0 0
    %4815 = vmatprep.subr.bf16.mxu0 0
    %4816 = vmatpush1.bf16.msra.mxu0 0
    %4817 = vmatprep.subr.bf16.mxu0 0
    %4818 = vmatpush1.bf16.msra.mxu0 0
    %4819 = vmatprep.subr.bf16.mxu0 0
    %4820 = vmatpush1.bf16.msra.mxu0 0
    %4821 = vmatprep.subr.bf16.mxu0 0
    %4822 = vmatpush1.bf16.msra.mxu0 0
    %4823 = vmatprep.subr.bf16.mxu0 0
    %4824 = vmatpush1.bf16.msra.mxu0 0
    %4825 = vmatprep.subr.bf16.mxu0 0
    %4826 = vmatpush1.bf16.msra.mxu0 0
    %4827 = vmatprep.subr.bf16.mxu0 0
    %4828 = vmatpush1.bf16.msra.mxu0 0
    %4829 = vmatprep.subr.bf16.mxu0 0
    %4830 = vmatpush1.bf16.msra.mxu0 0
    %4831 = vmatprep.subr.bf16.mxu0 0
    %4832 = vmatpush1.bf16.msra.mxu0 0
    %4833 = vmatprep.subr.bf16.mxu0 0
    %4834 = vmatpush1.bf16.msra.mxu0 0
    %4835 = vmatprep.subr.bf16.mxu0 0
    %4836 = vmatpush1.bf16.msra.mxu0 0
    %4837 = vmatprep.subr.bf16.mxu0 0
    %4838 = vmatpush1.bf16.msra.mxu0 0
    %4839 = vmatprep.mubr.bf16.mxu0 0
    %4840 = vmatmul.mubr.bf16.gmra.mrb[0].mxu0 %v4736
    %v4841 = vpop.f32.mrb[0].mxu0
    %v4842 = vadd.f32 %v4583, %v4841
    %v4843 = vpop.f32.mrb[0].mxu0
    %v4844 = vadd.f32 %v4585, %v4843
    %v4845 = vpop.f32.mrb[0].mxu0
    %v4846 = vpop.f32.mrb[0].mxu0
    %4847 = vdwg.mxu0
    %4848 = vmatprep.subr.bf16.mxu0 %v4755
    %4849 = vmatpush1.bf16.msra.mxu0 %v4752
    %4850 = vmatprep.subr.bf16.mxu0 0
    %4851 = vmatpush1.bf16.msra.mxu0 0
    %4852 = vmatprep.subr.bf16.mxu0 0
    %4853 = vmatpush1.bf16.msra.mxu0 0
    %4854 = vmatprep.subr.bf16.mxu0 0
    %4855 = vmatpush1.bf16.msra.mxu0 0
    %4856 = vmatprep.subr.bf16.mxu0 0
    %4857 = vmatpush1.bf16.msra.mxu0 0
    %4858 = vmatprep.subr.bf16.mxu0 0
    %4859 = vmatpush1.bf16.msra.mxu0 0
    %4860 = vmatprep.subr.bf16.mxu0 0
    %4861 = vmatpush1.bf16.msra.mxu0 0
    %4862 = vmatprep.subr.bf16.mxu0 0
    %4863 = vmatpush1.bf16.msra.mxu0 0
    %4864 = vmatprep.subr.bf16.mxu0 0
    %4865 = vmatpush1.bf16.msra.mxu0 0
    %4866 = vmatprep.subr.bf16.mxu0 0
    %4867 = vmatpush1.bf16.msra.mxu0 0
    %4868 = vmatprep.subr.bf16.mxu0 0
    %4869 = vmatpush1.bf16.msra.mxu0 0
    %4870 = vmatprep.subr.bf16.mxu0 0
    %4871 = vmatpush1.bf16.msra.mxu0 0
    %4872 = vmatprep.subr.bf16.mxu0 0
    %4873 = vmatpush1.bf16.msra.mxu0 0
    %4874 = vmatprep.subr.bf16.mxu0 0
    %4875 = vmatpush1.bf16.msra.mxu0 0
    %4876 = vmatprep.subr.bf16.mxu0 0
    %4877 = vmatpush1.bf16.msra.mxu0 0
    %4878 = vmatprep.subr.bf16.mxu0 0
    %4879 = vmatpush1.bf16.msra.mxu0 0
    %4880 = vmatprep.mubr.bf16.mxu0 0
    %4881 = vmatmul.mubr.bf16.gmra.mrb[0].mxu0 %v4736
    %v4882 = vpop.f32.mrb[0].mxu0
    %v4883 = vadd.f32 %v4624, %v4882
    %v4884 = vpop.f32.mrb[0].mxu0
    %v4885 = vadd.f32 %v4626, %v4884
    %v4886 = vpop.f32.mrb[0].mxu0
    %v4887 = vpop.f32.mrb[0].mxu0
    %4888 = vdwg.mxu0
    %4889 = vmatprep.subr.bf16.mxu0 %v4761
    %4890 = vmatpush1.bf16.msra.mxu0 %v4758
    %4891 = vmatprep.subr.bf16.mxu0 0
    %4892 = vmatpush1.bf16.msra.mxu0 0
    %4893 = vmatprep.subr.bf16.mxu0 0
    %4894 = vmatpush1.bf16.msra.mxu0 0
    %4895 = vmatprep.subr.bf16.mxu0 0
    %4896 = vmatpush1.bf16.msra.mxu0 0
    %4897 = vmatprep.subr.bf16.mxu0 0
    %4898 = vmatpush1.bf16.msra.mxu0 0
    %4899 = vmatprep.subr.bf16.mxu0 0
    %4900 = vmatpush1.bf16.msra.mxu0 0
    %4901 = vmatprep.subr.bf16.mxu0 0
    %4902 = vmatpush1.bf16.msra.mxu0 0
    %4903 = vmatprep.subr.bf16.mxu0 0
    %4904 = vmatpush1.bf16.msra.mxu0 0
    %4905 = vmatprep.subr.bf16.mxu0 0
    %4906 = vmatpush1.bf16.msra.mxu0 0
    %4907 = vmatprep.subr.bf16.mxu0 0
    %4908 = vmatpush1.bf16.msra.mxu0 0
    %4909 = vmatprep.subr.bf16.mxu0 0
    %4910 = vmatpush1.bf16.msra.mxu0 0
    %4911 = vmatprep.subr.bf16.mxu0 0
    %4912 = vmatpush1.bf16.msra.mxu0 0
    %4913 = vmatprep.subr.bf16.mxu0 0
    %4914 = vmatpush1.bf16.msra.mxu0 0
    %4915 = vmatprep.subr.bf16.mxu0 0
    %4916 = vmatpush1.bf16.msra.mxu0 0
    %4917 = vmatprep.subr.bf16.mxu0 0
    %4918 = vmatpush1.bf16.msra.mxu0 0
    %4919 = vmatprep.subr.bf16.mxu0 0
    %4920 = vmatpush1.bf16.msra.mxu0 0
    %4921 = vmatprep.mubr.bf16.mxu0 0
    %4922 = vmatmul.mubr.bf16.gmra.mrb[0].mxu0 %v4736
    %v4923 = vpop.f32.mrb[0].mxu0
    %v4924 = vadd.f32 %v4665, %v4923
    %v4925 = vpop.f32.mrb[0].mxu0
    %v4926 = vadd.f32 %v4667, %v4925
    %v4927 = vpop.f32.mrb[0].mxu0
    %v4928 = vpop.f32.mrb[0].mxu0
    %4929 = vdwg.mxu0
    %4930 = vmatprep.subr.bf16.mxu0 0
    %4931 = vmatpush1.bf16.msra.mxu0 %v4764
    %4932 = vmatprep.subr.bf16.mxu0 0
    %4933 = vmatpush1.bf16.msra.mxu0 0
    %4934 = vmatprep.subr.bf16.mxu0 0
    %4935 = vmatpush1.bf16.msra.mxu0 0
    %4936 = vmatprep.subr.bf16.mxu0 0
    %4937 = vmatpush1.bf16.msra.mxu0 0
    %4938 = vmatprep.subr.bf16.mxu0 0
    %4939 = vmatpush1.bf16.msra.mxu0 0
    %4940 = vmatprep.subr.bf16.mxu0 0
    %4941 = vmatpush1.bf16.msra.mxu0 0
    %4942 = vmatprep.subr.bf16.mxu0 0
    %4943 = vmatpush1.bf16.msra.mxu0 0
    %4944 = vmatprep.subr.bf16.mxu0 0
    %4945 = vmatpush1.bf16.msra.mxu0 0
    %4946 = vmatprep.subr.bf16.mxu0 0
    %4947 = vmatpush1.bf16.msra.mxu0 0
    %4948 = vmatprep.subr.bf16.mxu0 0
    %4949 = vmatpush1.bf16.msra.mxu0 0
    %4950 = vmatprep.subr.bf16.mxu0 0
    %4951 = vmatpush1.bf16.msra.mxu0 0
    %4952 = vmatprep.subr.bf16.mxu0 0
    %4953 = vmatpush1.bf16.msra.mxu0 0
    %4954 = vmatprep.subr.bf16.mxu0 0
    %4955 = vmatpush1.bf16.msra.mxu0 0
    %4956 = vmatprep.subr.bf16.mxu0 0
    %4957 = vmatpush1.bf16.msra.mxu0 0
    %4958 = vmatprep.subr.bf16.mxu0 0
    %4959 = vmatpush1.bf16.msra.mxu0 0
    %4960 = vmatprep.subr.bf16.mxu0 0
    %4961 = vmatpush1.bf16.msra.mxu0 0
    %4962 = vmatprep.mubr.bf16.mxu0 0
    %4963 = vmatmul.mubr.bf16.gmra.mrb[0].mxu0 %v4736
    %v4964 = vpop.f32.mrb[0].mxu0
    %v4965 = vadd.f32 %v4706, %v4964
    %v4966 = vpop.f32.mrb[0].mxu0
    %v4967 = vpop.f32.mrb[0].mxu0
    %v4968 = vpop.f32.mrb[0].mxu0
    %4969 = vdwg.mxu0
    %v4972 = vlaneseq
    %v4973 = vshrl.u32 %v4972, 7
    %v4974 = vsub.s32 0, %v4973
    %v4975 = vrot.slane %v871, %v4974
    %v4976 = vlaneseq
    %v4977 = vshrl.u32 %v4976, 7
    %v4978 = vsub.s32 1, %v4977
    %v4979 = vrot.slane %v871, %v4978
    %v4980 = vlaneseq
    %v4981 = vshrl.u32 %v4980, 7
    %v4982 = vsub.s32 2, %v4981
    %v4983 = vrot.slane %v871, %v4982
    %v4984 = vlaneseq
    %v4985 = vshrl.u32 %v4984, 7
    %v4986 = vsub.s32 3, %v4985
    %v4987 = vrot.slane %v871, %v4986
    %v4988 = vlaneseq
    %v4989 = vshrl.u32 %v4988, 7
    %v4990 = vsub.s32 4, %v4989
    %v4991 = vrot.slane %v871, %v4990
    %v4992 = vlaneseq
    %v4993 = vshrl.u32 %v4992, 7
    %v4994 = vsub.s32 5, %v4993
    %v4995 = vrot.slane %v871, %v4994
    %v4996 = vlaneseq
    %v4997 = vshrl.u32 %v4996, 7
    %v4998 = vsub.s32 6, %v4997
    %v4999 = vrot.slane %v871, %v4998
    %v5000 = vlaneseq
    %v5001 = vshrl.u32 %v5000, 7
    %v5002 = vsub.s32 7, %v5001
    %v5003 = vrot.slane %v871, %v5002
    %v5004 = vlaneseq
    %v5005 = vshrl.u32 %v5004, 7
    %v5006 = vsub.s32 0, %v5005
    %v5007 = vrot.slane %v872, %v5006
    %v5017 = vadd.f32 %v4801, %v4975
    %v5018 = vadd.f32 %v4803, %v4979
    %v5019 = vadd.f32 %v4842, %v4983
    %v5020 = vadd.f32 %v4844, %v4987
    %v5021 = vadd.f32 %v4883, %v4991
    %v5022 = vadd.f32 %v4885, %v4995
    %v5023 = vadd.f32 %v4924, %v4999
    %v5024 = vadd.f32 %v4926, %v5003
    %v5025 = vadd.f32 %v4965, %v5007
    %vm5026 = vcmp.gt.f32.partialorder %v5017, 0.0
    %vm5027 = vcmp.gt.f32.partialorder %v5018, 0.0
    %vm5028 = vcmp.gt.f32.partialorder %v5019, 0.0
    %vm5029 = vcmp.gt.f32.partialorder %v5020, 0.0
    %vm5030 = vcmp.gt.f32.partialorder %v5021, 0.0
    %vm5031 = vcmp.gt.f32.partialorder %v5022, 0.0
    %vm5032 = vcmp.gt.f32.partialorder %v5023, 0.0
    %vm5033 = vcmp.gt.f32.partialorder %v5024, 0.0
    %vm5034 = vcmp.gt.f32.partialorder %v5025, 0.0
    %v5035 = vmul.f32 %v5017, 0.1
    %v5036 = vmul.f32 %v5018, 0.1
    %v5037 = vmul.f32 %v5019, 0.1
    %v5038 = vmul.f32 %v5020, 0.1
    %v5039 = vmul.f32 %v5021, 0.1
    %v5040 = vmul.f32 %v5022, 0.1
    %v5041 = vmul.f32 %v5023, 0.1
    %v5042 = vmul.f32 %v5024, 0.1
    %v5043 = vmul.f32 %v5025, 0.1
    %v5044 = vsel %vm5026, %v5017, %v5035
    %v5045 = vsel %vm5027, %v5018, %v5036
    %v5046 = vsel %vm5028, %v5019, %v5037
    %v5047 = vsel %vm5029, %v5020, %v5038
    %v5048 = vsel %vm5030, %v5021, %v5039
    %v5049 = vsel %vm5031, %v5022, %v5040
    %v5050 = vsel %vm5032, %v5023, %v5041
    %v5051 = vsel %vm5033, %v5024, %v5042
    %v5052 = vsel %vm5034, %v5025, %v5043
    %v5053 = vrot.slane %v5044, 4
    %v5054 = vadd.f32 %v5044, %v5053
    %v5055 = vrot.slane %v5054, 2
    %v5056 = vadd.f32 %v5054, %v5055
    %v5057 = vrot.slane %v5056, 1
    %v5058 = vadd.f32 %v5056, %v5057
    %v5059 = vrot.slane %v5045, 4
    %v5060 = vadd.f32 %v5045, %v5059
    %v5061 = vrot.slane %v5060, 2
    %v5062 = vadd.f32 %v5060, %v5061
    %v5063 = vrot.slane %v5062, 1
    %v5064 = vadd.f32 %v5062, %v5063
    %v5065 = vrot.slane %v5046, 4
    %v5066 = vadd.f32 %v5046, %v5065
    %v5067 = vrot.slane %v5066, 2
    %v5068 = vadd.f32 %v5066, %v5067
    %v5069 = vrot.slane %v5068, 1
    %v5070 = vadd.f32 %v5068, %v5069
    %v5071 = vrot.slane %v5047, 4
    %v5072 = vadd.f32 %v5047, %v5071
    %v5073 = vrot.slane %v5072, 2
    %v5074 = vadd.f32 %v5072, %v5073
    %v5075 = vrot.slane %v5074, 1
    %v5076 = vadd.f32 %v5074, %v5075
    %v5077 = vrot.slane %v5048, 4
    %v5078 = vadd.f32 %v5048, %v5077
    %v5079 = vrot.slane %v5078, 2
    %v5080 = vadd.f32 %v5078, %v5079
    %v5081 = vrot.slane %v5080, 1
    %v5082 = vadd.f32 %v5080, %v5081
    %v5083 = vrot.slane %v5049, 4
    %v5084 = vadd.f32 %v5049, %v5083
    %v5085 = vrot.slane %v5084, 2
    %v5086 = vadd.f32 %v5084, %v5085
    %v5087 = vrot.slane %v5086, 1
    %v5088 = vadd.f32 %v5086, %v5087
    %v5089 = vrot.slane %v5050, 4
    %v5090 = vadd.f32 %v5050, %v5089
    %v5091 = vrot.slane %v5090, 2
    %v5092 = vadd.f32 %v5090, %v5091
    %v5093 = vrot.slane %v5092, 1
    %v5094 = vadd.f32 %v5092, %v5093
    %v5095 = vrot.slane %v5051, 4
    %v5096 = vadd.f32 %v5051, %v5095
    %v5097 = vrot.slane %v5096, 2
    %v5098 = vadd.f32 %v5096, %v5097
    %v5099 = vrot.slane %v5098, 1
    %v5100 = vadd.f32 %v5098, %v5099
    %v5101 = vsel %vm1271, %v5052, 0.0
    %v5102 = vrot.slane %v5101, 4
    %v5103 = vadd.f32 %v5101, %v5102
    %v5104 = vrot.slane %v5103, 2
    %v5105 = vadd.f32 %v5103, %v5104
    %v5106 = vrot.slane %v5105, 1
    %v5107 = vadd.f32 %v5105, %v5106
    %v5108 = vmul.f32 %v5058, %v1899
    %v5109 = vmul.f32 %v5064, %v1899
    %v5110 = vmul.f32 %v5070, %v1899
    %v5111 = vmul.f32 %v5076, %v1899
    %v5112 = vmul.f32 %v5082, %v1899
    %v5113 = vmul.f32 %v5088, %v1899
    %v5114 = vmul.f32 %v5094, %v1899
    %v5115 = vmul.f32 %v5100, %v1899
    %v5116 = vmul.f32 %v5107, %v1899
    %v5117 = vsub.f32 %v5044, %v5108
    %v5118 = vsub.f32 %v5045, %v5109
    %v5119 = vsub.f32 %v5046, %v5110
    %v5120 = vsub.f32 %v5047, %v5111
    %v5121 = vsub.f32 %v5048, %v5112
    %v5122 = vsub.f32 %v5049, %v5113
    %v5123 = vsub.f32 %v5050, %v5114
    %v5124 = vsub.f32 %v5051, %v5115
    %v5125 = vsub.f32 %v5052, %v5116
    %v5126 = vmul.f32 %v5117, %v5117
    %v5127 = vmul.f32 %v5118, %v5118
    %v5128 = vmul.f32 %v5119, %v5119
    %v5129 = vmul.f32 %v5120, %v5120
    %v5130 = vmul.f32 %v5121, %v5121
    %v5131 = vmul.f32 %v5122, %v5122
    %v5132 = vmul.f32 %v5123, %v5123
    %v5133 = vmul.f32 %v5124, %v5124
    %v5134 = vmul.f32 %v5125, %v5125
    %v5135 = vrot.slane %v5126, 4
    %v5136 = vadd.f32 %v5126, %v5135
    %v5137 = vrot.slane %v5136, 2
    %v5138 = vadd.f32 %v5136, %v5137
    %v5139 = vrot.slane %v5138, 1
    %v5140 = vadd.f32 %v5138, %v5139
    %v5141 = vrot.slane %v5127, 4
    %v5142 = vadd.f32 %v5127, %v5141
    %v5143 = vrot.slane %v5142, 2
    %v5144 = vadd.f32 %v5142, %v5143
    %v5145 = vrot.slane %v5144, 1
    %v5146 = vadd.f32 %v5144, %v5145
    %v5147 = vrot.slane %v5128, 4
    %v5148 = vadd.f32 %v5128, %v5147
    %v5149 = vrot.slane %v5148, 2
    %v5150 = vadd.f32 %v5148, %v5149
    %v5151 = vrot.slane %v5150, 1
    %v5152 = vadd.f32 %v5150, %v5151
    %v5153 = vrot.slane %v5129, 4
    %v5154 = vadd.f32 %v5129, %v5153
    %v5155 = vrot.slane %v5154, 2
    %v5156 = vadd.f32 %v5154, %v5155
    %v5157 = vrot.slane %v5156, 1
    %v5158 = vadd.f32 %v5156, %v5157
    %v5159 = vrot.slane %v5130, 4
    %v5160 = vadd.f32 %v5130, %v5159
    %v5161 = vrot.slane %v5160, 2
    %v5162 = vadd.f32 %v5160, %v5161
    %v5163 = vrot.slane %v5162, 1
    %v5164 = vadd.f32 %v5162, %v5163
    %v5165 = vrot.slane %v5131, 4
    %v5166 = vadd.f32 %v5131, %v5165
    %v5167 = vrot.slane %v5166, 2
    %v5168 = vadd.f32 %v5166, %v5167
    %v5169 = vrot.slane %v5168, 1
    %v5170 = vadd.f32 %v5168, %v5169
    %v5171 = vrot.slane %v5132, 4
    %v5172 = vadd.f32 %v5132, %v5171
    %v5173 = vrot.slane %v5172, 2
    %v5174 = vadd.f32 %v5172, %v5173
    %v5175 = vrot.slane %v5174, 1
    %v5176 = vadd.f32 %v5174, %v5175
    %v5177 = vrot.slane %v5133, 4
    %v5178 = vadd.f32 %v5133, %v5177
    %v5179 = vrot.slane %v5178, 2
    %v5180 = vadd.f32 %v5178, %v5179
    %v5181 = vrot.slane %v5180, 1
    %v5182 = vadd.f32 %v5180, %v5181
    %v5183 = vsel %vm1271, %v5134, 0.0
    %v5184 = vrot.slane %v5183, 4
    %v5185 = vadd.f32 %v5183, %v5184
    %v5186 = vrot.slane %v5185, 2
    %v5187 = vadd.f32 %v5185, %v5186
    %v5188 = vrot.slane %v5187, 1
    %v5189 = vadd.f32 %v5187, %v5188
    %v5190 = vmul.f32 %v5140, %v1899
    %v5191 = vmul.f32 %v5146, %v1899
    %v5192 = vmul.f32 %v5152, %v1899
    %v5193 = vmul.f32 %v5158, %v1899
    %v5194 = vmul.f32 %v5164, %v1899
    %v5195 = vmul.f32 %v5170, %v1899
    %v5196 = vmul.f32 %v5176, %v1899
    %v5197 = vmul.f32 %v5182, %v1899
    %v5198 = vmul.f32 %v5189, %v1899
    %v5199 = vadd.f32 %v5190, 1e-05
    %v5200 = vadd.f32 %v5191, 1e-05
    %v5201 = vadd.f32 %v5192, 1e-05
    %v5202 = vadd.f32 %v5193, 1e-05
    %v5203 = vadd.f32 %v5194, 1e-05
    %v5204 = vadd.f32 %v5195, 1e-05
    %v5205 = vadd.f32 %v5196, 1e-05
    %v5206 = vadd.f32 %v5197, 1e-05
    %v5207 = vadd.f32 %v5198, 1e-05
    %v5208 = vrsqrt.pop %v5199
    %v5209 = vrsqrt.pop %v5200
    %v5210 = vrsqrt.pop %v5201
    %v5211 = vrsqrt.pop %v5202
    %v5212 = vrsqrt.pop %v5203
    %v5213 = vrsqrt.pop %v5204
    %v5214 = vrsqrt.pop %v5205
    %v5215 = vrsqrt.pop %v5206
    %v5216 = vrsqrt.pop %v5207
    %v5217 = vmul.f32 %v5117, %v5208
    %v5218 = vmul.f32 %v5118, %v5209
    %v5219 = vmul.f32 %v5119, %v5210
    %v5220 = vmul.f32 %v5120, %v5211
    %v5221 = vmul.f32 %v5121, %v5212
    %v5222 = vmul.f32 %v5122, %v5213
    %v5223 = vmul.f32 %v5123, %v5214
    %v5224 = vmul.f32 %v5124, %v5215
    %v5225 = vmul.f32 %v5125, %v5216
    %v5228 = vlaneseq
    %v5229 = vshrl.u32 %v5228, 7
    %v5230 = vsub.s32 0, %v5229
    %v5231 = vrot.slane %v873, %v5230
    %v5232 = vlaneseq
    %v5233 = vshrl.u32 %v5232, 7
    %v5234 = vsub.s32 1, %v5233
    %v5235 = vrot.slane %v873, %v5234
    %v5236 = vlaneseq
    %v5237 = vshrl.u32 %v5236, 7
    %v5238 = vsub.s32 2, %v5237
    %v5239 = vrot.slane %v873, %v5238
    %v5240 = vlaneseq
    %v5241 = vshrl.u32 %v5240, 7
    %v5242 = vsub.s32 3, %v5241
    %v5243 = vrot.slane %v873, %v5242
    %v5244 = vlaneseq
    %v5245 = vshrl.u32 %v5244, 7
    %v5246 = vsub.s32 4, %v5245
    %v5247 = vrot.slane %v873, %v5246
    %v5248 = vlaneseq
    %v5249 = vshrl.u32 %v5248, 7
    %v5250 = vsub.s32 5, %v5249
    %v5251 = vrot.slane %v873, %v5250
    %v5252 = vlaneseq
    %v5253 = vshrl.u32 %v5252, 7
    %v5254 = vsub.s32 6, %v5253
    %v5255 = vrot.slane %v873, %v5254
    %v5256 = vlaneseq
    %v5257 = vshrl.u32 %v5256, 7
    %v5258 = vsub.s32 7, %v5257
    %v5259 = vrot.slane %v873, %v5258
    %v5260 = vlaneseq
    %v5261 = vshrl.u32 %v5260, 7
    %v5262 = vsub.s32 0, %v5261
    %v5263 = vrot.slane %v874, %v5262
    %v5273 = vmul.f32 %v5217, %v5231
    %v5274 = vmul.f32 %v5218, %v5235
    %v5275 = vmul.f32 %v5219, %v5239
    %v5276 = vmul.f32 %v5220, %v5243
    %v5277 = vmul.f32 %v5221, %v5247
    %v5278 = vmul.f32 %v5222, %v5251
    %v5279 = vmul.f32 %v5223, %v5255
    %v5280 = vmul.f32 %v5224, %v5259
    %v5281 = vmul.f32 %v5225, %v5263
    %v5284 = vlaneseq
    %v5285 = vshrl.u32 %v5284, 7
    %v5286 = vsub.s32 0, %v5285
    %v5287 = vrot.slane %v875, %v5286
    %v5288 = vlaneseq
    %v5289 = vshrl.u32 %v5288, 7
    %v5290 = vsub.s32 1, %v5289
    %v5291 = vrot.slane %v875, %v5290
    %v5292 = vlaneseq
    %v5293 = vshrl.u32 %v5292, 7
    %v5294 = vsub.s32 2, %v5293
    %v5295 = vrot.slane %v875, %v5294
    %v5296 = vlaneseq
    %v5297 = vshrl.u32 %v5296, 7
    %v5298 = vsub.s32 3, %v5297
    %v5299 = vrot.slane %v875, %v5298
    %v5300 = vlaneseq
    %v5301 = vshrl.u32 %v5300, 7
    %v5302 = vsub.s32 4, %v5301
    %v5303 = vrot.slane %v875, %v5302
    %v5304 = vlaneseq
    %v5305 = vshrl.u32 %v5304, 7
    %v5306 = vsub.s32 5, %v5305
    %v5307 = vrot.slane %v875, %v5306
    %v5308 = vlaneseq
    %v5309 = vshrl.u32 %v5308, 7
    %v5310 = vsub.s32 6, %v5309
    %v5311 = vrot.slane %v875, %v5310
    %v5312 = vlaneseq
    %v5313 = vshrl.u32 %v5312, 7
    %v5314 = vsub.s32 7, %v5313
    %v5315 = vrot.slane %v875, %v5314
    %v5316 = vlaneseq
    %v5317 = vshrl.u32 %v5316, 7
    %v5318 = vsub.s32 0, %v5317
    %v5319 = vrot.slane %v876, %v5318
    %v5329 = vadd.f32 %v5273, %v5287
    %v5330 = vadd.f32 %v5274, %v5291
    %v5331 = vadd.f32 %v5275, %v5295
    %v5332 = vadd.f32 %v5276, %v5299
    %v5333 = vadd.f32 %v5277, %v5303
    %v5334 = vadd.f32 %v5278, %v5307
    %v5335 = vadd.f32 %v5279, %v5311
    %v5336 = vadd.f32 %v5280, %v5315
    %v5337 = vadd.f32 %v5281, %v5319
    %v5338 = vpack.c.bf16 %v5329, %v5329
    %v5339 = vpack.c.bf16 %v5330, %v5330
    %v5340 = vpack.c.bf16 %v5331, %v5331
    %v5341 = vpack.c.bf16 %v5332, %v5332
    %v5342 = vpack.c.bf16 %v5333, %v5333
    %v5343 = vpack.c.bf16 %v5334, %v5334
    %v5344 = vpack.c.bf16 %v5335, %v5335
    %v5345 = vpack.c.bf16 %v5336, %v5336
    %v5346 = vpack.c.bf16 %v5337, %v5337
    %v5348 = vlaneseq
    %v5349 = vshrl.u32 %v5348, 7
    %v5350 = vsub.s32 0, %v5349
    %v5351 = vrot.slane %v1135, %v5350
    %v5352 = vlaneseq
    %v5353 = vshrl.u32 %v5352, 7
    %v5354 = vsub.s32 1, %v5353
    %v5355 = vrot.slane %v1135, %v5354
    %v5356 = vlaneseq
    %v5357 = vshrl.u32 %v5356, 7
    %v5358 = vsub.s32 2, %v5357
    %v5359 = vrot.slane %v1135, %v5358
    %v5360 = vlaneseq
    %v5361 = vshrl.u32 %v5360, 7
    %v5362 = vsub.s32 3, %v5361
    %v5363 = vrot.slane %v1135, %v5362
    %v5626 = vunpack.c.l.b16 %v877
    %v5627 = vunpack.c.h.b16 %v877
    %v5628 = vunpack.c.l.b16 %v878
    %v5629 = vunpack.c.h.b16 %v878
    %v5630 = vunpack.c.l.b16 %v879
    %v5631 = vunpack.c.h.b16 %v879
    %v5632 = vunpack.c.l.b16 %v880
    %v5633 = vunpack.c.h.b16 %v880
    %v5634 = vunpack.c.l.b16 %v881
    %v5635 = vunpack.c.h.b16 %v881
    %v5636 = vunpack.c.l.b16 %v882
    %v5637 = vunpack.c.h.b16 %v882
    %v5638 = vunpack.c.l.b16 %v883
    %v5639 = vunpack.c.h.b16 %v883
    %v5640 = vunpack.c.l.b16 %v884
    %v5641 = vunpack.c.h.b16 %v884
    %v5642 = vunpack.c.l.b16 %v885
    %v5643 = vunpack.c.h.b16 %v885
    %v5644 = vunpack.c.l.b16 %v886
    %v5645 = vunpack.c.h.b16 %v886
    %v5646 = vunpack.c.l.b16 %v887
    %v5647 = vunpack.c.h.b16 %v887
    %v5648 = vunpack.c.l.b16 %v888
    %v5649 = vunpack.c.h.b16 %v888
    %v5650 = vunpack.c.l.b16 %v889
    %v5651 = vunpack.c.h.b16 %v889
    %v5652 = vunpack.c.l.b16 %v890
    %v5653 = vunpack.c.h.b16 %v890
    %v5654 = vunpack.c.l.b16 %v891
    %v5655 = vunpack.c.h.b16 %v891
    %v5656 = vunpack.c.l.b16 %v892
    %v5657 = vunpack.c.h.b16 %v892
    %v5658 = vunpack.c.l.b16 %v893
    %v5659 = vunpack.c.h.b16 %v893
    %v5660 = vunpack.c.l.b16 %v894
    %v5661 = vunpack.c.h.b16 %v894
    %v5662 = vunpack.c.l.b16 %v895
    %v5663 = vunpack.c.h.b16 %v895
    %v5664 = vunpack.c.l.b16 %v896
    %v5665 = vunpack.c.h.b16 %v896
    %v5666 = vunpack.c.l.b16 %v897
    %v5667 = vunpack.c.h.b16 %v897
    %v5668 = vunpack.c.l.b16 %v898
    %v5669 = vunpack.c.h.b16 %v898
    %v5670 = vunpack.c.l.b16 %v899
    %v5671 = vunpack.c.h.b16 %v899
    %v5672 = vunpack.c.l.b16 %v900
    %v5673 = vunpack.c.h.b16 %v900
    %v5674 = vunpack.c.l.b16 %v901
    %v5675 = vunpack.c.h.b16 %v901
    %v5676 = vunpack.c.l.b16 %v902
    %v5677 = vunpack.c.h.b16 %v902
    %v5678 = vunpack.c.l.b16 %v903
    %v5679 = vunpack.c.h.b16 %v903
    %v5680 = vunpack.c.l.b16 %v904
    %v5681 = vunpack.c.h.b16 %v904
    %v5682 = vunpack.c.l.b16 %v905
    %v5683 = vunpack.c.h.b16 %v905
    %v5684 = vunpack.c.l.b16 %v906
    %v5685 = vunpack.c.h.b16 %v906
    %v5686 = vunpack.c.l.b16 %v907
    %v5687 = vunpack.c.h.b16 %v907
    %v5688 = vunpack.c.l.b16 %v908
    %v5689 = vunpack.c.h.b16 %v908
    %v5690 = vunpack.c.l.b16 %v909
    %v5691 = vunpack.c.h.b16 %v909
    %v5692 = vunpack.c.l.b16 %v910
    %v5693 = vunpack.c.h.b16 %v910
    %v5694 = vunpack.c.l.b16 %v911
    %v5695 = vunpack.c.h.b16 %v911
    %v5696 = vunpack.c.l.b16 %v912
    %v5697 = vunpack.c.h.b16 %v912
    %v5698 = vunpack.c.l.b16 %v913
    %v5699 = vunpack.c.h.b16 %v913
    %v5700 = vunpack.c.l.b16 %v914
    %v5701 = vunpack.c.h.b16 %v914
    %v5702 = vunpack.c.l.b16 %v915
    %v5703 = vunpack.c.h.b16 %v915
    %v5704 = vunpack.c.l.b16 %v916
    %v5705 = vunpack.c.h.b16 %v916
    %v5706 = vunpack.c.l.b16 %v917
    %v5707 = vunpack.c.h.b16 %v917
    %v5708 = vunpack.c.l.b16 %v918
    %v5709 = vunpack.c.h.b16 %v918
    %v5710 = vunpack.c.l.b16 %v919
    %v5711 = vunpack.c.h.b16 %v919
    %v5712 = vunpack.c.l.b16 %v920
    %v5713 = vunpack.c.h.b16 %v920
    %v5714 = vunpack.c.l.b16 %v921
    %v5715 = vunpack.c.h.b16 %v921
    %v5716 = vunpack.c.l.b16 %v922
    %v5717 = vunpack.c.h.b16 %v922
    %v5718 = vunpack.c.l.b16 %v923
    %v5719 = vunpack.c.h.b16 %v923
    %v5720 = vunpack.c.l.b16 %v924
    %v5721 = vunpack.c.h.b16 %v924
    %v5722 = vunpack.c.l.b16 %v925
    %v5723 = vunpack.c.h.b16 %v925
    %v5724 = vunpack.c.l.b16 %v926
    %v5725 = vunpack.c.h.b16 %v926
    %v5726 = vunpack.c.l.b16 %v927
    %v5727 = vunpack.c.h.b16 %v927
    %v5728 = vunpack.c.l.b16 %v928
    %v5729 = vunpack.c.h.b16 %v928
    %v5730 = vunpack.c.l.b16 %v929
    %v5731 = vunpack.c.h.b16 %v929
    %v5732 = vunpack.c.l.b16 %v930
    %v5733 = vunpack.c.h.b16 %v930
    %v5734 = vunpack.c.l.b16 %v931
    %v5735 = vunpack.c.h.b16 %v931
    %v5736 = vunpack.c.l.b16 %v932
    %v5737 = vunpack.c.h.b16 %v932
    %v5738 = vunpack.c.l.b16 %v933
    %v5739 = vunpack.c.h.b16 %v933
    %v5740 = vunpack.c.l.b16 %v934
    %v5741 = vunpack.c.h.b16 %v934
    %v5742 = vunpack.c.l.b16 %v935
    %v5743 = vunpack.c.h.b16 %v935
    %v5744 = vunpack.c.l.b16 %v936
    %v5745 = vunpack.c.h.b16 %v936
    %v5746 = vunpack.c.l.b16 %v937
    %v5747 = vunpack.c.h.b16 %v937
    %v5748 = vunpack.c.l.b16 %v938
    %v5749 = vunpack.c.h.b16 %v938
    %v5750 = vunpack.c.l.b16 %v939
    %v5751 = vunpack.c.h.b16 %v939
    %v5752 = vunpack.c.l.b16 %v940
    %v5753 = vunpack.c.h.b16 %v940
    %v5754 = vunpack.c.l.b16 %v941
    %v5755 = vunpack.c.h.b16 %v941
    %v5756 = vunpack.c.l.b16 %v942
    %v5757 = vunpack.c.h.b16 %v942
    %v5758 = vunpack.c.l.b16 %v943
    %v5759 = vunpack.c.h.b16 %v943
    %v5760 = vunpack.c.l.b16 %v944
    %v5761 = vunpack.c.h.b16 %v944
    %v5762 = vunpack.c.l.b16 %v945
    %v5763 = vunpack.c.h.b16 %v945
    %v5764 = vunpack.c.l.b16 %v946
    %v5765 = vunpack.c.h.b16 %v946
    %v5766 = vunpack.c.l.b16 %v947
    %v5767 = vunpack.c.h.b16 %v947
    %v5768 = vunpack.c.l.b16 %v948
    %v5769 = vunpack.c.h.b16 %v948
    %v5770 = vunpack.c.l.b16 %v949
    %v5771 = vunpack.c.h.b16 %v949
    %v5772 = vunpack.c.l.b16 %v950
    %v5773 = vunpack.c.h.b16 %v950
    %v5774 = vunpack.c.l.b16 %v951
    %v5775 = vunpack.c.h.b16 %v951
    %v5776 = vunpack.c.l.b16 %v952
    %v5777 = vunpack.c.h.b16 %v952
    %v5778 = vunpack.c.l.b16 %v953
    %v5779 = vunpack.c.h.b16 %v953
    %v5780 = vunpack.c.l.b16 %v954
    %v5781 = vunpack.c.h.b16 %v954
    %v5782 = vunpack.c.l.b16 %v955
    %v5783 = vunpack.c.h.b16 %v955
    %v5784 = vunpack.c.l.b16 %v956
    %v5785 = vunpack.c.h.b16 %v956
    %v5786 = vunpack.c.l.b16 %v957
    %v5787 = vunpack.c.h.b16 %v957
    %v5788 = vunpack.c.l.b16 %v958
    %v5789 = vunpack.c.h.b16 %v958
    %v5790 = vunpack.c.l.b16 %v959
    %v5791 = vunpack.c.h.b16 %v959
    %v5792 = vunpack.c.l.b16 %v960
    %v5793 = vunpack.c.h.b16 %v960
    %v5794 = vunpack.c.l.b16 %v961
    %v5795 = vunpack.c.h.b16 %v961
    %v5796 = vunpack.c.l.b16 %v962
    %v5797 = vunpack.c.h.b16 %v962
    %v5798 = vunpack.c.l.b16 %v963
    %v5799 = vunpack.c.h.b16 %v963
    %v5800 = vunpack.c.l.b16 %v964
    %v5801 = vunpack.c.h.b16 %v964
    %v5802 = vunpack.c.l.b16 %v965
    %v5803 = vunpack.c.h.b16 %v965
    %v5804 = vunpack.c.l.b16 %v966
    %v5805 = vunpack.c.h.b16 %v966
    %v5806 = vunpack.c.l.b16 %v967
    %v5807 = vunpack.c.h.b16 %v967
    %v5808 = vunpack.c.l.b16 %v968
    %v5809 = vunpack.c.h.b16 %v968
    %v5810 = vunpack.c.l.b16 %v969
    %v5811 = vunpack.c.h.b16 %v969
    %v5812 = vunpack.c.l.b16 %v970
    %v5813 = vunpack.c.h.b16 %v970
    %v5814 = vunpack.c.l.b16 %v971
    %v5815 = vunpack.c.h.b16 %v971
    %v5816 = vunpack.c.l.b16 %v972
    %v5817 = vunpack.c.h.b16 %v972
    %v5818 = vunpack.c.l.b16 %v973
    %v5819 = vunpack.c.h.b16 %v973
    %v5820 = vunpack.c.l.b16 %v974
    %v5821 = vunpack.c.h.b16 %v974
    %v5822 = vunpack.c.l.b16 %v975
    %v5823 = vunpack.c.h.b16 %v975
    %v5824 = vunpack.c.l.b16 %v976
    %v5825 = vunpack.c.h.b16 %v976
    %v5826 = vunpack.c.l.b16 %v977
    %v5827 = vunpack.c.h.b16 %v977
    %v5828 = vunpack.c.l.b16 %v978
    %v5829 = vunpack.c.h.b16 %v978
    %v5830 = vunpack.c.l.b16 %v979
    %v5831 = vunpack.c.h.b16 %v979
    %v5832 = vunpack.c.l.b16 %v980
    %v5833 = vunpack.c.h.b16 %v980
    %v5834 = vunpack.c.l.b16 %v981
    %v5835 = vunpack.c.h.b16 %v981
    %v5836 = vunpack.c.l.b16 %v982
    %v5837 = vunpack.c.h.b16 %v982
    %v5838 = vunpack.c.l.b16 %v983
    %v5839 = vunpack.c.h.b16 %v983
    %v5840 = vunpack.c.l.b16 %v984
    %v5841 = vunpack.c.h.b16 %v984
    %v5842 = vunpack.c.l.b16 %v985
    %v5843 = vunpack.c.h.b16 %v985
    %v5844 = vunpack.c.l.b16 %v986
    %v5845 = vunpack.c.h.b16 %v986
    %v5846 = vunpack.c.l.b16 %v987
    %v5847 = vunpack.c.h.b16 %v987
    %v5848 = vunpack.c.l.b16 %v988
    %v5849 = vunpack.c.h.b16 %v988
    %v5850 = vunpack.c.l.b16 %v989
    %v5851 = vunpack.c.h.b16 %v989
    %v5852 = vunpack.c.l.b16 %v990
    %v5853 = vunpack.c.h.b16 %v990
    %v5854 = vunpack.c.l.b16 %v991
    %v5855 = vunpack.c.h.b16 %v991
    %v5856 = vunpack.c.l.b16 %v992
    %v5857 = vunpack.c.h.b16 %v992
    %v5858 = vunpack.c.l.b16 %v993
    %v5859 = vunpack.c.h.b16 %v993
    %v5860 = vunpack.c.l.b16 %v994
    %v5861 = vunpack.c.h.b16 %v994
    %v5862 = vunpack.c.l.b16 %v995
    %v5863 = vunpack.c.h.b16 %v995
    %v5864 = vunpack.c.l.b16 %v996
    %v5865 = vunpack.c.h.b16 %v996
    %v5866 = vunpack.c.l.b16 %v997
    %v5867 = vunpack.c.h.b16 %v997
    %v5868 = vunpack.c.l.b16 %v998
    %v5869 = vunpack.c.h.b16 %v998
    %v5870 = vunpack.c.l.b16 %v999
    %v5871 = vunpack.c.h.b16 %v999
    %v5872 = vunpack.c.l.b16 %v1000
    %v5873 = vunpack.c.h.b16 %v1000
    %v5874 = vunpack.c.l.b16 %v1001
    %v5875 = vunpack.c.h.b16 %v1001
    %v5876 = vunpack.c.l.b16 %v1002
    %v5877 = vunpack.c.h.b16 %v1002
    %v5878 = vunpack.c.l.b16 %v1003
    %v5879 = vunpack.c.h.b16 %v1003
    %v5880 = vunpack.c.l.b16 %v1004
    %v5881 = vunpack.c.h.b16 %v1004
    %v5882 = vunpack.c.l.b16 %v1005
    %v5883 = vunpack.c.h.b16 %v1005
    %v5884 = vunpack.c.l.b16 %v1006
    %v5885 = vunpack.c.h.b16 %v1006
    %v5886 = vunpack.c.l.b16 %v1007
    %v5887 = vunpack.c.h.b16 %v1007
    %v5888 = vunpack.c.l.b16 %v1008
    %v5889 = vunpack.c.h.b16 %v1008
    %v5890 = vunpack.c.l.b16 %v1009
    %v5891 = vunpack.c.h.b16 %v1009
    %v5892 = vunpack.c.l.b16 %v1010
    %v5893 = vunpack.c.h.b16 %v1010
    %v5894 = vunpack.c.l.b16 %v1011
    %v5895 = vunpack.c.h.b16 %v1011
    %v5896 = vunpack.c.l.b16 %v1012
    %v5897 = vunpack.c.h.b16 %v1012
    %v5898 = vunpack.c.l.b16 %v1013
    %v5899 = vunpack.c.h.b16 %v1013
    %v5900 = vunpack.c.l.b16 %v1014
    %v5901 = vunpack.c.h.b16 %v1014
    %v5902 = vunpack.c.l.b16 %v1015
    %v5903 = vunpack.c.h.b16 %v1015
    %v5904 = vunpack.c.l.b16 %v1016
    %v5905 = vunpack.c.h.b16 %v1016
    %v5906 = vunpack.c.l.b16 %v1017
    %v5907 = vunpack.c.h.b16 %v1017
    %v5908 = vunpack.c.l.b16 %v1018
    %v5909 = vunpack.c.h.b16 %v1018
    %v5910 = vunpack.c.l.b16 %v1019
    %v5911 = vunpack.c.h.b16 %v1019
    %v5912 = vunpack.c.l.b16 %v1020
    %v5913 = vunpack.c.h.b16 %v1020
    %v5914 = vunpack.c.l.b16 %v1021
    %v5915 = vunpack.c.h.b16 %v1021
    %v5916 = vunpack.c.l.b16 %v1022
    %v5917 = vunpack.c.h.b16 %v1022
    %v5918 = vunpack.c.l.b16 %v1023
    %v5919 = vunpack.c.h.b16 %v1023
    %v5920 = vunpack.c.l.b16 %v1024
    %v5921 = vunpack.c.h.b16 %v1024
    %v5922 = vunpack.c.l.b16 %v1025
    %v5923 = vunpack.c.h.b16 %v1025
    %v5924 = vunpack.c.l.b16 %v1026
    %v5925 = vunpack.c.h.b16 %v1026
    %v5926 = vunpack.c.l.b16 %v1027
    %v5927 = vunpack.c.h.b16 %v1027
    %v5928 = vunpack.c.l.b16 %v1028
    %v5929 = vunpack.c.h.b16 %v1028
    %v5930 = vunpack.c.l.b16 %v1029
    %v5931 = vunpack.c.h.b16 %v1029
    %v5932 = vunpack.c.l.b16 %v1030
    %v5933 = vunpack.c.h.b16 %v1030
    %v5934 = vunpack.c.l.b16 %v1031
    %v5935 = vunpack.c.h.b16 %v1031
    %v5936 = vunpack.c.l.b16 %v1032
    %v5937 = vunpack.c.h.b16 %v1032
    %v5938 = vunpack.c.l.b16 %v1033
    %v5939 = vunpack.c.h.b16 %v1033
    %v5940 = vunpack.c.l.b16 %v1034
    %v5941 = vunpack.c.h.b16 %v1034
    %v5942 = vunpack.c.l.b16 %v1035
    %v5943 = vunpack.c.h.b16 %v1035
    %v5944 = vunpack.c.l.b16 %v1036
    %v5945 = vunpack.c.h.b16 %v1036
    %v5946 = vunpack.c.l.b16 %v1037
    %v5947 = vunpack.c.h.b16 %v1037
    %v5948 = vunpack.c.l.b16 %v1038
    %v5949 = vunpack.c.h.b16 %v1038
    %v5950 = vunpack.c.l.b16 %v1039
    %v5951 = vunpack.c.h.b16 %v1039
    %v5952 = vunpack.c.l.b16 %v1040
    %v5953 = vunpack.c.h.b16 %v1040
    %v5954 = vunpack.c.l.b16 %v1041
    %v5955 = vunpack.c.h.b16 %v1041
    %v5956 = vunpack.c.l.b16 %v1042
    %v5957 = vunpack.c.h.b16 %v1042
    %v5958 = vunpack.c.l.b16 %v1043
    %v5959 = vunpack.c.h.b16 %v1043
    %v5960 = vunpack.c.l.b16 %v1044
    %v5961 = vunpack.c.h.b16 %v1044
    %v5962 = vunpack.c.l.b16 %v1045
    %v5963 = vunpack.c.h.b16 %v1045
    %v5964 = vunpack.c.l.b16 %v1046
    %v5965 = vunpack.c.h.b16 %v1046
    %v5966 = vunpack.c.l.b16 %v1047
    %v5967 = vunpack.c.h.b16 %v1047
    %v5968 = vunpack.c.l.b16 %v1048
    %v5969 = vunpack.c.h.b16 %v1048
    %v5970 = vunpack.c.l.b16 %v1049
    %v5971 = vunpack.c.h.b16 %v1049
    %v5972 = vunpack.c.l.b16 %v1050
    %v5973 = vunpack.c.h.b16 %v1050
    %v5974 = vunpack.c.l.b16 %v1051
    %v5975 = vunpack.c.h.b16 %v1051
    %v5976 = vunpack.c.l.b16 %v1052
    %v5977 = vunpack.c.h.b16 %v1052
    %v5978 = vunpack.c.l.b16 %v1053
    %v5979 = vunpack.c.h.b16 %v1053
    %v5980 = vunpack.c.l.b16 %v1054
    %v5981 = vunpack.c.h.b16 %v1054
    %v5982 = vunpack.c.l.b16 %v1055
    %v5983 = vunpack.c.h.b16 %v1055
    %v5984 = vunpack.c.l.b16 %v1056
    %v5985 = vunpack.c.h.b16 %v1056
    %v5986 = vunpack.c.l.b16 %v1057
    %v5987 = vunpack.c.h.b16 %v1057
    %v5988 = vunpack.c.l.b16 %v1058
    %v5989 = vunpack.c.h.b16 %v1058
    %v5990 = vunpack.c.l.b16 %v1059
    %v5991 = vunpack.c.h.b16 %v1059
    %v5992 = vunpack.c.l.b16 %v1060
    %v5993 = vunpack.c.h.b16 %v1060
    %v5994 = vunpack.c.l.b16 %v1061
    %v5995 = vunpack.c.h.b16 %v1061
    %v5996 = vunpack.c.l.b16 %v1062
    %v5997 = vunpack.c.h.b16 %v1062
    %v5998 = vunpack.c.l.b16 %v1063
    %v5999 = vunpack.c.h.b16 %v1063
    %v6000 = vunpack.c.l.b16 %v1064
    %v6001 = vunpack.c.h.b16 %v1064
    %v6002 = vunpack.c.l.b16 %v1065
    %v6003 = vunpack.c.h.b16 %v1065
    %v6004 = vunpack.c.l.b16 %v1066
    %v6005 = vunpack.c.h.b16 %v1066
    %v6006 = vunpack.c.l.b16 %v1067
    %v6007 = vunpack.c.h.b16 %v1067
    %v6008 = vunpack.c.l.b16 %v1068
    %v6009 = vunpack.c.h.b16 %v1068
    %v6010 = vunpack.c.l.b16 %v1069
    %v6011 = vunpack.c.h.b16 %v1069
    %v6012 = vunpack.c.l.b16 %v1070
    %v6013 = vunpack.c.h.b16 %v1070
    %v6014 = vunpack.c.l.b16 %v1071
    %v6015 = vunpack.c.h.b16 %v1071
    %v6016 = vunpack.c.l.b16 %v1072
    %v6017 = vunpack.c.h.b16 %v1072
    %v6018 = vunpack.c.l.b16 %v1073
    %v6019 = vunpack.c.h.b16 %v1073
    %v6020 = vunpack.c.l.b16 %v1074
    %v6021 = vunpack.c.h.b16 %v1074
    %v6022 = vunpack.c.l.b16 %v1075
    %v6023 = vunpack.c.h.b16 %v1075
    %v6024 = vunpack.c.l.b16 %v1076
    %v6025 = vunpack.c.h.b16 %v1076
    %v6026 = vunpack.c.l.b16 %v1077
    %v6027 = vunpack.c.h.b16 %v1077
    %v6028 = vunpack.c.l.b16 %v1078
    %v6029 = vunpack.c.h.b16 %v1078
    %v6030 = vunpack.c.l.b16 %v1079
    %v6031 = vunpack.c.h.b16 %v1079
    %v6032 = vunpack.c.l.b16 %v1080
    %v6033 = vunpack.c.h.b16 %v1080
    %v6034 = vunpack.c.l.b16 %v1081
    %v6035 = vunpack.c.h.b16 %v1081
    %v6036 = vunpack.c.l.b16 %v1082
    %v6037 = vunpack.c.h.b16 %v1082
    %v6038 = vunpack.c.l.b16 %v1083
    %v6039 = vunpack.c.h.b16 %v1083
    %v6040 = vunpack.c.l.b16 %v1084
    %v6041 = vunpack.c.h.b16 %v1084
    %v6042 = vunpack.c.l.b16 %v1085
    %v6043 = vunpack.c.h.b16 %v1085
    %v6044 = vunpack.c.l.b16 %v1086
    %v6045 = vunpack.c.h.b16 %v1086
    %v6046 = vunpack.c.l.b16 %v1087
    %v6047 = vunpack.c.h.b16 %v1087
    %v6048 = vunpack.c.l.b16 %v1088
    %v6049 = vunpack.c.h.b16 %v1088
    %v6050 = vunpack.c.l.b16 %v1089
    %v6051 = vunpack.c.h.b16 %v1089
    %v6052 = vunpack.c.l.b16 %v1090
    %v6053 = vunpack.c.h.b16 %v1090
    %v6054 = vunpack.c.l.b16 %v1091
    %v6055 = vunpack.c.h.b16 %v1091
    %v6056 = vunpack.c.l.b16 %v1092
    %v6057 = vunpack.c.h.b16 %v1092
    %v6058 = vunpack.c.l.b16 %v1093
    %v6059 = vunpack.c.h.b16 %v1093
    %v6060 = vunpack.c.l.b16 %v1094
    %v6061 = vunpack.c.h.b16 %v1094
    %v6062 = vunpack.c.l.b16 %v1095
    %v6063 = vunpack.c.h.b16 %v1095
    %v6064 = vunpack.c.l.b16 %v1096
    %v6065 = vunpack.c.h.b16 %v1096
    %v6066 = vunpack.c.l.b16 %v1097
    %v6067 = vunpack.c.h.b16 %v1097
    %v6068 = vunpack.c.l.b16 %v1098
    %v6069 = vunpack.c.h.b16 %v1098
    %v6070 = vunpack.c.l.b16 %v1099
    %v6071 = vunpack.c.h.b16 %v1099
    %v6072 = vunpack.c.l.b16 %v1100
    %v6073 = vunpack.c.h.b16 %v1100
    %v6074 = vunpack.c.l.b16 %v1101
    %v6075 = vunpack.c.h.b16 %v1101
    %v6076 = vunpack.c.l.b16 %v1102
    %v6077 = vunpack.c.h.b16 %v1102
    %v6078 = vunpack.c.l.b16 %v1103
    %v6079 = vunpack.c.h.b16 %v1103
    %v6080 = vunpack.c.l.b16 %v1104
    %v6081 = vunpack.c.h.b16 %v1104
    %v6082 = vunpack.c.l.b16 %v1105
    %v6083 = vunpack.c.h.b16 %v1105
    %v6084 = vunpack.c.l.b16 %v1106
    %v6085 = vunpack.c.h.b16 %v1106
    %v6086 = vunpack.c.l.b16 %v1107
    %v6087 = vunpack.c.h.b16 %v1107
    %v6088 = vunpack.c.l.b16 %v1108
    %v6089 = vunpack.c.h.b16 %v1108
    %v6090 = vunpack.c.l.b16 %v1109
    %v6091 = vunpack.c.h.b16 %v1109
    %v6092 = vunpack.c.l.b16 %v1110
    %v6093 = vunpack.c.h.b16 %v1110
    %v6094 = vunpack.c.l.b16 %v1111
    %v6095 = vunpack.c.h.b16 %v1111
    %v6096 = vunpack.c.l.b16 %v1112
    %v6097 = vunpack.c.h.b16 %v1112
    %v6098 = vunpack.c.l.b16 %v1113
    %v6099 = vunpack.c.h.b16 %v1113
    %v6100 = vunpack.c.l.b16 %v1114
    %v6101 = vunpack.c.h.b16 %v1114
    %v6102 = vunpack.c.l.b16 %v1115
    %v6103 = vunpack.c.h.b16 %v1115
    %v6104 = vunpack.c.l.b16 %v1116
    %v6105 = vunpack.c.h.b16 %v1116
    %v6106 = vunpack.c.l.b16 %v1117
    %v6107 = vunpack.c.h.b16 %v1117
    %v6108 = vunpack.c.l.b16 %v1118
    %v6109 = vunpack.c.h.b16 %v1118
    %v6110 = vunpack.c.l.b16 %v1119
    %v6111 = vunpack.c.h.b16 %v1119
    %v6112 = vunpack.c.l.b16 %v1120
    %v6113 = vunpack.c.h.b16 %v1120
    %v6114 = vunpack.c.l.b16 %v1121
    %v6115 = vunpack.c.h.b16 %v1121
    %v6116 = vunpack.c.l.b16 %v1122
    %v6117 = vunpack.c.h.b16 %v1122
    %v6118 = vunpack.c.l.b16 %v1123
    %v6119 = vunpack.c.h.b16 %v1123
    %v6120 = vunpack.c.l.b16 %v1124
    %v6121 = vunpack.c.h.b16 %v1124
    %v6122 = vunpack.c.l.b16 %v1125
    %v6123 = vunpack.c.h.b16 %v1125
    %v6124 = vunpack.c.l.b16 %v1126
    %v6125 = vunpack.c.h.b16 %v1126
    %v6126 = vunpack.c.l.b16 %v1127
    %v6127 = vunpack.c.h.b16 %v1127
    %v6128 = vunpack.c.l.b16 %v1128
    %v6129 = vunpack.c.h.b16 %v1128
    %v6130 = vunpack.c.l.b16 %v1129
    %v6131 = vunpack.c.h.b16 %v1129
    %v6132 = vunpack.c.l.b16 %v1130
    %v6133 = vunpack.c.h.b16 %v1130
    %v6134 = vunpack.c.l.b16 %v1131
    %v6135 = vunpack.c.h.b16 %v1131
    %v6136 = vunpack.c.l.b16 %v1132
    %v6137 = vunpack.c.h.b16 %v1132
    %v6138 = vunpack.c.l.b16 %v1133
    %v6139 = vunpack.c.h.b16 %v1133
    %v6140 = vunpack.c.l.b16 %v1134
    %v6141 = vunpack.c.h.b16 %v1134
    %v6142 = vpack.c.b16 %v5630, %v5626
    %v6143 = vpack.c.b16 %v5631, %v5627
    %v6144 = vpack.c.b16 %v5632, %v5628
    %v6145 = vpack.c.b16 %v5633, %v5629
    %v6146 = vpack.c.b16 %v5638, %v5634
    %v6147 = vpack.c.b16 %v5639, %v5635
    %v6148 = vpack.c.b16 %v5640, %v5636
    %v6149 = vpack.c.b16 %v5641, %v5637
    %v6150 = vpack.c.b16 %v5646, %v5642
    %v6151 = vpack.c.b16 %v5647, %v5643
    %v6152 = vpack.c.b16 %v5648, %v5644
    %v6153 = vpack.c.b16 %v5649, %v5645
    %v6154 = vpack.c.b16 %v5654, %v5650
    %v6155 = vpack.c.b16 %v5655, %v5651
    %v6156 = vpack.c.b16 %v5656, %v5652
    %v6157 = vpack.c.b16 %v5657, %v5653
    %v6158 = vpack.c.b16 %v5662, %v5658
    %v6159 = vpack.c.b16 %v5663, %v5659
    %v6160 = vpack.c.b16 %v5664, %v5660
    %v6161 = vpack.c.b16 %v5665, %v5661
    %v6162 = vpack.c.b16 %v5670, %v5666
    %v6163 = vpack.c.b16 %v5671, %v5667
    %v6164 = vpack.c.b16 %v5672, %v5668
    %v6165 = vpack.c.b16 %v5673, %v5669
    %v6166 = vpack.c.b16 %v5678, %v5674
    %v6167 = vpack.c.b16 %v5679, %v5675
    %v6168 = vpack.c.b16 %v5680, %v5676
    %v6169 = vpack.c.b16 %v5681, %v5677
    %v6170 = vpack.c.b16 %v5686, %v5682
    %v6171 = vpack.c.b16 %v5687, %v5683
    %v6172 = vpack.c.b16 %v5688, %v5684
    %v6173 = vpack.c.b16 %v5689, %v5685
    %v6174 = vpack.c.b16 %v5694, %v5690
    %v6175 = vpack.c.b16 %v5695, %v5691
    %v6176 = vpack.c.b16 %v5696, %v5692
    %v6177 = vpack.c.b16 %v5697, %v5693
    %v6178 = vpack.c.b16 %v5702, %v5698
    %v6179 = vpack.c.b16 %v5703, %v5699
    %v6180 = vpack.c.b16 %v5704, %v5700
    %v6181 = vpack.c.b16 %v5705, %v5701
    %v6182 = vpack.c.b16 %v5710, %v5706
    %v6183 = vpack.c.b16 %v5711, %v5707
    %v6184 = vpack.c.b16 %v5712, %v5708
    %v6185 = vpack.c.b16 %v5713, %v5709
    %v6186 = vpack.c.b16 %v5718, %v5714
    %v6187 = vpack.c.b16 %v5719, %v5715
    %v6188 = vpack.c.b16 %v5720, %v5716
    %v6189 = vpack.c.b16 %v5721, %v5717
    %v6190 = vpack.c.b16 %v5726, %v5722
    %v6191 = vpack.c.b16 %v5727, %v5723
    %v6192 = vpack.c.b16 %v5728, %v5724
    %v6193 = vpack.c.b16 %v5729, %v5725
    %v6194 = vpack.c.b16 %v5734, %v5730
    %v6195 = vpack.c.b16 %v5735, %v5731
    %v6196 = vpack.c.b16 %v5736, %v5732
    %v6197 = vpack.c.b16 %v5737, %v5733
    %v6198 = vpack.c.b16 %v5742, %v5738
    %v6199 = vpack.c.b16 %v5743, %v5739
    %v6200 = vpack.c.b16 %v5744, %v5740
    %v6201 = vpack.c.b16 %v5745, %v5741
    %v6202 = vpack.c.b16 %v5750, %v5746
    %v6203 = vpack.c.b16 %v5751, %v5747
    %v6204 = vpack.c.b16 %v5752, %v5748
    %v6205 = vpack.c.b16 %v5753, %v5749
    %v6206 = vpack.c.b16 %v5758, %v5754
    %v6207 = vpack.c.b16 %v5759, %v5755
    %v6208 = vpack.c.b16 %v5760, %v5756
    %v6209 = vpack.c.b16 %v5761, %v5757
    %v6210 = vpack.c.b16 %v5766, %v5762
    %v6211 = vpack.c.b16 %v5767, %v5763
    %v6212 = vpack.c.b16 %v5768, %v5764
    %v6213 = vpack.c.b16 %v5769, %v5765
    %v6214 = vpack.c.b16 %v5774, %v5770
    %v6215 = vpack.c.b16 %v5775, %v5771
    %v6216 = vpack.c.b16 %v5776, %v5772
    %v6217 = vpack.c.b16 %v5777, %v5773
    %v6218 = vpack.c.b16 %v5782, %v5778
    %v6219 = vpack.c.b16 %v5783, %v5779
    %v6220 = vpack.c.b16 %v5784, %v5780
    %v6221 = vpack.c.b16 %v5785, %v5781
    %v6222 = vpack.c.b16 %v5790, %v5786
    %v6223 = vpack.c.b16 %v5791, %v5787
    %v6224 = vpack.c.b16 %v5792, %v5788
    %v6225 = vpack.c.b16 %v5793, %v5789
    %v6226 = vpack.c.b16 %v5798, %v5794
    %v6227 = vpack.c.b16 %v5799, %v5795
    %v6228 = vpack.c.b16 %v5800, %v5796
    %v6229 = vpack.c.b16 %v5801, %v5797
    %v6230 = vpack.c.b16 %v5806, %v5802
    %v6231 = vpack.c.b16 %v5807, %v5803
    %v6232 = vpack.c.b16 %v5808, %v5804
    %v6233 = vpack.c.b16 %v5809, %v5805
    %v6234 = vpack.c.b16 %v5814, %v5810
    %v6235 = vpack.c.b16 %v5815, %v5811
    %v6236 = vpack.c.b16 %v5816, %v5812
    %v6237 = vpack.c.b16 %v5817, %v5813
    %v6238 = vpack.c.b16 %v5822, %v5818
    %v6239 = vpack.c.b16 %v5823, %v5819
    %v6240 = vpack.c.b16 %v5824, %v5820
    %v6241 = vpack.c.b16 %v5825, %v5821
    %v6242 = vpack.c.b16 %v5830, %v5826
    %v6243 = vpack.c.b16 %v5831, %v5827
    %v6244 = vpack.c.b16 %v5832, %v5828
    %v6245 = vpack.c.b16 %v5833, %v5829
    %v6246 = vpack.c.b16 %v5838, %v5834
    %v6247 = vpack.c.b16 %v5839, %v5835
    %v6248 = vpack.c.b16 %v5840, %v5836
    %v6249 = vpack.c.b16 %v5841, %v5837
    %v6250 = vpack.c.b16 %v5846, %v5842
    %v6251 = vpack.c.b16 %v5847, %v5843
    %v6252 = vpack.c.b16 %v5848, %v5844
    %v6253 = vpack.c.b16 %v5849, %v5845
    %v6254 = vpack.c.b16 %v5854, %v5850
    %v6255 = vpack.c.b16 %v5855, %v5851
    %v6256 = vpack.c.b16 %v5856, %v5852
    %v6257 = vpack.c.b16 %v5857, %v5853
    %v6258 = vpack.c.b16 %v5862, %v5858
    %v6259 = vpack.c.b16 %v5863, %v5859
    %v6260 = vpack.c.b16 %v5864, %v5860
    %v6261 = vpack.c.b16 %v5865, %v5861
    %v6262 = vpack.c.b16 %v5870, %v5866
    %v6263 = vpack.c.b16 %v5871, %v5867
    %v6264 = vpack.c.b16 %v5872, %v5868
    %v6265 = vpack.c.b16 %v5873, %v5869
    %v6266 = vpack.c.b16 %v5878, %v5874
    %v6267 = vpack.c.b16 %v5879, %v5875
    %v6268 = vpack.c.b16 %v5880, %v5876
    %v6269 = vpack.c.b16 %v5881, %v5877
    %v6270 = vpack.c.b16 %v5886, %v5882
    %v6271 = vpack.c.b16 %v5887, %v5883
    %v6272 = vpack.c.b16 %v5888, %v5884
    %v6273 = vpack.c.b16 %v5889, %v5885
    %v6274 = vpack.c.b16 %v5894, %v5890
    %v6275 = vpack.c.b16 %v5895, %v5891
    %v6276 = vpack.c.b16 %v5896, %v5892
    %v6277 = vpack.c.b16 %v5897, %v5893
    %v6278 = vpack.c.b16 %v5902, %v5898
    %v6279 = vpack.c.b16 %v5903, %v5899
    %v6280 = vpack.c.b16 %v5904, %v5900
    %v6281 = vpack.c.b16 %v5905, %v5901
    %v6282 = vpack.c.b16 %v5910, %v5906
    %v6283 = vpack.c.b16 %v5911, %v5907
    %v6284 = vpack.c.b16 %v5912, %v5908
    %v6285 = vpack.c.b16 %v5913, %v5909
    %v6286 = vpack.c.b16 %v5918, %v5914
    %v6287 = vpack.c.b16 %v5919, %v5915
    %v6288 = vpack.c.b16 %v5920, %v5916
    %v6289 = vpack.c.b16 %v5921, %v5917
    %v6290 = vpack.c.b16 %v5926, %v5922
    %v6291 = vpack.c.b16 %v5927, %v5923
    %v6292 = vpack.c.b16 %v5928, %v5924
    %v6293 = vpack.c.b16 %v5929, %v5925
    %v6294 = vpack.c.b16 %v5934, %v5930
    %v6295 = vpack.c.b16 %v5935, %v5931
    %v6296 = vpack.c.b16 %v5936, %v5932
    %v6297 = vpack.c.b16 %v5937, %v5933
    %v6298 = vpack.c.b16 %v5942, %v5938
    %v6299 = vpack.c.b16 %v5943, %v5939
    %v6300 = vpack.c.b16 %v5944, %v5940
    %v6301 = vpack.c.b16 %v5945, %v5941
    %v6302 = vpack.c.b16 %v5950, %v5946
    %v6303 = vpack.c.b16 %v5951, %v5947
    %v6304 = vpack.c.b16 %v5952, %v5948
    %v6305 = vpack.c.b16 %v5953, %v5949
    %v6306 = vpack.c.b16 %v5958, %v5954
    %v6307 = vpack.c.b16 %v5959, %v5955
    %v6308 = vpack.c.b16 %v5960, %v5956
    %v6309 = vpack.c.b16 %v5961, %v5957
    %v6310 = vpack.c.b16 %v5966, %v5962
    %v6311 = vpack.c.b16 %v5967, %v5963
    %v6312 = vpack.c.b16 %v5968, %v5964
    %v6313 = vpack.c.b16 %v5969, %v5965
    %v6314 = vpack.c.b16 %v5974, %v5970
    %v6315 = vpack.c.b16 %v5975, %v5971
    %v6316 = vpack.c.b16 %v5976, %v5972
    %v6317 = vpack.c.b16 %v5977, %v5973
    %v6318 = vpack.c.b16 %v5982, %v5978
    %v6319 = vpack.c.b16 %v5983, %v5979
    %v6320 = vpack.c.b16 %v5984, %v5980
    %v6321 = vpack.c.b16 %v5985, %v5981
    %v6322 = vpack.c.b16 %v5990, %v5986
    %v6323 = vpack.c.b16 %v5991, %v5987
    %v6324 = vpack.c.b16 %v5992, %v5988
    %v6325 = vpack.c.b16 %v5993, %v5989
    %v6326 = vpack.c.b16 %v5998, %v5994
    %v6327 = vpack.c.b16 %v5999, %v5995
    %v6328 = vpack.c.b16 %v6000, %v5996
    %v6329 = vpack.c.b16 %v6001, %v5997
    %v6330 = vpack.c.b16 %v6006, %v6002
    %v6331 = vpack.c.b16 %v6007, %v6003
    %v6332 = vpack.c.b16 %v6008, %v6004
    %v6333 = vpack.c.b16 %v6009, %v6005
    %v6334 = vpack.c.b16 %v6014, %v6010
    %v6335 = vpack.c.b16 %v6015, %v6011
    %v6336 = vpack.c.b16 %v6016, %v6012
    %v6337 = vpack.c.b16 %v6017, %v6013
    %v6338 = vpack.c.b16 %v6022, %v6018
    %v6339 = vpack.c.b16 %v6023, %v6019
    %v6340 = vpack.c.b16 %v6024, %v6020
    %v6341 = vpack.c.b16 %v6025, %v6021
    %v6342 = vpack.c.b16 %v6030, %v6026
    %v6343 = vpack.c.b16 %v6031, %v6027
    %v6344 = vpack.c.b16 %v6032, %v6028
    %v6345 = vpack.c.b16 %v6033, %v6029
    %v6346 = vpack.c.b16 %v6038, %v6034
    %v6347 = vpack.c.b16 %v6039, %v6035
    %v6348 = vpack.c.b16 %v6040, %v6036
    %v6349 = vpack.c.b16 %v6041, %v6037
    %v6350 = vpack.c.b16 %v6046, %v6042
    %v6351 = vpack.c.b16 %v6047, %v6043
    %v6352 = vpack.c.b16 %v6048, %v6044
    %v6353 = vpack.c.b16 %v6049, %v6045
    %v6354 = vpack.c.b16 %v6054, %v6050
    %v6355 = vpack.c.b16 %v6055, %v6051
    %v6356 = vpack.c.b16 %v6056, %v6052
    %v6357 = vpack.c.b16 %v6057, %v6053
    %v6358 = vpack.c.b16 %v6062, %v6058
    %v6359 = vpack.c.b16 %v6063, %v6059
    %v6360 = vpack.c.b16 %v6064, %v6060
    %v6361 = vpack.c.b16 %v6065, %v6061
    %v6362 = vpack.c.b16 %v6070, %v6066
    %v6363 = vpack.c.b16 %v6071, %v6067
    %v6364 = vpack.c.b16 %v6072, %v6068
    %v6365 = vpack.c.b16 %v6073, %v6069
    %v6366 = vpack.c.b16 %v6078, %v6074
    %v6367 = vpack.c.b16 %v6079, %v6075
    %v6368 = vpack.c.b16 %v6080, %v6076
    %v6369 = vpack.c.b16 %v6081, %v6077
    %v6370 = vpack.c.b16 %v6086, %v6082
    %v6371 = vpack.c.b16 %v6087, %v6083
    %v6372 = vpack.c.b16 %v6088, %v6084
    %v6373 = vpack.c.b16 %v6089, %v6085
    %v6374 = vpack.c.b16 %v6094, %v6090
    %v6375 = vpack.c.b16 %v6095, %v6091
    %v6376 = vpack.c.b16 %v6096, %v6092
    %v6377 = vpack.c.b16 %v6097, %v6093
    %v6378 = vpack.c.b16 %v6102, %v6098
    %v6379 = vpack.c.b16 %v6103, %v6099
    %v6380 = vpack.c.b16 %v6104, %v6100
    %v6381 = vpack.c.b16 %v6105, %v6101
    %v6382 = vpack.c.b16 %v6110, %v6106
    %v6383 = vpack.c.b16 %v6111, %v6107
    %v6384 = vpack.c.b16 %v6112, %v6108
    %v6385 = vpack.c.b16 %v6113, %v6109
    %v6386 = vpack.c.b16 %v6118, %v6114
    %v6387 = vpack.c.b16 %v6119, %v6115
    %v6388 = vpack.c.b16 %v6120, %v6116
    %v6389 = vpack.c.b16 %v6121, %v6117
    %v6390 = vpack.c.b16 %v6126, %v6122
    %v6391 = vpack.c.b16 %v6127, %v6123
    %v6392 = vpack.c.b16 %v6128, %v6124
    %v6393 = vpack.c.b16 %v6129, %v6125
    %v6394 = vpack.c.b16 %v6134, %v6130
    %v6395 = vpack.c.b16 %v6135, %v6131
    %v6396 = vpack.c.b16 %v6136, %v6132
    %v6397 = vpack.c.b16 %v6137, %v6133
    %v6398 = vpack.c.b16 %v6138, %v6138
    %v6399 = vpack.c.b16 %v6139, %v6139
    %v6400 = vpack.c.b16 %v6140, %v6140
    %v6401 = vpack.c.b16 %v6141, %v6141
    %v6659 = vsel %vm1271, %v5346, 0
    %v6662 = vsel %vm1275, %v6398, 0
    %v6665 = vsel %vm1275, %v6399, 0
    %v6668 = vsel %vm1275, %v6400, 0
    %v6671 = vsel %vm1275, %v6401, 0
    %6673 = vmatprep.subr.bf16.mxu0 %v6143
    %6674 = vmatpush1.bf16.msra.mxu0 %v6142
    %6675 = vmatprep.subr.bf16.mxu0 %v6147
    %6676 = vmatpush1.bf16.msra.mxu0 %v6146
    %6677 = vmatprep.subr.bf16.mxu0 %v6151
    %6678 = vmatpush1.bf16.msra.mxu0 %v6150
    %6679 = vmatprep.subr.bf16.mxu0 %v6155
    %6680 = vmatpush1.bf16.msra.mxu0 %v6154
    %6681 = vmatprep.subr.bf16.mxu0 %v6159
    %6682 = vmatpush1.bf16.msra.mxu0 %v6158
    %6683 = vmatprep.subr.bf16.mxu0 %v6163
    %6684 = vmatpush1.bf16.msra.mxu0 %v6162
    %6685 = vmatprep.subr.bf16.mxu0 %v6167
    %6686 = vmatpush1.bf16.msra.mxu0 %v6166
    %6687 = vmatprep.subr.bf16.mxu0 %v6171
    %6688 = vmatpush1.bf16.msra.mxu0 %v6170
    %6689 = vmatprep.subr.bf16.mxu0 %v6175
    %6690 = vmatpush1.bf16.msra.mxu0 %v6174
    %6691 = vmatprep.subr.bf16.mxu0 %v6179
    %6692 = vmatpush1.bf16.msra.mxu0 %v6178
    %6693 = vmatprep.subr.bf16.mxu0 %v6183
    %6694 = vmatpush1.bf16.msra.mxu0 %v6182
    %6695 = vmatprep.subr.bf16.mxu0 %v6187
    %6696 = vmatpush1.bf16.msra.mxu0 %v6186
    %6697 = vmatprep.subr.bf16.mxu0 %v6191
    %6698 = vmatpush1.bf16.msra.mxu0 %v6190
    %6699 = vmatprep.subr.bf16.mxu0 %v6195
    %6700 = vmatpush1.bf16.msra.mxu0 %v6194
    %6701 = vmatprep.subr.bf16.mxu0 %v6199
    %6702 = vmatpush1.bf16.msra.mxu0 %v6198
    %6703 = vmatprep.subr.bf16.mxu0 %v6203
    %6704 = vmatpush1.bf16.msra.mxu0 %v6202
    %6705 = vmatprep.mubr.bf16.mxu0 %v5339
    %6706 = vmatmul.mubr.bf16.gmra.mrb[0].mxu0 %v5338
    %v6707 = vpop.f32.mrb[0].mxu0
    %v6708 = vadd.f32 %v5351, %v6707
    %v6709 = vpop.f32.mrb[0].mxu0
    %v6710 = vadd.f32 %v5355, %v6709
    %v6711 = vpop.f32.mrb[0].mxu0
    %v6712 = vpop.f32.mrb[0].mxu0
    %6713 = vdwg.mxu0
    %6714 = vmatprep.subr.bf16.mxu0 %v6207
    %6715 = vmatpush1.bf16.msra.mxu0 %v6206
    %6716 = vmatprep.subr.bf16.mxu0 %v6211
    %6717 = vmatpush1.bf16.msra.mxu0 %v6210
    %6718 = vmatprep.subr.bf16.mxu0 %v6215
    %6719 = vmatpush1.bf16.msra.mxu0 %v6214
    %6720 = vmatprep.subr.bf16.mxu0 %v6219
    %6721 = vmatpush1.bf16.msra.mxu0 %v6218
    %6722 = vmatprep.subr.bf16.mxu0 %v6223
    %6723 = vmatpush1.bf16.msra.mxu0 %v6222
    %6724 = vmatprep.subr.bf16.mxu0 %v6227
    %6725 = vmatpush1.bf16.msra.mxu0 %v6226
    %6726 = vmatprep.subr.bf16.mxu0 %v6231
    %6727 = vmatpush1.bf16.msra.mxu0 %v6230
    %6728 = vmatprep.subr.bf16.mxu0 %v6235
    %6729 = vmatpush1.bf16.msra.mxu0 %v6234
    %6730 = vmatprep.subr.bf16.mxu0 %v6239
    %6731 = vmatpush1.bf16.msra.mxu0 %v6238
    %6732 = vmatprep.subr.bf16.mxu0 %v6243
    %6733 = vmatpush1.bf16.msra.mxu0 %v6242
    %6734 = vmatprep.subr.bf16.mxu0 %v6247
    %6735 = vmatpush1.bf16.msra.mxu0 %v6246
    %6736 = vmatprep.subr.bf16.mxu0 %v6251
    %6737 = vmatpush1.bf16.msra.mxu0 %v6250
    %6738 = vmatprep.subr.bf16.mxu0 %v6255
    %6739 = vmatpush1.bf16.msra.mxu0 %v6254
    %6740 = vmatprep.subr.bf16.mxu0 %v6259
    %6741 = vmatpush1.bf16.msra.mxu0 %v6258
    %6742 = vmatprep.subr.bf16.mxu0 %v6263
    %6743 = vmatpush1.bf16.msra.mxu0 %v6262
    %6744 = vmatprep.subr.bf16.mxu0 %v6267
    %6745 = vmatpush1.bf16.msra.mxu0 %v6266
    %6746 = vmatprep.mubr.bf16.mxu0 %v5341
    %6747 = vmatmul.mubr.bf16.gmra.mrb[0].mxu0 %v5340
    %v6748 = vpop.f32.mrb[0].mxu0
    %v6749 = vadd.f32 %v6708, %v6748
    %v6750 = vpop.f32.mrb[0].mxu0
    %v6751 = vadd.f32 %v6710, %v6750
    %v6752 = vpop.f32.mrb[0].mxu0
    %v6753 = vpop.f32.mrb[0].mxu0
    %6754 = vdwg.mxu0
    %6755 = vmatprep.subr.bf16.mxu0 %v6271
    %6756 = vmatpush1.bf16.msra.mxu0 %v6270
    %6757 = vmatprep.subr.bf16.mxu0 %v6275
    %6758 = vmatpush1.bf16.msra.mxu0 %v6274
    %6759 = vmatprep.subr.bf16.mxu0 %v6279
    %6760 = vmatpush1.bf16.msra.mxu0 %v6278
    %6761 = vmatprep.subr.bf16.mxu0 %v6283
    %6762 = vmatpush1.bf16.msra.mxu0 %v6282
    %6763 = vmatprep.subr.bf16.mxu0 %v6287
    %6764 = vmatpush1.bf16.msra.mxu0 %v6286
    %6765 = vmatprep.subr.bf16.mxu0 %v6291
    %6766 = vmatpush1.bf16.msra.mxu0 %v6290
    %6767 = vmatprep.subr.bf16.mxu0 %v6295
    %6768 = vmatpush1.bf16.msra.mxu0 %v6294
    %6769 = vmatprep.subr.bf16.mxu0 %v6299
    %6770 = vmatpush1.bf16.msra.mxu0 %v6298
    %6771 = vmatprep.subr.bf16.mxu0 %v6303
    %6772 = vmatpush1.bf16.msra.mxu0 %v6302
    %6773 = vmatprep.subr.bf16.mxu0 %v6307
    %6774 = vmatpush1.bf16.msra.mxu0 %v6306
    %6775 = vmatprep.subr.bf16.mxu0 %v6311
    %6776 = vmatpush1.bf16.msra.mxu0 %v6310
    %6777 = vmatprep.subr.bf16.mxu0 %v6315
    %6778 = vmatpush1.bf16.msra.mxu0 %v6314
    %6779 = vmatprep.subr.bf16.mxu0 %v6319
    %6780 = vmatpush1.bf16.msra.mxu0 %v6318
    %6781 = vmatprep.subr.bf16.mxu0 %v6323
    %6782 = vmatpush1.bf16.msra.mxu0 %v6322
    %6783 = vmatprep.subr.bf16.mxu0 %v6327
    %6784 = vmatpush1.bf16.msra.mxu0 %v6326
    %6785 = vmatprep.subr.bf16.mxu0 %v6331
    %6786 = vmatpush1.bf16.msra.mxu0 %v6330
    %6787 = vmatprep.mubr.bf16.mxu0 %v5343
    %6788 = vmatmul.mubr.bf16.gmra.mrb[0].mxu0 %v5342
    %v6789 = vpop.f32.mrb[0].mxu0
    %v6790 = vadd.f32 %v6749, %v6789
    %v6791 = vpop.f32.mrb[0].mxu0
    %v6792 = vadd.f32 %v6751, %v6791
    %v6793 = vpop.f32.mrb[0].mxu0
    %v6794 = vpop.f32.mrb[0].mxu0
    %6795 = vdwg.mxu0
    %6796 = vmatprep.subr.bf16.mxu0 %v6335
    %6797 = vmatpush1.bf16.msra.mxu0 %v6334
    %6798 = vmatprep.subr.bf16.mxu0 %v6339
    %6799 = vmatpush1.bf16.msra.mxu0 %v6338
    %6800 = vmatprep.subr.bf16.mxu0 %v6343
    %6801 = vmatpush1.bf16.msra.mxu0 %v6342
    %6802 = vmatprep.subr.bf16.mxu0 %v6347
    %6803 = vmatpush1.bf16.msra.mxu0 %v6346
    %6804 = vmatprep.subr.bf16.mxu0 %v6351
    %6805 = vmatpush1.bf16.msra.mxu0 %v6350
    %6806 = vmatprep.subr.bf16.mxu0 %v6355
    %6807 = vmatpush1.bf16.msra.mxu0 %v6354
    %6808 = vmatprep.subr.bf16.mxu0 %v6359
    %6809 = vmatpush1.bf16.msra.mxu0 %v6358
    %6810 = vmatprep.subr.bf16.mxu0 %v6363
    %6811 = vmatpush1.bf16.msra.mxu0 %v6362
    %6812 = vmatprep.subr.bf16.mxu0 %v6367
    %6813 = vmatpush1.bf16.msra.mxu0 %v6366
    %6814 = vmatprep.subr.bf16.mxu0 %v6371
    %6815 = vmatpush1.bf16.msra.mxu0 %v6370
    %6816 = vmatprep.subr.bf16.mxu0 %v6375
    %6817 = vmatpush1.bf16.msra.mxu0 %v6374
    %6818 = vmatprep.subr.bf16.mxu0 %v6379
    %6819 = vmatpush1.bf16.msra.mxu0 %v6378
    %6820 = vmatprep.subr.bf16.mxu0 %v6383
    %6821 = vmatpush1.bf16.msra.mxu0 %v6382
    %6822 = vmatprep.subr.bf16.mxu0 %v6387
    %6823 = vmatpush1.bf16.msra.mxu0 %v6386
    %6824 = vmatprep.subr.bf16.mxu0 %v6391
    %6825 = vmatpush1.bf16.msra.mxu0 %v6390
    %6826 = vmatprep.subr.bf16.mxu0 %v6395
    %6827 = vmatpush1.bf16.msra.mxu0 %v6394
    %6828 = vmatprep.mubr.bf16.mxu0 %v5345
    %6829 = vmatmul.mubr.bf16.gmra.mrb[0].mxu0 %v5344
    %v6830 = vpop.f32.mrb[0].mxu0
    %v6831 = vadd.f32 %v6790, %v6830
    %v6832 = vpop.f32.mrb[0].mxu0
    %v6833 = vadd.f32 %v6792, %v6832
    %v6834 = vpop.f32.mrb[0].mxu0
    %v6835 = vpop.f32.mrb[0].mxu0
    %6836 = vdwg.mxu0
    %6837 = vmatprep.subr.bf16.mxu0 %v6665
    %6838 = vmatpush1.bf16.msra.mxu0 %v6662
    %6839 = vmatprep.subr.bf16.mxu0 0
    %6840 = vmatpush1.bf16.msra.mxu0 0
    %6841 = vmatprep.subr.bf16.mxu0 0
    %6842 = vmatpush1.bf16.msra.mxu0 0
    %6843 = vmatprep.subr.bf16.mxu0 0
    %6844 = vmatpush1.bf16.msra.mxu0 0
    %6845 = vmatprep.subr.bf16.mxu0 0
    %6846 = vmatpush1.bf16.msra.mxu0 0
    %6847 = vmatprep.subr.bf16.mxu0 0
    %6848 = vmatpush1.bf16.msra.mxu0 0
    %6849 = vmatprep.subr.bf16.mxu0 0
    %6850 = vmatpush1.bf16.msra.mxu0 0
    %6851 = vmatprep.subr.bf16.mxu0 0
    %6852 = vmatpush1.bf16.msra.mxu0 0
    %6853 = vmatprep.subr.bf16.mxu0 0
    %6854 = vmatpush1.bf16.msra.mxu0 0
    %6855 = vmatprep.subr.bf16.mxu0 0
    %6856 = vmatpush1.bf16.msra.mxu0 0
    %6857 = vmatprep.subr.bf16.mxu0 0
    %6858 = vmatpush1.bf16.msra.mxu0 0
    %6859 = vmatprep.subr.bf16.mxu0 0
    %6860 = vmatpush1.bf16.msra.mxu0 0
    %6861 = vmatprep.subr.bf16.mxu0 0
    %6862 = vmatpush1.bf16.msra.mxu0 0
    %6863 = vmatprep.subr.bf16.mxu0 0
    %6864 = vmatpush1.bf16.msra.mxu0 0
    %6865 = vmatprep.subr.bf16.mxu0 0
    %6866 = vmatpush1.bf16.msra.mxu0 0
    %6867 = vmatprep.subr.bf16.mxu0 0
    %6868 = vmatpush1.bf16.msra.mxu0 0
    %6869 = vmatprep.mubr.bf16.mxu0 0
    %6870 = vmatmul.mubr.bf16.gmra.mrb[0].mxu0 %v6659
    %v6871 = vpop.f32.mrb[0].mxu0
    %v6872 = vadd.f32 %v6831, %v6871
    %v6873 = vpop.f32.mrb[0].mxu0
    %v6874 = vadd.f32 %v6833, %v6873
    %v6875 = vpop.f32.mrb[0].mxu0
    %v6876 = vpop.f32.mrb[0].mxu0
    %6877 = vdwg.mxu0
    %6878 = vmatprep.subr.bf16.mxu0 %v6145
    %6879 = vmatpush1.bf16.msra.mxu0 %v6144
    %6880 = vmatprep.subr.bf16.mxu0 %v6149
    %6881 = vmatpush1.bf16.msra.mxu0 %v6148
    %6882 = vmatprep.subr.bf16.mxu0 %v6153
    %6883 = vmatpush1.bf16.msra.mxu0 %v6152
    %6884 = vmatprep.subr.bf16.mxu0 %v6157
    %6885 = vmatpush1.bf16.msra.mxu0 %v6156
    %6886 = vmatprep.subr.bf16.mxu0 %v6161
    %6887 = vmatpush1.bf16.msra.mxu0 %v6160
    %6888 = vmatprep.subr.bf16.mxu0 %v6165
    %6889 = vmatpush1.bf16.msra.mxu0 %v6164
    %6890 = vmatprep.subr.bf16.mxu0 %v6169
    %6891 = vmatpush1.bf16.msra.mxu0 %v6168
    %6892 = vmatprep.subr.bf16.mxu0 %v6173
    %6893 = vmatpush1.bf16.msra.mxu0 %v6172
    %6894 = vmatprep.subr.bf16.mxu0 %v6177
    %6895 = vmatpush1.bf16.msra.mxu0 %v6176
    %6896 = vmatprep.subr.bf16.mxu0 %v6181
    %6897 = vmatpush1.bf16.msra.mxu0 %v6180
    %6898 = vmatprep.subr.bf16.mxu0 %v6185
    %6899 = vmatpush1.bf16.msra.mxu0 %v6184
    %6900 = vmatprep.subr.bf16.mxu0 %v6189
    %6901 = vmatpush1.bf16.msra.mxu0 %v6188
    %6902 = vmatprep.subr.bf16.mxu0 %v6193
    %6903 = vmatpush1.bf16.msra.mxu0 %v6192
    %6904 = vmatprep.subr.bf16.mxu0 %v6197
    %6905 = vmatpush1.bf16.msra.mxu0 %v6196
    %6906 = vmatprep.subr.bf16.mxu0 %v6201
    %6907 = vmatpush1.bf16.msra.mxu0 %v6200
    %6908 = vmatprep.subr.bf16.mxu0 %v6205
    %6909 = vmatpush1.bf16.msra.mxu0 %v6204
    %6910 = vmatprep.mubr.bf16.mxu0 %v5339
    %6911 = vmatmul.mubr.bf16.gmra.mrb[0].mxu0 %v5338
    %v6912 = vpop.f32.mrb[0].mxu0
    %v6913 = vadd.f32 %v5359, %v6912
    %v6914 = vpop.f32.mrb[0].mxu0
    %v6915 = vadd.f32 %v5363, %v6914
    %v6916 = vpop.f32.mrb[0].mxu0
    %v6917 = vpop.f32.mrb[0].mxu0
    %6918 = vdwg.mxu0
    %6919 = vmatprep.subr.bf16.mxu0 %v6209
    %6920 = vmatpush1.bf16.msra.mxu0 %v6208
    %6921 = vmatprep.subr.bf16.mxu0 %v6213
    %6922 = vmatpush1.bf16.msra.mxu0 %v6212
    %6923 = vmatprep.subr.bf16.mxu0 %v6217
    %6924 = vmatpush1.bf16.msra.mxu0 %v6216
    %6925 = vmatprep.subr.bf16.mxu0 %v6221
    %6926 = vmatpush1.bf16.msra.mxu0 %v6220
    %6927 = vmatprep.subr.bf16.mxu0 %v6225
    %6928 = vmatpush1.bf16.msra.mxu0 %v6224
    %6929 = vmatprep.subr.bf16.mxu0 %v6229
    %6930 = vmatpush1.bf16.msra.mxu0 %v6228
    %6931 = vmatprep.subr.bf16.mxu0 %v6233
    %6932 = vmatpush1.bf16.msra.mxu0 %v6232
    %6933 = vmatprep.subr.bf16.mxu0 %v6237
    %6934 = vmatpush1.bf16.msra.mxu0 %v6236
    %6935 = vmatprep.subr.bf16.mxu0 %v6241
    %6936 = vmatpush1.bf16.msra.mxu0 %v6240
    %6937 = vmatprep.subr.bf16.mxu0 %v6245
    %6938 = vmatpush1.bf16.msra.mxu0 %v6244
    %6939 = vmatprep.subr.bf16.mxu0 %v6249
    %6940 = vmatpush1.bf16.msra.mxu0 %v6248
    %6941 = vmatprep.subr.bf16.mxu0 %v6253
    %6942 = vmatpush1.bf16.msra.mxu0 %v6252
    %6943 = vmatprep.subr.bf16.mxu0 %v6257
    %6944 = vmatpush1.bf16.msra.mxu0 %v6256
    %6945 = vmatprep.subr.bf16.mxu0 %v6261
    %6946 = vmatpush1.bf16.msra.mxu0 %v6260
    %6947 = vmatprep.subr.bf16.mxu0 %v6265
    %6948 = vmatpush1.bf16.msra.mxu0 %v6264
    %6949 = vmatprep.subr.bf16.mxu0 %v6269
    %6950 = vmatpush1.bf16.msra.mxu0 %v6268
    %6951 = vmatprep.mubr.bf16.mxu0 %v5341
    %6952 = vmatmul.mubr.bf16.gmra.mrb[0].mxu0 %v5340
    %v6953 = vpop.f32.mrb[0].mxu0
    %v6954 = vadd.f32 %v6913, %v6953
    %v6955 = vpop.f32.mrb[0].mxu0
    %v6956 = vadd.f32 %v6915, %v6955
    %v6957 = vpop.f32.mrb[0].mxu0
    %v6958 = vpop.f32.mrb[0].mxu0
    %6959 = vdwg.mxu0
    %6960 = vmatprep.subr.bf16.mxu0 %v6273
    %6961 = vmatpush1.bf16.msra.mxu0 %v6272
    %6962 = vmatprep.subr.bf16.mxu0 %v6277
    %6963 = vmatpush1.bf16.msra.mxu0 %v6276
    %6964 = vmatprep.subr.bf16.mxu0 %v6281
    %6965 = vmatpush1.bf16.msra.mxu0 %v6280
    %6966 = vmatprep.subr.bf16.mxu0 %v6285
    %6967 = vmatpush1.bf16.msra.mxu0 %v6284
    %6968 = vmatprep.subr.bf16.mxu0 %v6289
    %6969 = vmatpush1.bf16.msra.mxu0 %v6288
    %6970 = vmatprep.subr.bf16.mxu0 %v6293
    %6971 = vmatpush1.bf16.msra.mxu0 %v6292
    %6972 = vmatprep.subr.bf16.mxu0 %v6297
    %6973 = vmatpush1.bf16.msra.mxu0 %v6296
    %6974 = vmatprep.subr.bf16.mxu0 %v6301
    %6975 = vmatpush1.bf16.msra.mxu0 %v6300
    %6976 = vmatprep.subr.bf16.mxu0 %v6305
    %6977 = vmatpush1.bf16.msra.mxu0 %v6304
    %6978 = vmatprep.subr.bf16.mxu0 %v6309
    %6979 = vmatpush1.bf16.msra.mxu0 %v6308
    %6980 = vmatprep.subr.bf16.mxu0 %v6313
    %6981 = vmatpush1.bf16.msra.mxu0 %v6312
    %6982 = vmatprep.subr.bf16.mxu0 %v6317
    %6983 = vmatpush1.bf16.msra.mxu0 %v6316
    %6984 = vmatprep.subr.bf16.mxu0 %v6321
    %6985 = vmatpush1.bf16.msra.mxu0 %v6320
    %6986 = vmatprep.subr.bf16.mxu0 %v6325
    %6987 = vmatpush1.bf16.msra.mxu0 %v6324
    %6988 = vmatprep.subr.bf16.mxu0 %v6329
    %6989 = vmatpush1.bf16.msra.mxu0 %v6328
    %6990 = vmatprep.subr.bf16.mxu0 %v6333
    %6991 = vmatpush1.bf16.msra.mxu0 %v6332
    %6992 = vmatprep.mubr.bf16.mxu0 %v5343
    %6993 = vmatmul.mubr.bf16.gmra.mrb[0].mxu0 %v5342
    %v6994 = vpop.f32.mrb[0].mxu0
    %v6995 = vadd.f32 %v6954, %v6994
    %v6996 = vpop.f32.mrb[0].mxu0
    %v6997 = vadd.f32 %v6956, %v6996
    %v6998 = vpop.f32.mrb[0].mxu0
    %v6999 = vpop.f32.mrb[0].mxu0
    %7000 = vdwg.mxu0
    %7001 = vmatprep.subr.bf16.mxu0 %v6337
    %7002 = vmatpush1.bf16.msra.mxu0 %v6336
    %7003 = vmatprep.subr.bf16.mxu0 %v6341
    %7004 = vmatpush1.bf16.msra.mxu0 %v6340
    %7005 = vmatprep.subr.bf16.mxu0 %v6345
    %7006 = vmatpush1.bf16.msra.mxu0 %v6344
    %7007 = vmatprep.subr.bf16.mxu0 %v6349
    %7008 = vmatpush1.bf16.msra.mxu0 %v6348
    %7009 = vmatprep.subr.bf16.mxu0 %v6353
    %7010 = vmatpush1.bf16.msra.mxu0 %v6352
    %7011 = vmatprep.subr.bf16.mxu0 %v6357
    %7012 = vmatpush1.bf16.msra.mxu0 %v6356
    %7013 = vmatprep.subr.bf16.mxu0 %v6361
    %7014 = vmatpush1.bf16.msra.mxu0 %v6360
    %7015 = vmatprep.subr.bf16.mxu0 %v6365
    %7016 = vmatpush1.bf16.msra.mxu0 %v6364
    %7017 = vmatprep.subr.bf16.mxu0 %v6369
    %7018 = vmatpush1.bf16.msra.mxu0 %v6368
    %7019 = vmatprep.subr.bf16.mxu0 %v6373
    %7020 = vmatpush1.bf16.msra.mxu0 %v6372
    %7021 = vmatprep.subr.bf16.mxu0 %v6377
    %7022 = vmatpush1.bf16.msra.mxu0 %v6376
    %7023 = vmatprep.subr.bf16.mxu0 %v6381
    %7024 = vmatpush1.bf16.msra.mxu0 %v6380
    %7025 = vmatprep.subr.bf16.mxu0 %v6385
    %7026 = vmatpush1.bf16.msra.mxu0 %v6384
    %7027 = vmatprep.subr.bf16.mxu0 %v6389
    %7028 = vmatpush1.bf16.msra.mxu0 %v6388
    %7029 = vmatprep.subr.bf16.mxu0 %v6393
    %7030 = vmatpush1.bf16.msra.mxu0 %v6392
    %7031 = vmatprep.subr.bf16.mxu0 %v6397
    %7032 = vmatpush1.bf16.msra.mxu0 %v6396
    %7033 = vmatprep.mubr.bf16.mxu0 %v5345
    %7034 = vmatmul.mubr.bf16.gmra.mrb[0].mxu0 %v5344
    %v7035 = vpop.f32.mrb[0].mxu0
    %v7036 = vadd.f32 %v6995, %v7035
    %v7037 = vpop.f32.mrb[0].mxu0
    %v7038 = vadd.f32 %v6997, %v7037
    %v7039 = vpop.f32.mrb[0].mxu0
    %v7040 = vpop.f32.mrb[0].mxu0
    %7041 = vdwg.mxu0
    %7042 = vmatprep.subr.bf16.mxu0 %v6671
    %7043 = vmatpush1.bf16.msra.mxu0 %v6668
    %7044 = vmatprep.subr.bf16.mxu0 0
    %7045 = vmatpush1.bf16.msra.mxu0 0
    %7046 = vmatprep.subr.bf16.mxu0 0
    %7047 = vmatpush1.bf16.msra.mxu0 0
    %7048 = vmatprep.subr.bf16.mxu0 0
    %7049 = vmatpush1.bf16.msra.mxu0 0
    %7050 = vmatprep.subr.bf16.mxu0 0
    %7051 = vmatpush1.bf16.msra.mxu0 0
    %7052 = vmatprep.subr.bf16.mxu0 0
    %7053 = vmatpush1.bf16.msra.mxu0 0
    %7054 = vmatprep.subr.bf16.mxu0 0
    %7055 = vmatpush1.bf16.msra.mxu0 0
    %7056 = vmatprep.subr.bf16.mxu0 0
    %7057 = vmatpush1.bf16.msra.mxu0 0
    %7058 = vmatprep.subr.bf16.mxu0 0
    %7059 = vmatpush1.bf16.msra.mxu0 0
    %7060 = vmatprep.subr.bf16.mxu0 0
    %7061 = vmatpush1.bf16.msra.mxu0 0
    %7062 = vmatprep.subr.bf16.mxu0 0
    %7063 = vmatpush1.bf16.msra.mxu0 0
    %7064 = vmatprep.subr.bf16.mxu0 0
    %7065 = vmatpush1.bf16.msra.mxu0 0
    %7066 = vmatprep.subr.bf16.mxu0 0
    %7067 = vmatpush1.bf16.msra.mxu0 0
    %7068 = vmatprep.subr.bf16.mxu0 0
    %7069 = vmatpush1.bf16.msra.mxu0 0
    %7070 = vmatprep.subr.bf16.mxu0 0
    %7071 = vmatpush1.bf16.msra.mxu0 0
    %7072 = vmatprep.subr.bf16.mxu0 0
    %7073 = vmatpush1.bf16.msra.mxu0 0
    %7074 = vmatprep.mubr.bf16.mxu0 0
    %7075 = vmatmul.mubr.bf16.gmra.mrb[0].mxu0 %v6659
    %v7076 = vpop.f32.mrb[0].mxu0
    %v7077 = vadd.f32 %v7036, %v7076
    %v7078 = vpop.f32.mrb[0].mxu0
    %v7079 = vadd.f32 %v7038, %v7078
    %v7080 = vpop.f32.mrb[0].mxu0
    %v7081 = vpop.f32.mrb[0].mxu0
    %7082 = vdwg.mxu0
    %vm7083 = vcmp.gt.f32.partialorder %v6872, 0.0
    %vm7084 = vcmp.gt.f32.partialorder %v6874, 0.0
    %vm7085 = vcmp.gt.f32.partialorder %v7077, 0.0
    %vm7086 = vcmp.gt.f32.partialorder %v7079, 0.0
    %v7087 = vmul.f32 %v6872, 0.1
    %v7088 = vmul.f32 %v6874, 0.1
    %v7089 = vmul.f32 %v7077, 0.1
    %v7090 = vmul.f32 %v7079, 0.1
    %v7091 = vsel %vm7083, %v6872, %v7087
    %v7092 = vsel %vm7084, %v6874, %v7088
    %v7093 = vsel %vm7085, %v7077, %v7089
    %v7094 = vsel %vm7086, %v7079, %v7090
    %v7095 = vrot.slane %v7091, 4
    %v7096 = vadd.f32 %v7091, %v7095
    %v7097 = vrot.slane %v7096, 2
    %v7098 = vadd.f32 %v7096, %v7097
    %v7099 = vrot.slane %v7098, 1
    %v7100 = vadd.f32 %v7098, %v7099
    %v7101 = vrot.slane %v7092, 4
    %v7102 = vadd.f32 %v7092, %v7101
    %v7103 = vrot.slane %v7102, 2
    %v7104 = vadd.f32 %v7102, %v7103
    %v7105 = vrot.slane %v7104, 1
    %v7106 = vadd.f32 %v7104, %v7105
    %v7107 = vrot.slane %v7093, 4
    %v7108 = vadd.f32 %v7093, %v7107
    %v7109 = vrot.slane %v7108, 2
    %v7110 = vadd.f32 %v7108, %v7109
    %v7111 = vrot.slane %v7110, 1
    %v7112 = vadd.f32 %v7110, %v7111
    %v7113 = vrot.slane %v7094, 4
    %v7114 = vadd.f32 %v7094, %v7113
    %v7115 = vrot.slane %v7114, 2
    %v7116 = vadd.f32 %v7114, %v7115
    %v7117 = vrot.slane %v7116, 1
    %v7118 = vadd.f32 %v7116, %v7117
    %v7119 = vmul.f32 %v7100, %v1899
    %v7120 = vmul.f32 %v7106, %v1899
    %v7121 = vmul.f32 %v7112, %v1899
    %v7122 = vmul.f32 %v7118, %v1899
    %v7123 = vsub.f32 %v7091, %v7119
    %v7124 = vsub.f32 %v7092, %v7120
    %v7125 = vsub.f32 %v7093, %v7121
    %v7126 = vsub.f32 %v7094, %v7122
    %v7127 = vmul.f32 %v7123, %v7123
    %v7128 = vmul.f32 %v7124, %v7124
    %v7129 = vmul.f32 %v7125, %v7125
    %v7130 = vmul.f32 %v7126, %v7126
    %v7131 = vrot.slane %v7127, 4
    %v7132 = vadd.f32 %v7127, %v7131
    %v7133 = vrot.slane %v7132, 2
    %v7134 = vadd.f32 %v7132, %v7133
    %v7135 = vrot.slane %v7134, 1
    %v7136 = vadd.f32 %v7134, %v7135
    %v7137 = vrot.slane %v7128, 4
    %v7138 = vadd.f32 %v7128, %v7137
    %v7139 = vrot.slane %v7138, 2
    %v7140 = vadd.f32 %v7138, %v7139
    %v7141 = vrot.slane %v7140, 1
    %v7142 = vadd.f32 %v7140, %v7141
    %v7143 = vrot.slane %v7129, 4
    %v7144 = vadd.f32 %v7129, %v7143
    %v7145 = vrot.slane %v7144, 2
    %v7146 = vadd.f32 %v7144, %v7145
    %v7147 = vrot.slane %v7146, 1
    %v7148 = vadd.f32 %v7146, %v7147
    %v7149 = vrot.slane %v7130, 4
    %v7150 = vadd.f32 %v7130, %v7149
    %v7151 = vrot.slane %v7150, 2
    %v7152 = vadd.f32 %v7150, %v7151
    %v7153 = vrot.slane %v7152, 1
    %v7154 = vadd.f32 %v7152, %v7153
    %v7155 = vmul.f32 %v7136, %v1899
    %v7156 = vmul.f32 %v7142, %v1899
    %v7157 = vmul.f32 %v7148, %v1899
    %v7158 = vmul.f32 %v7154, %v1899
    %v7159 = vadd.f32 %v7155, 1e-05
    %v7160 = vadd.f32 %v7156, 1e-05
    %v7161 = vadd.f32 %v7157, 1e-05
    %v7162 = vadd.f32 %v7158, 1e-05
    %v7163 = vrsqrt.pop %v7159
    %v7164 = vrsqrt.pop %v7160
    %v7165 = vrsqrt.pop %v7161
    %v7166 = vrsqrt.pop %v7162
    %v7167 = vmul.f32 %v7123, %v7163
    %v7168 = vmul.f32 %v7124, %v7164
    %v7169 = vmul.f32 %v7125, %v7165
    %v7170 = vmul.f32 %v7126, %v7166
    %v7172 = vlaneseq
    %v7173 = vshrl.u32 %v7172, 7
    %v7174 = vsub.s32 0, %v7173
    %v7175 = vrot.slane %v1136, %v7174
    %v7176 = vlaneseq
    %v7177 = vshrl.u32 %v7176, 7
    %v7178 = vsub.s32 1, %v7177
    %v7179 = vrot.slane %v1136, %v7178
    %v7180 = vlaneseq
    %v7181 = vshrl.u32 %v7180, 7
    %v7182 = vsub.s32 2, %v7181
    %v7183 = vrot.slane %v1136, %v7182
    %v7184 = vlaneseq
    %v7185 = vshrl.u32 %v7184, 7
    %v7186 = vsub.s32 3, %v7185
    %v7187 = vrot.slane %v1136, %v7186
    %v7192 = vmul.f32 %v7167, %v7175
    %v7193 = vmul.f32 %v7168, %v7179
    %v7194 = vmul.f32 %v7169, %v7183
    %v7195 = vmul.f32 %v7170, %v7187
    %v7197 = vlaneseq
    %v7198 = vshrl.u32 %v7197, 7
    %v7199 = vsub.s32 0, %v7198
    %v7200 = vrot.slane %v1137, %v7199
    %v7201 = vlaneseq
    %v7202 = vshrl.u32 %v7201, 7
    %v7203 = vsub.s32 1, %v7202
    %v7204 = vrot.slane %v1137, %v7203
    %v7205 = vlaneseq
    %v7206 = vshrl.u32 %v7205, 7
    %v7207 = vsub.s32 2, %v7206
    %v7208 = vrot.slane %v1137, %v7207
    %v7209 = vlaneseq
    %v7210 = vshrl.u32 %v7209, 7
    %v7211 = vsub.s32 3, %v7210
    %v7212 = vrot.slane %v1137, %v7211
    %v7217 = vadd.f32 %v7192, %v7200
    %v7218 = vadd.f32 %v7193, %v7204
    %v7219 = vadd.f32 %v7194, %v7208
    %v7220 = vadd.f32 %v7195, %v7212
    %v7221 = vpack.c.bf16 %v7217, %v7217
    %v7222 = vpack.c.bf16 %v7218, %v7218
    %v7223 = vpack.c.bf16 %v7219, %v7219
    %v7224 = vpack.c.bf16 %v7220, %v7220
    %v7226 = vlaneseq
    %v7227 = vshrl.u32 %v7226, 7
    %v7228 = vsub.s32 0, %v7227
    %v7229 = vrot.slane %v1202, %v7228
    %v7295 = vunpack.c.l.b16 %v1138
    %v7296 = vunpack.c.l.b16 %v1139
    %v7297 = vunpack.c.l.b16 %v1140
    %v7298 = vunpack.c.l.b16 %v1141
    %v7299 = vunpack.c.l.b16 %v1142
    %v7300 = vunpack.c.l.b16 %v1143
    %v7301 = vunpack.c.l.b16 %v1144
    %v7302 = vunpack.c.l.b16 %v1145
    %v7303 = vunpack.c.l.b16 %v1146
    %v7304 = vunpack.c.l.b16 %v1147
    %v7305 = vunpack.c.l.b16 %v1148
    %v7306 = vunpack.c.l.b16 %v1149
    %v7307 = vunpack.c.l.b16 %v1150
    %v7308 = vunpack.c.l.b16 %v1151
    %v7309 = vunpack.c.l.b16 %v1152
    %v7310 = vunpack.c.l.b16 %v1153
    %v7311 = vunpack.c.l.b16 %v1154
    %v7312 = vunpack.c.l.b16 %v1155
    %v7313 = vunpack.c.l.b16 %v1156
    %v7314 = vunpack.c.l.b16 %v1157
    %v7315 = vunpack.c.l.b16 %v1158
    %v7316 = vunpack.c.l.b16 %v1159
    %v7317 = vunpack.c.l.b16 %v1160
    %v7318 = vunpack.c.l.b16 %v1161
    %v7319 = vunpack.c.l.b16 %v1162
    %v7320 = vunpack.c.l.b16 %v1163
    %v7321 = vunpack.c.l.b16 %v1164
    %v7322 = vunpack.c.l.b16 %v1165
    %v7323 = vunpack.c.l.b16 %v1166
    %v7324 = vunpack.c.l.b16 %v1167
    %v7325 = vunpack.c.l.b16 %v1168
    %v7326 = vunpack.c.l.b16 %v1169
    %v7327 = vunpack.c.l.b16 %v1170
    %v7328 = vunpack.c.l.b16 %v1171
    %v7329 = vunpack.c.l.b16 %v1172
    %v7330 = vunpack.c.l.b16 %v1173
    %v7331 = vunpack.c.l.b16 %v1174
    %v7332 = vunpack.c.l.b16 %v1175
    %v7333 = vunpack.c.l.b16 %v1176
    %v7334 = vunpack.c.l.b16 %v1177
    %v7335 = vunpack.c.l.b16 %v1178
    %v7336 = vunpack.c.l.b16 %v1179
    %v7337 = vunpack.c.l.b16 %v1180
    %v7338 = vunpack.c.l.b16 %v1181
    %v7339 = vunpack.c.l.b16 %v1182
    %v7340 = vunpack.c.l.b16 %v1183
    %v7341 = vunpack.c.l.b16 %v1184
    %v7342 = vunpack.c.l.b16 %v1185
    %v7343 = vunpack.c.l.b16 %v1186
    %v7344 = vunpack.c.l.b16 %v1187
    %v7345 = vunpack.c.l.b16 %v1188
    %v7346 = vunpack.c.l.b16 %v1189
    %v7347 = vunpack.c.l.b16 %v1190
    %v7348 = vunpack.c.l.b16 %v1191
    %v7349 = vunpack.c.l.b16 %v1192
    %v7350 = vunpack.c.l.b16 %v1193
    %v7351 = vunpack.c.l.b16 %v1194
    %v7352 = vunpack.c.l.b16 %v1195
    %v7353 = vunpack.c.l.b16 %v1196
    %v7354 = vunpack.c.l.b16 %v1197
    %v7355 = vunpack.c.l.b16 %v1198
    %v7356 = vunpack.c.l.b16 %v1199
    %v7357 = vunpack.c.l.b16 %v1200
    %v7358 = vunpack.c.l.b16 %v1201
    %v7359 = vpack.c.b16 %v7296, %v7295
    %v7360 = vpack.c.b16 %v7298, %v7297
    %v7361 = vpack.c.b16 %v7300, %v7299
    %v7362 = vpack.c.b16 %v7302, %v7301
    %v7363 = vpack.c.b16 %v7304, %v7303
    %v7364 = vpack.c.b16 %v7306, %v7305
    %v7365 = vpack.c.b16 %v7308, %v7307
    %v7366 = vpack.c.b16 %v7310, %v7309
    %v7367 = vpack.c.b16 %v7312, %v7311
    %v7368 = vpack.c.b16 %v7314, %v7313
    %v7369 = vpack.c.b16 %v7316, %v7315
    %v7370 = vpack.c.b16 %v7318, %v7317
    %v7371 = vpack.c.b16 %v7320, %v7319
    %v7372 = vpack.c.b16 %v7322, %v7321
    %v7373 = vpack.c.b16 %v7324, %v7323
    %v7374 = vpack.c.b16 %v7326, %v7325
    %v7375 = vpack.c.b16 %v7328, %v7327
    %v7376 = vpack.c.b16 %v7330, %v7329
    %v7377 = vpack.c.b16 %v7332, %v7331
    %v7378 = vpack.c.b16 %v7334, %v7333
    %v7379 = vpack.c.b16 %v7336, %v7335
    %v7380 = vpack.c.b16 %v7338, %v7337
    %v7381 = vpack.c.b16 %v7340, %v7339
    %v7382 = vpack.c.b16 %v7342, %v7341
    %v7383 = vpack.c.b16 %v7344, %v7343
    %v7384 = vpack.c.b16 %v7346, %v7345
    %v7385 = vpack.c.b16 %v7348, %v7347
    %v7386 = vpack.c.b16 %v7350, %v7349
    %v7387 = vpack.c.b16 %v7352, %v7351
    %v7388 = vpack.c.b16 %v7354, %v7353
    %v7389 = vpack.c.b16 %v7356, %v7355
    %v7390 = vpack.c.b16 %v7358, %v7357
    %7423 = vmatprep.subr.bf16.mxu0 0
    %7424 = vmatpush1.bf16.msra.mxu0 %v7359
    %7425 = vmatprep.subr.bf16.mxu0 0
    %7426 = vmatpush1.bf16.msra.mxu0 %v7360
    %7427 = vmatprep.subr.bf16.mxu0 0
    %7428 = vmatpush1.bf16.msra.mxu0 %v7361
    %7429 = vmatprep.subr.bf16.mxu0 0
    %7430 = vmatpush1.bf16.msra.mxu0 %v7362
    %7431 = vmatprep.subr.bf16.mxu0 0
    %7432 = vmatpush1.bf16.msra.mxu0 %v7363
    %7433 = vmatprep.subr.bf16.mxu0 0
    %7434 = vmatpush1.bf16.msra.mxu0 %v7364
    %7435 = vmatprep.subr.bf16.mxu0 0
    %7436 = vmatpush1.bf16.msra.mxu0 %v7365
    %7437 = vmatprep.subr.bf16.mxu0 0
    %7438 = vmatpush1.bf16.msra.mxu0 %v7366
    %7439 = vmatprep.subr.bf16.mxu0 0
    %7440 = vmatpush1.bf16.msra.mxu0 %v7367
    %7441 = vmatprep.subr.bf16.mxu0 0
    %7442 = vmatpush1.bf16.msra.mxu0 %v7368
    %7443 = vmatprep.subr.bf16.mxu0 0
    %7444 = vmatpush1.bf16.msra.mxu0 %v7369
    %7445 = vmatprep.subr.bf16.mxu0 0
    %7446 = vmatpush1.bf16.msra.mxu0 %v7370
    %7447 = vmatprep.subr.bf16.mxu0 0
    %7448 = vmatpush1.bf16.msra.mxu0 %v7371
    %7449 = vmatprep.subr.bf16.mxu0 0
    %7450 = vmatpush1.bf16.msra.mxu0 %v7372
    %7451 = vmatprep.subr.bf16.mxu0 0
    %7452 = vmatpush1.bf16.msra.mxu0 %v7373
    %7453 = vmatprep.subr.bf16.mxu0 0
    %7454 = vmatpush1.bf16.msra.mxu0 %v7374
    %7455 = vmatprep.mubr.bf16.mxu0 %v7222
    %7456 = vmatmul.mubr.bf16.gmra.mrb[0].mxu0 %v7221
    %v7457 = vpop.f32.mrb[0].mxu0
    %v7458 = vadd.f32 %v7229, %v7457
    %v7459 = vpop.f32.mrb[0].mxu0
    %v7460 = vpop.f32.mrb[0].mxu0
    %v7461 = vpop.f32.mrb[0].mxu0
    %7462 = vdwg.mxu0
    %7463 = vmatprep.subr.bf16.mxu0 0
    %7464 = vmatpush1.bf16.msra.mxu0 %v7375
    %7465 = vmatprep.subr.bf16.mxu0 0
    %7466 = vmatpush1.bf16.msra.mxu0 %v7376
    %7467 = vmatprep.subr.bf16.mxu0 0
    %7468 = vmatpush1.bf16.msra.mxu0 %v7377
    %7469 = vmatprep.subr.bf16.mxu0 0
    %7470 = vmatpush1.bf16.msra.mxu0 %v7378
    %7471 = vmatprep.subr.bf16.mxu0 0
    %7472 = vmatpush1.bf16.msra.mxu0 %v7379
    %7473 = vmatprep.subr.bf16.mxu0 0
    %7474 = vmatpush1.bf16.msra.mxu0 %v7380
    %7475 = vmatprep.subr.bf16.mxu0 0
    %7476 = vmatpush1.bf16.msra.mxu0 %v7381
    %7477 = vmatprep.subr.bf16.mxu0 0
    %7478 = vmatpush1.bf16.msra.mxu0 %v7382
    %7479 = vmatprep.subr.bf16.mxu0 0
    %7480 = vmatpush1.bf16.msra.mxu0 %v7383
    %7481 = vmatprep.subr.bf16.mxu0 0
    %7482 = vmatpush1.bf16.msra.mxu0 %v7384
    %7483 = vmatprep.subr.bf16.mxu0 0
    %7484 = vmatpush1.bf16.msra.mxu0 %v7385
    %7485 = vmatprep.subr.bf16.mxu0 0
    %7486 = vmatpush1.bf16.msra.mxu0 %v7386
    %7487 = vmatprep.subr.bf16.mxu0 0
    %7488 = vmatpush1.bf16.msra.mxu0 %v7387
    %7489 = vmatprep.subr.bf16.mxu0 0
    %7490 = vmatpush1.bf16.msra.mxu0 %v7388
    %7491 = vmatprep.subr.bf16.mxu0 0
    %7492 = vmatpush1.bf16.msra.mxu0 %v7389
    %7493 = vmatprep.subr.bf16.mxu0 0
    %7494 = vmatpush1.bf16.msra.mxu0 %v7390
    %7495 = vmatprep.mubr.bf16.mxu0 %v7224
    %7496 = vmatmul.mubr.bf16.gmra.mrb[0].mxu0 %v7223
    %v7497 = vpop.f32.mrb[0].mxu0
    %v7498 = vadd.f32 %v7458, %v7497
    %v7499 = vpop.f32.mrb[0].mxu0
    %v7500 = vpop.f32.mrb[0].mxu0
    %v7501 = vpop.f32.mrb[0].mxu0
    %7502 = vdwg.mxu0
    %vm7503 = vcmp.gt.f32.partialorder %v7498, 0.0
    %v7504 = vmul.f32 %v7498, 0.1
    %v7505 = vsel %vm7503, %v7498, %v7504
    %v7506 = vrot.slane %v7505, 4
    %v7507 = vadd.f32 %v7505, %v7506
    %v7508 = vrot.slane %v7507, 2
    %v7509 = vadd.f32 %v7507, %v7508
    %v7510 = vrot.slane %v7509, 1
    %v7511 = vadd.f32 %v7509, %v7510
    %v7512 = vmul.f32 %v7511, %v1899
    %v7513 = vsub.f32 %v7505, %v7512
    %v7514 = vmul.f32 %v7513, %v7513
    %v7515 = vrot.slane %v7514, 4
    %v7516 = vadd.f32 %v7514, %v7515
    %v7517 = vrot.slane %v7516, 2
    %v7518 = vadd.f32 %v7516, %v7517
    %v7519 = vrot.slane %v7518, 1
    %v7520 = vadd.f32 %v7518, %v7519
    %v7521 = vmul.f32 %v7520, %v1899
    %v7522 = vadd.f32 %v7521, 1e-05
    %v7523 = vrsqrt.pop %v7522
    %v7524 = vmul.f32 %v7513, %v7523
    %v7526 = vlaneseq
    %v7527 = vshrl.u32 %v7526, 7
    %v7528 = vsub.s32 0, %v7527
    %v7529 = vrot.slane %v1203, %v7528
    %v7531 = vmul.f32 %v7524, %v7529
    %v7533 = vlaneseq
    %v7534 = vshrl.u32 %v7533, 7
    %v7535 = vsub.s32 0, %v7534
    %v7536 = vrot.slane %v1204, %v7535
    %v7538 = vadd.f32 %v7531, %v7536
    %v7539 = vpack.c.bf16 %v7538, %v7538
    %v7541 = vlaneseq
    %v7542 = vshrl.u32 %v7541, 7
    %v7543 = vsub.s32 0, %v7542
    %v7544 = vrot.slane %v1221, %v7543
    %v7562 = vunpack.c.l.b16 %v1205
    %v7563 = vunpack.c.l.b16 %v1206
    %v7564 = vunpack.c.l.b16 %v1207
    %v7565 = vunpack.c.l.b16 %v1208
    %v7566 = vunpack.c.l.b16 %v1209
    %v7567 = vunpack.c.l.b16 %v1210
    %v7568 = vunpack.c.l.b16 %v1211
    %v7569 = vunpack.c.l.b16 %v1212
    %v7570 = vunpack.c.l.b16 %v1213
    %v7571 = vunpack.c.l.b16 %v1214
    %v7572 = vunpack.c.l.b16 %v1215
    %v7573 = vunpack.c.l.b16 %v1216
    %v7574 = vunpack.c.l.b16 %v1217
    %v7575 = vunpack.c.l.b16 %v1218
    %v7576 = vunpack.c.l.b16 %v1219
    %v7577 = vunpack.c.l.b16 %v1220
    %v7578 = vpack.c.b16 %v7563, %v7562
    %v7579 = vpack.c.b16 %v7565, %v7564
    %v7580 = vpack.c.b16 %v7567, %v7566
    %v7581 = vpack.c.b16 %v7569, %v7568
    %v7582 = vpack.c.b16 %v7571, %v7570
    %v7583 = vpack.c.b16 %v7573, %v7572
    %v7584 = vpack.c.b16 %v7575, %v7574
    %v7585 = vpack.c.b16 %v7577, %v7576
    %7594 = vmatprep.subr.bf16.mxu0 0
    %7595 = vmatpush1.bf16.msra.mxu0 %v7578
    %7596 = vmatprep.subr.bf16.mxu0 0
    %7597 = vmatpush1.bf16.msra.mxu0 %v7579
    %7598 = vmatprep.subr.bf16.mxu0 0
    %7599 = vmatpush1.bf16.msra.mxu0 %v7580
    %7600 = vmatprep.subr.bf16.mxu0 0
    %7601 = vmatpush1.bf16.msra.mxu0 %v7581
    %7602 = vmatprep.subr.bf16.mxu0 0
    %7603 = vmatpush1.bf16.msra.mxu0 %v7582
    %7604 = vmatprep.subr.bf16.mxu0 0
    %7605 = vmatpush1.bf16.msra.mxu0 %v7583
    %7606 = vmatprep.subr.bf16.mxu0 0
    %7607 = vmatpush1.bf16.msra.mxu0 %v7584
    %7608 = vmatprep.subr.bf16.mxu0 0
    %7609 = vmatpush1.bf16.msra.mxu0 %v7585
    %7610 = vmatprep.subr.bf16.mxu0 0
    %7611 = vmatpush1.bf16.msra.mxu0 0
    %7612 = vmatprep.subr.bf16.mxu0 0
    %7613 = vmatpush1.bf16.msra.mxu0 0
    %7614 = vmatprep.subr.bf16.mxu0 0
    %7615 = vmatpush1.bf16.msra.mxu0 0
    %7616 = vmatprep.subr.bf16.mxu0 0
    %7617 = vmatpush1.bf16.msra.mxu0 0
    %7618 = vmatprep.subr.bf16.mxu0 0
    %7619 = vmatpush1.bf16.msra.mxu0 0
    %7620 = vmatprep.subr.bf16.mxu0 0
    %7621 = vmatpush1.bf16.msra.mxu0 0
    %7622 = vmatprep.subr.bf16.mxu0 0
    %7623 = vmatpush1.bf16.msra.mxu0 0
    %7624 = vmatprep.subr.bf16.mxu0 0
    %7625 = vmatpush1.bf16.msra.mxu0 0
    %7626 = vmatprep.mubr.bf16.mxu0 0
    %7627 = vmatmul.mubr.bf16.gmra.mrb[0].mxu0 %v7539
    %v7628 = vpop.f32.mrb[0].mxu0
    %v7629 = vadd.f32 %v7544, %v7628
    %v7630 = vpop.f32.mrb[0].mxu0
    %v7631 = vpop.f32.mrb[0].mxu0
    %v7632 = vpop.f32.mrb[0].mxu0
    %7633 = vdwg.mxu0
    %7634 = vst.msk [vmem:[%s67] sm:$0xff] %vm1553, %v4421
    %7635 = vst.msk [vmem:[#allocation49] sm:$0xff] %vm1553, %v7629
    // Predicated region
    $region254: #{cvae_forward.1} parent=1 // pred_check
      _
    $region255: #{cvae_forward.1} parent=1 // pred_check_branch
      %7637 = sbr.rel (0) target = $region257
    $region256: #{cvae_forward.1} parent=1 // pred_region
      _
    $region257: #{cvae_forward.1} parent=1 // pred_fallthru
      _
    // Predicated region
    $region258: #{cvae_forward.1} parent=1 // pred_check
      _
    $region259: #{cvae_forward.1} parent=1 // pred_check_branch
      %7639 = sbr.rel (0) target = $region261
    $region260: #{cvae_forward.1} parent=1 // pred_region
      %s7641 = ssub.s32 128, 128
      %7642 = vsyncadd [#allocation4], %s7641
      %s7644 = sshll.u32 [#allocation49], 4
      %s7645 = int_to_ptr.vmem [resolvable:$true] %s7644
      %7647 = dma.vmem_to_hbm [thread:$0]  %s7645, 128, %s69, [#allocation4]
    $region261: #{cvae_forward.1} parent=1 // pred_fallthru
      _
    // Predicated region
    $region262: #{cvae_forward.1} parent=1 // pred_check
      _
    $region263: #{cvae_forward.1} parent=1 // pred_check_branch
      %7649 = sbr.rel (0) target = $region265
    $region264: #{cvae_forward.1} parent=1 // pred_region
      _
    $region265: #{cvae_forward.1} parent=1 // pred_fallthru
      _
    // Predicated region
    $region266: #{cvae_forward.1} parent=1 // pred_check
      _
    $region267: #{cvae_forward.1} parent=1 // pred_check_branch
      %7651 = sbr.rel (0) target = $region269
    $region268: #{cvae_forward.1} parent=1 // pred_region
      %7652 = dma.done [#allocation4], 128
    $region269: #{cvae_forward.1} parent=1 // pred_fallthru
      _
    %7653 = vsyncpa [#allocation3], 1
    %7654 = vsyncpa [#allocation6], 1
    %7655 = vsyncpa [#allocation9], 1
    %7656 = vsyncpa [#allocation12], 1
    %7657 = vsyncpa [#allocation15], 1
    %7658 = vsyncpa [#allocation18], 1
    %7659 = vsyncpa [#allocation21], 1
    %7660 = vsyncpa [#allocation24], 1
    %7661 = vsyncpa [#allocation27], 1
    %7662 = vsyncpa [#allocation30], 1
    %7663 = vsyncpa [#allocation33], 1
    %7664 = vsyncpa [#allocation36], 1
    %7665 = vsyncpa [#allocation39], 1
    %7666 = vsyncpa [#allocation42], 1
    %7667 = vsyncpa [#allocation45], 1
    %7668 = vsyncpa [#allocation48], 1
    %7669 = vsyncpa [#allocation4], 1

</llo_original>
